<compile_context>
chip_gen: v6e
topology: v6e:2x2x1
jax: 0.10.0
libtpu: 0.0.40
codegen_flags: <defaults>
</compile_context>

<pallas_src>
import functools

import jax
import jax.numpy as jnp
from jax import lax
from jax.experimental import pallas as pl
from jax.experimental.pallas import tpu as pltpu

START_TAG = "<s>"
END_TAG = "<e>"

HP = 128        # padded per-direction hidden width (lane)
EP = 128        # padded embedding width (lane)
NTP = 128       # padded number-of-tags width (lane)
VP = 128        # padded vocab width (one-hot lane width)
G4 = 4 * HP     # per-direction gate block width (i|f|o|g)
NEG = -1e9      # fill value for padded transition / init scores


# ------------------------- fused Pallas kernel --------------------------------


def _bilstm_crf_kernel(ids_ref, emb_ref, wih_ref, bih_ref, whh_f_ref, whh_b_ref,
                       st0_ref, wtf_ref, wtb_ref, btag_ref,
                       transT_ref, tend_ref, vinit_ref,
                       feats_ref, path_ref, aux_ref,
                       xgf_ref, xgb_ref, hf_ref, hb_ref, bp_ref,
                       *, seq_len, t_pad):
    """Embedding + BiLSTM + hidden2tag + Viterbi decode, all in VMEM.

    ids_ref    : (T_pad, 1)   int32 word ids (padded rows point at a zero emb row)
    emb_ref    : (VP, EP)     padded embedding table
    wih_ref    : (EP, 2*G4)   input->gates for fwd|bwd, gate order i,f,o,g
    bih_ref    : (1, 2*G4)    b_ih + b_hh for fwd|bwd
    whh_*_ref  : (HP, G4)     hidden->gates per direction
    st0_ref    : (8, HP)      rows: h0_f, c0_f, h0_b, c0_b
    wt*_ref    : (HP, NTP)    hidden2tag weight split per direction
    btag_ref   : (1, NTP)     hidden2tag bias
    transT_ref : (NTP, NTP)   transT[prev, next] = transitions[next, prev], NEG pad
    tend_ref   : (1, NTP)     transitions[end_ix, :], NEG pad
    vinit_ref  : (1, NTP)     Viterbi init scores (0 at START, -10000 real, NEG pad)
    feats_ref  : (T_pad, NTP) output tag scores
    path_ref   : (T_pad, NTP) output decoded path (tag id broadcast across lanes)
    aux_ref    : (8, NTP)     row0 = start tag of backtrack, row1 = path score
    xg*_ref    : (T_pad, G4)  scratch: precomputed input projections
    h*_ref     : (T_pad, HP)  scratch: per-timestep hidden states
    bp_ref     : (T_pad, NTP) scratch: Viterbi backpointers (f32 tag indices)
    """
    # ---- embedding lookup as one-hot matmul (single MXU op, no gather) ----
    ids = ids_ref[...]                                            # (T_pad, 1)
    vocab_iota = lax.broadcasted_iota(jnp.int32, (t_pad, VP), 1)
    onehot = (ids == vocab_iota).astype(jnp.float32)              # (T_pad, VP)
    x = jnp.dot(onehot, emb_ref[...], preferred_element_type=jnp.float32)

    # ---- hoisted input projection: both directions, all timesteps at once ----
    xg = (jnp.dot(x, wih_ref[...], preferred_element_type=jnp.float32)
          + bih_ref[...])                                         # (T_pad, 2*G4)
    xgf_ref[...] = xg[:, :G4]
    xgb_ref[...] = xg[:, G4:]

    if t_pad > seq_len:
        # Padded tail rows feed the hidden2tag matmul / stay unwritten by the
        # backtrack -> zero them explicitly.
        hf_ref[...] = jnp.zeros((t_pad, HP), jnp.float32)
        hb_ref[...] = jnp.zeros((t_pad, HP), jnp.float32)
        path_ref[...] = jnp.zeros((t_pad, NTP), jnp.int32)

    h0f = st0_ref[0:1, :]
    c0f = st0_ref[1:2, :]
    h0b = st0_ref[2:3, :]
    c0b = st0_ref[3:4, :]

    def gates_to_hc(gates, c):
        sfo = jax.nn.sigmoid(gates[:, :3 * HP])   # one wide sigmoid over i|f|o
        g = jnp.tanh(gates[:, 3 * HP:])
        i = sfo[:, 0 * HP:1 * HP]
        f = sfo[:, 1 * HP:2 * HP]
        o = sfo[:, 2 * HP:3 * HP]
        c_new = f * c + i * g
        h_new = o * jnp.tanh(c_new)
        return h_new, c_new

    def lstm_step(t, carry):
        h_f, c_f, h_b, c_b = carry
        tb = seq_len - 1 - t
        gates_f = xgf_ref[pl.ds(t, 1), :] + jnp.dot(
            h_f, whh_f_ref[...], preferred_element_type=jnp.float32)
        gates_b = xgb_ref[pl.ds(tb, 1), :] + jnp.dot(
            h_b, whh_b_ref[...], preferred_element_type=jnp.float32)
        h_f, c_f = gates_to_hc(gates_f, c_f)
        h_b, c_b = gates_to_hc(gates_b, c_b)
        hf_ref[pl.ds(t, 1), :] = h_f
        hb_ref[pl.ds(tb, 1), :] = h_b          # store at original time index
        return (h_f, c_f, h_b, c_b)

    # seq_len is static -> fully unrolled; the two directions' independent MXU
    # chains hide each other's latency.
    lax.fori_loop(0, seq_len, lstm_step, (h0f, c0f, h0b, c0b), unroll=True)

    # ---- fused hidden2tag: feats[t] = h_f[t]@Wf + h_b[t]@Wb + b ----
    feats_ref[...] = (
        jnp.dot(hf_ref[...], wtf_ref[...], preferred_element_type=jnp.float32)
        + jnp.dot(hb_ref[...], wtb_ref[...], preferred_element_type=jnp.float32)
        + btag_ref[...])

    # ---- Viterbi DP (vector ops only; padded tags carry NEG and never win) ----
    transT = transT_ref[...]                                      # (NTP, NTP)
    diag = (lax.broadcasted_iota(jnp.int32, (NTP, NTP), 0)
            == lax.broadcasted_iota(jnp.int32, (NTP, NTP), 1))
    prev_iota = lax.broadcasted_iota(jnp.int32, (NTP, NTP), 0).astype(jnp.float32)
    lane_iota = lax.broadcasted_iota(jnp.int32, (1, NTP), 1).astype(jnp.float32)
    big = jnp.float32(NTP)

    def dp_step(t, fv_row):
        # lane->sublane move of fv without a transpose: fv_col[i,0] = fv_row[0,i]
        fv_col = jnp.sum(jnp.where(diag, fv_row, 0.0), axis=1, keepdims=True)
        m = transT + fv_col                     # m[prev, next] = fv[prev] + T[next, prev]
        best = jnp.max(m, axis=0, keepdims=True)                  # (1, NTP) over next
        bp = jnp.min(jnp.where(m >= best, prev_iota, big),
                     axis=0, keepdims=True)     # first-occurrence argmax over prev
        bp_ref[pl.ds(t, 1), :] = bp
        return best + feats_ref[pl.ds(t, 1), :]

    fv_row = lax.fori_loop(0, seq_len, dp_step, vinit_ref[...], unroll=True)

    terminal = fv_row + tend_ref[...]                             # (1, NTP)
    tmax = jnp.max(terminal, axis=1, keepdims=True)               # (1, 1)
    best_last = jnp.min(jnp.where(terminal >= tmax, lane_iota, big),
                        axis=1, keepdims=True)                    # (1, 1)

    # ---- backtrack: one-hot select of bptrs row, path stored lane-dense ----
    def bt_step(i, cur):
        t = seq_len - 1 - i
        path_ref[pl.ds(t, 1), :] = jnp.broadcast_to(cur, (1, NTP)).astype(jnp.int32)
        bp_row = bp_ref[pl.ds(t, 1), :]
        return jnp.sum(jnp.where(lane_iota == cur, bp_row, 0.0),
                       axis=1, keepdims=True)

    start = lax.fori_loop(0, seq_len, bt_step, best_last, unroll=True)

    aux_ref[...] = jnp.zeros((8, NTP), jnp.float32)
    aux_ref[0:1, :] = jnp.broadcast_to(start, (1, NTP))
    aux_ref[1:2, :] = jnp.broadcast_to(tmax, (1, NTP))


def fused_forward(ids_pad, p, seq_len):
    t_pad = ids_pad.shape[0]
    kernel = functools.partial(_bilstm_crf_kernel, seq_len=seq_len, t_pad=t_pad)
    vmem = pl.BlockSpec(memory_space=pltpu.MemorySpace.VMEM)
    return pl.pallas_call(
        kernel,
        out_shape=(jax.ShapeDtypeStruct((t_pad, NTP), jnp.float32),   # feats
                   jax.ShapeDtypeStruct((t_pad, NTP), jnp.int32),     # path
                   jax.ShapeDtypeStruct((8, NTP), jnp.float32)),      # aux
        in_specs=[vmem] * 13,
        out_specs=(vmem, vmem, vmem),
        scratch_shapes=[
            pltpu.VMEM((t_pad, G4), jnp.float32),   # xg forward
            pltpu.VMEM((t_pad, G4), jnp.float32),   # xg backward
            pltpu.VMEM((t_pad, HP), jnp.float32),   # h history forward
            pltpu.VMEM((t_pad, HP), jnp.float32),   # h history backward
            pltpu.VMEM((t_pad, NTP), jnp.float32),  # Viterbi backpointers
        ],
    )(ids_pad, p["emb"], p["wih"], p["bih"], p["whh_f"], p["whh_b"],
      p["st0"], p["wtf"], p["wtb"], p["btag"],
      p["transT"], p["tend"], p["vinit"])


# ------------------------- parameter setup (glue) -----------------------------


def init_params(key, vocab_size, embedding_dim, hidden_dim, n_tags, tag2ix):
    h = hidden_dim // 2
    ks = jax.random.split(key, 14)

    def rnd(k, shape, scale=0.1):
        return scale * jax.random.normal(k, shape, dtype=jnp.float32)

    params = dict(
        embedding=rnd(ks[0], (vocab_size, embedding_dim)),
        w_ih_f=rnd(ks[1], (4 * h, embedding_dim)),
        w_hh_f=rnd(ks[2], (4 * h, h)),
        b_ih_f=rnd(ks[3], (4 * h,)),
        b_hh_f=rnd(ks[4], (4 * h,)),
        w_ih_b=rnd(ks[5], (4 * h, embedding_dim)),
        w_hh_b=rnd(ks[6], (4 * h, h)),
        b_ih_b=rnd(ks[7], (4 * h,)),
        b_hh_b=rnd(ks[8], (4 * h,)),
        w_tag=rnd(ks[9], (n_tags, hidden_dim)),
        b_tag=rnd(ks[10], (n_tags,)),
    )
    # Deterministic synthetic transitions. Off-diagonal values are kept negative
    # so the untrained Viterbi backtrack terminates at START_TAG (same structural
    # constraints as the reference: no transition into START, none out of END).
    trans = -jnp.abs(jax.random.normal(ks[11], (n_tags, n_tags),
                                       dtype=jnp.float32)) * 0.1
    trans = trans.at[:, tag2ix[START_TAG]].set(-10000.0)
    trans = trans.at[tag2ix[END_TAG], :].set(-10000.0)
    params["transitions"] = trans
    # Reference uses torch.randn initial (h0, c0) per call; we use a fixed
    # deterministic draw instead.
    params["h0"] = jax.random.normal(ks[12], (2, h), dtype=jnp.float32)
    params["c0"] = jax.random.normal(ks[13], (2, h), dtype=jnp.float32)
    return params


# torch gate order within weight_ih/weight_hh is [i, f, g, o]; we repack to
# [i, f, o, g] so one sigmoid covers a contiguous 3*HP lane block.
_GATE_SLOT = {0: 0, 1: 1, 2: 3, 3: 2}


def pack_params(params, embedding_dim, hidden_dim, n_tags, tag2ix):
    """One-time repack of torch-layout weights into the padded kernel layout."""
    h = hidden_dim // 2
    vocab_size = params["embedding"].shape[0]
    assert vocab_size < VP, "vocab must leave at least one zero row for padding"

    wih = jnp.zeros((EP, 2 * G4), jnp.float32)
    bih = jnp.zeros((1, 2 * G4), jnp.float32)
    whh_f = jnp.zeros((HP, G4), jnp.float32)
    whh_b = jnp.zeros((HP, G4), jnp.float32)

    per_dir = [
        (params["w_ih_f"], params["w_hh_f"], params["b_ih_f"], params["b_hh_f"]),
        (params["w_ih_b"], params["w_hh_b"], params["b_ih_b"], params["b_hh_b"]),
    ]
    for d, (w_ih, w_hh, b_i, b_h) in enumerate(per_dir):
        for gt in range(4):                     # torch gate index
            s = _GATE_SLOT[gt]                  # packed gate slot
            lo = d * G4 + s * HP
            wih = wih.at[:embedding_dim, lo:lo + h].set(
                w_ih[gt * h:(gt + 1) * h, :].T)
            bih = bih.at[0, lo:lo + h].set(
                b_i[gt * h:(gt + 1) * h] + b_h[gt * h:(gt + 1) * h])
            wgh = w_hh[gt * h:(gt + 1) * h, :].T
            if d == 0:
                whh_f = whh_f.at[:h, s * HP:s * HP + h].set(wgh)
            else:
                whh_b = whh_b.at[:h, s * HP:s * HP + h].set(wgh)

    st0 = jnp.zeros((8, HP), jnp.float32)
    st0 = st0.at[0, :h].set(params["h0"][0])
    st0 = st0.at[1, :h].set(params["c0"][0])
    st0 = st0.at[2, :h].set(params["h0"][1])
    st0 = st0.at[3, :h].set(params["c0"][1])

    # hidden2tag split per direction: feats = h_f @ W[:, :h].T + h_b @ W[:, h:].T + b
    wtf = jnp.zeros((HP, NTP), jnp.float32).at[:h, :n_tags].set(
        params["w_tag"][:, :h].T)
    wtb = jnp.zeros((HP, NTP), jnp.float32).at[:h, :n_tags].set(
        params["w_tag"][:, h:].T)
    btag = jnp.zeros((1, NTP), jnp.float32).at[0, :n_tags].set(params["b_tag"])

    emb_pad = jnp.zeros((VP, EP), jnp.float32).at[:vocab_size,
                                                  :embedding_dim].set(
        params["embedding"])

    trans = params["transitions"]
    start_ix, end_ix = tag2ix[START_TAG], tag2ix[END_TAG]
    # Viterbi decode (matching the reference) uses transitions[next_tag][prev];
    # transT[prev, next] = transitions[next, prev], padded with NEG so padded
    # prev rows / next cols never win a max.
    transT = jnp.full((NTP, NTP), NEG, jnp.float32).at[:n_tags, :n_tags].set(
        trans.T)
    tend = jnp.full((1, NTP), NEG, jnp.float32).at[0, :n_tags].set(
        trans[end_ix, :])
    vinit = (jnp.full((1, NTP), NEG, jnp.float32)
             .at[0, :n_tags].set(-10000.0)
             .at[0, start_ix].set(0.0))

    return dict(emb=emb_pad, wih=wih, bih=bih, whh_f=whh_f, whh_b=whh_b,
                st0=st0, wtf=wtf, wtb=wtb, btag=btag,
                transT=transT, tend=tend, vinit=vinit)


# ------------------------- forward (device side, jitted) ----------------------


@functools.partial(jax.jit, static_argnames=("n_tags",))
def _forward_device(packed, word_ids, *, n_tags):
    seq_len = word_ids.shape[0]
    t_pad = max(8, ((seq_len + 7) // 8) * 8)
    # Padded rows select embedding row VP-1, which is all-zero.
    ids_pad = jnp.full((t_pad, 1), VP - 1, jnp.int32).at[:seq_len, 0].set(
        word_ids.astype(jnp.int32))

    feats_pad, path_pad, aux = fused_forward(ids_pad, packed, seq_len)

    feats = feats_pad[:seq_len, :n_tags]
    path = path_pad[:seq_len, 0]
    start = aux[0, 0].astype(jnp.int32)
    return feats, path, start


def bilstm_crf_forward(packed, word_ids, n_tags, tag2ix):
    feats, path, start = _forward_device(packed, word_ids, n_tags=n_tags)
    # Single host transfer of the integer path for string conversion.
    path_np, start_np = jax.device_get((path, start))
    assert int(start_np) == tag2ix[START_TAG]
    id2char = {0: "B", 1: "I", 2: "E", 3: "S"}
    tag_string = "".join(id2char.get(int(i), "N") for i in path_np)
    return feats, tag_string


# ------------------------- main ------------------------------------------------


if __name__ == "__main__":
    word2ix = {"U": 0, "a": 1, "b": 2, "c": 3, "d": 4, "e": 5}
    tag2ix = {"B": 0, "I": 1, "E": 2, "S": 3, START_TAG: 4, END_TAG: 5}
    embedding_dim, hidden_dim = 16, 32
    vocab_size = len(word2ix) + 1
    n_tags = len(tag2ix)

    key = jax.random.PRNGKey(0)
    params = init_params(key, vocab_size, embedding_dim, hidden_dim, n_tags,
                         tag2ix)
    packed = pack_params(params, embedding_dim, hidden_dim, n_tags, tag2ix)

    words = ["a", "b", "c", "zzz", "d", "e", "a", "b"]   # 'zzz' -> unknown -> 'U'
    word_ids = jnp.array(
        [word2ix[w] if w in word2ix else word2ix["U"] for w in words],
        dtype=jnp.int32)

    feats, tag_string = bilstm_crf_forward(packed, word_ids, n_tags, tag2ix)
    feats = jax.block_until_ready(feats)

    assert feats.shape == (len(words), n_tags)
    assert len(tag_string) == len(words)
    # TODO(synk): v7x dual-TensorCore split of the two LSTM directions and
    # sublane batching of multiple sequences are left out (single-sequence
    # latency path); training-time CRF forward algorithm not implemented.
    print("KERNEL_OK")
</pallas_src>

<mosaic_0001>
module attributes {stable_mosaic.version = 11 : i64} {
  func.func @_bilstm_crf_kernel(%arg0: memref<8x1xi32, #tpu.memory_space<vmem>>, %arg1: memref<128x128xf32, #tpu.memory_space<vmem>>, %arg2: memref<128x1024xf32, #tpu.memory_space<vmem>>, %arg3: memref<1x1024xf32, #tpu.memory_space<vmem>>, %arg4: memref<128x512xf32, #tpu.memory_space<vmem>>, %arg5: memref<128x512xf32, #tpu.memory_space<vmem>>, %arg6: memref<8x128xf32, #tpu.memory_space<vmem>>, %arg7: memref<128x128xf32, #tpu.memory_space<vmem>>, %arg8: memref<128x128xf32, #tpu.memory_space<vmem>>, %arg9: memref<1x128xf32, #tpu.memory_space<vmem>>, %arg10: memref<128x128xf32, #tpu.memory_space<vmem>>, %arg11: memref<1x128xf32, #tpu.memory_space<vmem>>, %arg12: memref<1x128xf32, #tpu.memory_space<vmem>>, %arg13: memref<8x128xf32, #tpu.memory_space<vmem>>, %arg14: memref<8x128xi32, #tpu.memory_space<vmem>>, %arg15: memref<8x128xf32, #tpu.memory_space<vmem>>, %arg16: memref<8x512xf32, #tpu.memory_space<vmem>>, %arg17: memref<8x512xf32, #tpu.memory_space<vmem>>, %arg18: memref<8x128xf32, #tpu.memory_space<vmem>>, %arg19: memref<8x128xf32, #tpu.memory_space<vmem>>, %arg20: memref<8x128xf32, #tpu.memory_space<vmem>>) attributes {dimension_semantics = [], scalar_prefetch = 0 : i64, scratch_operands = 5 : i64, tpu.core_type = #tpu.core_type<tc>} {
    %c0 = arith.constant 0 : index
    %c0_0 = arith.constant 0 : index
    %0 = vector.load %arg0[%c0, %c0_0] : memref<8x1xi32, #tpu.memory_space<vmem>>, vector<8x1xi32>
    %1 = tpu.iota {dimensions = array<i32: 1>} : vector<8x128xi32>
    %2 = vector.broadcast %0 : vector<8x1xi32> to vector<8x128xi32>
    %3 = arith.cmpi eq, %2, %1 : vector<8x128xi32>
    %4 = arith.extui %3 : vector<8x128xi1> to vector<8x128xi32>
    %5 = arith.sitofp %4 : vector<8x128xi32> to vector<8x128xf32>
    %c0_1 = arith.constant 0 : index
    %c0_2 = arith.constant 0 : index
    %6 = vector.load %arg1[%c0_1, %c0_2] : memref<128x128xf32, #tpu.memory_space<vmem>>, vector<128x128xf32>
    %cst = arith.constant dense<0.000000e+00> : vector<8x128xf32>
    %7 = tpu.matmul %5, %6, %cst {dimension_numbers = #tpu.dot_dimension_numbers<[1], [0], [0], [1], [0, 0, 1, 1], [], []>} : vector<8x128xf32>, vector<128x128xf32>, vector<8x128xf32> -> vector<8x128xf32>
    %c0_3 = arith.constant 0 : index
    %c0_4 = arith.constant 0 : index
    %8 = vector.load %arg2[%c0_3, %c0_4] : memref<128x1024xf32, #tpu.memory_space<vmem>>, vector<128x1024xf32>
    %cst_5 = arith.constant dense<0.000000e+00> : vector<8x1024xf32>
    %9 = tpu.matmul %7, %8, %cst_5 {dimension_numbers = #tpu.dot_dimension_numbers<[1], [0], [0], [1], [0, 0, 1, 1], [], []>} : vector<8x128xf32>, vector<128x1024xf32>, vector<8x1024xf32> -> vector<8x1024xf32>
    %c0_6 = arith.constant 0 : index
    %c0_7 = arith.constant 0 : index
    %10 = vector.load %arg3[%c0_6, %c0_7] : memref<1x1024xf32, #tpu.memory_space<vmem>>, vector<1x1024xf32>
    %11 = vector.broadcast %10 : vector<1x1024xf32> to vector<8x1024xf32>
    %12 = arith.addf %9, %11 : vector<8x1024xf32>
    %13 = vector.extract_strided_slice %12 {offsets = [0, 0], sizes = [8, 512], strides = [1, 1]} : vector<8x1024xf32> to vector<8x512xf32>
    %c0_8 = arith.constant 0 : index
    %c0_9 = arith.constant 0 : index
    %14 = vector.load %arg16[%c0_8, %c0_9] : memref<8x512xf32, #tpu.memory_space<vmem>>, vector<8x512xf32>
    tpu.vector_store %arg16[%c0_8, %c0_9], %13 {strides = array<i32>} : memref<8x512xf32, #tpu.memory_space<vmem>>, vector<8x512xf32>,
    %15 = vector.extract_strided_slice %12 {offsets = [0, 512], sizes = [8, 512], strides = [1, 1]} : vector<8x1024xf32> to vector<8x512xf32>
    %c0_10 = arith.constant 0 : index
    %c0_11 = arith.constant 0 : index
    %16 = vector.load %arg17[%c0_10, %c0_11] : memref<8x512xf32, #tpu.memory_space<vmem>>, vector<8x512xf32>
    tpu.vector_store %arg17[%c0_10, %c0_11], %15 {strides = array<i32>} : memref<8x512xf32, #tpu.memory_space<vmem>>, vector<8x512xf32>,
    %c0_12 = arith.constant 0 : index
    %c0_13 = arith.constant 0 : index
    %17 = vector.load %arg6[%c0_12, %c0_13] : memref<8x128xf32, #tpu.memory_space<vmem>>, vector<1x128xf32>
    %c1 = arith.constant 1 : index
    %c0_14 = arith.constant 0 : index
    %18 = vector.load %arg6[%c1, %c0_14] : memref<8x128xf32, #tpu.memory_space<vmem>>, vector<1x128xf32>
    %c2 = arith.constant 2 : index
    %c0_15 = arith.constant 0 : index
    %19 = vector.load %arg6[%c2, %c0_15] : memref<8x128xf32, #tpu.memory_space<vmem>>, vector<1x128xf32>
    %c3 = arith.constant 3 : index
    %c0_16 = arith.constant 0 : index
    %20 = vector.load %arg6[%c3, %c0_16] : memref<8x128xf32, #tpu.memory_space<vmem>>, vector<1x128xf32>
    %c0_i32 = arith.constant 0 : i32
    %c7_i32 = arith.constant 7 : i32
    %21 = arith.subi %c7_i32, %c0_i32 : i32
    %22 = arith.index_cast %c0_i32 : i32 to index
    %c0_17 = arith.constant 0 : index
    %23 = vector.load %arg16[%22, %c0_17] : memref<8x512xf32, #tpu.memory_space<vmem>>, vector<1x512xf32>
    %c0_18 = arith.constant 0 : index
    %c0_19 = arith.constant 0 : index
    %24 = vector.load %arg4[%c0_18, %c0_19] : memref<128x512xf32, #tpu.memory_space<vmem>>, vector<128x512xf32>
    %cst_20 = arith.constant dense<0.000000e+00> : vector<1x512xf32>
    %25 = tpu.matmul %17, %24, %cst_20 {dimension_numbers = #tpu.dot_dimension_numbers<[1], [0], [0], [1], [0, 0, 1, 1], [], []>} : vector<1x128xf32>, vector<128x512xf32>, vector<1x512xf32> -> vector<1x512xf32>
    %26 = arith.addf %23, %25 : vector<1x512xf32>
    %27 = arith.index_cast %21 : i32 to index
    %c0_21 = arith.constant 0 : index
    %28 = vector.load %arg17[%27, %c0_21] : memref<8x512xf32, #tpu.memory_space<vmem>>, vector<1x512xf32>
    %c0_22 = arith.constant 0 : index
    %c0_23 = arith.constant 0 : index
    %29 = vector.load %arg5[%c0_22, %c0_23] : memref<128x512xf32, #tpu.memory_space<vmem>>, vector<128x512xf32>
    %cst_24 = arith.constant dense<0.000000e+00> : vector<1x512xf32>
    %30 = tpu.matmul %19, %29, %cst_24 {dimension_numbers = #tpu.dot_dimension_numbers<[1], [0], [0], [1], [0, 0, 1, 1], [], []>} : vector<1x128xf32>, vector<128x512xf32>, vector<1x512xf32> -> vector<1x512xf32>
    %31 = arith.addf %28, %30 : vector<1x512xf32>
    %32 = vector.extract_strided_slice %26 {offsets = [0, 0], sizes = [1, 384], strides = [1, 1]} : vector<1x512xf32> to vector<1x384xf32>
    %33 = arith.negf %32 : vector<1x384xf32>
    %34 = math.exp %33 : vector<1x384xf32>
    %cst_25 = arith.constant 1.000000e+00 : f32
    %35 = vector.broadcast %cst_25 : f32 to vector<1x384xf32>
    %36 = arith.addf %35, %34 : vector<1x384xf32>
    %37 = arith.divf %35, %36 : vector<1x384xf32>
    %38 = vector.extract_strided_slice %26 {offsets = [0, 384], sizes = [1, 128], strides = [1, 1]} : vector<1x512xf32> to vector<1x128xf32>
    %39 = math.tanh %38 : vector<1x128xf32>
    %40 = vector.extract_strided_slice %37 {offsets = [0, 0], sizes = [1, 128], strides = [1, 1]} : vector<1x384xf32> to vector<1x128xf32>
    %41 = vector.extract_strided_slice %37 {offsets = [0, 128], sizes = [1, 128], strides = [1, 1]} : vector<1x384xf32> to vector<1x128xf32>
    %42 = vector.extract_strided_slice %37 {offsets = [0, 256], sizes = [1, 128], strides = [1, 1]} : vector<1x384xf32> to vector<1x128xf32>
    %43 = arith.mulf %41, %18 : vector<1x128xf32>
    %44 = arith.mulf %40, %39 : vector<1x128xf32>
    %45 = arith.addf %43, %44 : vector<1x128xf32>
    %46 = math.tanh %45 : vector<1x128xf32>
    %47 = arith.mulf %42, %46 : vector<1x128xf32>
    %48 = vector.extract_strided_slice %31 {offsets = [0, 0], sizes = [1, 384], strides = [1, 1]} : vector<1x512xf32> to vector<1x384xf32>
    %49 = arith.negf %48 : vector<1x384xf32>
    %50 = math.exp %49 : vector<1x384xf32>
    %cst_26 = arith.constant 1.000000e+00 : f32
    %51 = vector.broadcast %cst_26 : f32 to vector<1x384xf32>
    %52 = arith.addf %51, %50 : vector<1x384xf32>
    %53 = arith.divf %51, %52 : vector<1x384xf32>
    %54 = vector.extract_strided_slice %31 {offsets = [0, 384], sizes = [1, 128], strides = [1, 1]} : vector<1x512xf32> to vector<1x128xf32>
    %55 = math.tanh %54 : vector<1x128xf32>
    %56 = vector.extract_strided_slice %53 {offsets = [0, 0], sizes = [1, 128], strides = [1, 1]} : vector<1x384xf32> to vector<1x128xf32>
    %57 = vector.extract_strided_slice %53 {offsets = [0, 128], sizes = [1, 128], strides = [1, 1]} : vector<1x384xf32> to vector<1x128xf32>
    %58 = vector.extract_strided_slice %53 {offsets = [0, 256], sizes = [1, 128], strides = [1, 1]} : vector<1x384xf32> to vector<1x128xf32>
    %59 = arith.mulf %57, %20 : vector<1x128xf32>
    %60 = arith.mulf %56, %55 : vector<1x128xf32>
    %61 = arith.addf %59, %60 : vector<1x128xf32>
    %62 = math.tanh %61 : vector<1x128xf32>
    %63 = arith.mulf %58, %62 : vector<1x128xf32>
    %64 = arith.index_cast %c0_i32 : i32 to index
    %c0_27 = arith.constant 0 : index
    %65 = vector.load %arg18[%64, %c0_27] : memref<8x128xf32, #tpu.memory_space<vmem>>, vector<1x128xf32>
    tpu.vector_store %arg18[%64, %c0_27], %47 {strides = array<i32>} : memref<8x128xf32, #tpu.memory_space<vmem>>, vector<1x128xf32>,
    %66 = arith.index_cast %21 : i32 to index
    %c0_28 = arith.constant 0 : index
    %67 = vector.load %arg19[%66, %c0_28] : memref<8x128xf32, #tpu.memory_space<vmem>>, vector<1x128xf32>
    tpu.vector_store %arg19[%66, %c0_28], %63 {strides = array<i32>} : memref<8x128xf32, #tpu.memory_space<vmem>>, vector<1x128xf32>,
    %c1_i32 = arith.constant 1 : i32
    %c7_i32_29 = arith.constant 7 : i32
    %68 = arith.subi %c7_i32_29, %c1_i32 : i32
    %69 = arith.index_cast %c1_i32 : i32 to index
    %c0_30 = arith.constant 0 : index
    %70 = vector.load %arg16[%69, %c0_30] : memref<8x512xf32, #tpu.memory_space<vmem>>, vector<1x512xf32>
    %c0_31 = arith.constant 0 : index
    %c0_32 = arith.constant 0 : index
    %71 = vector.load %arg4[%c0_31, %c0_32] : memref<128x512xf32, #tpu.memory_space<vmem>>, vector<128x512xf32>
    %cst_33 = arith.constant dense<0.000000e+00> : vector<1x512xf32>
    %72 = tpu.matmul %47, %71, %cst_33 {dimension_numbers = #tpu.dot_dimension_numbers<[1], [0], [0], [1], [0, 0, 1, 1], [], []>} : vector<1x128xf32>, vector<128x512xf32>, vector<1x512xf32> -> vector<1x512xf32>
    %73 = arith.addf %70, %72 : vector<1x512xf32>
    %74 = arith.index_cast %68 : i32 to index
    %c0_34 = arith.constant 0 : index
    %75 = vector.load %arg17[%74, %c0_34] : memref<8x512xf32, #tpu.memory_space<vmem>>, vector<1x512xf32>
    %c0_35 = arith.constant 0 : index
    %c0_36 = arith.constant 0 : index
    %76 = vector.load %arg5[%c0_35, %c0_36] : memref<128x512xf32, #tpu.memory_space<vmem>>, vector<128x512xf32>
    %cst_37 = arith.constant dense<0.000000e+00> : vector<1x512xf32>
    %77 = tpu.matmul %63, %76, %cst_37 {dimension_numbers = #tpu.dot_dimension_numbers<[1], [0], [0], [1], [0, 0, 1, 1], [], []>} : vector<1x128xf32>, vector<128x512xf32>, vector<1x512xf32> -> vector<1x512xf32>
    %78 = arith.addf %75, %77 : vector<1x512xf32>
    %79 = vector.extract_strided_slice %73 {offsets = [0, 0], sizes = [1, 384], strides = [1, 1]} : vector<1x512xf32> to vector<1x384xf32>
    %80 = arith.negf %79 : vector<1x384xf32>
    %81 = math.exp %80 : vector<1x384xf32>
    %cst_38 = arith.constant 1.000000e+00 : f32
    %82 = vector.broadcast %cst_38 : f32 to vector<1x384xf32>
    %83 = arith.addf %82, %81 : vector<1x384xf32>
    %84 = arith.divf %82, %83 : vector<1x384xf32>
    %85 = vector.extract_strided_slice %73 {offsets = [0, 384], sizes = [1, 128], strides = [1, 1]} : vector<1x512xf32> to vector<1x128xf32>
    %86 = math.tanh %85 : vector<1x128xf32>
    %87 = vector.extract_strided_slice %84 {offsets = [0, 0], sizes = [1, 128], strides = [1, 1]} : vector<1x384xf32> to vector<1x128xf32>
    %88 = vector.extract_strided_slice %84 {offsets = [0, 128], sizes = [1, 128], strides = [1, 1]} : vector<1x384xf32> to vector<1x128xf32>
    %89 = vector.extract_strided_slice %84 {offsets = [0, 256], sizes = [1, 128], strides = [1, 1]} : vector<1x384xf32> to vector<1x128xf32>
    %90 = arith.mulf %88, %45 : vector<1x128xf32>
    %91 = arith.mulf %87, %86 : vector<1x128xf32>
    %92 = arith.addf %90, %91 : vector<1x128xf32>
    %93 = math.tanh %92 : vector<1x128xf32>
    %94 = arith.mulf %89, %93 : vector<1x128xf32>
    %95 = vector.extract_strided_slice %78 {offsets = [0, 0], sizes = [1, 384], strides = [1, 1]} : vector<1x512xf32> to vector<1x384xf32>
    %96 = arith.negf %95 : vector<1x384xf32>
    %97 = math.exp %96 : vector<1x384xf32>
    %cst_39 = arith.constant 1.000000e+00 : f32
    %98 = vector.broadcast %cst_39 : f32 to vector<1x384xf32>
    %99 = arith.addf %98, %97 : vector<1x384xf32>
    %100 = arith.divf %98, %99 : vector<1x384xf32>
    %101 = vector.extract_strided_slice %78 {offsets = [0, 384], sizes = [1, 128], strides = [1, 1]} : vector<1x512xf32> to vector<1x128xf32>
    %102 = math.tanh %101 : vector<1x128xf32>
    %103 = vector.extract_strided_slice %100 {offsets = [0, 0], sizes = [1, 128], strides = [1, 1]} : vector<1x384xf32> to vector<1x128xf32>
    %104 = vector.extract_strided_slice %100 {offsets = [0, 128], sizes = [1, 128], strides = [1, 1]} : vector<1x384xf32> to vector<1x128xf32>
    %105 = vector.extract_strided_slice %100 {offsets = [0, 256], sizes = [1, 128], strides = [1, 1]} : vector<1x384xf32> to vector<1x128xf32>
    %106 = arith.mulf %104, %61 : vector<1x128xf32>
    %107 = arith.mulf %103, %102 : vector<1x128xf32>
    %108 = arith.addf %106, %107 : vector<1x128xf32>
    %109 = math.tanh %108 : vector<1x128xf32>
    %110 = arith.mulf %105, %109 : vector<1x128xf32>
    %111 = arith.index_cast %c1_i32 : i32 to index
    %c0_40 = arith.constant 0 : index
    %112 = vector.load %arg18[%111, %c0_40] : memref<8x128xf32, #tpu.memory_space<vmem>>, vector<1x128xf32>
    tpu.vector_store %arg18[%111, %c0_40], %94 {strides = array<i32>} : memref<8x128xf32, #tpu.memory_space<vmem>>, vector<1x128xf32>,
    %113 = arith.index_cast %68 : i32 to index
    %c0_41 = arith.constant 0 : index
    %114 = vector.load %arg19[%113, %c0_41] : memref<8x128xf32, #tpu.memory_space<vmem>>, vector<1x128xf32>
    tpu.vector_store %arg19[%113, %c0_41], %110 {strides = array<i32>} : memref<8x128xf32, #tpu.memory_space<vmem>>, vector<1x128xf32>,
    %c2_i32 = arith.constant 2 : i32
    %c7_i32_42 = arith.constant 7 : i32
    %115 = arith.subi %c7_i32_42, %c2_i32 : i32
    %116 = arith.index_cast %c2_i32 : i32 to index
    %c0_43 = arith.constant 0 : index
    %117 = vector.load %arg16[%116, %c0_43] : memref<8x512xf32, #tpu.memory_space<vmem>>, vector<1x512xf32>
    %c0_44 = arith.constant 0 : index
    %c0_45 = arith.constant 0 : index
    %118 = vector.load %arg4[%c0_44, %c0_45] : memref<128x512xf32, #tpu.memory_space<vmem>>, vector<128x512xf32>
    %cst_46 = arith.constant dense<0.000000e+00> : vector<1x512xf32>
    %119 = tpu.matmul %94, %118, %cst_46 {dimension_numbers = #tpu.dot_dimension_numbers<[1], [0], [0], [1], [0, 0, 1, 1], [], []>} : vector<1x128xf32>, vector<128x512xf32>, vector<1x512xf32> -> vector<1x512xf32>
    %120 = arith.addf %117, %119 : vector<1x512xf32>
    %121 = arith.index_cast %115 : i32 to index
    %c0_47 = arith.constant 0 : index
    %122 = vector.load %arg17[%121, %c0_47] : memref<8x512xf32, #tpu.memory_space<vmem>>, vector<1x512xf32>
    %c0_48 = arith.constant 0 : index
    %c0_49 = arith.constant 0 : index
    %123 = vector.load %arg5[%c0_48, %c0_49] : memref<128x512xf32, #tpu.memory_space<vmem>>, vector<128x512xf32>
    %cst_50 = arith.constant dense<0.000000e+00> : vector<1x512xf32>
    %124 = tpu.matmul %110, %123, %cst_50 {dimension_numbers = #tpu.dot_dimension_numbers<[1], [0], [0], [1], [0, 0, 1, 1], [], []>} : vector<1x128xf32>, vector<128x512xf32>, vector<1x512xf32> -> vector<1x512xf32>
    %125 = arith.addf %122, %124 : vector<1x512xf32>
    %126 = vector.extract_strided_slice %120 {offsets = [0, 0], sizes = [1, 384], strides = [1, 1]} : vector<1x512xf32> to vector<1x384xf32>
    %127 = arith.negf %126 : vector<1x384xf32>
    %128 = math.exp %127 : vector<1x384xf32>
    %cst_51 = arith.constant 1.000000e+00 : f32
    %129 = vector.broadcast %cst_51 : f32 to vector<1x384xf32>
    %130 = arith.addf %129, %128 : vector<1x384xf32>
    %131 = arith.divf %129, %130 : vector<1x384xf32>
    %132 = vector.extract_strided_slice %120 {offsets = [0, 384], sizes = [1, 128], strides = [1, 1]} : vector<1x512xf32> to vector<1x128xf32>
    %133 = math.tanh %132 : vector<1x128xf32>
    %134 = vector.extract_strided_slice %131 {offsets = [0, 0], sizes = [1, 128], strides = [1, 1]} : vector<1x384xf32> to vector<1x128xf32>
    %135 = vector.extract_strided_slice %131 {offsets = [0, 128], sizes = [1, 128], strides = [1, 1]} : vector<1x384xf32> to vector<1x128xf32>
    %136 = vector.extract_strided_slice %131 {offsets = [0, 256], sizes = [1, 128], strides = [1, 1]} : vector<1x384xf32> to vector<1x128xf32>
    %137 = arith.mulf %135, %92 : vector<1x128xf32>
    %138 = arith.mulf %134, %133 : vector<1x128xf32>
    %139 = arith.addf %137, %138 : vector<1x128xf32>
    %140 = math.tanh %139 : vector<1x128xf32>
    %141 = arith.mulf %136, %140 : vector<1x128xf32>
    %142 = vector.extract_strided_slice %125 {offsets = [0, 0], sizes = [1, 384], strides = [1, 1]} : vector<1x512xf32> to vector<1x384xf32>
    %143 = arith.negf %142 : vector<1x384xf32>
    %144 = math.exp %143 : vector<1x384xf32>
    %cst_52 = arith.constant 1.000000e+00 : f32
    %145 = vector.broadcast %cst_52 : f32 to vector<1x384xf32>
    %146 = arith.addf %145, %144 : vector<1x384xf32>
    %147 = arith.divf %145, %146 : vector<1x384xf32>
    %148 = vector.extract_strided_slice %125 {offsets = [0, 384], sizes = [1, 128], strides = [1, 1]} : vector<1x512xf32> to vector<1x128xf32>
    %149 = math.tanh %148 : vector<1x128xf32>
    %150 = vector.extract_strided_slice %147 {offsets = [0, 0], sizes = [1, 128], strides = [1, 1]} : vector<1x384xf32> to vector<1x128xf32>
    %151 = vector.extract_strided_slice %147 {offsets = [0, 128], sizes = [1, 128], strides = [1, 1]} : vector<1x384xf32> to vector<1x128xf32>
    %152 = vector.extract_strided_slice %147 {offsets = [0, 256], sizes = [1, 128], strides = [1, 1]} : vector<1x384xf32> to vector<1x128xf32>
    %153 = arith.mulf %151, %108 : vector<1x128xf32>
    %154 = arith.mulf %150, %149 : vector<1x128xf32>
    %155 = arith.addf %153, %154 : vector<1x128xf32>
    %156 = math.tanh %155 : vector<1x128xf32>
    %157 = arith.mulf %152, %156 : vector<1x128xf32>
    %158 = arith.index_cast %c2_i32 : i32 to index
    %c0_53 = arith.constant 0 : index
    %159 = vector.load %arg18[%158, %c0_53] : memref<8x128xf32, #tpu.memory_space<vmem>>, vector<1x128xf32>
    tpu.vector_store %arg18[%158, %c0_53], %141 {strides = array<i32>} : memref<8x128xf32, #tpu.memory_space<vmem>>, vector<1x128xf32>,
    %160 = arith.index_cast %115 : i32 to index
    %c0_54 = arith.constant 0 : index
    %161 = vector.load %arg19[%160, %c0_54] : memref<8x128xf32, #tpu.memory_space<vmem>>, vector<1x128xf32>
    tpu.vector_store %arg19[%160, %c0_54], %157 {strides = array<i32>} : memref<8x128xf32, #tpu.memory_space<vmem>>, vector<1x128xf32>,
    %c3_i32 = arith.constant 3 : i32
    %c7_i32_55 = arith.constant 7 : i32
    %162 = arith.subi %c7_i32_55, %c3_i32 : i32
    %163 = arith.index_cast %c3_i32 : i32 to index
    %c0_56 = arith.constant 0 : index
    %164 = vector.load %arg16[%163, %c0_56] : memref<8x512xf32, #tpu.memory_space<vmem>>, vector<1x512xf32>
    %c0_57 = arith.constant 0 : index
    %c0_58 = arith.constant 0 : index
    %165 = vector.load %arg4[%c0_57, %c0_58] : memref<128x512xf32, #tpu.memory_space<vmem>>, vector<128x512xf32>
    %cst_59 = arith.constant dense<0.000000e+00> : vector<1x512xf32>
    %166 = tpu.matmul %141, %165, %cst_59 {dimension_numbers = #tpu.dot_dimension_numbers<[1], [0], [0], [1], [0, 0, 1, 1], [], []>} : vector<1x128xf32>, vector<128x512xf32>, vector<1x512xf32> -> vector<1x512xf32>
    %167 = arith.addf %164, %166 : vector<1x512xf32>
    %168 = arith.index_cast %162 : i32 to index
    %c0_60 = arith.constant 0 : index
    %169 = vector.load %arg17[%168, %c0_60] : memref<8x512xf32, #tpu.memory_space<vmem>>, vector<1x512xf32>
    %c0_61 = arith.constant 0 : index
    %c0_62 = arith.constant 0 : index
    %170 = vector.load %arg5[%c0_61, %c0_62] : memref<128x512xf32, #tpu.memory_space<vmem>>, vector<128x512xf32>
    %cst_63 = arith.constant dense<0.000000e+00> : vector<1x512xf32>
    %171 = tpu.matmul %157, %170, %cst_63 {dimension_numbers = #tpu.dot_dimension_numbers<[1], [0], [0], [1], [0, 0, 1, 1], [], []>} : vector<1x128xf32>, vector<128x512xf32>, vector<1x512xf32> -> vector<1x512xf32>
    %172 = arith.addf %169, %171 : vector<1x512xf32>
    %173 = vector.extract_strided_slice %167 {offsets = [0, 0], sizes = [1, 384], strides = [1, 1]} : vector<1x512xf32> to vector<1x384xf32>
    %174 = arith.negf %173 : vector<1x384xf32>
    %175 = math.exp %174 : vector<1x384xf32>
    %cst_64 = arith.constant 1.000000e+00 : f32
    %176 = vector.broadcast %cst_64 : f32 to vector<1x384xf32>
    %177 = arith.addf %176, %175 : vector<1x384xf32>
    %178 = arith.divf %176, %177 : vector<1x384xf32>
    %179 = vector.extract_strided_slice %167 {offsets = [0, 384], sizes = [1, 128], strides = [1, 1]} : vector<1x512xf32> to vector<1x128xf32>
    %180 = math.tanh %179 : vector<1x128xf32>
    %181 = vector.extract_strided_slice %178 {offsets = [0, 0], sizes = [1, 128], strides = [1, 1]} : vector<1x384xf32> to vector<1x128xf32>
    %182 = vector.extract_strided_slice %178 {offsets = [0, 128], sizes = [1, 128], strides = [1, 1]} : vector<1x384xf32> to vector<1x128xf32>
    %183 = vector.extract_strided_slice %178 {offsets = [0, 256], sizes = [1, 128], strides = [1, 1]} : vector<1x384xf32> to vector<1x128xf32>
    %184 = arith.mulf %182, %139 : vector<1x128xf32>
    %185 = arith.mulf %181, %180 : vector<1x128xf32>
    %186 = arith.addf %184, %185 : vector<1x128xf32>
    %187 = math.tanh %186 : vector<1x128xf32>
    %188 = arith.mulf %183, %187 : vector<1x128xf32>
    %189 = vector.extract_strided_slice %172 {offsets = [0, 0], sizes = [1, 384], strides = [1, 1]} : vector<1x512xf32> to vector<1x384xf32>
    %190 = arith.negf %189 : vector<1x384xf32>
    %191 = math.exp %190 : vector<1x384xf32>
    %cst_65 = arith.constant 1.000000e+00 : f32
    %192 = vector.broadcast %cst_65 : f32 to vector<1x384xf32>
    %193 = arith.addf %192, %191 : vector<1x384xf32>
    %194 = arith.divf %192, %193 : vector<1x384xf32>
    %195 = vector.extract_strided_slice %172 {offsets = [0, 384], sizes = [1, 128], strides = [1, 1]} : vector<1x512xf32> to vector<1x128xf32>
    %196 = math.tanh %195 : vector<1x128xf32>
    %197 = vector.extract_strided_slice %194 {offsets = [0, 0], sizes = [1, 128], strides = [1, 1]} : vector<1x384xf32> to vector<1x128xf32>
    %198 = vector.extract_strided_slice %194 {offsets = [0, 128], sizes = [1, 128], strides = [1, 1]} : vector<1x384xf32> to vector<1x128xf32>
    %199 = vector.extract_strided_slice %194 {offsets = [0, 256], sizes = [1, 128], strides = [1, 1]} : vector<1x384xf32> to vector<1x128xf32>
    %200 = arith.mulf %198, %155 : vector<1x128xf32>
    %201 = arith.mulf %197, %196 : vector<1x128xf32>
    %202 = arith.addf %200, %201 : vector<1x128xf32>
    %203 = math.tanh %202 : vector<1x128xf32>
    %204 = arith.mulf %199, %203 : vector<1x128xf32>
    %205 = arith.index_cast %c3_i32 : i32 to index
    %c0_66 = arith.constant 0 : index
    %206 = vector.load %arg18[%205, %c0_66] : memref<8x128xf32, #tpu.memory_space<vmem>>, vector<1x128xf32>
    tpu.vector_store %arg18[%205, %c0_66], %188 {strides = array<i32>} : memref<8x128xf32, #tpu.memory_space<vmem>>, vector<1x128xf32>,
    %207 = arith.index_cast %162 : i32 to index
    %c0_67 = arith.constant 0 : index
    %208 = vector.load %arg19[%207, %c0_67] : memref<8x128xf32, #tpu.memory_space<vmem>>, vector<1x128xf32>
    tpu.vector_store %arg19[%207, %c0_67], %204 {strides = array<i32>} : memref<8x128xf32, #tpu.memory_space<vmem>>, vector<1x128xf32>,
    %c4_i32 = arith.constant 4 : i32
    %c7_i32_68 = arith.constant 7 : i32
    %209 = arith.subi %c7_i32_68, %c4_i32 : i32
    %210 = arith.index_cast %c4_i32 : i32 to index
    %c0_69 = arith.constant 0 : index
    %211 = vector.load %arg16[%210, %c0_69] : memref<8x512xf32, #tpu.memory_space<vmem>>, vector<1x512xf32>
    %c0_70 = arith.constant 0 : index
    %c0_71 = arith.constant 0 : index
    %212 = vector.load %arg4[%c0_70, %c0_71] : memref<128x512xf32, #tpu.memory_space<vmem>>, vector<128x512xf32>
    %cst_72 = arith.constant dense<0.000000e+00> : vector<1x512xf32>
    %213 = tpu.matmul %188, %212, %cst_72 {dimension_numbers = #tpu.dot_dimension_numbers<[1], [0], [0], [1], [0, 0, 1, 1], [], []>} : vector<1x128xf32>, vector<128x512xf32>, vector<1x512xf32> -> vector<1x512xf32>
    %214 = arith.addf %211, %213 : vector<1x512xf32>
    %215 = arith.index_cast %209 : i32 to index
    %c0_73 = arith.constant 0 : index
    %216 = vector.load %arg17[%215, %c0_73] : memref<8x512xf32, #tpu.memory_space<vmem>>, vector<1x512xf32>
    %c0_74 = arith.constant 0 : index
    %c0_75 = arith.constant 0 : index
    %217 = vector.load %arg5[%c0_74, %c0_75] : memref<128x512xf32, #tpu.memory_space<vmem>>, vector<128x512xf32>
    %cst_76 = arith.constant dense<0.000000e+00> : vector<1x512xf32>
    %218 = tpu.matmul %204, %217, %cst_76 {dimension_numbers = #tpu.dot_dimension_numbers<[1], [0], [0], [1], [0, 0, 1, 1], [], []>} : vector<1x128xf32>, vector<128x512xf32>, vector<1x512xf32> -> vector<1x512xf32>
    %219 = arith.addf %216, %218 : vector<1x512xf32>
    %220 = vector.extract_strided_slice %214 {offsets = [0, 0], sizes = [1, 384], strides = [1, 1]} : vector<1x512xf32> to vector<1x384xf32>
    %221 = arith.negf %220 : vector<1x384xf32>
    %222 = math.exp %221 : vector<1x384xf32>
    %cst_77 = arith.constant 1.000000e+00 : f32
    %223 = vector.broadcast %cst_77 : f32 to vector<1x384xf32>
    %224 = arith.addf %223, %222 : vector<1x384xf32>
    %225 = arith.divf %223, %224 : vector<1x384xf32>
    %226 = vector.extract_strided_slice %214 {offsets = [0, 384], sizes = [1, 128], strides = [1, 1]} : vector<1x512xf32> to vector<1x128xf32>
    %227 = math.tanh %226 : vector<1x128xf32>
    %228 = vector.extract_strided_slice %225 {offsets = [0, 0], sizes = [1, 128], strides = [1, 1]} : vector<1x384xf32> to vector<1x128xf32>
    %229 = vector.extract_strided_slice %225 {offsets = [0, 128], sizes = [1, 128], strides = [1, 1]} : vector<1x384xf32> to vector<1x128xf32>
    %230 = vector.extract_strided_slice %225 {offsets = [0, 256], sizes = [1, 128], strides = [1, 1]} : vector<1x384xf32> to vector<1x128xf32>
    %231 = arith.mulf %229, %186 : vector<1x128xf32>
    %232 = arith.mulf %228, %227 : vector<1x128xf32>
    %233 = arith.addf %231, %232 : vector<1x128xf32>
    %234 = math.tanh %233 : vector<1x128xf32>
    %235 = arith.mulf %230, %234 : vector<1x128xf32>
    %236 = vector.extract_strided_slice %219 {offsets = [0, 0], sizes = [1, 384], strides = [1, 1]} : vector<1x512xf32> to vector<1x384xf32>
    %237 = arith.negf %236 : vector<1x384xf32>
    %238 = math.exp %237 : vector<1x384xf32>
    %cst_78 = arith.constant 1.000000e+00 : f32
    %239 = vector.broadcast %cst_78 : f32 to vector<1x384xf32>
    %240 = arith.addf %239, %238 : vector<1x384xf32>
    %241 = arith.divf %239, %240 : vector<1x384xf32>
    %242 = vector.extract_strided_slice %219 {offsets = [0, 384], sizes = [1, 128], strides = [1, 1]} : vector<1x512xf32> to vector<1x128xf32>
    %243 = math.tanh %242 : vector<1x128xf32>
    %244 = vector.extract_strided_slice %241 {offsets = [0, 0], sizes = [1, 128], strides = [1, 1]} : vector<1x384xf32> to vector<1x128xf32>
    %245 = vector.extract_strided_slice %241 {offsets = [0, 128], sizes = [1, 128], strides = [1, 1]} : vector<1x384xf32> to vector<1x128xf32>
    %246 = vector.extract_strided_slice %241 {offsets = [0, 256], sizes = [1, 128], strides = [1, 1]} : vector<1x384xf32> to vector<1x128xf32>
    %247 = arith.mulf %245, %202 : vector<1x128xf32>
    %248 = arith.mulf %244, %243 : vector<1x128xf32>
    %249 = arith.addf %247, %248 : vector<1x128xf32>
    %250 = math.tanh %249 : vector<1x128xf32>
    %251 = arith.mulf %246, %250 : vector<1x128xf32>
    %252 = arith.index_cast %c4_i32 : i32 to index
    %c0_79 = arith.constant 0 : index
    %253 = vector.load %arg18[%252, %c0_79] : memref<8x128xf32, #tpu.memory_space<vmem>>, vector<1x128xf32>
    tpu.vector_store %arg18[%252, %c0_79], %235 {strides = array<i32>} : memref<8x128xf32, #tpu.memory_space<vmem>>, vector<1x128xf32>,
    %254 = arith.index_cast %209 : i32 to index
    %c0_80 = arith.constant 0 : index
    %255 = vector.load %arg19[%254, %c0_80] : memref<8x128xf32, #tpu.memory_space<vmem>>, vector<1x128xf32>
    tpu.vector_store %arg19[%254, %c0_80], %251 {strides = array<i32>} : memref<8x128xf32, #tpu.memory_space<vmem>>, vector<1x128xf32>,
    %c5_i32 = arith.constant 5 : i32
    %c7_i32_81 = arith.constant 7 : i32
    %256 = arith.subi %c7_i32_81, %c5_i32 : i32
    %257 = arith.index_cast %c5_i32 : i32 to index
    %c0_82 = arith.constant 0 : index
    %258 = vector.load %arg16[%257, %c0_82] : memref<8x512xf32, #tpu.memory_space<vmem>>, vector<1x512xf32>
    %c0_83 = arith.constant 0 : index
    %c0_84 = arith.constant 0 : index
    %259 = vector.load %arg4[%c0_83, %c0_84] : memref<128x512xf32, #tpu.memory_space<vmem>>, vector<128x512xf32>
    %cst_85 = arith.constant dense<0.000000e+00> : vector<1x512xf32>
    %260 = tpu.matmul %235, %259, %cst_85 {dimension_numbers = #tpu.dot_dimension_numbers<[1], [0], [0], [1], [0, 0, 1, 1], [], []>} : vector<1x128xf32>, vector<128x512xf32>, vector<1x512xf32> -> vector<1x512xf32>
    %261 = arith.addf %258, %260 : vector<1x512xf32>
    %262 = arith.index_cast %256 : i32 to index
    %c0_86 = arith.constant 0 : index
    %263 = vector.load %arg17[%262, %c0_86] : memref<8x512xf32, #tpu.memory_space<vmem>>, vector<1x512xf32>
    %c0_87 = arith.constant 0 : index
    %c0_88 = arith.constant 0 : index
    %264 = vector.load %arg5[%c0_87, %c0_88] : memref<128x512xf32, #tpu.memory_space<vmem>>, vector<128x512xf32>
    %cst_89 = arith.constant dense<0.000000e+00> : vector<1x512xf32>
    %265 = tpu.matmul %251, %264, %cst_89 {dimension_numbers = #tpu.dot_dimension_numbers<[1], [0], [0], [1], [0, 0, 1, 1], [], []>} : vector<1x128xf32>, vector<128x512xf32>, vector<1x512xf32> -> vector<1x512xf32>
    %266 = arith.addf %263, %265 : vector<1x512xf32>
    %267 = vector.extract_strided_slice %261 {offsets = [0, 0], sizes = [1, 384], strides = [1, 1]} : vector<1x512xf32> to vector<1x384xf32>
    %268 = arith.negf %267 : vector<1x384xf32>
    %269 = math.exp %268 : vector<1x384xf32>
    %cst_90 = arith.constant 1.000000e+00 : f32
    %270 = vector.broadcast %cst_90 : f32 to vector<1x384xf32>
    %271 = arith.addf %270, %269 : vector<1x384xf32>
    %272 = arith.divf %270, %271 : vector<1x384xf32>
    %273 = vector.extract_strided_slice %261 {offsets = [0, 384], sizes = [1, 128], strides = [1, 1]} : vector<1x512xf32> to vector<1x128xf32>
    %274 = math.tanh %273 : vector<1x128xf32>
    %275 = vector.extract_strided_slice %272 {offsets = [0, 0], sizes = [1, 128], strides = [1, 1]} : vector<1x384xf32> to vector<1x128xf32>
    %276 = vector.extract_strided_slice %272 {offsets = [0, 128], sizes = [1, 128], strides = [1, 1]} : vector<1x384xf32> to vector<1x128xf32>
    %277 = vector.extract_strided_slice %272 {offsets = [0, 256], sizes = [1, 128], strides = [1, 1]} : vector<1x384xf32> to vector<1x128xf32>
    %278 = arith.mulf %276, %233 : vector<1x128xf32>
    %279 = arith.mulf %275, %274 : vector<1x128xf32>
    %280 = arith.addf %278, %279 : vector<1x128xf32>
    %281 = math.tanh %280 : vector<1x128xf32>
    %282 = arith.mulf %277, %281 : vector<1x128xf32>
    %283 = vector.extract_strided_slice %266 {offsets = [0, 0], sizes = [1, 384], strides = [1, 1]} : vector<1x512xf32> to vector<1x384xf32>
    %284 = arith.negf %283 : vector<1x384xf32>
    %285 = math.exp %284 : vector<1x384xf32>
    %cst_91 = arith.constant 1.000000e+00 : f32
    %286 = vector.broadcast %cst_91 : f32 to vector<1x384xf32>
    %287 = arith.addf %286, %285 : vector<1x384xf32>
    %288 = arith.divf %286, %287 : vector<1x384xf32>
    %289 = vector.extract_strided_slice %266 {offsets = [0, 384], sizes = [1, 128], strides = [1, 1]} : vector<1x512xf32> to vector<1x128xf32>
    %290 = math.tanh %289 : vector<1x128xf32>
    %291 = vector.extract_strided_slice %288 {offsets = [0, 0], sizes = [1, 128], strides = [1, 1]} : vector<1x384xf32> to vector<1x128xf32>
    %292 = vector.extract_strided_slice %288 {offsets = [0, 128], sizes = [1, 128], strides = [1, 1]} : vector<1x384xf32> to vector<1x128xf32>
    %293 = vector.extract_strided_slice %288 {offsets = [0, 256], sizes = [1, 128], strides = [1, 1]} : vector<1x384xf32> to vector<1x128xf32>
    %294 = arith.mulf %292, %249 : vector<1x128xf32>
    %295 = arith.mulf %291, %290 : vector<1x128xf32>
    %296 = arith.addf %294, %295 : vector<1x128xf32>
    %297 = math.tanh %296 : vector<1x128xf32>
    %298 = arith.mulf %293, %297 : vector<1x128xf32>
    %299 = arith.index_cast %c5_i32 : i32 to index
    %c0_92 = arith.constant 0 : index
    %300 = vector.load %arg18[%299, %c0_92] : memref<8x128xf32, #tpu.memory_space<vmem>>, vector<1x128xf32>
    tpu.vector_store %arg18[%299, %c0_92], %282 {strides = array<i32>} : memref<8x128xf32, #tpu.memory_space<vmem>>, vector<1x128xf32>,
    %301 = arith.index_cast %256 : i32 to index
    %c0_93 = arith.constant 0 : index
    %302 = vector.load %arg19[%301, %c0_93] : memref<8x128xf32, #tpu.memory_space<vmem>>, vector<1x128xf32>
    tpu.vector_store %arg19[%301, %c0_93], %298 {strides = array<i32>} : memref<8x128xf32, #tpu.memory_space<vmem>>, vector<1x128xf32>,
    %c6_i32 = arith.constant 6 : i32
    %c7_i32_94 = arith.constant 7 : i32
    %303 = arith.subi %c7_i32_94, %c6_i32 : i32
    %304 = arith.index_cast %c6_i32 : i32 to index
    %c0_95 = arith.constant 0 : index
    %305 = vector.load %arg16[%304, %c0_95] : memref<8x512xf32, #tpu.memory_space<vmem>>, vector<1x512xf32>
    %c0_96 = arith.constant 0 : index
    %c0_97 = arith.constant 0 : index
    %306 = vector.load %arg4[%c0_96, %c0_97] : memref<128x512xf32, #tpu.memory_space<vmem>>, vector<128x512xf32>
    %cst_98 = arith.constant dense<0.000000e+00> : vector<1x512xf32>
    %307 = tpu.matmul %282, %306, %cst_98 {dimension_numbers = #tpu.dot_dimension_numbers<[1], [0], [0], [1], [0, 0, 1, 1], [], []>} : vector<1x128xf32>, vector<128x512xf32>, vector<1x512xf32> -> vector<1x512xf32>
    %308 = arith.addf %305, %307 : vector<1x512xf32>
    %309 = arith.index_cast %303 : i32 to index
    %c0_99 = arith.constant 0 : index
    %310 = vector.load %arg17[%309, %c0_99] : memref<8x512xf32, #tpu.memory_space<vmem>>, vector<1x512xf32>
    %c0_100 = arith.constant 0 : index
    %c0_101 = arith.constant 0 : index
    %311 = vector.load %arg5[%c0_100, %c0_101] : memref<128x512xf32, #tpu.memory_space<vmem>>, vector<128x512xf32>
    %cst_102 = arith.constant dense<0.000000e+00> : vector<1x512xf32>
    %312 = tpu.matmul %298, %311, %cst_102 {dimension_numbers = #tpu.dot_dimension_numbers<[1], [0], [0], [1], [0, 0, 1, 1], [], []>} : vector<1x128xf32>, vector<128x512xf32>, vector<1x512xf32> -> vector<1x512xf32>
    %313 = arith.addf %310, %312 : vector<1x512xf32>
    %314 = vector.extract_strided_slice %308 {offsets = [0, 0], sizes = [1, 384], strides = [1, 1]} : vector<1x512xf32> to vector<1x384xf32>
    %315 = arith.negf %314 : vector<1x384xf32>
    %316 = math.exp %315 : vector<1x384xf32>
    %cst_103 = arith.constant 1.000000e+00 : f32
    %317 = vector.broadcast %cst_103 : f32 to vector<1x384xf32>
    %318 = arith.addf %317, %316 : vector<1x384xf32>
    %319 = arith.divf %317, %318 : vector<1x384xf32>
    %320 = vector.extract_strided_slice %308 {offsets = [0, 384], sizes = [1, 128], strides = [1, 1]} : vector<1x512xf32> to vector<1x128xf32>
    %321 = math.tanh %320 : vector<1x128xf32>
    %322 = vector.extract_strided_slice %319 {offsets = [0, 0], sizes = [1, 128], strides = [1, 1]} : vector<1x384xf32> to vector<1x128xf32>
    %323 = vector.extract_strided_slice %319 {offsets = [0, 128], sizes = [1, 128], strides = [1, 1]} : vector<1x384xf32> to vector<1x128xf32>
    %324 = vector.extract_strided_slice %319 {offsets = [0, 256], sizes = [1, 128], strides = [1, 1]} : vector<1x384xf32> to vector<1x128xf32>
    %325 = arith.mulf %323, %280 : vector<1x128xf32>
    %326 = arith.mulf %322, %321 : vector<1x128xf32>
    %327 = arith.addf %325, %326 : vector<1x128xf32>
    %328 = math.tanh %327 : vector<1x128xf32>
    %329 = arith.mulf %324, %328 : vector<1x128xf32>
    %330 = vector.extract_strided_slice %313 {offsets = [0, 0], sizes = [1, 384], strides = [1, 1]} : vector<1x512xf32> to vector<1x384xf32>
    %331 = arith.negf %330 : vector<1x384xf32>
    %332 = math.exp %331 : vector<1x384xf32>
    %cst_104 = arith.constant 1.000000e+00 : f32
    %333 = vector.broadcast %cst_104 : f32 to vector<1x384xf32>
    %334 = arith.addf %333, %332 : vector<1x384xf32>
    %335 = arith.divf %333, %334 : vector<1x384xf32>
    %336 = vector.extract_strided_slice %313 {offsets = [0, 384], sizes = [1, 128], strides = [1, 1]} : vector<1x512xf32> to vector<1x128xf32>
    %337 = math.tanh %336 : vector<1x128xf32>
    %338 = vector.extract_strided_slice %335 {offsets = [0, 0], sizes = [1, 128], strides = [1, 1]} : vector<1x384xf32> to vector<1x128xf32>
    %339 = vector.extract_strided_slice %335 {offsets = [0, 128], sizes = [1, 128], strides = [1, 1]} : vector<1x384xf32> to vector<1x128xf32>
    %340 = vector.extract_strided_slice %335 {offsets = [0, 256], sizes = [1, 128], strides = [1, 1]} : vector<1x384xf32> to vector<1x128xf32>
    %341 = arith.mulf %339, %296 : vector<1x128xf32>
    %342 = arith.mulf %338, %337 : vector<1x128xf32>
    %343 = arith.addf %341, %342 : vector<1x128xf32>
    %344 = math.tanh %343 : vector<1x128xf32>
    %345 = arith.mulf %340, %344 : vector<1x128xf32>
    %346 = arith.index_cast %c6_i32 : i32 to index
    %c0_105 = arith.constant 0 : index
    %347 = vector.load %arg18[%346, %c0_105] : memref<8x128xf32, #tpu.memory_space<vmem>>, vector<1x128xf32>
    tpu.vector_store %arg18[%346, %c0_105], %329 {strides = array<i32>} : memref<8x128xf32, #tpu.memory_space<vmem>>, vector<1x128xf32>,
    %348 = arith.index_cast %303 : i32 to index
    %c0_106 = arith.constant 0 : index
    %349 = vector.load %arg19[%348, %c0_106] : memref<8x128xf32, #tpu.memory_space<vmem>>, vector<1x128xf32>
    tpu.vector_store %arg19[%348, %c0_106], %345 {strides = array<i32>} : memref<8x128xf32, #tpu.memory_space<vmem>>, vector<1x128xf32>,
    %c7_i32_107 = arith.constant 7 : i32
    %c7_i32_108 = arith.constant 7 : i32
    %350 = arith.subi %c7_i32_108, %c7_i32_107 : i32
    %351 = arith.index_cast %c7_i32_107 : i32 to index
    %c0_109 = arith.constant 0 : index
    %352 = vector.load %arg16[%351, %c0_109] : memref<8x512xf32, #tpu.memory_space<vmem>>, vector<1x512xf32>
    %c0_110 = arith.constant 0 : index
    %c0_111 = arith.constant 0 : index
    %353 = vector.load %arg4[%c0_110, %c0_111] : memref<128x512xf32, #tpu.memory_space<vmem>>, vector<128x512xf32>
    %cst_112 = arith.constant dense<0.000000e+00> : vector<1x512xf32>
    %354 = tpu.matmul %329, %353, %cst_112 {dimension_numbers = #tpu.dot_dimension_numbers<[1], [0], [0], [1], [0, 0, 1, 1], [], []>} : vector<1x128xf32>, vector<128x512xf32>, vector<1x512xf32> -> vector<1x512xf32>
    %355 = arith.addf %352, %354 : vector<1x512xf32>
    %356 = arith.index_cast %350 : i32 to index
    %c0_113 = arith.constant 0 : index
    %357 = vector.load %arg17[%356, %c0_113] : memref<8x512xf32, #tpu.memory_space<vmem>>, vector<1x512xf32>
    %c0_114 = arith.constant 0 : index
    %c0_115 = arith.constant 0 : index
    %358 = vector.load %arg5[%c0_114, %c0_115] : memref<128x512xf32, #tpu.memory_space<vmem>>, vector<128x512xf32>
    %cst_116 = arith.constant dense<0.000000e+00> : vector<1x512xf32>
    %359 = tpu.matmul %345, %358, %cst_116 {dimension_numbers = #tpu.dot_dimension_numbers<[1], [0], [0], [1], [0, 0, 1, 1], [], []>} : vector<1x128xf32>, vector<128x512xf32>, vector<1x512xf32> -> vector<1x512xf32>
    %360 = arith.addf %357, %359 : vector<1x512xf32>
    %361 = vector.extract_strided_slice %355 {offsets = [0, 0], sizes = [1, 384], strides = [1, 1]} : vector<1x512xf32> to vector<1x384xf32>
    %362 = arith.negf %361 : vector<1x384xf32>
    %363 = math.exp %362 : vector<1x384xf32>
    %cst_117 = arith.constant 1.000000e+00 : f32
    %364 = vector.broadcast %cst_117 : f32 to vector<1x384xf32>
    %365 = arith.addf %364, %363 : vector<1x384xf32>
    %366 = arith.divf %364, %365 : vector<1x384xf32>
    %367 = vector.extract_strided_slice %355 {offsets = [0, 384], sizes = [1, 128], strides = [1, 1]} : vector<1x512xf32> to vector<1x128xf32>
    %368 = math.tanh %367 : vector<1x128xf32>
    %369 = vector.extract_strided_slice %366 {offsets = [0, 0], sizes = [1, 128], strides = [1, 1]} : vector<1x384xf32> to vector<1x128xf32>
    %370 = vector.extract_strided_slice %366 {offsets = [0, 128], sizes = [1, 128], strides = [1, 1]} : vector<1x384xf32> to vector<1x128xf32>
    %371 = vector.extract_strided_slice %366 {offsets = [0, 256], sizes = [1, 128], strides = [1, 1]} : vector<1x384xf32> to vector<1x128xf32>
    %372 = arith.mulf %370, %327 : vector<1x128xf32>
    %373 = arith.mulf %369, %368 : vector<1x128xf32>
    %374 = arith.addf %372, %373 : vector<1x128xf32>
    %375 = math.tanh %374 : vector<1x128xf32>
    %376 = arith.mulf %371, %375 : vector<1x128xf32>
    %377 = vector.extract_strided_slice %360 {offsets = [0, 0], sizes = [1, 384], strides = [1, 1]} : vector<1x512xf32> to vector<1x384xf32>
    %378 = arith.negf %377 : vector<1x384xf32>
    %379 = math.exp %378 : vector<1x384xf32>
    %cst_118 = arith.constant 1.000000e+00 : f32
    %380 = vector.broadcast %cst_118 : f32 to vector<1x384xf32>
    %381 = arith.addf %380, %379 : vector<1x384xf32>
    %382 = arith.divf %380, %381 : vector<1x384xf32>
    %383 = vector.extract_strided_slice %360 {offsets = [0, 384], sizes = [1, 128], strides = [1, 1]} : vector<1x512xf32> to vector<1x128xf32>
    %384 = math.tanh %383 : vector<1x128xf32>
    %385 = vector.extract_strided_slice %382 {offsets = [0, 0], sizes = [1, 128], strides = [1, 1]} : vector<1x384xf32> to vector<1x128xf32>
    %386 = vector.extract_strided_slice %382 {offsets = [0, 128], sizes = [1, 128], strides = [1, 1]} : vector<1x384xf32> to vector<1x128xf32>
    %387 = vector.extract_strided_slice %382 {offsets = [0, 256], sizes = [1, 128], strides = [1, 1]} : vector<1x384xf32> to vector<1x128xf32>
    %388 = arith.mulf %386, %343 : vector<1x128xf32>
    %389 = arith.mulf %385, %384 : vector<1x128xf32>
    %390 = arith.addf %388, %389 : vector<1x128xf32>
    %391 = math.tanh %390 : vector<1x128xf32>
    %392 = arith.mulf %387, %391 : vector<1x128xf32>
    %393 = arith.index_cast %c7_i32_107 : i32 to index
    %c0_119 = arith.constant 0 : index
    %394 = vector.load %arg18[%393, %c0_119] : memref<8x128xf32, #tpu.memory_space<vmem>>, vector<1x128xf32>
    tpu.vector_store %arg18[%393, %c0_119], %376 {strides = array<i32>} : memref<8x128xf32, #tpu.memory_space<vmem>>, vector<1x128xf32>,
    %395 = arith.index_cast %350 : i32 to index
    %c0_120 = arith.constant 0 : index
    %396 = vector.load %arg19[%395, %c0_120] : memref<8x128xf32, #tpu.memory_space<vmem>>, vector<1x128xf32>
    tpu.vector_store %arg19[%395, %c0_120], %392 {strides = array<i32>} : memref<8x128xf32, #tpu.memory_space<vmem>>, vector<1x128xf32>,
    %c8_i32 = arith.constant 8 : i32
    %c0_121 = arith.constant 0 : index
    %c0_122 = arith.constant 0 : index
    %397 = vector.load %arg18[%c0_121, %c0_122] : memref<8x128xf32, #tpu.memory_space<vmem>>, vector<8x128xf32>
    %c0_123 = arith.constant 0 : index
    %c0_124 = arith.constant 0 : index
    %398 = vector.load %arg7[%c0_123, %c0_124] : memref<128x128xf32, #tpu.memory_space<vmem>>, vector<128x128xf32>
    %cst_125 = arith.constant dense<0.000000e+00> : vector<8x128xf32>
    %399 = tpu.matmul %397, %398, %cst_125 {dimension_numbers = #tpu.dot_dimension_numbers<[1], [0], [0], [1], [0, 0, 1, 1], [], []>} : vector<8x128xf32>, vector<128x128xf32>, vector<8x128xf32> -> vector<8x128xf32>
    %c0_126 = arith.constant 0 : index
    %c0_127 = arith.constant 0 : index
    %400 = vector.load %arg19[%c0_126, %c0_127] : memref<8x128xf32, #tpu.memory_space<vmem>>, vector<8x128xf32>
    %c0_128 = arith.constant 0 : index
    %c0_129 = arith.constant 0 : index
    %401 = vector.load %arg8[%c0_128, %c0_129] : memref<128x128xf32, #tpu.memory_space<vmem>>, vector<128x128xf32>
    %cst_130 = arith.constant dense<0.000000e+00> : vector<8x128xf32>
    %402 = tpu.matmul %400, %401, %cst_130 {dimension_numbers = #tpu.dot_dimension_numbers<[1], [0], [0], [1], [0, 0, 1, 1], [], []>} : vector<8x128xf32>, vector<128x128xf32>, vector<8x128xf32> -> vector<8x128xf32>
    %403 = arith.addf %399, %402 : vector<8x128xf32>
    %c0_131 = arith.constant 0 : index
    %c0_132 = arith.constant 0 : index
    %404 = vector.load %arg9[%c0_131, %c0_132] : memref<1x128xf32, #tpu.memory_space<vmem>>, vector<1x128xf32>
    %405 = vector.broadcast %404 : vector<1x128xf32> to vector<8x128xf32>
    %406 = arith.addf %403, %405 : vector<8x128xf32>
    %c0_133 = arith.constant 0 : index
    %c0_134 = arith.constant 0 : index
    %407 = vector.load %arg13[%c0_133, %c0_134] : memref<8x128xf32, #tpu.memory_space<vmem>>, vector<8x128xf32>
    tpu.vector_store %arg13[%c0_133, %c0_134], %406 {strides = array<i32>} : memref<8x128xf32, #tpu.memory_space<vmem>>, vector<8x128xf32>,
    %c0_135 = arith.constant 0 : index
    %c0_136 = arith.constant 0 : index
    %408 = vector.load %arg10[%c0_135, %c0_136] : memref<128x128xf32, #tpu.memory_space<vmem>>, vector<128x128xf32>
    %409 = tpu.iota {dimensions = array<i32: 0>} : vector<128x128xi32>
    %410 = tpu.iota {dimensions = array<i32: 1>} : vector<128x128xi32>
    %411 = arith.cmpi eq, %409, %410 : vector<128x128xi32>
    %412 = tpu.iota {dimensions = array<i32: 0>} : vector<128x128xi32>
    %413 = arith.sitofp %412 : vector<128x128xi32> to vector<128x128xf32>
    %414 = tpu.iota {dimensions = array<i32: 1>} : vector<1x128xi32>
    %415 = arith.sitofp %414 : vector<1x128xi32> to vector<1x128xf32>
    %c0_137 = arith.constant 0 : index
    %c0_138 = arith.constant 0 : index
    %416 = vector.load %arg12[%c0_137, %c0_138] : memref<1x128xf32, #tpu.memory_space<vmem>>, vector<1x128xf32>
    %cst_139 = arith.constant 1.280000e+02 : f32
    %c0_i32_140 = arith.constant 0 : i32
    %cst_141 = arith.constant 0.000000e+00 : f32
    %417 = vector.shape_cast %416 : vector<1x128xf32> to vector<1x128xf32>
    %418 = vector.broadcast %417 : vector<1x128xf32> to vector<128x128xf32>
    %419 = vector.broadcast %cst_141 : f32 to vector<128x128xf32>
    %420 = arith.select %411, %418, %419 : vector<128x128xi1>, vector<128x128xf32>
    %cst_142 = arith.constant dense<0.000000e+00> : vector<128xf32>
    %421 = vector.multi_reduction <add>, %420, %cst_142 [1] : vector<128x128xf32> to vector<128xf32>
    %422 = vector.shape_cast %421 : vector<128xf32> to vector<128x1xf32>
    %423 = vector.broadcast %422 : vector<128x1xf32> to vector<128x128xf32>
    %424 = arith.addf %408, %423 : vector<128x128xf32>
    %cst_143 = arith.constant dense<0xFF800000> : vector<128xf32>
    %425 = vector.multi_reduction <maximumf>, %424, %cst_143 [0] : vector<128x128xf32> to vector<128xf32>
    %426 = vector.shape_cast %425 : vector<128xf32> to vector<1x128xf32>
    %427 = vector.broadcast %426 : vector<1x128xf32> to vector<128x128xf32>
    %428 = arith.cmpf oge, %424, %427 : vector<128x128xf32>
    %429 = vector.broadcast %cst_139 : f32 to vector<128x128xf32>
    %430 = arith.select %428, %413, %429 : vector<128x128xi1>, vector<128x128xf32>
    %cst_144 = arith.constant dense<0x7F800000> : vector<128xf32>
    %431 = vector.multi_reduction <minimumf>, %430, %cst_144 [0] : vector<128x128xf32> to vector<128xf32>
    %432 = vector.shape_cast %431 : vector<128xf32> to vector<1x128xf32>
    %433 = arith.index_cast %c0_i32_140 : i32 to index
    %c0_145 = arith.constant 0 : index
    %434 = vector.load %arg20[%433, %c0_145] : memref<8x128xf32, #tpu.memory_space<vmem>>, vector<1x128xf32>
    tpu.vector_store %arg20[%433, %c0_145], %432 {strides = array<i32>} : memref<8x128xf32, #tpu.memory_space<vmem>>, vector<1x128xf32>,
    %435 = arith.index_cast %c0_i32_140 : i32 to index
    %c0_146 = arith.constant 0 : index
    %436 = vector.load %arg13[%435, %c0_146] : memref<8x128xf32, #tpu.memory_space<vmem>>, vector<1x128xf32>
    %437 = arith.addf %426, %436 : vector<1x128xf32>
    %c1_i32_147 = arith.constant 1 : i32
    %cst_148 = arith.constant 0.000000e+00 : f32
    %438 = vector.shape_cast %437 : vector<1x128xf32> to vector<1x128xf32>
    %439 = vector.broadcast %438 : vector<1x128xf32> to vector<128x128xf32>
    %440 = vector.broadcast %cst_148 : f32 to vector<128x128xf32>
    %441 = arith.select %411, %439, %440 : vector<128x128xi1>, vector<128x128xf32>
    %cst_149 = arith.constant dense<0.000000e+00> : vector<128xf32>
    %442 = vector.multi_reduction <add>, %441, %cst_149 [1] : vector<128x128xf32> to vector<128xf32>
    %443 = vector.shape_cast %442 : vector<128xf32> to vector<128x1xf32>
    %444 = vector.broadcast %443 : vector<128x1xf32> to vector<128x128xf32>
    %445 = arith.addf %408, %444 : vector<128x128xf32>
    %cst_150 = arith.constant dense<0xFF800000> : vector<128xf32>
    %446 = vector.multi_reduction <maximumf>, %445, %cst_150 [0] : vector<128x128xf32> to vector<128xf32>
    %447 = vector.shape_cast %446 : vector<128xf32> to vector<1x128xf32>
    %448 = vector.broadcast %447 : vector<1x128xf32> to vector<128x128xf32>
    %449 = arith.cmpf oge, %445, %448 : vector<128x128xf32>
    %450 = vector.broadcast %cst_139 : f32 to vector<128x128xf32>
    %451 = arith.select %449, %413, %450 : vector<128x128xi1>, vector<128x128xf32>
    %cst_151 = arith.constant dense<0x7F800000> : vector<128xf32>
    %452 = vector.multi_reduction <minimumf>, %451, %cst_151 [0] : vector<128x128xf32> to vector<128xf32>
    %453 = vector.shape_cast %452 : vector<128xf32> to vector<1x128xf32>
    %454 = arith.index_cast %c1_i32_147 : i32 to index
    %c0_152 = arith.constant 0 : index
    %455 = vector.load %arg20[%454, %c0_152] : memref<8x128xf32, #tpu.memory_space<vmem>>, vector<1x128xf32>
    tpu.vector_store %arg20[%454, %c0_152], %453 {strides = array<i32>} : memref<8x128xf32, #tpu.memory_space<vmem>>, vector<1x128xf32>,
    %456 = arith.index_cast %c1_i32_147 : i32 to index
    %c0_153 = arith.constant 0 : index
    %457 = vector.load %arg13[%456, %c0_153] : memref<8x128xf32, #tpu.memory_space<vmem>>, vector<1x128xf32>
    %458 = arith.addf %447, %457 : vector<1x128xf32>
    %c2_i32_154 = arith.constant 2 : i32
    %cst_155 = arith.constant 0.000000e+00 : f32
    %459 = vector.shape_cast %458 : vector<1x128xf32> to vector<1x128xf32>
    %460 = vector.broadcast %459 : vector<1x128xf32> to vector<128x128xf32>
    %461 = vector.broadcast %cst_155 : f32 to vector<128x128xf32>
    %462 = arith.select %411, %460, %461 : vector<128x128xi1>, vector<128x128xf32>
    %cst_156 = arith.constant dense<0.000000e+00> : vector<128xf32>
    %463 = vector.multi_reduction <add>, %462, %cst_156 [1] : vector<128x128xf32> to vector<128xf32>
    %464 = vector.shape_cast %463 : vector<128xf32> to vector<128x1xf32>
    %465 = vector.broadcast %464 : vector<128x1xf32> to vector<128x128xf32>
    %466 = arith.addf %408, %465 : vector<128x128xf32>
    %cst_157 = arith.constant dense<0xFF800000> : vector<128xf32>
    %467 = vector.multi_reduction <maximumf>, %466, %cst_157 [0] : vector<128x128xf32> to vector<128xf32>
    %468 = vector.shape_cast %467 : vector<128xf32> to vector<1x128xf32>
    %469 = vector.broadcast %468 : vector<1x128xf32> to vector<128x128xf32>
    %470 = arith.cmpf oge, %466, %469 : vector<128x128xf32>
    %471 = vector.broadcast %cst_139 : f32 to vector<128x128xf32>
    %472 = arith.select %470, %413, %471 : vector<128x128xi1>, vector<128x128xf32>
    %cst_158 = arith.constant dense<0x7F800000> : vector<128xf32>
    %473 = vector.multi_reduction <minimumf>, %472, %cst_158 [0] : vector<128x128xf32> to vector<128xf32>
    %474 = vector.shape_cast %473 : vector<128xf32> to vector<1x128xf32>
    %475 = arith.index_cast %c2_i32_154 : i32 to index
    %c0_159 = arith.constant 0 : index
    %476 = vector.load %arg20[%475, %c0_159] : memref<8x128xf32, #tpu.memory_space<vmem>>, vector<1x128xf32>
    tpu.vector_store %arg20[%475, %c0_159], %474 {strides = array<i32>} : memref<8x128xf32, #tpu.memory_space<vmem>>, vector<1x128xf32>,
    %477 = arith.index_cast %c2_i32_154 : i32 to index
    %c0_160 = arith.constant 0 : index
    %478 = vector.load %arg13[%477, %c0_160] : memref<8x128xf32, #tpu.memory_space<vmem>>, vector<1x128xf32>
    %479 = arith.addf %468, %478 : vector<1x128xf32>
    %c3_i32_161 = arith.constant 3 : i32
    %cst_162 = arith.constant 0.000000e+00 : f32
    %480 = vector.shape_cast %479 : vector<1x128xf32> to vector<1x128xf32>
    %481 = vector.broadcast %480 : vector<1x128xf32> to vector<128x128xf32>
    %482 = vector.broadcast %cst_162 : f32 to vector<128x128xf32>
    %483 = arith.select %411, %481, %482 : vector<128x128xi1>, vector<128x128xf32>
    %cst_163 = arith.constant dense<0.000000e+00> : vector<128xf32>
    %484 = vector.multi_reduction <add>, %483, %cst_163 [1] : vector<128x128xf32> to vector<128xf32>
    %485 = vector.shape_cast %484 : vector<128xf32> to vector<128x1xf32>
    %486 = vector.broadcast %485 : vector<128x1xf32> to vector<128x128xf32>
    %487 = arith.addf %408, %486 : vector<128x128xf32>
    %cst_164 = arith.constant dense<0xFF800000> : vector<128xf32>
    %488 = vector.multi_reduction <maximumf>, %487, %cst_164 [0] : vector<128x128xf32> to vector<128xf32>
    %489 = vector.shape_cast %488 : vector<128xf32> to vector<1x128xf32>
    %490 = vector.broadcast %489 : vector<1x128xf32> to vector<128x128xf32>
    %491 = arith.cmpf oge, %487, %490 : vector<128x128xf32>
    %492 = vector.broadcast %cst_139 : f32 to vector<128x128xf32>
    %493 = arith.select %491, %413, %492 : vector<128x128xi1>, vector<128x128xf32>
    %cst_165 = arith.constant dense<0x7F800000> : vector<128xf32>
    %494 = vector.multi_reduction <minimumf>, %493, %cst_165 [0] : vector<128x128xf32> to vector<128xf32>
    %495 = vector.shape_cast %494 : vector<128xf32> to vector<1x128xf32>
    %496 = arith.index_cast %c3_i32_161 : i32 to index
    %c0_166 = arith.constant 0 : index
    %497 = vector.load %arg20[%496, %c0_166] : memref<8x128xf32, #tpu.memory_space<vmem>>, vector<1x128xf32>
    tpu.vector_store %arg20[%496, %c0_166], %495 {strides = array<i32>} : memref<8x128xf32, #tpu.memory_space<vmem>>, vector<1x128xf32>,
    %498 = arith.index_cast %c3_i32_161 : i32 to index
    %c0_167 = arith.constant 0 : index
    %499 = vector.load %arg13[%498, %c0_167] : memref<8x128xf32, #tpu.memory_space<vmem>>, vector<1x128xf32>
    %500 = arith.addf %489, %499 : vector<1x128xf32>
    %c4_i32_168 = arith.constant 4 : i32
    %cst_169 = arith.constant 0.000000e+00 : f32
    %501 = vector.shape_cast %500 : vector<1x128xf32> to vector<1x128xf32>
    %502 = vector.broadcast %501 : vector<1x128xf32> to vector<128x128xf32>
    %503 = vector.broadcast %cst_169 : f32 to vector<128x128xf32>
    %504 = arith.select %411, %502, %503 : vector<128x128xi1>, vector<128x128xf32>
    %cst_170 = arith.constant dense<0.000000e+00> : vector<128xf32>
    %505 = vector.multi_reduction <add>, %504, %cst_170 [1] : vector<128x128xf32> to vector<128xf32>
    %506 = vector.shape_cast %505 : vector<128xf32> to vector<128x1xf32>
    %507 = vector.broadcast %506 : vector<128x1xf32> to vector<128x128xf32>
    %508 = arith.addf %408, %507 : vector<128x128xf32>
    %cst_171 = arith.constant dense<0xFF800000> : vector<128xf32>
    %509 = vector.multi_reduction <maximumf>, %508, %cst_171 [0] : vector<128x128xf32> to vector<128xf32>
    %510 = vector.shape_cast %509 : vector<128xf32> to vector<1x128xf32>
    %511 = vector.broadcast %510 : vector<1x128xf32> to vector<128x128xf32>
    %512 = arith.cmpf oge, %508, %511 : vector<128x128xf32>
    %513 = vector.broadcast %cst_139 : f32 to vector<128x128xf32>
    %514 = arith.select %512, %413, %513 : vector<128x128xi1>, vector<128x128xf32>
    %cst_172 = arith.constant dense<0x7F800000> : vector<128xf32>
    %515 = vector.multi_reduction <minimumf>, %514, %cst_172 [0] : vector<128x128xf32> to vector<128xf32>
    %516 = vector.shape_cast %515 : vector<128xf32> to vector<1x128xf32>
    %517 = arith.index_cast %c4_i32_168 : i32 to index
    %c0_173 = arith.constant 0 : index
    %518 = vector.load %arg20[%517, %c0_173] : memref<8x128xf32, #tpu.memory_space<vmem>>, vector<1x128xf32>
    tpu.vector_store %arg20[%517, %c0_173], %516 {strides = array<i32>} : memref<8x128xf32, #tpu.memory_space<vmem>>, vector<1x128xf32>,
    %519 = arith.index_cast %c4_i32_168 : i32 to index
    %c0_174 = arith.constant 0 : index
    %520 = vector.load %arg13[%519, %c0_174] : memref<8x128xf32, #tpu.memory_space<vmem>>, vector<1x128xf32>
    %521 = arith.addf %510, %520 : vector<1x128xf32>
    %c5_i32_175 = arith.constant 5 : i32
    %cst_176 = arith.constant 0.000000e+00 : f32
    %522 = vector.shape_cast %521 : vector<1x128xf32> to vector<1x128xf32>
    %523 = vector.broadcast %522 : vector<1x128xf32> to vector<128x128xf32>
    %524 = vector.broadcast %cst_176 : f32 to vector<128x128xf32>
    %525 = arith.select %411, %523, %524 : vector<128x128xi1>, vector<128x128xf32>
    %cst_177 = arith.constant dense<0.000000e+00> : vector<128xf32>
    %526 = vector.multi_reduction <add>, %525, %cst_177 [1] : vector<128x128xf32> to vector<128xf32>
    %527 = vector.shape_cast %526 : vector<128xf32> to vector<128x1xf32>
    %528 = vector.broadcast %527 : vector<128x1xf32> to vector<128x128xf32>
    %529 = arith.addf %408, %528 : vector<128x128xf32>
    %cst_178 = arith.constant dense<0xFF800000> : vector<128xf32>
    %530 = vector.multi_reduction <maximumf>, %529, %cst_178 [0] : vector<128x128xf32> to vector<128xf32>
    %531 = vector.shape_cast %530 : vector<128xf32> to vector<1x128xf32>
    %532 = vector.broadcast %531 : vector<1x128xf32> to vector<128x128xf32>
    %533 = arith.cmpf oge, %529, %532 : vector<128x128xf32>
    %534 = vector.broadcast %cst_139 : f32 to vector<128x128xf32>
    %535 = arith.select %533, %413, %534 : vector<128x128xi1>, vector<128x128xf32>
    %cst_179 = arith.constant dense<0x7F800000> : vector<128xf32>
    %536 = vector.multi_reduction <minimumf>, %535, %cst_179 [0] : vector<128x128xf32> to vector<128xf32>
    %537 = vector.shape_cast %536 : vector<128xf32> to vector<1x128xf32>
    %538 = arith.index_cast %c5_i32_175 : i32 to index
    %c0_180 = arith.constant 0 : index
    %539 = vector.load %arg20[%538, %c0_180] : memref<8x128xf32, #tpu.memory_space<vmem>>, vector<1x128xf32>
    tpu.vector_store %arg20[%538, %c0_180], %537 {strides = array<i32>} : memref<8x128xf32, #tpu.memory_space<vmem>>, vector<1x128xf32>,
    %540 = arith.index_cast %c5_i32_175 : i32 to index
    %c0_181 = arith.constant 0 : index
    %541 = vector.load %arg13[%540, %c0_181] : memref<8x128xf32, #tpu.memory_space<vmem>>, vector<1x128xf32>
    %542 = arith.addf %531, %541 : vector<1x128xf32>
    %c6_i32_182 = arith.constant 6 : i32
    %cst_183 = arith.constant 0.000000e+00 : f32
    %543 = vector.shape_cast %542 : vector<1x128xf32> to vector<1x128xf32>
    %544 = vector.broadcast %543 : vector<1x128xf32> to vector<128x128xf32>
    %545 = vector.broadcast %cst_183 : f32 to vector<128x128xf32>
    %546 = arith.select %411, %544, %545 : vector<128x128xi1>, vector<128x128xf32>
    %cst_184 = arith.constant dense<0.000000e+00> : vector<128xf32>
    %547 = vector.multi_reduction <add>, %546, %cst_184 [1] : vector<128x128xf32> to vector<128xf32>
    %548 = vector.shape_cast %547 : vector<128xf32> to vector<128x1xf32>
    %549 = vector.broadcast %548 : vector<128x1xf32> to vector<128x128xf32>
    %550 = arith.addf %408, %549 : vector<128x128xf32>
    %cst_185 = arith.constant dense<0xFF800000> : vector<128xf32>
    %551 = vector.multi_reduction <maximumf>, %550, %cst_185 [0] : vector<128x128xf32> to vector<128xf32>
    %552 = vector.shape_cast %551 : vector<128xf32> to vector<1x128xf32>
    %553 = vector.broadcast %552 : vector<1x128xf32> to vector<128x128xf32>
    %554 = arith.cmpf oge, %550, %553 : vector<128x128xf32>
    %555 = vector.broadcast %cst_139 : f32 to vector<128x128xf32>
    %556 = arith.select %554, %413, %555 : vector<128x128xi1>, vector<128x128xf32>
    %cst_186 = arith.constant dense<0x7F800000> : vector<128xf32>
    %557 = vector.multi_reduction <minimumf>, %556, %cst_186 [0] : vector<128x128xf32> to vector<128xf32>
    %558 = vector.shape_cast %557 : vector<128xf32> to vector<1x128xf32>
    %559 = arith.index_cast %c6_i32_182 : i32 to index
    %c0_187 = arith.constant 0 : index
    %560 = vector.load %arg20[%559, %c0_187] : memref<8x128xf32, #tpu.memory_space<vmem>>, vector<1x128xf32>
    tpu.vector_store %arg20[%559, %c0_187], %558 {strides = array<i32>} : memref<8x128xf32, #tpu.memory_space<vmem>>, vector<1x128xf32>,
    %561 = arith.index_cast %c6_i32_182 : i32 to index
    %c0_188 = arith.constant 0 : index
    %562 = vector.load %arg13[%561, %c0_188] : memref<8x128xf32, #tpu.memory_space<vmem>>, vector<1x128xf32>
    %563 = arith.addf %552, %562 : vector<1x128xf32>
    %c7_i32_189 = arith.constant 7 : i32
    %cst_190 = arith.constant 0.000000e+00 : f32
    %564 = vector.shape_cast %563 : vector<1x128xf32> to vector<1x128xf32>
    %565 = vector.broadcast %564 : vector<1x128xf32> to vector<128x128xf32>
    %566 = vector.broadcast %cst_190 : f32 to vector<128x128xf32>
    %567 = arith.select %411, %565, %566 : vector<128x128xi1>, vector<128x128xf32>
    %cst_191 = arith.constant dense<0.000000e+00> : vector<128xf32>
    %568 = vector.multi_reduction <add>, %567, %cst_191 [1] : vector<128x128xf32> to vector<128xf32>
    %569 = vector.shape_cast %568 : vector<128xf32> to vector<128x1xf32>
    %570 = vector.broadcast %569 : vector<128x1xf32> to vector<128x128xf32>
    %571 = arith.addf %408, %570 : vector<128x128xf32>
    %cst_192 = arith.constant dense<0xFF800000> : vector<128xf32>
    %572 = vector.multi_reduction <maximumf>, %571, %cst_192 [0] : vector<128x128xf32> to vector<128xf32>
    %573 = vector.shape_cast %572 : vector<128xf32> to vector<1x128xf32>
    %574 = vector.broadcast %573 : vector<1x128xf32> to vector<128x128xf32>
    %575 = arith.cmpf oge, %571, %574 : vector<128x128xf32>
    %576 = vector.broadcast %cst_139 : f32 to vector<128x128xf32>
    %577 = arith.select %575, %413, %576 : vector<128x128xi1>, vector<128x128xf32>
    %cst_193 = arith.constant dense<0x7F800000> : vector<128xf32>
    %578 = vector.multi_reduction <minimumf>, %577, %cst_193 [0] : vector<128x128xf32> to vector<128xf32>
    %579 = vector.shape_cast %578 : vector<128xf32> to vector<1x128xf32>
    %580 = arith.index_cast %c7_i32_189 : i32 to index
    %c0_194 = arith.constant 0 : index
    %581 = vector.load %arg20[%580, %c0_194] : memref<8x128xf32, #tpu.memory_space<vmem>>, vector<1x128xf32>
    tpu.vector_store %arg20[%580, %c0_194], %579 {strides = array<i32>} : memref<8x128xf32, #tpu.memory_space<vmem>>, vector<1x128xf32>,
    %582 = arith.index_cast %c7_i32_189 : i32 to index
    %c0_195 = arith.constant 0 : index
    %583 = vector.load %arg13[%582, %c0_195] : memref<8x128xf32, #tpu.memory_space<vmem>>, vector<1x128xf32>
    %584 = arith.addf %573, %583 : vector<1x128xf32>
    %c8_i32_196 = arith.constant 8 : i32
    %c0_197 = arith.constant 0 : index
    %c0_198 = arith.constant 0 : index
    %585 = vector.load %arg11[%c0_197, %c0_198] : memref<1x128xf32, #tpu.memory_space<vmem>>, vector<1x128xf32>
    %586 = arith.addf %584, %585 : vector<1x128xf32>
    %cst_199 = arith.constant dense<0xFF800000> : vector<1xf32>
    %587 = vector.multi_reduction <maximumf>, %586, %cst_199 [1] : vector<1x128xf32> to vector<1xf32>
    %588 = vector.shape_cast %587 : vector<1xf32> to vector<1x1xf32>
    %589 = vector.broadcast %588 : vector<1x1xf32> to vector<1x128xf32>
    %590 = arith.cmpf oge, %586, %589 : vector<1x128xf32>
    %cst_200 = arith.constant 1.280000e+02 : f32
    %591 = vector.broadcast %cst_200 : f32 to vector<1x128xf32>
    %592 = arith.select %590, %415, %591 : vector<1x128xi1>, vector<1x128xf32>
    %cst_201 = arith.constant dense<0x7F800000> : vector<1xf32>
    %593 = vector.multi_reduction <minimumf>, %592, %cst_201 [1] : vector<1x128xf32> to vector<1xf32>
    %594 = vector.shape_cast %593 : vector<1xf32> to vector<1x1xf32>
    %c0_i32_202 = arith.constant 0 : i32
    %c7_i32_203 = arith.constant 7 : i32
    %595 = arith.subi %c7_i32_203, %c0_i32_202 : i32
    %596 = vector.shape_cast %594 : vector<1x1xf32> to vector<1x1xf32>
    %597 = vector.broadcast %596 : vector<1x1xf32> to vector<1x128xf32>
    %598 = arith.fptosi %597 : vector<1x128xf32> to vector<1x128xi32>
    %599 = arith.index_cast %595 : i32 to index
    %c0_204 = arith.constant 0 : index
    %600 = vector.load %arg14[%599, %c0_204] : memref<8x128xi32, #tpu.memory_space<vmem>>, vector<1x128xi32>
    tpu.vector_store %arg14[%599, %c0_204], %598 {strides = array<i32>} : memref<8x128xi32, #tpu.memory_space<vmem>>, vector<1x128xi32>,
    %601 = arith.index_cast %595 : i32 to index
    %c0_205 = arith.constant 0 : index
    %602 = vector.load %arg20[%601, %c0_205] : memref<8x128xf32, #tpu.memory_space<vmem>>, vector<1x128xf32>
    %603 = vector.broadcast %594 : vector<1x1xf32> to vector<1x128xf32>
    %604 = arith.cmpf oeq, %415, %603 : vector<1x128xf32>
    %cst_206 = arith.constant 0.000000e+00 : f32
    %605 = vector.broadcast %cst_206 : f32 to vector<1x128xf32>
    %606 = arith.select %604, %602, %605 : vector<1x128xi1>, vector<1x128xf32>
    %cst_207 = arith.constant dense<0.000000e+00> : vector<1xf32>
    %607 = vector.multi_reduction <add>, %606, %cst_207 [1] : vector<1x128xf32> to vector<1xf32>
    %608 = vector.shape_cast %607 : vector<1xf32> to vector<1x1xf32>
    %c1_i32_208 = arith.constant 1 : i32
    %c7_i32_209 = arith.constant 7 : i32
    %609 = arith.subi %c7_i32_209, %c1_i32_208 : i32
    %610 = vector.shape_cast %608 : vector<1x1xf32> to vector<1x1xf32>
    %611 = vector.broadcast %610 : vector<1x1xf32> to vector<1x128xf32>
    %612 = arith.fptosi %611 : vector<1x128xf32> to vector<1x128xi32>
    %613 = arith.index_cast %609 : i32 to index
    %c0_210 = arith.constant 0 : index
    %614 = vector.load %arg14[%613, %c0_210] : memref<8x128xi32, #tpu.memory_space<vmem>>, vector<1x128xi32>
    tpu.vector_store %arg14[%613, %c0_210], %612 {strides = array<i32>} : memref<8x128xi32, #tpu.memory_space<vmem>>, vector<1x128xi32>,
    %615 = arith.index_cast %609 : i32 to index
    %c0_211 = arith.constant 0 : index
    %616 = vector.load %arg20[%615, %c0_211] : memref<8x128xf32, #tpu.memory_space<vmem>>, vector<1x128xf32>
    %617 = vector.broadcast %608 : vector<1x1xf32> to vector<1x128xf32>
    %618 = arith.cmpf oeq, %415, %617 : vector<1x128xf32>
    %cst_212 = arith.constant 0.000000e+00 : f32
    %619 = vector.broadcast %cst_212 : f32 to vector<1x128xf32>
    %620 = arith.select %618, %616, %619 : vector<1x128xi1>, vector<1x128xf32>
    %cst_213 = arith.constant dense<0.000000e+00> : vector<1xf32>
    %621 = vector.multi_reduction <add>, %620, %cst_213 [1] : vector<1x128xf32> to vector<1xf32>
    %622 = vector.shape_cast %621 : vector<1xf32> to vector<1x1xf32>
    %c2_i32_214 = arith.constant 2 : i32
    %c7_i32_215 = arith.constant 7 : i32
    %623 = arith.subi %c7_i32_215, %c2_i32_214 : i32
    %624 = vector.shape_cast %622 : vector<1x1xf32> to vector<1x1xf32>
    %625 = vector.broadcast %624 : vector<1x1xf32> to vector<1x128xf32>
    %626 = arith.fptosi %625 : vector<1x128xf32> to vector<1x128xi32>
    %627 = arith.index_cast %623 : i32 to index
    %c0_216 = arith.constant 0 : index
    %628 = vector.load %arg14[%627, %c0_216] : memref<8x128xi32, #tpu.memory_space<vmem>>, vector<1x128xi32>
    tpu.vector_store %arg14[%627, %c0_216], %626 {strides = array<i32>} : memref<8x128xi32, #tpu.memory_space<vmem>>, vector<1x128xi32>,
    %629 = arith.index_cast %623 : i32 to index
    %c0_217 = arith.constant 0 : index
    %630 = vector.load %arg20[%629, %c0_217] : memref<8x128xf32, #tpu.memory_space<vmem>>, vector<1x128xf32>
    %631 = vector.broadcast %622 : vector<1x1xf32> to vector<1x128xf32>
    %632 = arith.cmpf oeq, %415, %631 : vector<1x128xf32>
    %cst_218 = arith.constant 0.000000e+00 : f32
    %633 = vector.broadcast %cst_218 : f32 to vector<1x128xf32>
    %634 = arith.select %632, %630, %633 : vector<1x128xi1>, vector<1x128xf32>
    %cst_219 = arith.constant dense<0.000000e+00> : vector<1xf32>
    %635 = vector.multi_reduction <add>, %634, %cst_219 [1] : vector<1x128xf32> to vector<1xf32>
    %636 = vector.shape_cast %635 : vector<1xf32> to vector<1x1xf32>
    %c3_i32_220 = arith.constant 3 : i32
    %c7_i32_221 = arith.constant 7 : i32
    %637 = arith.subi %c7_i32_221, %c3_i32_220 : i32
    %638 = vector.shape_cast %636 : vector<1x1xf32> to vector<1x1xf32>
    %639 = vector.broadcast %638 : vector<1x1xf32> to vector<1x128xf32>
    %640 = arith.fptosi %639 : vector<1x128xf32> to vector<1x128xi32>
    %641 = arith.index_cast %637 : i32 to index
    %c0_222 = arith.constant 0 : index
    %642 = vector.load %arg14[%641, %c0_222] : memref<8x128xi32, #tpu.memory_space<vmem>>, vector<1x128xi32>
    tpu.vector_store %arg14[%641, %c0_222], %640 {strides = array<i32>} : memref<8x128xi32, #tpu.memory_space<vmem>>, vector<1x128xi32>,
    %643 = arith.index_cast %637 : i32 to index
    %c0_223 = arith.constant 0 : index
    %644 = vector.load %arg20[%643, %c0_223] : memref<8x128xf32, #tpu.memory_space<vmem>>, vector<1x128xf32>
    %645 = vector.broadcast %636 : vector<1x1xf32> to vector<1x128xf32>
    %646 = arith.cmpf oeq, %415, %645 : vector<1x128xf32>
    %cst_224 = arith.constant 0.000000e+00 : f32
    %647 = vector.broadcast %cst_224 : f32 to vector<1x128xf32>
    %648 = arith.select %646, %644, %647 : vector<1x128xi1>, vector<1x128xf32>
    %cst_225 = arith.constant dense<0.000000e+00> : vector<1xf32>
    %649 = vector.multi_reduction <add>, %648, %cst_225 [1] : vector<1x128xf32> to vector<1xf32>
    %650 = vector.shape_cast %649 : vector<1xf32> to vector<1x1xf32>
    %c4_i32_226 = arith.constant 4 : i32
    %c7_i32_227 = arith.constant 7 : i32
    %651 = arith.subi %c7_i32_227, %c4_i32_226 : i32
    %652 = vector.shape_cast %650 : vector<1x1xf32> to vector<1x1xf32>
    %653 = vector.broadcast %652 : vector<1x1xf32> to vector<1x128xf32>
    %654 = arith.fptosi %653 : vector<1x128xf32> to vector<1x128xi32>
    %655 = arith.index_cast %651 : i32 to index
    %c0_228 = arith.constant 0 : index
    %656 = vector.load %arg14[%655, %c0_228] : memref<8x128xi32, #tpu.memory_space<vmem>>, vector<1x128xi32>
    tpu.vector_store %arg14[%655, %c0_228], %654 {strides = array<i32>} : memref<8x128xi32, #tpu.memory_space<vmem>>, vector<1x128xi32>,
    %657 = arith.index_cast %651 : i32 to index
    %c0_229 = arith.constant 0 : index
    %658 = vector.load %arg20[%657, %c0_229] : memref<8x128xf32, #tpu.memory_space<vmem>>, vector<1x128xf32>
    %659 = vector.broadcast %650 : vector<1x1xf32> to vector<1x128xf32>
    %660 = arith.cmpf oeq, %415, %659 : vector<1x128xf32>
    %cst_230 = arith.constant 0.000000e+00 : f32
    %661 = vector.broadcast %cst_230 : f32 to vector<1x128xf32>
    %662 = arith.select %660, %658, %661 : vector<1x128xi1>, vector<1x128xf32>
    %cst_231 = arith.constant dense<0.000000e+00> : vector<1xf32>
    %663 = vector.multi_reduction <add>, %662, %cst_231 [1] : vector<1x128xf32> to vector<1xf32>
    %664 = vector.shape_cast %663 : vector<1xf32> to vector<1x1xf32>
    %c5_i32_232 = arith.constant 5 : i32
    %c7_i32_233 = arith.constant 7 : i32
    %665 = arith.subi %c7_i32_233, %c5_i32_232 : i32
    %666 = vector.shape_cast %664 : vector<1x1xf32> to vector<1x1xf32>
    %667 = vector.broadcast %666 : vector<1x1xf32> to vector<1x128xf32>
    %668 = arith.fptosi %667 : vector<1x128xf32> to vector<1x128xi32>
    %669 = arith.index_cast %665 : i32 to index
    %c0_234 = arith.constant 0 : index
    %670 = vector.load %arg14[%669, %c0_234] : memref<8x128xi32, #tpu.memory_space<vmem>>, vector<1x128xi32>
    tpu.vector_store %arg14[%669, %c0_234], %668 {strides = array<i32>} : memref<8x128xi32, #tpu.memory_space<vmem>>, vector<1x128xi32>,
    %671 = arith.index_cast %665 : i32 to index
    %c0_235 = arith.constant 0 : index
    %672 = vector.load %arg20[%671, %c0_235] : memref<8x128xf32, #tpu.memory_space<vmem>>, vector<1x128xf32>
    %673 = vector.broadcast %664 : vector<1x1xf32> to vector<1x128xf32>
    %674 = arith.cmpf oeq, %415, %673 : vector<1x128xf32>
    %cst_236 = arith.constant 0.000000e+00 : f32
    %675 = vector.broadcast %cst_236 : f32 to vector<1x128xf32>
    %676 = arith.select %674, %672, %675 : vector<1x128xi1>, vector<1x128xf32>
    %cst_237 = arith.constant dense<0.000000e+00> : vector<1xf32>
    %677 = vector.multi_reduction <add>, %676, %cst_237 [1] : vector<1x128xf32> to vector<1xf32>
    %678 = vector.shape_cast %677 : vector<1xf32> to vector<1x1xf32>
    %c6_i32_238 = arith.constant 6 : i32
    %c7_i32_239 = arith.constant 7 : i32
    %679 = arith.subi %c7_i32_239, %c6_i32_238 : i32
    %680 = vector.shape_cast %678 : vector<1x1xf32> to vector<1x1xf32>
    %681 = vector.broadcast %680 : vector<1x1xf32> to vector<1x128xf32>
    %682 = arith.fptosi %681 : vector<1x128xf32> to vector<1x128xi32>
    %683 = arith.index_cast %679 : i32 to index
    %c0_240 = arith.constant 0 : index
    %684 = vector.load %arg14[%683, %c0_240] : memref<8x128xi32, #tpu.memory_space<vmem>>, vector<1x128xi32>
    tpu.vector_store %arg14[%683, %c0_240], %682 {strides = array<i32>} : memref<8x128xi32, #tpu.memory_space<vmem>>, vector<1x128xi32>,
    %685 = arith.index_cast %679 : i32 to index
    %c0_241 = arith.constant 0 : index
    %686 = vector.load %arg20[%685, %c0_241] : memref<8x128xf32, #tpu.memory_space<vmem>>, vector<1x128xf32>
    %687 = vector.broadcast %678 : vector<1x1xf32> to vector<1x128xf32>
    %688 = arith.cmpf oeq, %415, %687 : vector<1x128xf32>
    %cst_242 = arith.constant 0.000000e+00 : f32
    %689 = vector.broadcast %cst_242 : f32 to vector<1x128xf32>
    %690 = arith.select %688, %686, %689 : vector<1x128xi1>, vector<1x128xf32>
    %cst_243 = arith.constant dense<0.000000e+00> : vector<1xf32>
    %691 = vector.multi_reduction <add>, %690, %cst_243 [1] : vector<1x128xf32> to vector<1xf32>
    %692 = vector.shape_cast %691 : vector<1xf32> to vector<1x1xf32>
    %c7_i32_244 = arith.constant 7 : i32
    %c7_i32_245 = arith.constant 7 : i32
    %693 = arith.subi %c7_i32_245, %c7_i32_244 : i32
    %694 = vector.shape_cast %692 : vector<1x1xf32> to vector<1x1xf32>
    %695 = vector.broadcast %694 : vector<1x1xf32> to vector<1x128xf32>
    %696 = arith.fptosi %695 : vector<1x128xf32> to vector<1x128xi32>
    %697 = arith.index_cast %693 : i32 to index
    %c0_246 = arith.constant 0 : index
    %698 = vector.load %arg14[%697, %c0_246] : memref<8x128xi32, #tpu.memory_space<vmem>>, vector<1x128xi32>
    tpu.vector_store %arg14[%697, %c0_246], %696 {strides = array<i32>} : memref<8x128xi32, #tpu.memory_space<vmem>>, vector<1x128xi32>,
    %699 = arith.index_cast %693 : i32 to index
    %c0_247 = arith.constant 0 : index
    %700 = vector.load %arg20[%699, %c0_247] : memref<8x128xf32, #tpu.memory_space<vmem>>, vector<1x128xf32>
    %701 = vector.broadcast %692 : vector<1x1xf32> to vector<1x128xf32>
    %702 = arith.cmpf oeq, %415, %701 : vector<1x128xf32>
    %cst_248 = arith.constant 0.000000e+00 : f32
    %703 = vector.broadcast %cst_248 : f32 to vector<1x128xf32>
    %704 = arith.select %702, %700, %703 : vector<1x128xi1>, vector<1x128xf32>
    %cst_249 = arith.constant dense<0.000000e+00> : vector<1xf32>
    %705 = vector.multi_reduction <add>, %704, %cst_249 [1] : vector<1x128xf32> to vector<1xf32>
    %706 = vector.shape_cast %705 : vector<1xf32> to vector<1x1xf32>
    %c8_i32_250 = arith.constant 8 : i32
    %cst_251 = arith.constant 0.000000e+00 : f32
    %707 = vector.broadcast %cst_251 : f32 to vector<8x128xf32>
    %c0_252 = arith.constant 0 : index
    %c0_253 = arith.constant 0 : index
    %708 = vector.load %arg15[%c0_252, %c0_253] : memref<8x128xf32, #tpu.memory_space<vmem>>, vector<8x128xf32>
    tpu.vector_store %arg15[%c0_252, %c0_253], %707 {strides = array<i32>} : memref<8x128xf32, #tpu.memory_space<vmem>>, vector<8x128xf32>,
    %709 = vector.shape_cast %706 : vector<1x1xf32> to vector<1x1xf32>
    %710 = vector.broadcast %709 : vector<1x1xf32> to vector<1x128xf32>
    %c0_254 = arith.constant 0 : index
    %c0_255 = arith.constant 0 : index
    %711 = vector.load %arg15[%c0_254, %c0_255] : memref<8x128xf32, #tpu.memory_space<vmem>>, vector<1x128xf32>
    tpu.vector_store %arg15[%c0_254, %c0_255], %710 {strides = array<i32>} : memref<8x128xf32, #tpu.memory_space<vmem>>, vector<1x128xf32>,
    %712 = vector.shape_cast %588 : vector<1x1xf32> to vector<1x1xf32>
    %713 = vector.broadcast %712 : vector<1x1xf32> to vector<1x128xf32>
    %c1_256 = arith.constant 1 : index
    %c0_257 = arith.constant 0 : index
    %714 = vector.load %arg15[%c1_256, %c0_257] : memref<8x128xf32, #tpu.memory_space<vmem>>, vector<1x128xf32>
    tpu.vector_store %arg15[%c1_256, %c0_257], %713 {strides = array<i32>} : memref<8x128xf32, #tpu.memory_space<vmem>>, vector<1x128xf32>,
    return
  }
}

</mosaic_0001>

<llo_original>
// kernel: _forward_device.1
$region0: #{_forward_device.1}
  #allocation0 [shape = 'u32[]', space=smem, size = 0x4, offset = 0x4, fixed_abs, tag = 'smem constant byte address 0x4 - core index']
  #allocation1 [shape = 'u32[144,128]{1,0:T(1,128)}', space=vmem, size = 0x12000, scoped, tag = 'internal scratch']
  #allocation2 [shape = 'f32[8,512]{1,0:T(8,128)}', space=vmem, size = 0x4000, scoped, tag = 'scratch operand']
  #allocation3 [shape = 'f32[8,512]{1,0:T(8,128)}', space=vmem, size = 0x4000, scoped, tag = 'scratch operand']
  #allocation4 [shape = 'f32[8,128]{1,0:T(8,128)}', space=vmem, size = 0x1000, scoped, tag = 'scratch operand']
  #allocation5 [shape = 'f32[8,128]{1,0:T(8,128)}', space=vmem, size = 0x1000, scoped, tag = 'scratch operand']
  #allocation6 [shape = 'f32[8,128]{1,0:T(8,128)}', space=vmem, size = 0x1000, scoped, tag = 'scratch operand']
  %s0 = inlined_call_operand.vmem [shape: s32[8,1], index: 0, kind: input, shape index: {}]
  %s1 = inlined_call_operand.hbm [shape: f32[128,128], index: 1, kind: input, shape index: {}]
  %s2 = inlined_call_operand.hbm [shape: f32[128,1024], index: 2, kind: input, shape index: {}]
  %s3 = inlined_call_operand.vmem [shape: f32[1,1024], index: 3, kind: input, shape index: {}]
  %s4 = inlined_call_operand.hbm [shape: f32[128,512], index: 4, kind: input, shape index: {}]
  %s5 = inlined_call_operand.hbm [shape: f32[128,512], index: 5, kind: input, shape index: {}]
  %s6 = inlined_call_operand.vmem [shape: f32[8,128], index: 6, kind: input, shape index: {}]
  %s7 = inlined_call_operand.hbm [shape: f32[128,128], index: 7, kind: input, shape index: {}]
  %s8 = inlined_call_operand.hbm [shape: f32[128,128], index: 8, kind: input, shape index: {}]
  %s9 = inlined_call_operand.hbm [shape: f32[1,128], index: 9, kind: input, shape index: {}]
  %s10 = inlined_call_operand.hbm [shape: f32[128,128], index: 10, kind: input, shape index: {}]
  %s11 = inlined_call_operand.vmem [shape: f32[1,128], index: 11, kind: input, shape index: {}]
  %s12 = inlined_call_operand.vmem [shape: f32[1,128], index: 12, kind: input, shape index: {}]
  %s13 = inlined_call_operand.hbm [shape: f32[8,128], index: 13, kind: output, shape index: {0}]
  %s14 = inlined_call_operand.vmem [shape: s32[8,128], index: 14, kind: output, shape index: {1}]
  %s15 = inlined_call_operand.vmem [shape: f32[8,128], index: 15, kind: output, shape index: {2}]
  %16 = xla_tuple %s13, %s14, %s15
  %s17 = sld [smem:[#allocation0]]
  $region110: #{_forward_device.1} parent=0
    _
  %s19 = ssub.s32 1, %s17
  %s20 = scalar_select 0, %s19, %s17
  $region1: #{_forward_device.1} parent=0
    #allocation7 [shape = 'u8[65536]{0}', space=vmem, size = 0x10000, scoped, tag = 'input window, operand 1, single buffered']
    #allocation8 [shape = 's32[1]{0}', space=sflag, size = 0x4, scoped, tag = 'scoped memory for _forward_device.1']
    #allocation9 [shape = 's32[1]{0}', space=sflag, size = 0x4, scoped, tag = 'scoped memory for _forward_device.1']
    #allocation10 [shape = 'u8[524288]{0}', space=vmem, size = 0x80000, scoped, tag = 'input window, operand 2, single buffered']
    #allocation11 [shape = 's32[1]{0}', space=sflag, size = 0x4, scoped, tag = 'scoped memory for _forward_device.1']
    #allocation12 [shape = 'u8[262144]{0}', space=vmem, size = 0x40000, scoped, tag = 'input window, operand 4, single buffered']
    #allocation13 [shape = 'u8[262144]{0}', space=vmem, size = 0x40000, scoped, tag = 'input window, operand 5, single buffered']
    #allocation14 [shape = 's32[1]{0}', space=sflag, size = 0x4, scoped, tag = 'scoped memory for _forward_device.1']
    #allocation15 [shape = 'u8[65536]{0}', space=vmem, size = 0x10000, scoped, tag = 'input window, operand 7, single buffered']
    #allocation16 [shape = 'u8[65536]{0}', space=vmem, size = 0x10000, scoped, tag = 'input window, operand 8, single buffered']
    #allocation17 [shape = 's32[1]{0}', space=sflag, size = 0x4, scoped, tag = 'scoped memory for _forward_device.1']
    #allocation18 [shape = 'u8[512]{0}', space=vmem, size = 0x400, scoped, tag = 'input window, operand 9, single buffered']
    #allocation19 [shape = 'u8[65536]{0}', space=vmem, size = 0x10000, scoped, tag = 'input window, operand 10, single buffered']
    #allocation20 [shape = 's32[1]{0}', space=sflag, size = 0x4, scoped, tag = 'scoped memory for _forward_device.1']
    #allocation21 [shape = 'u8[4096]{0}', space=vmem, size = 0x1000, scoped, tag = 'output window, operand 0, single buffered']
    %21 = vsyncpa [#allocation8], 0
    %22 = vsyncpa [#allocation11], 0
    %23 = vsyncpa [#allocation14], 0
    %24 = vsyncpa [#allocation17], 0
    %25 = vsyncpa [#allocation20], 0
    %26 = vsyncpa [#allocation9], 0
    // Predicated region
    $region2: #{_forward_device.1} parent=1 // pred_check
      _
    $region3: #{_forward_device.1} parent=1 // pred_check_branch
      %28 = sbr.rel (0) target = $region5
    $region4: #{_forward_device.1} parent=1 // pred_region
      _
    $region5: #{_forward_device.1} parent=1 // pred_fallthru
      _
    // Predicated region
    $region6: #{_forward_device.1} parent=1 // pred_check
      _
    $region7: #{_forward_device.1} parent=1 // pred_check_branch
      %30 = sbr.rel (0) target = $region9
    $region8: #{_forward_device.1} parent=1 // pred_region
      %s32 = ssub.s32 2048, 2048
      %33 = vsyncadd [#allocation8], %s32
      %s34 = sshll.u32 [#allocation7], 4
      %s35 = int_to_ptr.vmem [resolvable:$true] %s34
      %40 = dma.hbm_to_vmem [thread:$0]  %s1, 2048, %s35, [#allocation8], 128, 128, 8
    $region9: #{_forward_device.1} parent=1 // pred_fallthru
      _
    // Predicated region
    $region10: #{_forward_device.1} parent=1 // pred_check
      _
    $region11: #{_forward_device.1} parent=1 // pred_check_branch
      %42 = sbr.rel (0) target = $region13
    $region12: #{_forward_device.1} parent=1 // pred_region
      %s44 = ssub.s32 16384, 16384
      %45 = vsyncadd [#allocation11], %s44
      %s46 = sshll.u32 [#allocation10], 4
      %s47 = int_to_ptr.vmem [resolvable:$true] %s46
      %52 = dma.hbm_to_vmem [thread:$0]  %s2, 16384, %s47, [#allocation11], 1024, 1024, 64
    $region13: #{_forward_device.1} parent=1 // pred_fallthru
      _
    // Predicated region
    $region14: #{_forward_device.1} parent=1 // pred_check
      _
    $region15: #{_forward_device.1} parent=1 // pred_check_branch
      %54 = sbr.rel (0) target = $region17
    $region16: #{_forward_device.1} parent=1 // pred_region
      _
    $region17: #{_forward_device.1} parent=1 // pred_fallthru
      _
    // Predicated region
    $region18: #{_forward_device.1} parent=1 // pred_check
      _
    $region19: #{_forward_device.1} parent=1 // pred_check_branch
      %56 = sbr.rel (0) target = $region21
    $region20: #{_forward_device.1} parent=1 // pred_region
      %s58 = ssub.s32 8192, 8192
      %59 = vsyncadd [#allocation11], %s58
      %s60 = sshll.u32 [#allocation12], 4
      %s61 = int_to_ptr.vmem [resolvable:$true] %s60
      %66 = dma.hbm_to_vmem [thread:$0]  %s4, 8192, %s61, [#allocation11], 512, 512, 32
    $region21: #{_forward_device.1} parent=1 // pred_fallthru
      _
    // Predicated region
    $region22: #{_forward_device.1} parent=1 // pred_check
      _
    $region23: #{_forward_device.1} parent=1 // pred_check_branch
      %68 = sbr.rel (0) target = $region25
    $region24: #{_forward_device.1} parent=1 // pred_region
      %s70 = ssub.s32 8192, 8192
      %71 = vsyncadd [#allocation14], %s70
      %s72 = sshll.u32 [#allocation13], 4
      %s73 = int_to_ptr.vmem [resolvable:$true] %s72
      %78 = dma.hbm_to_vmem [thread:$0]  %s5, 8192, %s73, [#allocation14], 512, 512, 32
    $region25: #{_forward_device.1} parent=1 // pred_fallthru
      _
    // Predicated region
    $region26: #{_forward_device.1} parent=1 // pred_check
      _
    $region27: #{_forward_device.1} parent=1 // pred_check_branch
      %80 = sbr.rel (0) target = $region29
    $region28: #{_forward_device.1} parent=1 // pred_region
      _
    $region29: #{_forward_device.1} parent=1 // pred_fallthru
      _
    // Predicated region
    $region30: #{_forward_device.1} parent=1 // pred_check
      _
    $region31: #{_forward_device.1} parent=1 // pred_check_branch
      %82 = sbr.rel (0) target = $region33
    $region32: #{_forward_device.1} parent=1 // pred_region
      %s84 = ssub.s32 2048, 2048
      %85 = vsyncadd [#allocation14], %s84
      %s86 = sshll.u32 [#allocation15], 4
      %s87 = int_to_ptr.vmem [resolvable:$true] %s86
      %92 = dma.hbm_to_vmem [thread:$0]  %s7, 2048, %s87, [#allocation14], 128, 128, 8
    $region33: #{_forward_device.1} parent=1 // pred_fallthru
      _
    // Predicated region
    $region34: #{_forward_device.1} parent=1 // pred_check
      _
    $region35: #{_forward_device.1} parent=1 // pred_check_branch
      %94 = sbr.rel (0) target = $region37
    $region36: #{_forward_device.1} parent=1 // pred_region
      %s96 = ssub.s32 2048, 2048
      %97 = vsyncadd [#allocation17], %s96
      %s98 = sshll.u32 [#allocation16], 4
      %s99 = int_to_ptr.vmem [resolvable:$true] %s98
      %104 = dma.hbm_to_vmem [thread:$0]  %s8, 2048, %s99, [#allocation17], 128, 128, 8
    $region37: #{_forward_device.1} parent=1 // pred_fallthru
      _
    // Predicated region
    $region38: #{_forward_device.1} parent=1 // pred_check
      _
    $region39: #{_forward_device.1} parent=1 // pred_check_branch
      %106 = sbr.rel (0) target = $region41
    $region40: #{_forward_device.1} parent=1 // pred_region
      %s108 = ssub.s32 16, 16
      %109 = vsyncadd [#allocation17], %s108
      %s111 = sshll.u32 [#allocation18], 4
      %s112 = int_to_ptr.vmem [resolvable:$true] %s111
      %114 = dma.hbm_to_vmem [thread:$0]  %s9, 16, %s112, [#allocation17]
    $region41: #{_forward_device.1} parent=1 // pred_fallthru
      _
    // Predicated region
    $region42: #{_forward_device.1} parent=1 // pred_check
      _
    $region43: #{_forward_device.1} parent=1 // pred_check_branch
      %116 = sbr.rel (0) target = $region45
    $region44: #{_forward_device.1} parent=1 // pred_region
      %s118 = ssub.s32 2048, 2048
      %119 = vsyncadd [#allocation20], %s118
      %s120 = sshll.u32 [#allocation19], 4
      %s121 = int_to_ptr.vmem [resolvable:$true] %s120
      %126 = dma.hbm_to_vmem [thread:$0]  %s10, 2048, %s121, [#allocation20], 128, 128, 8
    $region45: #{_forward_device.1} parent=1 // pred_fallthru
      _
    // Predicated region
    $region46: #{_forward_device.1} parent=1 // pred_check
      _
    $region47: #{_forward_device.1} parent=1 // pred_check_branch
      %128 = sbr.rel (0) target = $region49
    $region48: #{_forward_device.1} parent=1 // pred_region
      _
    $region49: #{_forward_device.1} parent=1 // pred_fallthru
      _
    // Predicated region
    $region50: #{_forward_device.1} parent=1 // pred_check
      _
    $region51: #{_forward_device.1} parent=1 // pred_check_branch
      %130 = sbr.rel (0) target = $region53
    $region52: #{_forward_device.1} parent=1 // pred_region
      _
    $region53: #{_forward_device.1} parent=1 // pred_fallthru
      _
    // Predicated region
    $region54: #{_forward_device.1} parent=1 // pred_check
      _
    $region55: #{_forward_device.1} parent=1 // pred_check_branch
      %132 = sbr.rel (0) target = $region57
    $region56: #{_forward_device.1} parent=1 // pred_region
      %133 = dma.done [#allocation8], 2048
    $region57: #{_forward_device.1} parent=1 // pred_fallthru
      _
    // Predicated region
    $region58: #{_forward_device.1} parent=1 // pred_check
      _
    $region59: #{_forward_device.1} parent=1 // pred_check_branch
      %135 = sbr.rel (0) target = $region61
    $region60: #{_forward_device.1} parent=1 // pred_region
      %136 = dma.done [#allocation11], 16384
    $region61: #{_forward_device.1} parent=1 // pred_fallthru
      _
    // Predicated region
    $region62: #{_forward_device.1} parent=1 // pred_check
      _
    $region63: #{_forward_device.1} parent=1 // pred_check_branch
      %138 = sbr.rel (0) target = $region65
    $region64: #{_forward_device.1} parent=1 // pred_region
      %139 = dma.done [#allocation11], 8192
    $region65: #{_forward_device.1} parent=1 // pred_fallthru
      _
    // Predicated region
    $region66: #{_forward_device.1} parent=1 // pred_check
      _
    $region67: #{_forward_device.1} parent=1 // pred_check_branch
      %141 = sbr.rel (0) target = $region69
    $region68: #{_forward_device.1} parent=1 // pred_region
      %142 = dma.done [#allocation14], 8192
    $region69: #{_forward_device.1} parent=1 // pred_fallthru
      _
    // Predicated region
    $region70: #{_forward_device.1} parent=1 // pred_check
      _
    $region71: #{_forward_device.1} parent=1 // pred_check_branch
      %144 = sbr.rel (0) target = $region73
    $region72: #{_forward_device.1} parent=1 // pred_region
      %145 = dma.done [#allocation14], 2048
    $region73: #{_forward_device.1} parent=1 // pred_fallthru
      _
    // Predicated region
    $region74: #{_forward_device.1} parent=1 // pred_check
      _
    $region75: #{_forward_device.1} parent=1 // pred_check_branch
      %147 = sbr.rel (0) target = $region77
    $region76: #{_forward_device.1} parent=1 // pred_region
      %148 = dma.done [#allocation17], 2048
    $region77: #{_forward_device.1} parent=1 // pred_fallthru
      _
    // Predicated region
    $region78: #{_forward_device.1} parent=1 // pred_check
      _
    $region79: #{_forward_device.1} parent=1 // pred_check_branch
      %150 = sbr.rel (0) target = $region81
    $region80: #{_forward_device.1} parent=1 // pred_region
      %151 = dma.done [#allocation17], 16
    $region81: #{_forward_device.1} parent=1 // pred_fallthru
      _
    // Predicated region
    $region82: #{_forward_device.1} parent=1 // pred_check
      _
    $region83: #{_forward_device.1} parent=1 // pred_check_branch
      %153 = sbr.rel (0) target = $region85
    $region84: #{_forward_device.1} parent=1 // pred_region
      %154 = dma.done [#allocation20], 2048
    $region85: #{_forward_device.1} parent=1 // pred_fallthru
      _
    %v155 = vld [vmem:[%s0] sm:$0xff]
    %v156 = vlaneseq
    %v157 = vand.u32 %v156, 127
    %158 = vset.pattern.permute.xlu0 0
    %159 = vperm.xlu0 %158, %v155
    %v160 = vpop.permute.xlu0 %159
    %vm161 = vcmp.eq.s32.totalorder %v160, %v157
    %v162 = vsel %vm161, 1, 0
    %v163 = vcvt.s32.f32 %v162
    %v164 = vld [vmem:[#allocation7] sm:$0xff]
    %v165 = vld [vmem:[#allocation7 + $0x8] sm:$0xff]
    %v166 = vld [vmem:[#allocation7 + $0x10] sm:$0xff]
    %v167 = vld [vmem:[#allocation7 + $0x18] sm:$0xff]
    %v168 = vld [vmem:[#allocation7 + $0x20] sm:$0xff]
    %v169 = vld [vmem:[#allocation7 + $0x28] sm:$0xff]
    %v170 = vld [vmem:[#allocation7 + $0x30] sm:$0xff]
    %v171 = vld [vmem:[#allocation7 + $0x38] sm:$0xff]
    %v172 = vld [vmem:[#allocation7 + $0x40] sm:$0xff]
    %v173 = vld [vmem:[#allocation7 + $0x48] sm:$0xff]
    %v174 = vld [vmem:[#allocation7 + $0x50] sm:$0xff]
    %v175 = vld [vmem:[#allocation7 + $0x58] sm:$0xff]
    %v176 = vld [vmem:[#allocation7 + $0x60] sm:$0xff]
    %v177 = vld [vmem:[#allocation7 + $0x68] sm:$0xff]
    %v178 = vld [vmem:[#allocation7 + $0x70] sm:$0xff]
    %v179 = vld [vmem:[#allocation7 + $0x78] sm:$0xff]
    %180 = vmatprep.subr.mxu0 0.0
    %181 = vmatpush1.msra.mxu0 %v179
    %182 = vmatprep.subr.mxu0 0.0
    %183 = vmatpush1.msra.mxu0 %v178
    %184 = vmatprep.subr.mxu0 0.0
    %185 = vmatpush1.msra.mxu0 %v177
    %186 = vmatprep.subr.mxu0 0.0
    %187 = vmatpush1.msra.mxu0 %v176
    %188 = vmatprep.subr.mxu0 0.0
    %189 = vmatpush1.msra.mxu0 %v175
    %190 = vmatprep.subr.mxu0 0.0
    %191 = vmatpush1.msra.mxu0 %v174
    %192 = vmatprep.subr.mxu0 0.0
    %193 = vmatpush1.msra.mxu0 %v173
    %194 = vmatprep.subr.mxu0 0.0
    %195 = vmatpush1.msra.mxu0 %v172
    %196 = vmatprep.subr.mxu0 0.0
    %197 = vmatpush1.msra.mxu0 %v171
    %198 = vmatprep.subr.mxu0 0.0
    %199 = vmatpush1.msra.mxu0 %v170
    %200 = vmatprep.subr.mxu0 0.0
    %201 = vmatpush1.msra.mxu0 %v169
    %202 = vmatprep.subr.mxu0 0.0
    %203 = vmatpush1.msra.mxu0 %v168
    %204 = vmatprep.subr.mxu0 0.0
    %205 = vmatpush1.msra.mxu0 %v167
    %206 = vmatprep.subr.mxu0 0.0
    %207 = vmatpush1.msra.mxu0 %v166
    %208 = vmatprep.subr.mxu0 0.0
    %209 = vmatpush1.msra.mxu0 %v165
    %210 = vmatprep.subr.mxu0 0.0
    %211 = vmatpush1.msra.mxu0 %v164
    %212 = vmatprep.subr.mxu0 0.0
    %213 = vmatpush2.msra.mxu0 0.0
    %214 = vmatprep.subr.mxu0 0.0
    %215 = vmatpush2.msra.mxu0 0.0
    %216 = vmatprep.subr.mxu0 0.0
    %217 = vmatpush2.msra.mxu0 0.0
    %218 = vmatprep.subr.mxu0 0.0
    %219 = vmatpush2.msra.mxu0 0.0
    %220 = vmatprep.subr.mxu0 0.0
    %221 = vmatpush2.msra.mxu0 0.0
    %222 = vmatprep.subr.mxu0 0.0
    %223 = vmatpush2.msra.mxu0 0.0
    %224 = vmatprep.subr.mxu0 0.0
    %225 = vmatpush2.msra.mxu0 0.0
    %226 = vmatprep.subr.mxu0 0.0
    %227 = vmatpush2.msra.mxu0 0.0
    %228 = vmatprep.subr.mxu0 0.0
    %229 = vmatpush2.msra.mxu0 0.0
    %230 = vmatprep.subr.mxu0 0.0
    %231 = vmatpush2.msra.mxu0 0.0
    %232 = vmatprep.subr.mxu0 0.0
    %233 = vmatpush2.msra.mxu0 0.0
    %234 = vmatprep.subr.mxu0 0.0
    %235 = vmatpush2.msra.mxu0 0.0
    %236 = vmatprep.subr.mxu0 0.0
    %237 = vmatpush2.msra.mxu0 0.0
    %238 = vmatprep.subr.mxu0 0.0
    %239 = vmatpush2.msra.mxu0 0.0
    %240 = vmatprep.subr.mxu0 0.0
    %241 = vmatpush2.msra.mxu0 0.0
    %242 = vmatprep.subr.mxu0 0.0
    %243 = vmatpush2.msra.mxu0 0.0
    %244 = vmatprep.mubr.f32.mxu0 0.0
    %245 = vmatmul.mubr.f32.gmra.mxu0 %v163
    %v246 = vpop.f32.mrf.mxu0
    %v247 = vadd.f32 0.0, %v246
    %v248 = vpop.f32.mrf.mxu0
    %249 = vdwg.mxu0
    %v250 = vld [vmem:[#allocation10] sm:$0xff]
    %v251 = vld [vmem:[#allocation10 + $0x8] sm:$0xff]
    %v252 = vld [vmem:[#allocation10 + $0x10] sm:$0xff]
    %v253 = vld [vmem:[#allocation10 + $0x18] sm:$0xff]
    %v254 = vld [vmem:[#allocation10 + $0x20] sm:$0xff]
    %v255 = vld [vmem:[#allocation10 + $0x28] sm:$0xff]
    %v256 = vld [vmem:[#allocation10 + $0x30] sm:$0xff]
    %v257 = vld [vmem:[#allocation10 + $0x38] sm:$0xff]
    %v258 = vld [vmem:[#allocation10 + $0x40] sm:$0xff]
    %v259 = vld [vmem:[#allocation10 + $0x48] sm:$0xff]
    %v260 = vld [vmem:[#allocation10 + $0x50] sm:$0xff]
    %v261 = vld [vmem:[#allocation10 + $0x58] sm:$0xff]
    %v262 = vld [vmem:[#allocation10 + $0x60] sm:$0xff]
    %v263 = vld [vmem:[#allocation10 + $0x68] sm:$0xff]
    %v264 = vld [vmem:[#allocation10 + $0x70] sm:$0xff]
    %v265 = vld [vmem:[#allocation10 + $0x78] sm:$0xff]
    %v266 = vld [vmem:[#allocation10 + $0x80] sm:$0xff]
    %v267 = vld [vmem:[#allocation10 + $0x88] sm:$0xff]
    %v268 = vld [vmem:[#allocation10 + $0x90] sm:$0xff]
    %v269 = vld [vmem:[#allocation10 + $0x98] sm:$0xff]
    %v270 = vld [vmem:[#allocation10 + $0xa0] sm:$0xff]
    %v271 = vld [vmem:[#allocation10 + $0xa8] sm:$0xff]
    %v272 = vld [vmem:[#allocation10 + $0xb0] sm:$0xff]
    %v273 = vld [vmem:[#allocation10 + $0xb8] sm:$0xff]
    %v274 = vld [vmem:[#allocation10 + $0xc0] sm:$0xff]
    %v275 = vld [vmem:[#allocation10 + $0xc8] sm:$0xff]
    %v276 = vld [vmem:[#allocation10 + $0xd0] sm:$0xff]
    %v277 = vld [vmem:[#allocation10 + $0xd8] sm:$0xff]
    %v278 = vld [vmem:[#allocation10 + $0xe0] sm:$0xff]
    %v279 = vld [vmem:[#allocation10 + $0xe8] sm:$0xff]
    %v280 = vld [vmem:[#allocation10 + $0xf0] sm:$0xff]
    %v281 = vld [vmem:[#allocation10 + $0xf8] sm:$0xff]
    %v282 = vld [vmem:[#allocation10 + $0x100] sm:$0xff]
    %v283 = vld [vmem:[#allocation10 + $0x108] sm:$0xff]
    %v284 = vld [vmem:[#allocation10 + $0x110] sm:$0xff]
    %v285 = vld [vmem:[#allocation10 + $0x118] sm:$0xff]
    %v286 = vld [vmem:[#allocation10 + $0x120] sm:$0xff]
    %v287 = vld [vmem:[#allocation10 + $0x128] sm:$0xff]
    %v288 = vld [vmem:[#allocation10 + $0x130] sm:$0xff]
    %v289 = vld [vmem:[#allocation10 + $0x138] sm:$0xff]
    %v290 = vld [vmem:[#allocation10 + $0x140] sm:$0xff]
    %v291 = vld [vmem:[#allocation10 + $0x148] sm:$0xff]
    %v292 = vld [vmem:[#allocation10 + $0x150] sm:$0xff]
    %v293 = vld [vmem:[#allocation10 + $0x158] sm:$0xff]
    %v294 = vld [vmem:[#allocation10 + $0x160] sm:$0xff]
    %v295 = vld [vmem:[#allocation10 + $0x168] sm:$0xff]
    %v296 = vld [vmem:[#allocation10 + $0x170] sm:$0xff]
    %v297 = vld [vmem:[#allocation10 + $0x178] sm:$0xff]
    %v298 = vld [vmem:[#allocation10 + $0x180] sm:$0xff]
    %v299 = vld [vmem:[#allocation10 + $0x188] sm:$0xff]
    %v300 = vld [vmem:[#allocation10 + $0x190] sm:$0xff]
    %v301 = vld [vmem:[#allocation10 + $0x198] sm:$0xff]
    %v302 = vld [vmem:[#allocation10 + $0x1a0] sm:$0xff]
    %v303 = vld [vmem:[#allocation10 + $0x1a8] sm:$0xff]
    %v304 = vld [vmem:[#allocation10 + $0x1b0] sm:$0xff]
    %v305 = vld [vmem:[#allocation10 + $0x1b8] sm:$0xff]
    %v306 = vld [vmem:[#allocation10 + $0x1c0] sm:$0xff]
    %v307 = vld [vmem:[#allocation10 + $0x1c8] sm:$0xff]
    %v308 = vld [vmem:[#allocation10 + $0x1d0] sm:$0xff]
    %v309 = vld [vmem:[#allocation10 + $0x1d8] sm:$0xff]
    %v310 = vld [vmem:[#allocation10 + $0x1e0] sm:$0xff]
    %v311 = vld [vmem:[#allocation10 + $0x1e8] sm:$0xff]
    %v312 = vld [vmem:[#allocation10 + $0x1f0] sm:$0xff]
    %v313 = vld [vmem:[#allocation10 + $0x1f8] sm:$0xff]
    %v314 = vld [vmem:[#allocation10 + $0x200] sm:$0xff]
    %v315 = vld [vmem:[#allocation10 + $0x208] sm:$0xff]
    %v316 = vld [vmem:[#allocation10 + $0x210] sm:$0xff]
    %v317 = vld [vmem:[#allocation10 + $0x218] sm:$0xff]
    %v318 = vld [vmem:[#allocation10 + $0x220] sm:$0xff]
    %v319 = vld [vmem:[#allocation10 + $0x228] sm:$0xff]
    %v320 = vld [vmem:[#allocation10 + $0x230] sm:$0xff]
    %v321 = vld [vmem:[#allocation10 + $0x238] sm:$0xff]
    %v322 = vld [vmem:[#allocation10 + $0x240] sm:$0xff]
    %v323 = vld [vmem:[#allocation10 + $0x248] sm:$0xff]
    %v324 = vld [vmem:[#allocation10 + $0x250] sm:$0xff]
    %v325 = vld [vmem:[#allocation10 + $0x258] sm:$0xff]
    %v326 = vld [vmem:[#allocation10 + $0x260] sm:$0xff]
    %v327 = vld [vmem:[#allocation10 + $0x268] sm:$0xff]
    %v328 = vld [vmem:[#allocation10 + $0x270] sm:$0xff]
    %v329 = vld [vmem:[#allocation10 + $0x278] sm:$0xff]
    %v330 = vld [vmem:[#allocation10 + $0x280] sm:$0xff]
    %v331 = vld [vmem:[#allocation10 + $0x288] sm:$0xff]
    %v332 = vld [vmem:[#allocation10 + $0x290] sm:$0xff]
    %v333 = vld [vmem:[#allocation10 + $0x298] sm:$0xff]
    %v334 = vld [vmem:[#allocation10 + $0x2a0] sm:$0xff]
    %v335 = vld [vmem:[#allocation10 + $0x2a8] sm:$0xff]
    %v336 = vld [vmem:[#allocation10 + $0x2b0] sm:$0xff]
    %v337 = vld [vmem:[#allocation10 + $0x2b8] sm:$0xff]
    %v338 = vld [vmem:[#allocation10 + $0x2c0] sm:$0xff]
    %v339 = vld [vmem:[#allocation10 + $0x2c8] sm:$0xff]
    %v340 = vld [vmem:[#allocation10 + $0x2d0] sm:$0xff]
    %v341 = vld [vmem:[#allocation10 + $0x2d8] sm:$0xff]
    %v342 = vld [vmem:[#allocation10 + $0x2e0] sm:$0xff]
    %v343 = vld [vmem:[#allocation10 + $0x2e8] sm:$0xff]
    %v344 = vld [vmem:[#allocation10 + $0x2f0] sm:$0xff]
    %v345 = vld [vmem:[#allocation10 + $0x2f8] sm:$0xff]
    %v346 = vld [vmem:[#allocation10 + $0x300] sm:$0xff]
    %v347 = vld [vmem:[#allocation10 + $0x308] sm:$0xff]
    %v348 = vld [vmem:[#allocation10 + $0x310] sm:$0xff]
    %v349 = vld [vmem:[#allocation10 + $0x318] sm:$0xff]
    %v350 = vld [vmem:[#allocation10 + $0x320] sm:$0xff]
    %v351 = vld [vmem:[#allocation10 + $0x328] sm:$0xff]
    %v352 = vld [vmem:[#allocation10 + $0x330] sm:$0xff]
    %v353 = vld [vmem:[#allocation10 + $0x338] sm:$0xff]
    %v354 = vld [vmem:[#allocation10 + $0x340] sm:$0xff]
    %v355 = vld [vmem:[#allocation10 + $0x348] sm:$0xff]
    %v356 = vld [vmem:[#allocation10 + $0x350] sm:$0xff]
    %v357 = vld [vmem:[#allocation10 + $0x358] sm:$0xff]
    %v358 = vld [vmem:[#allocation10 + $0x360] sm:$0xff]
    %v359 = vld [vmem:[#allocation10 + $0x368] sm:$0xff]
    %v360 = vld [vmem:[#allocation10 + $0x370] sm:$0xff]
    %v361 = vld [vmem:[#allocation10 + $0x378] sm:$0xff]
    %v362 = vld [vmem:[#allocation10 + $0x380] sm:$0xff]
    %v363 = vld [vmem:[#allocation10 + $0x388] sm:$0xff]
    %v364 = vld [vmem:[#allocation10 + $0x390] sm:$0xff]
    %v365 = vld [vmem:[#allocation10 + $0x398] sm:$0xff]
    %v366 = vld [vmem:[#allocation10 + $0x3a0] sm:$0xff]
    %v367 = vld [vmem:[#allocation10 + $0x3a8] sm:$0xff]
    %v368 = vld [vmem:[#allocation10 + $0x3b0] sm:$0xff]
    %v369 = vld [vmem:[#allocation10 + $0x3b8] sm:$0xff]
    %v370 = vld [vmem:[#allocation10 + $0x3c0] sm:$0xff]
    %v371 = vld [vmem:[#allocation10 + $0x3c8] sm:$0xff]
    %v372 = vld [vmem:[#allocation10 + $0x3d0] sm:$0xff]
    %v373 = vld [vmem:[#allocation10 + $0x3d8] sm:$0xff]
    %v374 = vld [vmem:[#allocation10 + $0x3e0] sm:$0xff]
    %v375 = vld [vmem:[#allocation10 + $0x3e8] sm:$0xff]
    %v376 = vld [vmem:[#allocation10 + $0x3f0] sm:$0xff]
    %v377 = vld [vmem:[#allocation10 + $0x3f8] sm:$0xff]
    %v378 = vld [vmem:[%s3] sm:$0xff]
    %v380 = vlaneseq
    %v381 = vshrl.u32 %v380, 7
    %v382 = vsub.s32 0, %v381
    %v383 = vrot.slane %v378, %v382
    %v384 = vlaneseq
    %v385 = vshrl.u32 %v384, 7
    %v386 = vsub.s32 1, %v385
    %v387 = vrot.slane %v378, %v386
    %v388 = vlaneseq
    %v389 = vshrl.u32 %v388, 7
    %v390 = vsub.s32 2, %v389
    %v391 = vrot.slane %v378, %v390
    %v392 = vlaneseq
    %v393 = vshrl.u32 %v392, 7
    %v394 = vsub.s32 3, %v393
    %v395 = vrot.slane %v378, %v394
    %v396 = vlaneseq
    %v397 = vshrl.u32 %v396, 7
    %v398 = vsub.s32 4, %v397
    %v399 = vrot.slane %v378, %v398
    %v400 = vlaneseq
    %v401 = vshrl.u32 %v400, 7
    %v402 = vsub.s32 5, %v401
    %v403 = vrot.slane %v378, %v402
    %v404 = vlaneseq
    %v405 = vshrl.u32 %v404, 7
    %v406 = vsub.s32 6, %v405
    %v407 = vrot.slane %v378, %v406
    %v408 = vlaneseq
    %v409 = vshrl.u32 %v408, 7
    %v410 = vsub.s32 7, %v409
    %v411 = vrot.slane %v378, %v410
    %420 = vmatprep.subr.mxu0 %v371
    %421 = vmatpush1.msra.mxu0 %v370
    %422 = vmatprep.subr.mxu0 %v363
    %423 = vmatpush1.msra.mxu0 %v362
    %424 = vmatprep.subr.mxu0 %v355
    %425 = vmatpush1.msra.mxu0 %v354
    %426 = vmatprep.subr.mxu0 %v347
    %427 = vmatpush1.msra.mxu0 %v346
    %428 = vmatprep.subr.mxu0 %v339
    %429 = vmatpush1.msra.mxu0 %v338
    %430 = vmatprep.subr.mxu0 %v331
    %431 = vmatpush1.msra.mxu0 %v330
    %432 = vmatprep.subr.mxu0 %v323
    %433 = vmatpush1.msra.mxu0 %v322
    %434 = vmatprep.subr.mxu0 %v315
    %435 = vmatpush1.msra.mxu0 %v314
    %436 = vmatprep.subr.mxu0 %v307
    %437 = vmatpush1.msra.mxu0 %v306
    %438 = vmatprep.subr.mxu0 %v299
    %439 = vmatpush1.msra.mxu0 %v298
    %440 = vmatprep.subr.mxu0 %v291
    %441 = vmatpush1.msra.mxu0 %v290
    %442 = vmatprep.subr.mxu0 %v283
    %443 = vmatpush1.msra.mxu0 %v282
    %444 = vmatprep.subr.mxu0 %v275
    %445 = vmatpush1.msra.mxu0 %v274
    %446 = vmatprep.subr.mxu0 %v267
    %447 = vmatpush1.msra.mxu0 %v266
    %448 = vmatprep.subr.mxu0 %v259
    %449 = vmatpush1.msra.mxu0 %v258
    %450 = vmatprep.subr.mxu0 %v251
    %451 = vmatpush1.msra.mxu0 %v250
    %452 = vmatprep.subr.mxu0 0.0
    %453 = vmatpush2.msra.mxu0 0.0
    %454 = vmatprep.subr.mxu0 0.0
    %455 = vmatpush2.msra.mxu0 0.0
    %456 = vmatprep.subr.mxu0 0.0
    %457 = vmatpush2.msra.mxu0 0.0
    %458 = vmatprep.subr.mxu0 0.0
    %459 = vmatpush2.msra.mxu0 0.0
    %460 = vmatprep.subr.mxu0 0.0
    %461 = vmatpush2.msra.mxu0 0.0
    %462 = vmatprep.subr.mxu0 0.0
    %463 = vmatpush2.msra.mxu0 0.0
    %464 = vmatprep.subr.mxu0 0.0
    %465 = vmatpush2.msra.mxu0 0.0
    %466 = vmatprep.subr.mxu0 0.0
    %467 = vmatpush2.msra.mxu0 0.0
    %468 = vmatprep.subr.mxu0 0.0
    %469 = vmatpush2.msra.mxu0 0.0
    %470 = vmatprep.subr.mxu0 0.0
    %471 = vmatpush2.msra.mxu0 0.0
    %472 = vmatprep.subr.mxu0 0.0
    %473 = vmatpush2.msra.mxu0 0.0
    %474 = vmatprep.subr.mxu0 0.0
    %475 = vmatpush2.msra.mxu0 0.0
    %476 = vmatprep.subr.mxu0 0.0
    %477 = vmatpush2.msra.mxu0 0.0
    %478 = vmatprep.subr.mxu0 0.0
    %479 = vmatpush2.msra.mxu0 0.0
    %480 = vmatprep.subr.mxu0 0.0
    %481 = vmatpush2.msra.mxu0 0.0
    %482 = vmatprep.subr.mxu0 0.0
    %483 = vmatpush2.msra.mxu0 0.0
    %484 = vmatprep.mubr.f32.mxu0 0.0
    %485 = vmatmul.mubr.f32.gmra.mxu0 %v247
    %v486 = vpop.f32.mrf.mxu0
    %v487 = vadd.f32 %v383, %v486
    %v488 = vpop.f32.mrf.mxu0
    %v489 = vadd.f32 %v387, %v488
    %490 = vdwg.mxu0
    %491 = vmatprep.subr.mxu0 %v373
    %492 = vmatpush1.msra.mxu0 %v372
    %493 = vmatprep.subr.mxu0 %v365
    %494 = vmatpush1.msra.mxu0 %v364
    %495 = vmatprep.subr.mxu0 %v357
    %496 = vmatpush1.msra.mxu0 %v356
    %497 = vmatprep.subr.mxu0 %v349
    %498 = vmatpush1.msra.mxu0 %v348
    %499 = vmatprep.subr.mxu0 %v341
    %500 = vmatpush1.msra.mxu0 %v340
    %501 = vmatprep.subr.mxu0 %v333
    %502 = vmatpush1.msra.mxu0 %v332
    %503 = vmatprep.subr.mxu0 %v325
    %504 = vmatpush1.msra.mxu0 %v324
    %505 = vmatprep.subr.mxu0 %v317
    %506 = vmatpush1.msra.mxu0 %v316
    %507 = vmatprep.subr.mxu0 %v309
    %508 = vmatpush1.msra.mxu0 %v308
    %509 = vmatprep.subr.mxu0 %v301
    %510 = vmatpush1.msra.mxu0 %v300
    %511 = vmatprep.subr.mxu0 %v293
    %512 = vmatpush1.msra.mxu0 %v292
    %513 = vmatprep.subr.mxu0 %v285
    %514 = vmatpush1.msra.mxu0 %v284
    %515 = vmatprep.subr.mxu0 %v277
    %516 = vmatpush1.msra.mxu0 %v276
    %517 = vmatprep.subr.mxu0 %v269
    %518 = vmatpush1.msra.mxu0 %v268
    %519 = vmatprep.subr.mxu0 %v261
    %520 = vmatpush1.msra.mxu0 %v260
    %521 = vmatprep.subr.mxu0 %v253
    %522 = vmatpush1.msra.mxu0 %v252
    %523 = vmatprep.subr.mxu0 0.0
    %524 = vmatpush2.msra.mxu0 0.0
    %525 = vmatprep.subr.mxu0 0.0
    %526 = vmatpush2.msra.mxu0 0.0
    %527 = vmatprep.subr.mxu0 0.0
    %528 = vmatpush2.msra.mxu0 0.0
    %529 = vmatprep.subr.mxu0 0.0
    %530 = vmatpush2.msra.mxu0 0.0
    %531 = vmatprep.subr.mxu0 0.0
    %532 = vmatpush2.msra.mxu0 0.0
    %533 = vmatprep.subr.mxu0 0.0
    %534 = vmatpush2.msra.mxu0 0.0
    %535 = vmatprep.subr.mxu0 0.0
    %536 = vmatpush2.msra.mxu0 0.0
    %537 = vmatprep.subr.mxu0 0.0
    %538 = vmatpush2.msra.mxu0 0.0
    %539 = vmatprep.subr.mxu0 0.0
    %540 = vmatpush2.msra.mxu0 0.0
    %541 = vmatprep.subr.mxu0 0.0
    %542 = vmatpush2.msra.mxu0 0.0
    %543 = vmatprep.subr.mxu0 0.0
    %544 = vmatpush2.msra.mxu0 0.0
    %545 = vmatprep.subr.mxu0 0.0
    %546 = vmatpush2.msra.mxu0 0.0
    %547 = vmatprep.subr.mxu0 0.0
    %548 = vmatpush2.msra.mxu0 0.0
    %549 = vmatprep.subr.mxu0 0.0
    %550 = vmatpush2.msra.mxu0 0.0
    %551 = vmatprep.subr.mxu0 0.0
    %552 = vmatpush2.msra.mxu0 0.0
    %553 = vmatprep.subr.mxu0 0.0
    %554 = vmatpush2.msra.mxu0 0.0
    %555 = vmatprep.mubr.f32.mxu0 0.0
    %556 = vmatmul.mubr.f32.gmra.mxu0 %v247
    %v557 = vpop.f32.mrf.mxu0
    %v558 = vadd.f32 %v391, %v557
    %v559 = vpop.f32.mrf.mxu0
    %v560 = vadd.f32 %v395, %v559
    %561 = vdwg.mxu0
    %562 = vmatprep.subr.mxu0 %v375
    %563 = vmatpush1.msra.mxu0 %v374
    %564 = vmatprep.subr.mxu0 %v367
    %565 = vmatpush1.msra.mxu0 %v366
    %566 = vmatprep.subr.mxu0 %v359
    %567 = vmatpush1.msra.mxu0 %v358
    %568 = vmatprep.subr.mxu0 %v351
    %569 = vmatpush1.msra.mxu0 %v350
    %570 = vmatprep.subr.mxu0 %v343
    %571 = vmatpush1.msra.mxu0 %v342
    %572 = vmatprep.subr.mxu0 %v335
    %573 = vmatpush1.msra.mxu0 %v334
    %574 = vmatprep.subr.mxu0 %v327
    %575 = vmatpush1.msra.mxu0 %v326
    %576 = vmatprep.subr.mxu0 %v319
    %577 = vmatpush1.msra.mxu0 %v318
    %578 = vmatprep.subr.mxu0 %v311
    %579 = vmatpush1.msra.mxu0 %v310
    %580 = vmatprep.subr.mxu0 %v303
    %581 = vmatpush1.msra.mxu0 %v302
    %582 = vmatprep.subr.mxu0 %v295
    %583 = vmatpush1.msra.mxu0 %v294
    %584 = vmatprep.subr.mxu0 %v287
    %585 = vmatpush1.msra.mxu0 %v286
    %586 = vmatprep.subr.mxu0 %v279
    %587 = vmatpush1.msra.mxu0 %v278
    %588 = vmatprep.subr.mxu0 %v271
    %589 = vmatpush1.msra.mxu0 %v270
    %590 = vmatprep.subr.mxu0 %v263
    %591 = vmatpush1.msra.mxu0 %v262
    %592 = vmatprep.subr.mxu0 %v255
    %593 = vmatpush1.msra.mxu0 %v254
    %594 = vmatprep.subr.mxu0 0.0
    %595 = vmatpush2.msra.mxu0 0.0
    %596 = vmatprep.subr.mxu0 0.0
    %597 = vmatpush2.msra.mxu0 0.0
    %598 = vmatprep.subr.mxu0 0.0
    %599 = vmatpush2.msra.mxu0 0.0
    %600 = vmatprep.subr.mxu0 0.0
    %601 = vmatpush2.msra.mxu0 0.0
    %602 = vmatprep.subr.mxu0 0.0
    %603 = vmatpush2.msra.mxu0 0.0
    %604 = vmatprep.subr.mxu0 0.0
    %605 = vmatpush2.msra.mxu0 0.0
    %606 = vmatprep.subr.mxu0 0.0
    %607 = vmatpush2.msra.mxu0 0.0
    %608 = vmatprep.subr.mxu0 0.0
    %609 = vmatpush2.msra.mxu0 0.0
    %610 = vmatprep.subr.mxu0 0.0
    %611 = vmatpush2.msra.mxu0 0.0
    %612 = vmatprep.subr.mxu0 0.0
    %613 = vmatpush2.msra.mxu0 0.0
    %614 = vmatprep.subr.mxu0 0.0
    %615 = vmatpush2.msra.mxu0 0.0
    %616 = vmatprep.subr.mxu0 0.0
    %617 = vmatpush2.msra.mxu0 0.0
    %618 = vmatprep.subr.mxu0 0.0
    %619 = vmatpush2.msra.mxu0 0.0
    %620 = vmatprep.subr.mxu0 0.0
    %621 = vmatpush2.msra.mxu0 0.0
    %622 = vmatprep.subr.mxu0 0.0
    %623 = vmatpush2.msra.mxu0 0.0
    %624 = vmatprep.subr.mxu0 0.0
    %625 = vmatpush2.msra.mxu0 0.0
    %626 = vmatprep.mubr.f32.mxu0 0.0
    %627 = vmatmul.mubr.f32.gmra.mxu0 %v247
    %v628 = vpop.f32.mrf.mxu0
    %v629 = vadd.f32 %v399, %v628
    %v630 = vpop.f32.mrf.mxu0
    %v631 = vadd.f32 %v403, %v630
    %632 = vdwg.mxu0
    %633 = vmatprep.subr.mxu0 %v377
    %634 = vmatpush1.msra.mxu0 %v376
    %635 = vmatprep.subr.mxu0 %v369
    %636 = vmatpush1.msra.mxu0 %v368
    %637 = vmatprep.subr.mxu0 %v361
    %638 = vmatpush1.msra.mxu0 %v360
    %639 = vmatprep.subr.mxu0 %v353
    %640 = vmatpush1.msra.mxu0 %v352
    %641 = vmatprep.subr.mxu0 %v345
    %642 = vmatpush1.msra.mxu0 %v344
    %643 = vmatprep.subr.mxu0 %v337
    %644 = vmatpush1.msra.mxu0 %v336
    %645 = vmatprep.subr.mxu0 %v329
    %646 = vmatpush1.msra.mxu0 %v328
    %647 = vmatprep.subr.mxu0 %v321
    %648 = vmatpush1.msra.mxu0 %v320
    %649 = vmatprep.subr.mxu0 %v313
    %650 = vmatpush1.msra.mxu0 %v312
    %651 = vmatprep.subr.mxu0 %v305
    %652 = vmatpush1.msra.mxu0 %v304
    %653 = vmatprep.subr.mxu0 %v297
    %654 = vmatpush1.msra.mxu0 %v296
    %655 = vmatprep.subr.mxu0 %v289
    %656 = vmatpush1.msra.mxu0 %v288
    %657 = vmatprep.subr.mxu0 %v281
    %658 = vmatpush1.msra.mxu0 %v280
    %659 = vmatprep.subr.mxu0 %v273
    %660 = vmatpush1.msra.mxu0 %v272
    %661 = vmatprep.subr.mxu0 %v265
    %662 = vmatpush1.msra.mxu0 %v264
    %663 = vmatprep.subr.mxu0 %v257
    %664 = vmatpush1.msra.mxu0 %v256
    %665 = vmatprep.subr.mxu0 0.0
    %666 = vmatpush2.msra.mxu0 0.0
    %667 = vmatprep.subr.mxu0 0.0
    %668 = vmatpush2.msra.mxu0 0.0
    %669 = vmatprep.subr.mxu0 0.0
    %670 = vmatpush2.msra.mxu0 0.0
    %671 = vmatprep.subr.mxu0 0.0
    %672 = vmatpush2.msra.mxu0 0.0
    %673 = vmatprep.subr.mxu0 0.0
    %674 = vmatpush2.msra.mxu0 0.0
    %675 = vmatprep.subr.mxu0 0.0
    %676 = vmatpush2.msra.mxu0 0.0
    %677 = vmatprep.subr.mxu0 0.0
    %678 = vmatpush2.msra.mxu0 0.0
    %679 = vmatprep.subr.mxu0 0.0
    %680 = vmatpush2.msra.mxu0 0.0
    %681 = vmatprep.subr.mxu0 0.0
    %682 = vmatpush2.msra.mxu0 0.0
    %683 = vmatprep.subr.mxu0 0.0
    %684 = vmatpush2.msra.mxu0 0.0
    %685 = vmatprep.subr.mxu0 0.0
    %686 = vmatpush2.msra.mxu0 0.0
    %687 = vmatprep.subr.mxu0 0.0
    %688 = vmatpush2.msra.mxu0 0.0
    %689 = vmatprep.subr.mxu0 0.0
    %690 = vmatpush2.msra.mxu0 0.0
    %691 = vmatprep.subr.mxu0 0.0
    %692 = vmatpush2.msra.mxu0 0.0
    %693 = vmatprep.subr.mxu0 0.0
    %694 = vmatpush2.msra.mxu0 0.0
    %695 = vmatprep.subr.mxu0 0.0
    %696 = vmatpush2.msra.mxu0 0.0
    %697 = vmatprep.mubr.f32.mxu0 0.0
    %698 = vmatmul.mubr.f32.gmra.mxu0 %v247
    %v699 = vpop.f32.mrf.mxu0
    %v700 = vadd.f32 %v407, %v699
    %v701 = vpop.f32.mrf.mxu0
    %v702 = vadd.f32 %v411, %v701
    %703 = vdwg.mxu0
    %704 = vst [vmem:[#allocation2] sm:$0xff] %v487
    %705 = vst [vmem:[#allocation2 + $0x8] sm:$0xff] %v489
    %706 = vst [vmem:[#allocation2 + $0x10] sm:$0xff] %v558
    %707 = vst [vmem:[#allocation2 + $0x18] sm:$0xff] %v560
    %708 = vst [vmem:[#allocation3] sm:$0xff] %v629
    %709 = vst [vmem:[#allocation3 + $0x8] sm:$0xff] %v631
    %710 = vst [vmem:[#allocation3 + $0x10] sm:$0xff] %v700
    %711 = vst [vmem:[#allocation3 + $0x18] sm:$0xff] %v702
    %v712 = vld [vmem:[%s6] sm:$0x1]
    %v713 = vld [vmem:[%s6 + $0x1] sm:$0x1]
    %v714 = vld [vmem:[%s6 + $0x2] sm:$0x1]
    %v715 = vld [vmem:[%s6 + $0x3] sm:$0x1]
    %v716 = vld [vmem:[#allocation2] ss:$8 sm:$0xf]
    %v717 = vld [vmem:[#allocation12] sm:$0xff]
    %v718 = vld [vmem:[#allocation12 + $0x8] sm:$0xff]
    %v719 = vld [vmem:[#allocation12 + $0x10] sm:$0xff]
    %v720 = vld [vmem:[#allocation12 + $0x18] sm:$0xff]
    %v721 = vld [vmem:[#allocation12 + $0x20] sm:$0xff]
    %v722 = vld [vmem:[#allocation12 + $0x28] sm:$0xff]
    %v723 = vld [vmem:[#allocation12 + $0x30] sm:$0xff]
    %v724 = vld [vmem:[#allocation12 + $0x38] sm:$0xff]
    %v725 = vld [vmem:[#allocation12 + $0x40] sm:$0xff]
    %v726 = vld [vmem:[#allocation12 + $0x48] sm:$0xff]
    %v727 = vld [vmem:[#allocation12 + $0x50] sm:$0xff]
    %v728 = vld [vmem:[#allocation12 + $0x58] sm:$0xff]
    %v729 = vld [vmem:[#allocation12 + $0x60] sm:$0xff]
    %v730 = vld [vmem:[#allocation12 + $0x68] sm:$0xff]
    %v731 = vld [vmem:[#allocation12 + $0x70] sm:$0xff]
    %v732 = vld [vmem:[#allocation12 + $0x78] sm:$0xff]
    %v733 = vld [vmem:[#allocation12 + $0x80] sm:$0xff]
    %v734 = vld [vmem:[#allocation12 + $0x88] sm:$0xff]
    %v735 = vld [vmem:[#allocation12 + $0x90] sm:$0xff]
    %v736 = vld [vmem:[#allocation12 + $0x98] sm:$0xff]
    %v737 = vld [vmem:[#allocation12 + $0xa0] sm:$0xff]
    %v738 = vld [vmem:[#allocation12 + $0xa8] sm:$0xff]
    %v739 = vld [vmem:[#allocation12 + $0xb0] sm:$0xff]
    %v740 = vld [vmem:[#allocation12 + $0xb8] sm:$0xff]
    %v741 = vld [vmem:[#allocation12 + $0xc0] sm:$0xff]
    %v742 = vld [vmem:[#allocation12 + $0xc8] sm:$0xff]
    %v743 = vld [vmem:[#allocation12 + $0xd0] sm:$0xff]
    %v744 = vld [vmem:[#allocation12 + $0xd8] sm:$0xff]
    %v745 = vld [vmem:[#allocation12 + $0xe0] sm:$0xff]
    %v746 = vld [vmem:[#allocation12 + $0xe8] sm:$0xff]
    %v747 = vld [vmem:[#allocation12 + $0xf0] sm:$0xff]
    %v748 = vld [vmem:[#allocation12 + $0xf8] sm:$0xff]
    %v749 = vld [vmem:[#allocation12 + $0x100] sm:$0xff]
    %v750 = vld [vmem:[#allocation12 + $0x108] sm:$0xff]
    %v751 = vld [vmem:[#allocation12 + $0x110] sm:$0xff]
    %v752 = vld [vmem:[#allocation12 + $0x118] sm:$0xff]
    %v753 = vld [vmem:[#allocation12 + $0x120] sm:$0xff]
    %v754 = vld [vmem:[#allocation12 + $0x128] sm:$0xff]
    %v755 = vld [vmem:[#allocation12 + $0x130] sm:$0xff]
    %v756 = vld [vmem:[#allocation12 + $0x138] sm:$0xff]
    %v757 = vld [vmem:[#allocation12 + $0x140] sm:$0xff]
    %v758 = vld [vmem:[#allocation12 + $0x148] sm:$0xff]
    %v759 = vld [vmem:[#allocation12 + $0x150] sm:$0xff]
    %v760 = vld [vmem:[#allocation12 + $0x158] sm:$0xff]
    %v761 = vld [vmem:[#allocation12 + $0x160] sm:$0xff]
    %v762 = vld [vmem:[#allocation12 + $0x168] sm:$0xff]
    %v763 = vld [vmem:[#allocation12 + $0x170] sm:$0xff]
    %v764 = vld [vmem:[#allocation12 + $0x178] sm:$0xff]
    %v765 = vld [vmem:[#allocation12 + $0x180] sm:$0xff]
    %v766 = vld [vmem:[#allocation12 + $0x188] sm:$0xff]
    %v767 = vld [vmem:[#allocation12 + $0x190] sm:$0xff]
    %v768 = vld [vmem:[#allocation12 + $0x198] sm:$0xff]
    %v769 = vld [vmem:[#allocation12 + $0x1a0] sm:$0xff]
    %v770 = vld [vmem:[#allocation12 + $0x1a8] sm:$0xff]
    %v771 = vld [vmem:[#allocation12 + $0x1b0] sm:$0xff]
    %v772 = vld [vmem:[#allocation12 + $0x1b8] sm:$0xff]
    %v773 = vld [vmem:[#allocation12 + $0x1c0] sm:$0xff]
    %v774 = vld [vmem:[#allocation12 + $0x1c8] sm:$0xff]
    %v775 = vld [vmem:[#allocation12 + $0x1d0] sm:$0xff]
    %v776 = vld [vmem:[#allocation12 + $0x1d8] sm:$0xff]
    %v777 = vld [vmem:[#allocation12 + $0x1e0] sm:$0xff]
    %v778 = vld [vmem:[#allocation12 + $0x1e8] sm:$0xff]
    %v779 = vld [vmem:[#allocation12 + $0x1f0] sm:$0xff]
    %v780 = vld [vmem:[#allocation12 + $0x1f8] sm:$0xff]
    %781 = vmatprep.subr.mxu0 %v778
    %782 = vmatpush1.msra.mxu0 %v777
    %783 = vmatprep.subr.mxu0 %v774
    %784 = vmatpush1.msra.mxu0 %v773
    %785 = vmatprep.subr.mxu0 %v770
    %786 = vmatpush1.msra.mxu0 %v769
    %787 = vmatprep.subr.mxu0 %v766
    %788 = vmatpush1.msra.mxu0 %v765
    %789 = vmatprep.subr.mxu0 %v762
    %790 = vmatpush1.msra.mxu0 %v761
    %791 = vmatprep.subr.mxu0 %v758
    %792 = vmatpush1.msra.mxu0 %v757
    %793 = vmatprep.subr.mxu0 %v754
    %794 = vmatpush1.msra.mxu0 %v753
    %795 = vmatprep.subr.mxu0 %v750
    %796 = vmatpush1.msra.mxu0 %v749
    %797 = vmatprep.subr.mxu0 %v746
    %798 = vmatpush1.msra.mxu0 %v745
    %799 = vmatprep.subr.mxu0 %v742
    %800 = vmatpush1.msra.mxu0 %v741
    %801 = vmatprep.subr.mxu0 %v738
    %802 = vmatpush1.msra.mxu0 %v737
    %803 = vmatprep.subr.mxu0 %v734
    %804 = vmatpush1.msra.mxu0 %v733
    %805 = vmatprep.subr.mxu0 %v730
    %806 = vmatpush1.msra.mxu0 %v729
    %807 = vmatprep.subr.mxu0 %v726
    %808 = vmatpush1.msra.mxu0 %v725
    %809 = vmatprep.subr.mxu0 %v722
    %810 = vmatpush1.msra.mxu0 %v721
    %811 = vmatprep.subr.mxu0 %v718
    %812 = vmatpush1.msra.mxu0 %v717
    %813 = vmatprep.subr.mxu0 0.0
    %814 = vmatpush2.msra.mxu0 0.0
    %815 = vmatprep.subr.mxu0 0.0
    %816 = vmatpush2.msra.mxu0 0.0
    %817 = vmatprep.subr.mxu0 0.0
    %818 = vmatpush2.msra.mxu0 0.0
    %819 = vmatprep.subr.mxu0 0.0
    %820 = vmatpush2.msra.mxu0 0.0
    %821 = vmatprep.subr.mxu0 0.0
    %822 = vmatpush2.msra.mxu0 0.0
    %823 = vmatprep.subr.mxu0 0.0
    %824 = vmatpush2.msra.mxu0 0.0
    %825 = vmatprep.subr.mxu0 0.0
    %826 = vmatpush2.msra.mxu0 0.0
    %827 = vmatprep.subr.mxu0 0.0
    %828 = vmatpush2.msra.mxu0 0.0
    %829 = vmatprep.subr.mxu0 0.0
    %830 = vmatpush2.msra.mxu0 0.0
    %831 = vmatprep.subr.mxu0 0.0
    %832 = vmatpush2.msra.mxu0 0.0
    %833 = vmatprep.subr.mxu0 0.0
    %834 = vmatpush2.msra.mxu0 0.0
    %835 = vmatprep.subr.mxu0 0.0
    %836 = vmatpush2.msra.mxu0 0.0
    %837 = vmatprep.subr.mxu0 0.0
    %838 = vmatpush2.msra.mxu0 0.0
    %839 = vmatprep.subr.mxu0 0.0
    %840 = vmatpush2.msra.mxu0 0.0
    %841 = vmatprep.subr.mxu0 0.0
    %842 = vmatpush2.msra.mxu0 0.0
    %843 = vmatprep.subr.mxu0 0.0
    %844 = vmatpush2.msra.mxu0 0.0
    %845 = vmatprep.mubr.f32.mxu0 0.0
    %846 = vmatmul.mubr.f32.gmra.mxu0 %v712
    %v847 = vpop.f32.mrf.mxu0
    %v848 = vadd.f32 0.0, %v847
    %v849 = vpop.f32.mrf.mxu0
    %v850 = vadd.f32 0.0, %v849
    %851 = vdwg.mxu0
    %852 = vmatprep.subr.mxu0 %v780
    %853 = vmatpush1.msra.mxu0 %v779
    %854 = vmatprep.subr.mxu0 %v776
    %855 = vmatpush1.msra.mxu0 %v775
    %856 = vmatprep.subr.mxu0 %v772
    %857 = vmatpush1.msra.mxu0 %v771
    %858 = vmatprep.subr.mxu0 %v768
    %859 = vmatpush1.msra.mxu0 %v767
    %860 = vmatprep.subr.mxu0 %v764
    %861 = vmatpush1.msra.mxu0 %v763
    %862 = vmatprep.subr.mxu0 %v760
    %863 = vmatpush1.msra.mxu0 %v759
    %864 = vmatprep.subr.mxu0 %v756
    %865 = vmatpush1.msra.mxu0 %v755
    %866 = vmatprep.subr.mxu0 %v752
    %867 = vmatpush1.msra.mxu0 %v751
    %868 = vmatprep.subr.mxu0 %v748
    %869 = vmatpush1.msra.mxu0 %v747
    %870 = vmatprep.subr.mxu0 %v744
    %871 = vmatpush1.msra.mxu0 %v743
    %872 = vmatprep.subr.mxu0 %v740
    %873 = vmatpush1.msra.mxu0 %v739
    %874 = vmatprep.subr.mxu0 %v736
    %875 = vmatpush1.msra.mxu0 %v735
    %876 = vmatprep.subr.mxu0 %v732
    %877 = vmatpush1.msra.mxu0 %v731
    %878 = vmatprep.subr.mxu0 %v728
    %879 = vmatpush1.msra.mxu0 %v727
    %880 = vmatprep.subr.mxu0 %v724
    %881 = vmatpush1.msra.mxu0 %v723
    %882 = vmatprep.subr.mxu0 %v720
    %883 = vmatpush1.msra.mxu0 %v719
    %884 = vmatprep.subr.mxu0 0.0
    %885 = vmatpush2.msra.mxu0 0.0
    %886 = vmatprep.subr.mxu0 0.0
    %887 = vmatpush2.msra.mxu0 0.0
    %888 = vmatprep.subr.mxu0 0.0
    %889 = vmatpush2.msra.mxu0 0.0
    %890 = vmatprep.subr.mxu0 0.0
    %891 = vmatpush2.msra.mxu0 0.0
    %892 = vmatprep.subr.mxu0 0.0
    %893 = vmatpush2.msra.mxu0 0.0
    %894 = vmatprep.subr.mxu0 0.0
    %895 = vmatpush2.msra.mxu0 0.0
    %896 = vmatprep.subr.mxu0 0.0
    %897 = vmatpush2.msra.mxu0 0.0
    %898 = vmatprep.subr.mxu0 0.0
    %899 = vmatpush2.msra.mxu0 0.0
    %900 = vmatprep.subr.mxu0 0.0
    %901 = vmatpush2.msra.mxu0 0.0
    %902 = vmatprep.subr.mxu0 0.0
    %903 = vmatpush2.msra.mxu0 0.0
    %904 = vmatprep.subr.mxu0 0.0
    %905 = vmatpush2.msra.mxu0 0.0
    %906 = vmatprep.subr.mxu0 0.0
    %907 = vmatpush2.msra.mxu0 0.0
    %908 = vmatprep.subr.mxu0 0.0
    %909 = vmatpush2.msra.mxu0 0.0
    %910 = vmatprep.subr.mxu0 0.0
    %911 = vmatpush2.msra.mxu0 0.0
    %912 = vmatprep.subr.mxu0 0.0
    %913 = vmatpush2.msra.mxu0 0.0
    %914 = vmatprep.subr.mxu0 0.0
    %915 = vmatpush2.msra.mxu0 0.0
    %916 = vmatprep.mubr.f32.mxu0 0.0
    %917 = vmatmul.mubr.f32.gmra.mxu0 %v712
    %v918 = vpop.f32.mrf.mxu0
    %v919 = vadd.f32 0.0, %v918
    %v920 = vpop.f32.mrf.mxu0
    %v921 = vadd.f32 0.0, %v920
    %922 = vdwg.mxu0
    %v927 = vcombine.low %v848, %v850
    %v928 = vcombine.low %v919, %v921
    %v930 = vunpack.c.l.s4 1966171168
    %v931 = vunpack.c.0.s8 %v930
    %v932 = vlaneseq
    %v933 = vshrl.u32 %v932, 7
    %v934 = vsub.s32 %v931, %v933
    %v935 = vrot.slane %v927, %v934
    %v937 = vunpack.c.l.s4 1966171168
    %v938 = vunpack.c.0.s8 %v937
    %v939 = vlaneseq
    %v940 = vshrl.u32 %v939, 7
    %v941 = vsub.s32 %v938, %v940
    %v942 = vrot.slane %v928, %v941
    %v943 = vcombine.low %v935, %v942
    %v945 = vunpack.c.l.s4 1966171168
    %v946 = vunpack.c.0.s8 %v945
    %v947 = vlaneseq
    %v948 = vshrl.u32 %v947, 7
    %v949 = vsub.s32 %v946, %v948
    %v950 = vrot.slane %v943, %v949
    %v952 = vadd.f32 %v716, %v950
    %s953 = scalar_lea.vmem [#allocation3], 7
    %v954 = vld [vmem:[%s953] ss:$8 sm:$0xf]
    %v955 = vld [vmem:[#allocation13] sm:$0xff]
    %v956 = vld [vmem:[#allocation13 + $0x8] sm:$0xff]
    %v957 = vld [vmem:[#allocation13 + $0x10] sm:$0xff]
    %v958 = vld [vmem:[#allocation13 + $0x18] sm:$0xff]
    %v959 = vld [vmem:[#allocation13 + $0x20] sm:$0xff]
    %v960 = vld [vmem:[#allocation13 + $0x28] sm:$0xff]
    %v961 = vld [vmem:[#allocation13 + $0x30] sm:$0xff]
    %v962 = vld [vmem:[#allocation13 + $0x38] sm:$0xff]
    %v963 = vld [vmem:[#allocation13 + $0x40] sm:$0xff]
    %v964 = vld [vmem:[#allocation13 + $0x48] sm:$0xff]
    %v965 = vld [vmem:[#allocation13 + $0x50] sm:$0xff]
    %v966 = vld [vmem:[#allocation13 + $0x58] sm:$0xff]
    %v967 = vld [vmem:[#allocation13 + $0x60] sm:$0xff]
    %v968 = vld [vmem:[#allocation13 + $0x68] sm:$0xff]
    %v969 = vld [vmem:[#allocation13 + $0x70] sm:$0xff]
    %v970 = vld [vmem:[#allocation13 + $0x78] sm:$0xff]
    %v971 = vld [vmem:[#allocation13 + $0x80] sm:$0xff]
    %v972 = vld [vmem:[#allocation13 + $0x88] sm:$0xff]
    %v973 = vld [vmem:[#allocation13 + $0x90] sm:$0xff]
    %v974 = vld [vmem:[#allocation13 + $0x98] sm:$0xff]
    %v975 = vld [vmem:[#allocation13 + $0xa0] sm:$0xff]
    %v976 = vld [vmem:[#allocation13 + $0xa8] sm:$0xff]
    %v977 = vld [vmem:[#allocation13 + $0xb0] sm:$0xff]
    %v978 = vld [vmem:[#allocation13 + $0xb8] sm:$0xff]
    %v979 = vld [vmem:[#allocation13 + $0xc0] sm:$0xff]
    %v980 = vld [vmem:[#allocation13 + $0xc8] sm:$0xff]
    %v981 = vld [vmem:[#allocation13 + $0xd0] sm:$0xff]
    %v982 = vld [vmem:[#allocation13 + $0xd8] sm:$0xff]
    %v983 = vld [vmem:[#allocation13 + $0xe0] sm:$0xff]
    %v984 = vld [vmem:[#allocation13 + $0xe8] sm:$0xff]
    %v985 = vld [vmem:[#allocation13 + $0xf0] sm:$0xff]
    %v986 = vld [vmem:[#allocation13 + $0xf8] sm:$0xff]
    %v987 = vld [vmem:[#allocation13 + $0x100] sm:$0xff]
    %v988 = vld [vmem:[#allocation13 + $0x108] sm:$0xff]
    %v989 = vld [vmem:[#allocation13 + $0x110] sm:$0xff]
    %v990 = vld [vmem:[#allocation13 + $0x118] sm:$0xff]
    %v991 = vld [vmem:[#allocation13 + $0x120] sm:$0xff]
    %v992 = vld [vmem:[#allocation13 + $0x128] sm:$0xff]
    %v993 = vld [vmem:[#allocation13 + $0x130] sm:$0xff]
    %v994 = vld [vmem:[#allocation13 + $0x138] sm:$0xff]
    %v995 = vld [vmem:[#allocation13 + $0x140] sm:$0xff]
    %v996 = vld [vmem:[#allocation13 + $0x148] sm:$0xff]
    %v997 = vld [vmem:[#allocation13 + $0x150] sm:$0xff]
    %v998 = vld [vmem:[#allocation13 + $0x158] sm:$0xff]
    %v999 = vld [vmem:[#allocation13 + $0x160] sm:$0xff]
    %v1000 = vld [vmem:[#allocation13 + $0x168] sm:$0xff]
    %v1001 = vld [vmem:[#allocation13 + $0x170] sm:$0xff]
    %v1002 = vld [vmem:[#allocation13 + $0x178] sm:$0xff]
    %v1003 = vld [vmem:[#allocation13 + $0x180] sm:$0xff]
    %v1004 = vld [vmem:[#allocation13 + $0x188] sm:$0xff]
    %v1005 = vld [vmem:[#allocation13 + $0x190] sm:$0xff]
    %v1006 = vld [vmem:[#allocation13 + $0x198] sm:$0xff]
    %v1007 = vld [vmem:[#allocation13 + $0x1a0] sm:$0xff]
    %v1008 = vld [vmem:[#allocation13 + $0x1a8] sm:$0xff]
    %v1009 = vld [vmem:[#allocation13 + $0x1b0] sm:$0xff]
    %v1010 = vld [vmem:[#allocation13 + $0x1b8] sm:$0xff]
    %v1011 = vld [vmem:[#allocation13 + $0x1c0] sm:$0xff]
    %v1012 = vld [vmem:[#allocation13 + $0x1c8] sm:$0xff]
    %v1013 = vld [vmem:[#allocation13 + $0x1d0] sm:$0xff]
    %v1014 = vld [vmem:[#allocation13 + $0x1d8] sm:$0xff]
    %v1015 = vld [vmem:[#allocation13 + $0x1e0] sm:$0xff]
    %v1016 = vld [vmem:[#allocation13 + $0x1e8] sm:$0xff]
    %v1017 = vld [vmem:[#allocation13 + $0x1f0] sm:$0xff]
    %v1018 = vld [vmem:[#allocation13 + $0x1f8] sm:$0xff]
    %1019 = vmatprep.subr.mxu0 %v1016
    %1020 = vmatpush1.msra.mxu0 %v1015
    %1021 = vmatprep.subr.mxu0 %v1012
    %1022 = vmatpush1.msra.mxu0 %v1011
    %1023 = vmatprep.subr.mxu0 %v1008
    %1024 = vmatpush1.msra.mxu0 %v1007
    %1025 = vmatprep.subr.mxu0 %v1004
    %1026 = vmatpush1.msra.mxu0 %v1003
    %1027 = vmatprep.subr.mxu0 %v1000
    %1028 = vmatpush1.msra.mxu0 %v999
    %1029 = vmatprep.subr.mxu0 %v996
    %1030 = vmatpush1.msra.mxu0 %v995
    %1031 = vmatprep.subr.mxu0 %v992
    %1032 = vmatpush1.msra.mxu0 %v991
    %1033 = vmatprep.subr.mxu0 %v988
    %1034 = vmatpush1.msra.mxu0 %v987
    %1035 = vmatprep.subr.mxu0 %v984
    %1036 = vmatpush1.msra.mxu0 %v983
    %1037 = vmatprep.subr.mxu0 %v980
    %1038 = vmatpush1.msra.mxu0 %v979
    %1039 = vmatprep.subr.mxu0 %v976
    %1040 = vmatpush1.msra.mxu0 %v975
    %1041 = vmatprep.subr.mxu0 %v972
    %1042 = vmatpush1.msra.mxu0 %v971
    %1043 = vmatprep.subr.mxu0 %v968
    %1044 = vmatpush1.msra.mxu0 %v967
    %1045 = vmatprep.subr.mxu0 %v964
    %1046 = vmatpush1.msra.mxu0 %v963
    %1047 = vmatprep.subr.mxu0 %v960
    %1048 = vmatpush1.msra.mxu0 %v959
    %1049 = vmatprep.subr.mxu0 %v956
    %1050 = vmatpush1.msra.mxu0 %v955
    %1051 = vmatprep.subr.mxu0 0.0
    %1052 = vmatpush2.msra.mxu0 0.0
    %1053 = vmatprep.subr.mxu0 0.0
    %1054 = vmatpush2.msra.mxu0 0.0
    %1055 = vmatprep.subr.mxu0 0.0
    %1056 = vmatpush2.msra.mxu0 0.0
    %1057 = vmatprep.subr.mxu0 0.0
    %1058 = vmatpush2.msra.mxu0 0.0
    %1059 = vmatprep.subr.mxu0 0.0
    %1060 = vmatpush2.msra.mxu0 0.0
    %1061 = vmatprep.subr.mxu0 0.0
    %1062 = vmatpush2.msra.mxu0 0.0
    %1063 = vmatprep.subr.mxu0 0.0
    %1064 = vmatpush2.msra.mxu0 0.0
    %1065 = vmatprep.subr.mxu0 0.0
    %1066 = vmatpush2.msra.mxu0 0.0
    %1067 = vmatprep.subr.mxu0 0.0
    %1068 = vmatpush2.msra.mxu0 0.0
    %1069 = vmatprep.subr.mxu0 0.0
    %1070 = vmatpush2.msra.mxu0 0.0
    %1071 = vmatprep.subr.mxu0 0.0
    %1072 = vmatpush2.msra.mxu0 0.0
    %1073 = vmatprep.subr.mxu0 0.0
    %1074 = vmatpush2.msra.mxu0 0.0
    %1075 = vmatprep.subr.mxu0 0.0
    %1076 = vmatpush2.msra.mxu0 0.0
    %1077 = vmatprep.subr.mxu0 0.0
    %1078 = vmatpush2.msra.mxu0 0.0
    %1079 = vmatprep.subr.mxu0 0.0
    %1080 = vmatpush2.msra.mxu0 0.0
    %1081 = vmatprep.subr.mxu0 0.0
    %1082 = vmatpush2.msra.mxu0 0.0
    %1083 = vmatprep.mubr.f32.mxu0 0.0
    %1084 = vmatmul.mubr.f32.gmra.mxu0 %v714
    %v1085 = vpop.f32.mrf.mxu0
    %v1086 = vadd.f32 0.0, %v1085
    %v1087 = vpop.f32.mrf.mxu0
    %v1088 = vadd.f32 0.0, %v1087
    %1089 = vdwg.mxu0
    %1090 = vmatprep.subr.mxu0 %v1018
    %1091 = vmatpush1.msra.mxu0 %v1017
    %1092 = vmatprep.subr.mxu0 %v1014
    %1093 = vmatpush1.msra.mxu0 %v1013
    %1094 = vmatprep.subr.mxu0 %v1010
    %1095 = vmatpush1.msra.mxu0 %v1009
    %1096 = vmatprep.subr.mxu0 %v1006
    %1097 = vmatpush1.msra.mxu0 %v1005
    %1098 = vmatprep.subr.mxu0 %v1002
    %1099 = vmatpush1.msra.mxu0 %v1001
    %1100 = vmatprep.subr.mxu0 %v998
    %1101 = vmatpush1.msra.mxu0 %v997
    %1102 = vmatprep.subr.mxu0 %v994
    %1103 = vmatpush1.msra.mxu0 %v993
    %1104 = vmatprep.subr.mxu0 %v990
    %1105 = vmatpush1.msra.mxu0 %v989
    %1106 = vmatprep.subr.mxu0 %v986
    %1107 = vmatpush1.msra.mxu0 %v985
    %1108 = vmatprep.subr.mxu0 %v982
    %1109 = vmatpush1.msra.mxu0 %v981
    %1110 = vmatprep.subr.mxu0 %v978
    %1111 = vmatpush1.msra.mxu0 %v977
    %1112 = vmatprep.subr.mxu0 %v974
    %1113 = vmatpush1.msra.mxu0 %v973
    %1114 = vmatprep.subr.mxu0 %v970
    %1115 = vmatpush1.msra.mxu0 %v969
    %1116 = vmatprep.subr.mxu0 %v966
    %1117 = vmatpush1.msra.mxu0 %v965
    %1118 = vmatprep.subr.mxu0 %v962
    %1119 = vmatpush1.msra.mxu0 %v961
    %1120 = vmatprep.subr.mxu0 %v958
    %1121 = vmatpush1.msra.mxu0 %v957
    %1122 = vmatprep.subr.mxu0 0.0
    %1123 = vmatpush2.msra.mxu0 0.0
    %1124 = vmatprep.subr.mxu0 0.0
    %1125 = vmatpush2.msra.mxu0 0.0
    %1126 = vmatprep.subr.mxu0 0.0
    %1127 = vmatpush2.msra.mxu0 0.0
    %1128 = vmatprep.subr.mxu0 0.0
    %1129 = vmatpush2.msra.mxu0 0.0
    %1130 = vmatprep.subr.mxu0 0.0
    %1131 = vmatpush2.msra.mxu0 0.0
    %1132 = vmatprep.subr.mxu0 0.0
    %1133 = vmatpush2.msra.mxu0 0.0
    %1134 = vmatprep.subr.mxu0 0.0
    %1135 = vmatpush2.msra.mxu0 0.0
    %1136 = vmatprep.subr.mxu0 0.0
    %1137 = vmatpush2.msra.mxu0 0.0
    %1138 = vmatprep.subr.mxu0 0.0
    %1139 = vmatpush2.msra.mxu0 0.0
    %1140 = vmatprep.subr.mxu0 0.0
    %1141 = vmatpush2.msra.mxu0 0.0
    %1142 = vmatprep.subr.mxu0 0.0
    %1143 = vmatpush2.msra.mxu0 0.0
    %1144 = vmatprep.subr.mxu0 0.0
    %1145 = vmatpush2.msra.mxu0 0.0
    %1146 = vmatprep.subr.mxu0 0.0
    %1147 = vmatpush2.msra.mxu0 0.0
    %1148 = vmatprep.subr.mxu0 0.0
    %1149 = vmatpush2.msra.mxu0 0.0
    %1150 = vmatprep.subr.mxu0 0.0
    %1151 = vmatpush2.msra.mxu0 0.0
    %1152 = vmatprep.subr.mxu0 0.0
    %1153 = vmatpush2.msra.mxu0 0.0
    %1154 = vmatprep.mubr.f32.mxu0 0.0
    %1155 = vmatmul.mubr.f32.gmra.mxu0 %v714
    %v1156 = vpop.f32.mrf.mxu0
    %v1157 = vadd.f32 0.0, %v1156
    %v1158 = vpop.f32.mrf.mxu0
    %v1159 = vadd.f32 0.0, %v1158
    %1160 = vdwg.mxu0
    %v1165 = vcombine.low %v1086, %v1088
    %v1166 = vcombine.low %v1157, %v1159
    %v1168 = vunpack.c.l.s4 1966171168
    %v1169 = vunpack.c.0.s8 %v1168
    %v1170 = vlaneseq
    %v1171 = vshrl.u32 %v1170, 7
    %v1172 = vsub.s32 %v1169, %v1171
    %v1173 = vrot.slane %v1165, %v1172
    %v1175 = vunpack.c.l.s4 1966171168
    %v1176 = vunpack.c.0.s8 %v1175
    %v1177 = vlaneseq
    %v1178 = vshrl.u32 %v1177, 7
    %v1179 = vsub.s32 %v1176, %v1178
    %v1180 = vrot.slane %v1166, %v1179
    %v1181 = vcombine.low %v1173, %v1180
    %v1183 = vunpack.c.l.s4 1966171168
    %v1184 = vunpack.c.0.s8 %v1183
    %v1185 = vlaneseq
    %v1186 = vshrl.u32 %v1185, 7
    %v1187 = vsub.s32 %v1184, %v1186
    %v1188 = vrot.slane %v1181, %v1187
    %v1190 = vadd.f32 %v954, %v1188
    %v1191 = vxor.u32 %v952, 2147483648
    %v1192 = vmul.f32 %v1191, 1.442695
    %v1193 = vpow.pop %v1192
    %v1194 = vadd.f32 %v1193, 1.0
    %v1195 = vrcp.pop %v1194
    %v1196 = vmul.f32 1.0, %v1195
    %v1198 = vrot.slane %v952, 3
    %v1200 = vtanh.pop %v1198
    %v1202 = vrot.slane %v1196, 1
    %v1204 = vmul.f32 %v1202, %v713
    %v1205 = vmul.f32 %v1196, %v1200
    %v1206 = vadd.f32 %v1204, %v1205
    %v1207 = vtanh.pop %v1206
    %v1208 = vrot.slane %v1196, 2
    %v1210 = vmul.f32 %v1208, %v1207
    %v1211 = vxor.u32 %v1190, 2147483648
    %v1212 = vmul.f32 %v1211, 1.442695
    %v1213 = vpow.pop %v1212
    %v1214 = vadd.f32 %v1213, 1.0
    %v1215 = vrcp.pop %v1214
    %v1216 = vmul.f32 1.0, %v1215
    %v1218 = vrot.slane %v1190, 3
    %v1220 = vtanh.pop %v1218
    %v1222 = vrot.slane %v1216, 1
    %v1224 = vmul.f32 %v1222, %v715
    %v1225 = vmul.f32 %v1216, %v1220
    %v1226 = vadd.f32 %v1224, %v1225
    %v1227 = vtanh.pop %v1226
    %v1228 = vrot.slane %v1216, 2
    %v1230 = vmul.f32 %v1228, %v1227
    %1231 = vst [vmem:[#allocation4] sm:$0x1] %v1210
    %1232 = vst [vmem:[#allocation5 + $0x7] sm:$0x1] %v1230
    %s1233 = scalar_lea.vmem [#allocation2], 1
    %v1234 = vld [vmem:[%s1233] ss:$8 sm:$0xf]
    %v1235 = vld [vmem:[#allocation12] sm:$0xff]
    %v1236 = vld [vmem:[#allocation12 + $0x8] sm:$0xff]
    %v1237 = vld [vmem:[#allocation12 + $0x10] sm:$0xff]
    %v1238 = vld [vmem:[#allocation12 + $0x18] sm:$0xff]
    %v1239 = vld [vmem:[#allocation12 + $0x20] sm:$0xff]
    %v1240 = vld [vmem:[#allocation12 + $0x28] sm:$0xff]
    %v1241 = vld [vmem:[#allocation12 + $0x30] sm:$0xff]
    %v1242 = vld [vmem:[#allocation12 + $0x38] sm:$0xff]
    %v1243 = vld [vmem:[#allocation12 + $0x40] sm:$0xff]
    %v1244 = vld [vmem:[#allocation12 + $0x48] sm:$0xff]
    %v1245 = vld [vmem:[#allocation12 + $0x50] sm:$0xff]
    %v1246 = vld [vmem:[#allocation12 + $0x58] sm:$0xff]
    %v1247 = vld [vmem:[#allocation12 + $0x60] sm:$0xff]
    %v1248 = vld [vmem:[#allocation12 + $0x68] sm:$0xff]
    %v1249 = vld [vmem:[#allocation12 + $0x70] sm:$0xff]
    %v1250 = vld [vmem:[#allocation12 + $0x78] sm:$0xff]
    %v1251 = vld [vmem:[#allocation12 + $0x80] sm:$0xff]
    %v1252 = vld [vmem:[#allocation12 + $0x88] sm:$0xff]
    %v1253 = vld [vmem:[#allocation12 + $0x90] sm:$0xff]
    %v1254 = vld [vmem:[#allocation12 + $0x98] sm:$0xff]
    %v1255 = vld [vmem:[#allocation12 + $0xa0] sm:$0xff]
    %v1256 = vld [vmem:[#allocation12 + $0xa8] sm:$0xff]
    %v1257 = vld [vmem:[#allocation12 + $0xb0] sm:$0xff]
    %v1258 = vld [vmem:[#allocation12 + $0xb8] sm:$0xff]
    %v1259 = vld [vmem:[#allocation12 + $0xc0] sm:$0xff]
    %v1260 = vld [vmem:[#allocation12 + $0xc8] sm:$0xff]
    %v1261 = vld [vmem:[#allocation12 + $0xd0] sm:$0xff]
    %v1262 = vld [vmem:[#allocation12 + $0xd8] sm:$0xff]
    %v1263 = vld [vmem:[#allocation12 + $0xe0] sm:$0xff]
    %v1264 = vld [vmem:[#allocation12 + $0xe8] sm:$0xff]
    %v1265 = vld [vmem:[#allocation12 + $0xf0] sm:$0xff]
    %v1266 = vld [vmem:[#allocation12 + $0xf8] sm:$0xff]
    %v1267 = vld [vmem:[#allocation12 + $0x100] sm:$0xff]
    %v1268 = vld [vmem:[#allocation12 + $0x108] sm:$0xff]
    %v1269 = vld [vmem:[#allocation12 + $0x110] sm:$0xff]
    %v1270 = vld [vmem:[#allocation12 + $0x118] sm:$0xff]
    %v1271 = vld [vmem:[#allocation12 + $0x120] sm:$0xff]
    %v1272 = vld [vmem:[#allocation12 + $0x128] sm:$0xff]
    %v1273 = vld [vmem:[#allocation12 + $0x130] sm:$0xff]
    %v1274 = vld [vmem:[#allocation12 + $0x138] sm:$0xff]
    %v1275 = vld [vmem:[#allocation12 + $0x140] sm:$0xff]
    %v1276 = vld [vmem:[#allocation12 + $0x148] sm:$0xff]
    %v1277 = vld [vmem:[#allocation12 + $0x150] sm:$0xff]
    %v1278 = vld [vmem:[#allocation12 + $0x158] sm:$0xff]
    %v1279 = vld [vmem:[#allocation12 + $0x160] sm:$0xff]
    %v1280 = vld [vmem:[#allocation12 + $0x168] sm:$0xff]
    %v1281 = vld [vmem:[#allocation12 + $0x170] sm:$0xff]
    %v1282 = vld [vmem:[#allocation12 + $0x178] sm:$0xff]
    %v1283 = vld [vmem:[#allocation12 + $0x180] sm:$0xff]
    %v1284 = vld [vmem:[#allocation12 + $0x188] sm:$0xff]
    %v1285 = vld [vmem:[#allocation12 + $0x190] sm:$0xff]
    %v1286 = vld [vmem:[#allocation12 + $0x198] sm:$0xff]
    %v1287 = vld [vmem:[#allocation12 + $0x1a0] sm:$0xff]
    %v1288 = vld [vmem:[#allocation12 + $0x1a8] sm:$0xff]
    %v1289 = vld [vmem:[#allocation12 + $0x1b0] sm:$0xff]
    %v1290 = vld [vmem:[#allocation12 + $0x1b8] sm:$0xff]
    %v1291 = vld [vmem:[#allocation12 + $0x1c0] sm:$0xff]
    %v1292 = vld [vmem:[#allocation12 + $0x1c8] sm:$0xff]
    %v1293 = vld [vmem:[#allocation12 + $0x1d0] sm:$0xff]
    %v1294 = vld [vmem:[#allocation12 + $0x1d8] sm:$0xff]
    %v1295 = vld [vmem:[#allocation12 + $0x1e0] sm:$0xff]
    %v1296 = vld [vmem:[#allocation12 + $0x1e8] sm:$0xff]
    %v1297 = vld [vmem:[#allocation12 + $0x1f0] sm:$0xff]
    %v1298 = vld [vmem:[#allocation12 + $0x1f8] sm:$0xff]
    %1299 = vmatprep.subr.mxu0 %v1296
    %1300 = vmatpush1.msra.mxu0 %v1295
    %1301 = vmatprep.subr.mxu0 %v1292
    %1302 = vmatpush1.msra.mxu0 %v1291
    %1303 = vmatprep.subr.mxu0 %v1288
    %1304 = vmatpush1.msra.mxu0 %v1287
    %1305 = vmatprep.subr.mxu0 %v1284
    %1306 = vmatpush1.msra.mxu0 %v1283
    %1307 = vmatprep.subr.mxu0 %v1280
    %1308 = vmatpush1.msra.mxu0 %v1279
    %1309 = vmatprep.subr.mxu0 %v1276
    %1310 = vmatpush1.msra.mxu0 %v1275
    %1311 = vmatprep.subr.mxu0 %v1272
    %1312 = vmatpush1.msra.mxu0 %v1271
    %1313 = vmatprep.subr.mxu0 %v1268
    %1314 = vmatpush1.msra.mxu0 %v1267
    %1315 = vmatprep.subr.mxu0 %v1264
    %1316 = vmatpush1.msra.mxu0 %v1263
    %1317 = vmatprep.subr.mxu0 %v1260
    %1318 = vmatpush1.msra.mxu0 %v1259
    %1319 = vmatprep.subr.mxu0 %v1256
    %1320 = vmatpush1.msra.mxu0 %v1255
    %1321 = vmatprep.subr.mxu0 %v1252
    %1322 = vmatpush1.msra.mxu0 %v1251
    %1323 = vmatprep.subr.mxu0 %v1248
    %1324 = vmatpush1.msra.mxu0 %v1247
    %1325 = vmatprep.subr.mxu0 %v1244
    %1326 = vmatpush1.msra.mxu0 %v1243
    %1327 = vmatprep.subr.mxu0 %v1240
    %1328 = vmatpush1.msra.mxu0 %v1239
    %1329 = vmatprep.subr.mxu0 %v1236
    %1330 = vmatpush1.msra.mxu0 %v1235
    %1331 = vmatprep.subr.mxu0 0.0
    %1332 = vmatpush2.msra.mxu0 0.0
    %1333 = vmatprep.subr.mxu0 0.0
    %1334 = vmatpush2.msra.mxu0 0.0
    %1335 = vmatprep.subr.mxu0 0.0
    %1336 = vmatpush2.msra.mxu0 0.0
    %1337 = vmatprep.subr.mxu0 0.0
    %1338 = vmatpush2.msra.mxu0 0.0
    %1339 = vmatprep.subr.mxu0 0.0
    %1340 = vmatpush2.msra.mxu0 0.0
    %1341 = vmatprep.subr.mxu0 0.0
    %1342 = vmatpush2.msra.mxu0 0.0
    %1343 = vmatprep.subr.mxu0 0.0
    %1344 = vmatpush2.msra.mxu0 0.0
    %1345 = vmatprep.subr.mxu0 0.0
    %1346 = vmatpush2.msra.mxu0 0.0
    %1347 = vmatprep.subr.mxu0 0.0
    %1348 = vmatpush2.msra.mxu0 0.0
    %1349 = vmatprep.subr.mxu0 0.0
    %1350 = vmatpush2.msra.mxu0 0.0
    %1351 = vmatprep.subr.mxu0 0.0
    %1352 = vmatpush2.msra.mxu0 0.0
    %1353 = vmatprep.subr.mxu0 0.0
    %1354 = vmatpush2.msra.mxu0 0.0
    %1355 = vmatprep.subr.mxu0 0.0
    %1356 = vmatpush2.msra.mxu0 0.0
    %1357 = vmatprep.subr.mxu0 0.0
    %1358 = vmatpush2.msra.mxu0 0.0
    %1359 = vmatprep.subr.mxu0 0.0
    %1360 = vmatpush2.msra.mxu0 0.0
    %1361 = vmatprep.subr.mxu0 0.0
    %1362 = vmatpush2.msra.mxu0 0.0
    %1363 = vmatprep.mubr.f32.mxu0 0.0
    %1364 = vmatmul.mubr.f32.gmra.mxu0 %v1210
    %v1365 = vpop.f32.mrf.mxu0
    %v1366 = vadd.f32 0.0, %v1365
    %v1367 = vpop.f32.mrf.mxu0
    %v1368 = vadd.f32 0.0, %v1367
    %1369 = vdwg.mxu0
    %1370 = vmatprep.subr.mxu0 %v1298
    %1371 = vmatpush1.msra.mxu0 %v1297
    %1372 = vmatprep.subr.mxu0 %v1294
    %1373 = vmatpush1.msra.mxu0 %v1293
    %1374 = vmatprep.subr.mxu0 %v1290
    %1375 = vmatpush1.msra.mxu0 %v1289
    %1376 = vmatprep.subr.mxu0 %v1286
    %1377 = vmatpush1.msra.mxu0 %v1285
    %1378 = vmatprep.subr.mxu0 %v1282
    %1379 = vmatpush1.msra.mxu0 %v1281
    %1380 = vmatprep.subr.mxu0 %v1278
    %1381 = vmatpush1.msra.mxu0 %v1277
    %1382 = vmatprep.subr.mxu0 %v1274
    %1383 = vmatpush1.msra.mxu0 %v1273
    %1384 = vmatprep.subr.mxu0 %v1270
    %1385 = vmatpush1.msra.mxu0 %v1269
    %1386 = vmatprep.subr.mxu0 %v1266
    %1387 = vmatpush1.msra.mxu0 %v1265
    %1388 = vmatprep.subr.mxu0 %v1262
    %1389 = vmatpush1.msra.mxu0 %v1261
    %1390 = vmatprep.subr.mxu0 %v1258
    %1391 = vmatpush1.msra.mxu0 %v1257
    %1392 = vmatprep.subr.mxu0 %v1254
    %1393 = vmatpush1.msra.mxu0 %v1253
    %1394 = vmatprep.subr.mxu0 %v1250
    %1395 = vmatpush1.msra.mxu0 %v1249
    %1396 = vmatprep.subr.mxu0 %v1246
    %1397 = vmatpush1.msra.mxu0 %v1245
    %1398 = vmatprep.subr.mxu0 %v1242
    %1399 = vmatpush1.msra.mxu0 %v1241
    %1400 = vmatprep.subr.mxu0 %v1238
    %1401 = vmatpush1.msra.mxu0 %v1237
    %1402 = vmatprep.subr.mxu0 0.0
    %1403 = vmatpush2.msra.mxu0 0.0
    %1404 = vmatprep.subr.mxu0 0.0
    %1405 = vmatpush2.msra.mxu0 0.0
    %1406 = vmatprep.subr.mxu0 0.0
    %1407 = vmatpush2.msra.mxu0 0.0
    %1408 = vmatprep.subr.mxu0 0.0
    %1409 = vmatpush2.msra.mxu0 0.0
    %1410 = vmatprep.subr.mxu0 0.0
    %1411 = vmatpush2.msra.mxu0 0.0
    %1412 = vmatprep.subr.mxu0 0.0
    %1413 = vmatpush2.msra.mxu0 0.0
    %1414 = vmatprep.subr.mxu0 0.0
    %1415 = vmatpush2.msra.mxu0 0.0
    %1416 = vmatprep.subr.mxu0 0.0
    %1417 = vmatpush2.msra.mxu0 0.0
    %1418 = vmatprep.subr.mxu0 0.0
    %1419 = vmatpush2.msra.mxu0 0.0
    %1420 = vmatprep.subr.mxu0 0.0
    %1421 = vmatpush2.msra.mxu0 0.0
    %1422 = vmatprep.subr.mxu0 0.0
    %1423 = vmatpush2.msra.mxu0 0.0
    %1424 = vmatprep.subr.mxu0 0.0
    %1425 = vmatpush2.msra.mxu0 0.0
    %1426 = vmatprep.subr.mxu0 0.0
    %1427 = vmatpush2.msra.mxu0 0.0
    %1428 = vmatprep.subr.mxu0 0.0
    %1429 = vmatpush2.msra.mxu0 0.0
    %1430 = vmatprep.subr.mxu0 0.0
    %1431 = vmatpush2.msra.mxu0 0.0
    %1432 = vmatprep.subr.mxu0 0.0
    %1433 = vmatpush2.msra.mxu0 0.0
    %1434 = vmatprep.mubr.f32.mxu0 0.0
    %1435 = vmatmul.mubr.f32.gmra.mxu0 %v1210
    %v1436 = vpop.f32.mrf.mxu0
    %v1437 = vadd.f32 0.0, %v1436
    %v1438 = vpop.f32.mrf.mxu0
    %v1439 = vadd.f32 0.0, %v1438
    %1440 = vdwg.mxu0
    %v1445 = vcombine.low %v1366, %v1368
    %v1446 = vcombine.low %v1437, %v1439
    %v1448 = vunpack.c.l.s4 1966171168
    %v1449 = vunpack.c.0.s8 %v1448
    %v1450 = vlaneseq
    %v1451 = vshrl.u32 %v1450, 7
    %v1452 = vsub.s32 %v1449, %v1451
    %v1453 = vrot.slane %v1445, %v1452
    %v1455 = vunpack.c.l.s4 1966171168
    %v1456 = vunpack.c.0.s8 %v1455
    %v1457 = vlaneseq
    %v1458 = vshrl.u32 %v1457, 7
    %v1459 = vsub.s32 %v1456, %v1458
    %v1460 = vrot.slane %v1446, %v1459
    %v1461 = vcombine.low %v1453, %v1460
    %v1463 = vunpack.c.l.s4 1966171168
    %v1464 = vunpack.c.0.s8 %v1463
    %v1465 = vlaneseq
    %v1466 = vshrl.u32 %v1465, 7
    %v1467 = vsub.s32 %v1464, %v1466
    %v1468 = vrot.slane %v1461, %v1467
    %v1470 = vadd.f32 %v1234, %v1468
    %s1471 = scalar_lea.vmem [#allocation3], 6
    %v1472 = vld [vmem:[%s1471] ss:$8 sm:$0xf]
    %v1473 = vld [vmem:[#allocation13] sm:$0xff]
    %v1474 = vld [vmem:[#allocation13 + $0x8] sm:$0xff]
    %v1475 = vld [vmem:[#allocation13 + $0x10] sm:$0xff]
    %v1476 = vld [vmem:[#allocation13 + $0x18] sm:$0xff]
    %v1477 = vld [vmem:[#allocation13 + $0x20] sm:$0xff]
    %v1478 = vld [vmem:[#allocation13 + $0x28] sm:$0xff]
    %v1479 = vld [vmem:[#allocation13 + $0x30] sm:$0xff]
    %v1480 = vld [vmem:[#allocation13 + $0x38] sm:$0xff]
    %v1481 = vld [vmem:[#allocation13 + $0x40] sm:$0xff]
    %v1482 = vld [vmem:[#allocation13 + $0x48] sm:$0xff]
    %v1483 = vld [vmem:[#allocation13 + $0x50] sm:$0xff]
    %v1484 = vld [vmem:[#allocation13 + $0x58] sm:$0xff]
    %v1485 = vld [vmem:[#allocation13 + $0x60] sm:$0xff]
    %v1486 = vld [vmem:[#allocation13 + $0x68] sm:$0xff]
    %v1487 = vld [vmem:[#allocation13 + $0x70] sm:$0xff]
    %v1488 = vld [vmem:[#allocation13 + $0x78] sm:$0xff]
    %v1489 = vld [vmem:[#allocation13 + $0x80] sm:$0xff]
    %v1490 = vld [vmem:[#allocation13 + $0x88] sm:$0xff]
    %v1491 = vld [vmem:[#allocation13 + $0x90] sm:$0xff]
    %v1492 = vld [vmem:[#allocation13 + $0x98] sm:$0xff]
    %v1493 = vld [vmem:[#allocation13 + $0xa0] sm:$0xff]
    %v1494 = vld [vmem:[#allocation13 + $0xa8] sm:$0xff]
    %v1495 = vld [vmem:[#allocation13 + $0xb0] sm:$0xff]
    %v1496 = vld [vmem:[#allocation13 + $0xb8] sm:$0xff]
    %v1497 = vld [vmem:[#allocation13 + $0xc0] sm:$0xff]
    %v1498 = vld [vmem:[#allocation13 + $0xc8] sm:$0xff]
    %v1499 = vld [vmem:[#allocation13 + $0xd0] sm:$0xff]
    %v1500 = vld [vmem:[#allocation13 + $0xd8] sm:$0xff]
    %v1501 = vld [vmem:[#allocation13 + $0xe0] sm:$0xff]
    %v1502 = vld [vmem:[#allocation13 + $0xe8] sm:$0xff]
    %v1503 = vld [vmem:[#allocation13 + $0xf0] sm:$0xff]
    %v1504 = vld [vmem:[#allocation13 + $0xf8] sm:$0xff]
    %v1505 = vld [vmem:[#allocation13 + $0x100] sm:$0xff]
    %v1506 = vld [vmem:[#allocation13 + $0x108] sm:$0xff]
    %v1507 = vld [vmem:[#allocation13 + $0x110] sm:$0xff]
    %v1508 = vld [vmem:[#allocation13 + $0x118] sm:$0xff]
    %v1509 = vld [vmem:[#allocation13 + $0x120] sm:$0xff]
    %v1510 = vld [vmem:[#allocation13 + $0x128] sm:$0xff]
    %v1511 = vld [vmem:[#allocation13 + $0x130] sm:$0xff]
    %v1512 = vld [vmem:[#allocation13 + $0x138] sm:$0xff]
    %v1513 = vld [vmem:[#allocation13 + $0x140] sm:$0xff]
    %v1514 = vld [vmem:[#allocation13 + $0x148] sm:$0xff]
    %v1515 = vld [vmem:[#allocation13 + $0x150] sm:$0xff]
    %v1516 = vld [vmem:[#allocation13 + $0x158] sm:$0xff]
    %v1517 = vld [vmem:[#allocation13 + $0x160] sm:$0xff]
    %v1518 = vld [vmem:[#allocation13 + $0x168] sm:$0xff]
    %v1519 = vld [vmem:[#allocation13 + $0x170] sm:$0xff]
    %v1520 = vld [vmem:[#allocation13 + $0x178] sm:$0xff]
    %v1521 = vld [vmem:[#allocation13 + $0x180] sm:$0xff]
    %v1522 = vld [vmem:[#allocation13 + $0x188] sm:$0xff]
    %v1523 = vld [vmem:[#allocation13 + $0x190] sm:$0xff]
    %v1524 = vld [vmem:[#allocation13 + $0x198] sm:$0xff]
    %v1525 = vld [vmem:[#allocation13 + $0x1a0] sm:$0xff]
    %v1526 = vld [vmem:[#allocation13 + $0x1a8] sm:$0xff]
    %v1527 = vld [vmem:[#allocation13 + $0x1b0] sm:$0xff]
    %v1528 = vld [vmem:[#allocation13 + $0x1b8] sm:$0xff]
    %v1529 = vld [vmem:[#allocation13 + $0x1c0] sm:$0xff]
    %v1530 = vld [vmem:[#allocation13 + $0x1c8] sm:$0xff]
    %v1531 = vld [vmem:[#allocation13 + $0x1d0] sm:$0xff]
    %v1532 = vld [vmem:[#allocation13 + $0x1d8] sm:$0xff]
    %v1533 = vld [vmem:[#allocation13 + $0x1e0] sm:$0xff]
    %v1534 = vld [vmem:[#allocation13 + $0x1e8] sm:$0xff]
    %v1535 = vld [vmem:[#allocation13 + $0x1f0] sm:$0xff]
    %v1536 = vld [vmem:[#allocation13 + $0x1f8] sm:$0xff]
    %1537 = vmatprep.subr.mxu0 %v1534
    %1538 = vmatpush1.msra.mxu0 %v1533
    %1539 = vmatprep.subr.mxu0 %v1530
    %1540 = vmatpush1.msra.mxu0 %v1529
    %1541 = vmatprep.subr.mxu0 %v1526
    %1542 = vmatpush1.msra.mxu0 %v1525
    %1543 = vmatprep.subr.mxu0 %v1522
    %1544 = vmatpush1.msra.mxu0 %v1521
    %1545 = vmatprep.subr.mxu0 %v1518
    %1546 = vmatpush1.msra.mxu0 %v1517
    %1547 = vmatprep.subr.mxu0 %v1514
    %1548 = vmatpush1.msra.mxu0 %v1513
    %1549 = vmatprep.subr.mxu0 %v1510
    %1550 = vmatpush1.msra.mxu0 %v1509
    %1551 = vmatprep.subr.mxu0 %v1506
    %1552 = vmatpush1.msra.mxu0 %v1505
    %1553 = vmatprep.subr.mxu0 %v1502
    %1554 = vmatpush1.msra.mxu0 %v1501
    %1555 = vmatprep.subr.mxu0 %v1498
    %1556 = vmatpush1.msra.mxu0 %v1497
    %1557 = vmatprep.subr.mxu0 %v1494
    %1558 = vmatpush1.msra.mxu0 %v1493
    %1559 = vmatprep.subr.mxu0 %v1490
    %1560 = vmatpush1.msra.mxu0 %v1489
    %1561 = vmatprep.subr.mxu0 %v1486
    %1562 = vmatpush1.msra.mxu0 %v1485
    %1563 = vmatprep.subr.mxu0 %v1482
    %1564 = vmatpush1.msra.mxu0 %v1481
    %1565 = vmatprep.subr.mxu0 %v1478
    %1566 = vmatpush1.msra.mxu0 %v1477
    %1567 = vmatprep.subr.mxu0 %v1474
    %1568 = vmatpush1.msra.mxu0 %v1473
    %1569 = vmatprep.subr.mxu0 0.0
    %1570 = vmatpush2.msra.mxu0 0.0
    %1571 = vmatprep.subr.mxu0 0.0
    %1572 = vmatpush2.msra.mxu0 0.0
    %1573 = vmatprep.subr.mxu0 0.0
    %1574 = vmatpush2.msra.mxu0 0.0
    %1575 = vmatprep.subr.mxu0 0.0
    %1576 = vmatpush2.msra.mxu0 0.0
    %1577 = vmatprep.subr.mxu0 0.0
    %1578 = vmatpush2.msra.mxu0 0.0
    %1579 = vmatprep.subr.mxu0 0.0
    %1580 = vmatpush2.msra.mxu0 0.0
    %1581 = vmatprep.subr.mxu0 0.0
    %1582 = vmatpush2.msra.mxu0 0.0
    %1583 = vmatprep.subr.mxu0 0.0
    %1584 = vmatpush2.msra.mxu0 0.0
    %1585 = vmatprep.subr.mxu0 0.0
    %1586 = vmatpush2.msra.mxu0 0.0
    %1587 = vmatprep.subr.mxu0 0.0
    %1588 = vmatpush2.msra.mxu0 0.0
    %1589 = vmatprep.subr.mxu0 0.0
    %1590 = vmatpush2.msra.mxu0 0.0
    %1591 = vmatprep.subr.mxu0 0.0
    %1592 = vmatpush2.msra.mxu0 0.0
    %1593 = vmatprep.subr.mxu0 0.0
    %1594 = vmatpush2.msra.mxu0 0.0
    %1595 = vmatprep.subr.mxu0 0.0
    %1596 = vmatpush2.msra.mxu0 0.0
    %1597 = vmatprep.subr.mxu0 0.0
    %1598 = vmatpush2.msra.mxu0 0.0
    %1599 = vmatprep.subr.mxu0 0.0
    %1600 = vmatpush2.msra.mxu0 0.0
    %1601 = vmatprep.mubr.f32.mxu0 0.0
    %1602 = vmatmul.mubr.f32.gmra.mxu0 %v1230
    %v1603 = vpop.f32.mrf.mxu0
    %v1604 = vadd.f32 0.0, %v1603
    %v1605 = vpop.f32.mrf.mxu0
    %v1606 = vadd.f32 0.0, %v1605
    %1607 = vdwg.mxu0
    %1608 = vmatprep.subr.mxu0 %v1536
    %1609 = vmatpush1.msra.mxu0 %v1535
    %1610 = vmatprep.subr.mxu0 %v1532
    %1611 = vmatpush1.msra.mxu0 %v1531
    %1612 = vmatprep.subr.mxu0 %v1528
    %1613 = vmatpush1.msra.mxu0 %v1527
    %1614 = vmatprep.subr.mxu0 %v1524
    %1615 = vmatpush1.msra.mxu0 %v1523
    %1616 = vmatprep.subr.mxu0 %v1520
    %1617 = vmatpush1.msra.mxu0 %v1519
    %1618 = vmatprep.subr.mxu0 %v1516
    %1619 = vmatpush1.msra.mxu0 %v1515
    %1620 = vmatprep.subr.mxu0 %v1512
    %1621 = vmatpush1.msra.mxu0 %v1511
    %1622 = vmatprep.subr.mxu0 %v1508
    %1623 = vmatpush1.msra.mxu0 %v1507
    %1624 = vmatprep.subr.mxu0 %v1504
    %1625 = vmatpush1.msra.mxu0 %v1503
    %1626 = vmatprep.subr.mxu0 %v1500
    %1627 = vmatpush1.msra.mxu0 %v1499
    %1628 = vmatprep.subr.mxu0 %v1496
    %1629 = vmatpush1.msra.mxu0 %v1495
    %1630 = vmatprep.subr.mxu0 %v1492
    %1631 = vmatpush1.msra.mxu0 %v1491
    %1632 = vmatprep.subr.mxu0 %v1488
    %1633 = vmatpush1.msra.mxu0 %v1487
    %1634 = vmatprep.subr.mxu0 %v1484
    %1635 = vmatpush1.msra.mxu0 %v1483
    %1636 = vmatprep.subr.mxu0 %v1480
    %1637 = vmatpush1.msra.mxu0 %v1479
    %1638 = vmatprep.subr.mxu0 %v1476
    %1639 = vmatpush1.msra.mxu0 %v1475
    %1640 = vmatprep.subr.mxu0 0.0
    %1641 = vmatpush2.msra.mxu0 0.0
    %1642 = vmatprep.subr.mxu0 0.0
    %1643 = vmatpush2.msra.mxu0 0.0
    %1644 = vmatprep.subr.mxu0 0.0
    %1645 = vmatpush2.msra.mxu0 0.0
    %1646 = vmatprep.subr.mxu0 0.0
    %1647 = vmatpush2.msra.mxu0 0.0
    %1648 = vmatprep.subr.mxu0 0.0
    %1649 = vmatpush2.msra.mxu0 0.0
    %1650 = vmatprep.subr.mxu0 0.0
    %1651 = vmatpush2.msra.mxu0 0.0
    %1652 = vmatprep.subr.mxu0 0.0
    %1653 = vmatpush2.msra.mxu0 0.0
    %1654 = vmatprep.subr.mxu0 0.0
    %1655 = vmatpush2.msra.mxu0 0.0
    %1656 = vmatprep.subr.mxu0 0.0
    %1657 = vmatpush2.msra.mxu0 0.0
    %1658 = vmatprep.subr.mxu0 0.0
    %1659 = vmatpush2.msra.mxu0 0.0
    %1660 = vmatprep.subr.mxu0 0.0
    %1661 = vmatpush2.msra.mxu0 0.0
    %1662 = vmatprep.subr.mxu0 0.0
    %1663 = vmatpush2.msra.mxu0 0.0
    %1664 = vmatprep.subr.mxu0 0.0
    %1665 = vmatpush2.msra.mxu0 0.0
    %1666 = vmatprep.subr.mxu0 0.0
    %1667 = vmatpush2.msra.mxu0 0.0
    %1668 = vmatprep.subr.mxu0 0.0
    %1669 = vmatpush2.msra.mxu0 0.0
    %1670 = vmatprep.subr.mxu0 0.0
    %1671 = vmatpush2.msra.mxu0 0.0
    %1672 = vmatprep.mubr.f32.mxu0 0.0
    %1673 = vmatmul.mubr.f32.gmra.mxu0 %v1230
    %v1674 = vpop.f32.mrf.mxu0
    %v1675 = vadd.f32 0.0, %v1674
    %v1676 = vpop.f32.mrf.mxu0
    %v1677 = vadd.f32 0.0, %v1676
    %1678 = vdwg.mxu0
    %v1683 = vcombine.low %v1604, %v1606
    %v1684 = vcombine.low %v1675, %v1677
    %v1686 = vunpack.c.l.s4 1966171168
    %v1687 = vunpack.c.0.s8 %v1686
    %v1688 = vlaneseq
    %v1689 = vshrl.u32 %v1688, 7
    %v1690 = vsub.s32 %v1687, %v1689
    %v1691 = vrot.slane %v1683, %v1690
    %v1693 = vunpack.c.l.s4 1966171168
    %v1694 = vunpack.c.0.s8 %v1693
    %v1695 = vlaneseq
    %v1696 = vshrl.u32 %v1695, 7
    %v1697 = vsub.s32 %v1694, %v1696
    %v1698 = vrot.slane %v1684, %v1697
    %v1699 = vcombine.low %v1691, %v1698
    %v1701 = vunpack.c.l.s4 1966171168
    %v1702 = vunpack.c.0.s8 %v1701
    %v1703 = vlaneseq
    %v1704 = vshrl.u32 %v1703, 7
    %v1705 = vsub.s32 %v1702, %v1704
    %v1706 = vrot.slane %v1699, %v1705
    %v1708 = vadd.f32 %v1472, %v1706
    %v1709 = vxor.u32 %v1470, 2147483648
    %v1710 = vmul.f32 %v1709, 1.442695
    %v1711 = vpow.pop %v1710
    %v1712 = vadd.f32 %v1711, 1.0
    %v1713 = vrcp.pop %v1712
    %v1714 = vmul.f32 1.0, %v1713
    %v1716 = vrot.slane %v1470, 3
    %v1718 = vtanh.pop %v1716
    %v1720 = vrot.slane %v1714, 1
    %v1722 = vmul.f32 %v1720, %v1206
    %v1723 = vmul.f32 %v1714, %v1718
    %v1724 = vadd.f32 %v1722, %v1723
    %v1725 = vtanh.pop %v1724
    %v1726 = vrot.slane %v1714, 2
    %v1728 = vmul.f32 %v1726, %v1725
    %v1729 = vxor.u32 %v1708, 2147483648
    %v1730 = vmul.f32 %v1729, 1.442695
    %v1731 = vpow.pop %v1730
    %v1732 = vadd.f32 %v1731, 1.0
    %v1733 = vrcp.pop %v1732
    %v1734 = vmul.f32 1.0, %v1733
    %v1736 = vrot.slane %v1708, 3
    %v1738 = vtanh.pop %v1736
    %v1740 = vrot.slane %v1734, 1
    %v1742 = vmul.f32 %v1740, %v1226
    %v1743 = vmul.f32 %v1734, %v1738
    %v1744 = vadd.f32 %v1742, %v1743
    %v1745 = vtanh.pop %v1744
    %v1746 = vrot.slane %v1734, 2
    %v1748 = vmul.f32 %v1746, %v1745
    %1749 = vst [vmem:[#allocation4 + $0x1] sm:$0x1] %v1728
    %1750 = vst [vmem:[#allocation5 + $0x6] sm:$0x1] %v1748
    %s1751 = scalar_lea.vmem [#allocation2], 2
    %v1752 = vld [vmem:[%s1751] ss:$8 sm:$0xf]
    %v1753 = vld [vmem:[#allocation12] sm:$0xff]
    %v1754 = vld [vmem:[#allocation12 + $0x8] sm:$0xff]
    %v1755 = vld [vmem:[#allocation12 + $0x10] sm:$0xff]
    %v1756 = vld [vmem:[#allocation12 + $0x18] sm:$0xff]
    %v1757 = vld [vmem:[#allocation12 + $0x20] sm:$0xff]
    %v1758 = vld [vmem:[#allocation12 + $0x28] sm:$0xff]
    %v1759 = vld [vmem:[#allocation12 + $0x30] sm:$0xff]
    %v1760 = vld [vmem:[#allocation12 + $0x38] sm:$0xff]
    %v1761 = vld [vmem:[#allocation12 + $0x40] sm:$0xff]
    %v1762 = vld [vmem:[#allocation12 + $0x48] sm:$0xff]
    %v1763 = vld [vmem:[#allocation12 + $0x50] sm:$0xff]
    %v1764 = vld [vmem:[#allocation12 + $0x58] sm:$0xff]
    %v1765 = vld [vmem:[#allocation12 + $0x60] sm:$0xff]
    %v1766 = vld [vmem:[#allocation12 + $0x68] sm:$0xff]
    %v1767 = vld [vmem:[#allocation12 + $0x70] sm:$0xff]
    %v1768 = vld [vmem:[#allocation12 + $0x78] sm:$0xff]
    %v1769 = vld [vmem:[#allocation12 + $0x80] sm:$0xff]
    %v1770 = vld [vmem:[#allocation12 + $0x88] sm:$0xff]
    %v1771 = vld [vmem:[#allocation12 + $0x90] sm:$0xff]
    %v1772 = vld [vmem:[#allocation12 + $0x98] sm:$0xff]
    %v1773 = vld [vmem:[#allocation12 + $0xa0] sm:$0xff]
    %v1774 = vld [vmem:[#allocation12 + $0xa8] sm:$0xff]
    %v1775 = vld [vmem:[#allocation12 + $0xb0] sm:$0xff]
    %v1776 = vld [vmem:[#allocation12 + $0xb8] sm:$0xff]
    %v1777 = vld [vmem:[#allocation12 + $0xc0] sm:$0xff]
    %v1778 = vld [vmem:[#allocation12 + $0xc8] sm:$0xff]
    %v1779 = vld [vmem:[#allocation12 + $0xd0] sm:$0xff]
    %v1780 = vld [vmem:[#allocation12 + $0xd8] sm:$0xff]
    %v1781 = vld [vmem:[#allocation12 + $0xe0] sm:$0xff]
    %v1782 = vld [vmem:[#allocation12 + $0xe8] sm:$0xff]
    %v1783 = vld [vmem:[#allocation12 + $0xf0] sm:$0xff]
    %v1784 = vld [vmem:[#allocation12 + $0xf8] sm:$0xff]
    %v1785 = vld [vmem:[#allocation12 + $0x100] sm:$0xff]
    %v1786 = vld [vmem:[#allocation12 + $0x108] sm:$0xff]
    %v1787 = vld [vmem:[#allocation12 + $0x110] sm:$0xff]
    %v1788 = vld [vmem:[#allocation12 + $0x118] sm:$0xff]
    %v1789 = vld [vmem:[#allocation12 + $0x120] sm:$0xff]
    %v1790 = vld [vmem:[#allocation12 + $0x128] sm:$0xff]
    %v1791 = vld [vmem:[#allocation12 + $0x130] sm:$0xff]
    %v1792 = vld [vmem:[#allocation12 + $0x138] sm:$0xff]
    %v1793 = vld [vmem:[#allocation12 + $0x140] sm:$0xff]
    %v1794 = vld [vmem:[#allocation12 + $0x148] sm:$0xff]
    %v1795 = vld [vmem:[#allocation12 + $0x150] sm:$0xff]
    %v1796 = vld [vmem:[#allocation12 + $0x158] sm:$0xff]
    %v1797 = vld [vmem:[#allocation12 + $0x160] sm:$0xff]
    %v1798 = vld [vmem:[#allocation12 + $0x168] sm:$0xff]
    %v1799 = vld [vmem:[#allocation12 + $0x170] sm:$0xff]
    %v1800 = vld [vmem:[#allocation12 + $0x178] sm:$0xff]
    %v1801 = vld [vmem:[#allocation12 + $0x180] sm:$0xff]
    %v1802 = vld [vmem:[#allocation12 + $0x188] sm:$0xff]
    %v1803 = vld [vmem:[#allocation12 + $0x190] sm:$0xff]
    %v1804 = vld [vmem:[#allocation12 + $0x198] sm:$0xff]
    %v1805 = vld [vmem:[#allocation12 + $0x1a0] sm:$0xff]
    %v1806 = vld [vmem:[#allocation12 + $0x1a8] sm:$0xff]
    %v1807 = vld [vmem:[#allocation12 + $0x1b0] sm:$0xff]
    %v1808 = vld [vmem:[#allocation12 + $0x1b8] sm:$0xff]
    %v1809 = vld [vmem:[#allocation12 + $0x1c0] sm:$0xff]
    %v1810 = vld [vmem:[#allocation12 + $0x1c8] sm:$0xff]
    %v1811 = vld [vmem:[#allocation12 + $0x1d0] sm:$0xff]
    %v1812 = vld [vmem:[#allocation12 + $0x1d8] sm:$0xff]
    %v1813 = vld [vmem:[#allocation12 + $0x1e0] sm:$0xff]
    %v1814 = vld [vmem:[#allocation12 + $0x1e8] sm:$0xff]
    %v1815 = vld [vmem:[#allocation12 + $0x1f0] sm:$0xff]
    %v1816 = vld [vmem:[#allocation12 + $0x1f8] sm:$0xff]
    %1817 = vmatprep.subr.mxu0 %v1814
    %1818 = vmatpush1.msra.mxu0 %v1813
    %1819 = vmatprep.subr.mxu0 %v1810
    %1820 = vmatpush1.msra.mxu0 %v1809
    %1821 = vmatprep.subr.mxu0 %v1806
    %1822 = vmatpush1.msra.mxu0 %v1805
    %1823 = vmatprep.subr.mxu0 %v1802
    %1824 = vmatpush1.msra.mxu0 %v1801
    %1825 = vmatprep.subr.mxu0 %v1798
    %1826 = vmatpush1.msra.mxu0 %v1797
    %1827 = vmatprep.subr.mxu0 %v1794
    %1828 = vmatpush1.msra.mxu0 %v1793
    %1829 = vmatprep.subr.mxu0 %v1790
    %1830 = vmatpush1.msra.mxu0 %v1789
    %1831 = vmatprep.subr.mxu0 %v1786
    %1832 = vmatpush1.msra.mxu0 %v1785
    %1833 = vmatprep.subr.mxu0 %v1782
    %1834 = vmatpush1.msra.mxu0 %v1781
    %1835 = vmatprep.subr.mxu0 %v1778
    %1836 = vmatpush1.msra.mxu0 %v1777
    %1837 = vmatprep.subr.mxu0 %v1774
    %1838 = vmatpush1.msra.mxu0 %v1773
    %1839 = vmatprep.subr.mxu0 %v1770
    %1840 = vmatpush1.msra.mxu0 %v1769
    %1841 = vmatprep.subr.mxu0 %v1766
    %1842 = vmatpush1.msra.mxu0 %v1765
    %1843 = vmatprep.subr.mxu0 %v1762
    %1844 = vmatpush1.msra.mxu0 %v1761
    %1845 = vmatprep.subr.mxu0 %v1758
    %1846 = vmatpush1.msra.mxu0 %v1757
    %1847 = vmatprep.subr.mxu0 %v1754
    %1848 = vmatpush1.msra.mxu0 %v1753
    %1849 = vmatprep.subr.mxu0 0.0
    %1850 = vmatpush2.msra.mxu0 0.0
    %1851 = vmatprep.subr.mxu0 0.0
    %1852 = vmatpush2.msra.mxu0 0.0
    %1853 = vmatprep.subr.mxu0 0.0
    %1854 = vmatpush2.msra.mxu0 0.0
    %1855 = vmatprep.subr.mxu0 0.0
    %1856 = vmatpush2.msra.mxu0 0.0
    %1857 = vmatprep.subr.mxu0 0.0
    %1858 = vmatpush2.msra.mxu0 0.0
    %1859 = vmatprep.subr.mxu0 0.0
    %1860 = vmatpush2.msra.mxu0 0.0
    %1861 = vmatprep.subr.mxu0 0.0
    %1862 = vmatpush2.msra.mxu0 0.0
    %1863 = vmatprep.subr.mxu0 0.0
    %1864 = vmatpush2.msra.mxu0 0.0
    %1865 = vmatprep.subr.mxu0 0.0
    %1866 = vmatpush2.msra.mxu0 0.0
    %1867 = vmatprep.subr.mxu0 0.0
    %1868 = vmatpush2.msra.mxu0 0.0
    %1869 = vmatprep.subr.mxu0 0.0
    %1870 = vmatpush2.msra.mxu0 0.0
    %1871 = vmatprep.subr.mxu0 0.0
    %1872 = vmatpush2.msra.mxu0 0.0
    %1873 = vmatprep.subr.mxu0 0.0
    %1874 = vmatpush2.msra.mxu0 0.0
    %1875 = vmatprep.subr.mxu0 0.0
    %1876 = vmatpush2.msra.mxu0 0.0
    %1877 = vmatprep.subr.mxu0 0.0
    %1878 = vmatpush2.msra.mxu0 0.0
    %1879 = vmatprep.subr.mxu0 0.0
    %1880 = vmatpush2.msra.mxu0 0.0
    %1881 = vmatprep.mubr.f32.mxu0 0.0
    %1882 = vmatmul.mubr.f32.gmra.mxu0 %v1728
    %v1883 = vpop.f32.mrf.mxu0
    %v1884 = vadd.f32 0.0, %v1883
    %v1885 = vpop.f32.mrf.mxu0
    %v1886 = vadd.f32 0.0, %v1885
    %1887 = vdwg.mxu0
    %1888 = vmatprep.subr.mxu0 %v1816
    %1889 = vmatpush1.msra.mxu0 %v1815
    %1890 = vmatprep.subr.mxu0 %v1812
    %1891 = vmatpush1.msra.mxu0 %v1811
    %1892 = vmatprep.subr.mxu0 %v1808
    %1893 = vmatpush1.msra.mxu0 %v1807
    %1894 = vmatprep.subr.mxu0 %v1804
    %1895 = vmatpush1.msra.mxu0 %v1803
    %1896 = vmatprep.subr.mxu0 %v1800
    %1897 = vmatpush1.msra.mxu0 %v1799
    %1898 = vmatprep.subr.mxu0 %v1796
    %1899 = vmatpush1.msra.mxu0 %v1795
    %1900 = vmatprep.subr.mxu0 %v1792
    %1901 = vmatpush1.msra.mxu0 %v1791
    %1902 = vmatprep.subr.mxu0 %v1788
    %1903 = vmatpush1.msra.mxu0 %v1787
    %1904 = vmatprep.subr.mxu0 %v1784
    %1905 = vmatpush1.msra.mxu0 %v1783
    %1906 = vmatprep.subr.mxu0 %v1780
    %1907 = vmatpush1.msra.mxu0 %v1779
    %1908 = vmatprep.subr.mxu0 %v1776
    %1909 = vmatpush1.msra.mxu0 %v1775
    %1910 = vmatprep.subr.mxu0 %v1772
    %1911 = vmatpush1.msra.mxu0 %v1771
    %1912 = vmatprep.subr.mxu0 %v1768
    %1913 = vmatpush1.msra.mxu0 %v1767
    %1914 = vmatprep.subr.mxu0 %v1764
    %1915 = vmatpush1.msra.mxu0 %v1763
    %1916 = vmatprep.subr.mxu0 %v1760
    %1917 = vmatpush1.msra.mxu0 %v1759
    %1918 = vmatprep.subr.mxu0 %v1756
    %1919 = vmatpush1.msra.mxu0 %v1755
    %1920 = vmatprep.subr.mxu0 0.0
    %1921 = vmatpush2.msra.mxu0 0.0
    %1922 = vmatprep.subr.mxu0 0.0
    %1923 = vmatpush2.msra.mxu0 0.0
    %1924 = vmatprep.subr.mxu0 0.0
    %1925 = vmatpush2.msra.mxu0 0.0
    %1926 = vmatprep.subr.mxu0 0.0
    %1927 = vmatpush2.msra.mxu0 0.0
    %1928 = vmatprep.subr.mxu0 0.0
    %1929 = vmatpush2.msra.mxu0 0.0
    %1930 = vmatprep.subr.mxu0 0.0
    %1931 = vmatpush2.msra.mxu0 0.0
    %1932 = vmatprep.subr.mxu0 0.0
    %1933 = vmatpush2.msra.mxu0 0.0
    %1934 = vmatprep.subr.mxu0 0.0
    %1935 = vmatpush2.msra.mxu0 0.0
    %1936 = vmatprep.subr.mxu0 0.0
    %1937 = vmatpush2.msra.mxu0 0.0
    %1938 = vmatprep.subr.mxu0 0.0
    %1939 = vmatpush2.msra.mxu0 0.0
    %1940 = vmatprep.subr.mxu0 0.0
    %1941 = vmatpush2.msra.mxu0 0.0
    %1942 = vmatprep.subr.mxu0 0.0
    %1943 = vmatpush2.msra.mxu0 0.0
    %1944 = vmatprep.subr.mxu0 0.0
    %1945 = vmatpush2.msra.mxu0 0.0
    %1946 = vmatprep.subr.mxu0 0.0
    %1947 = vmatpush2.msra.mxu0 0.0
    %1948 = vmatprep.subr.mxu0 0.0
    %1949 = vmatpush2.msra.mxu0 0.0
    %1950 = vmatprep.subr.mxu0 0.0
    %1951 = vmatpush2.msra.mxu0 0.0
    %1952 = vmatprep.mubr.f32.mxu0 0.0
    %1953 = vmatmul.mubr.f32.gmra.mxu0 %v1728
    %v1954 = vpop.f32.mrf.mxu0
    %v1955 = vadd.f32 0.0, %v1954
    %v1956 = vpop.f32.mrf.mxu0
    %v1957 = vadd.f32 0.0, %v1956
    %1958 = vdwg.mxu0
    %v1963 = vcombine.low %v1884, %v1886
    %v1964 = vcombine.low %v1955, %v1957
    %v1966 = vunpack.c.l.s4 1966171168
    %v1967 = vunpack.c.0.s8 %v1966
    %v1968 = vlaneseq
    %v1969 = vshrl.u32 %v1968, 7
    %v1970 = vsub.s32 %v1967, %v1969
    %v1971 = vrot.slane %v1963, %v1970
    %v1973 = vunpack.c.l.s4 1966171168
    %v1974 = vunpack.c.0.s8 %v1973
    %v1975 = vlaneseq
    %v1976 = vshrl.u32 %v1975, 7
    %v1977 = vsub.s32 %v1974, %v1976
    %v1978 = vrot.slane %v1964, %v1977
    %v1979 = vcombine.low %v1971, %v1978
    %v1981 = vunpack.c.l.s4 1966171168
    %v1982 = vunpack.c.0.s8 %v1981
    %v1983 = vlaneseq
    %v1984 = vshrl.u32 %v1983, 7
    %v1985 = vsub.s32 %v1982, %v1984
    %v1986 = vrot.slane %v1979, %v1985
    %v1988 = vadd.f32 %v1752, %v1986
    %s1989 = scalar_lea.vmem [#allocation3], 5
    %v1990 = vld [vmem:[%s1989] ss:$8 sm:$0xf]
    %v1991 = vld [vmem:[#allocation13] sm:$0xff]
    %v1992 = vld [vmem:[#allocation13 + $0x8] sm:$0xff]
    %v1993 = vld [vmem:[#allocation13 + $0x10] sm:$0xff]
    %v1994 = vld [vmem:[#allocation13 + $0x18] sm:$0xff]
    %v1995 = vld [vmem:[#allocation13 + $0x20] sm:$0xff]
    %v1996 = vld [vmem:[#allocation13 + $0x28] sm:$0xff]
    %v1997 = vld [vmem:[#allocation13 + $0x30] sm:$0xff]
    %v1998 = vld [vmem:[#allocation13 + $0x38] sm:$0xff]
    %v1999 = vld [vmem:[#allocation13 + $0x40] sm:$0xff]
    %v2000 = vld [vmem:[#allocation13 + $0x48] sm:$0xff]
    %v2001 = vld [vmem:[#allocation13 + $0x50] sm:$0xff]
    %v2002 = vld [vmem:[#allocation13 + $0x58] sm:$0xff]
    %v2003 = vld [vmem:[#allocation13 + $0x60] sm:$0xff]
    %v2004 = vld [vmem:[#allocation13 + $0x68] sm:$0xff]
    %v2005 = vld [vmem:[#allocation13 + $0x70] sm:$0xff]
    %v2006 = vld [vmem:[#allocation13 + $0x78] sm:$0xff]
    %v2007 = vld [vmem:[#allocation13 + $0x80] sm:$0xff]
    %v2008 = vld [vmem:[#allocation13 + $0x88] sm:$0xff]
    %v2009 = vld [vmem:[#allocation13 + $0x90] sm:$0xff]
    %v2010 = vld [vmem:[#allocation13 + $0x98] sm:$0xff]
    %v2011 = vld [vmem:[#allocation13 + $0xa0] sm:$0xff]
    %v2012 = vld [vmem:[#allocation13 + $0xa8] sm:$0xff]
    %v2013 = vld [vmem:[#allocation13 + $0xb0] sm:$0xff]
    %v2014 = vld [vmem:[#allocation13 + $0xb8] sm:$0xff]
    %v2015 = vld [vmem:[#allocation13 + $0xc0] sm:$0xff]
    %v2016 = vld [vmem:[#allocation13 + $0xc8] sm:$0xff]
    %v2017 = vld [vmem:[#allocation13 + $0xd0] sm:$0xff]
    %v2018 = vld [vmem:[#allocation13 + $0xd8] sm:$0xff]
    %v2019 = vld [vmem:[#allocation13 + $0xe0] sm:$0xff]
    %v2020 = vld [vmem:[#allocation13 + $0xe8] sm:$0xff]
    %v2021 = vld [vmem:[#allocation13 + $0xf0] sm:$0xff]
    %v2022 = vld [vmem:[#allocation13 + $0xf8] sm:$0xff]
    %v2023 = vld [vmem:[#allocation13 + $0x100] sm:$0xff]
    %v2024 = vld [vmem:[#allocation13 + $0x108] sm:$0xff]
    %v2025 = vld [vmem:[#allocation13 + $0x110] sm:$0xff]
    %v2026 = vld [vmem:[#allocation13 + $0x118] sm:$0xff]
    %v2027 = vld [vmem:[#allocation13 + $0x120] sm:$0xff]
    %v2028 = vld [vmem:[#allocation13 + $0x128] sm:$0xff]
    %v2029 = vld [vmem:[#allocation13 + $0x130] sm:$0xff]
    %v2030 = vld [vmem:[#allocation13 + $0x138] sm:$0xff]
    %v2031 = vld [vmem:[#allocation13 + $0x140] sm:$0xff]
    %v2032 = vld [vmem:[#allocation13 + $0x148] sm:$0xff]
    %v2033 = vld [vmem:[#allocation13 + $0x150] sm:$0xff]
    %v2034 = vld [vmem:[#allocation13 + $0x158] sm:$0xff]
    %v2035 = vld [vmem:[#allocation13 + $0x160] sm:$0xff]
    %v2036 = vld [vmem:[#allocation13 + $0x168] sm:$0xff]
    %v2037 = vld [vmem:[#allocation13 + $0x170] sm:$0xff]
    %v2038 = vld [vmem:[#allocation13 + $0x178] sm:$0xff]
    %v2039 = vld [vmem:[#allocation13 + $0x180] sm:$0xff]
    %v2040 = vld [vmem:[#allocation13 + $0x188] sm:$0xff]
    %v2041 = vld [vmem:[#allocation13 + $0x190] sm:$0xff]
    %v2042 = vld [vmem:[#allocation13 + $0x198] sm:$0xff]
    %v2043 = vld [vmem:[#allocation13 + $0x1a0] sm:$0xff]
    %v2044 = vld [vmem:[#allocation13 + $0x1a8] sm:$0xff]
    %v2045 = vld [vmem:[#allocation13 + $0x1b0] sm:$0xff]
    %v2046 = vld [vmem:[#allocation13 + $0x1b8] sm:$0xff]
    %v2047 = vld [vmem:[#allocation13 + $0x1c0] sm:$0xff]
    %v2048 = vld [vmem:[#allocation13 + $0x1c8] sm:$0xff]
    %v2049 = vld [vmem:[#allocation13 + $0x1d0] sm:$0xff]
    %v2050 = vld [vmem:[#allocation13 + $0x1d8] sm:$0xff]
    %v2051 = vld [vmem:[#allocation13 + $0x1e0] sm:$0xff]
    %v2052 = vld [vmem:[#allocation13 + $0x1e8] sm:$0xff]
    %v2053 = vld [vmem:[#allocation13 + $0x1f0] sm:$0xff]
    %v2054 = vld [vmem:[#allocation13 + $0x1f8] sm:$0xff]
    %2055 = vmatprep.subr.mxu0 %v2052
    %2056 = vmatpush1.msra.mxu0 %v2051
    %2057 = vmatprep.subr.mxu0 %v2048
    %2058 = vmatpush1.msra.mxu0 %v2047
    %2059 = vmatprep.subr.mxu0 %v2044
    %2060 = vmatpush1.msra.mxu0 %v2043
    %2061 = vmatprep.subr.mxu0 %v2040
    %2062 = vmatpush1.msra.mxu0 %v2039
    %2063 = vmatprep.subr.mxu0 %v2036
    %2064 = vmatpush1.msra.mxu0 %v2035
    %2065 = vmatprep.subr.mxu0 %v2032
    %2066 = vmatpush1.msra.mxu0 %v2031
    %2067 = vmatprep.subr.mxu0 %v2028
    %2068 = vmatpush1.msra.mxu0 %v2027
    %2069 = vmatprep.subr.mxu0 %v2024
    %2070 = vmatpush1.msra.mxu0 %v2023
    %2071 = vmatprep.subr.mxu0 %v2020
    %2072 = vmatpush1.msra.mxu0 %v2019
    %2073 = vmatprep.subr.mxu0 %v2016
    %2074 = vmatpush1.msra.mxu0 %v2015
    %2075 = vmatprep.subr.mxu0 %v2012
    %2076 = vmatpush1.msra.mxu0 %v2011
    %2077 = vmatprep.subr.mxu0 %v2008
    %2078 = vmatpush1.msra.mxu0 %v2007
    %2079 = vmatprep.subr.mxu0 %v2004
    %2080 = vmatpush1.msra.mxu0 %v2003
    %2081 = vmatprep.subr.mxu0 %v2000
    %2082 = vmatpush1.msra.mxu0 %v1999
    %2083 = vmatprep.subr.mxu0 %v1996
    %2084 = vmatpush1.msra.mxu0 %v1995
    %2085 = vmatprep.subr.mxu0 %v1992
    %2086 = vmatpush1.msra.mxu0 %v1991
    %2087 = vmatprep.subr.mxu0 0.0
    %2088 = vmatpush2.msra.mxu0 0.0
    %2089 = vmatprep.subr.mxu0 0.0
    %2090 = vmatpush2.msra.mxu0 0.0
    %2091 = vmatprep.subr.mxu0 0.0
    %2092 = vmatpush2.msra.mxu0 0.0
    %2093 = vmatprep.subr.mxu0 0.0
    %2094 = vmatpush2.msra.mxu0 0.0
    %2095 = vmatprep.subr.mxu0 0.0
    %2096 = vmatpush2.msra.mxu0 0.0
    %2097 = vmatprep.subr.mxu0 0.0
    %2098 = vmatpush2.msra.mxu0 0.0
    %2099 = vmatprep.subr.mxu0 0.0
    %2100 = vmatpush2.msra.mxu0 0.0
    %2101 = vmatprep.subr.mxu0 0.0
    %2102 = vmatpush2.msra.mxu0 0.0
    %2103 = vmatprep.subr.mxu0 0.0
    %2104 = vmatpush2.msra.mxu0 0.0
    %2105 = vmatprep.subr.mxu0 0.0
    %2106 = vmatpush2.msra.mxu0 0.0
    %2107 = vmatprep.subr.mxu0 0.0
    %2108 = vmatpush2.msra.mxu0 0.0
    %2109 = vmatprep.subr.mxu0 0.0
    %2110 = vmatpush2.msra.mxu0 0.0
    %2111 = vmatprep.subr.mxu0 0.0
    %2112 = vmatpush2.msra.mxu0 0.0
    %2113 = vmatprep.subr.mxu0 0.0
    %2114 = vmatpush2.msra.mxu0 0.0
    %2115 = vmatprep.subr.mxu0 0.0
    %2116 = vmatpush2.msra.mxu0 0.0
    %2117 = vmatprep.subr.mxu0 0.0
    %2118 = vmatpush2.msra.mxu0 0.0
    %2119 = vmatprep.mubr.f32.mxu0 0.0
    %2120 = vmatmul.mubr.f32.gmra.mxu0 %v1748
    %v2121 = vpop.f32.mrf.mxu0
    %v2122 = vadd.f32 0.0, %v2121
    %v2123 = vpop.f32.mrf.mxu0
    %v2124 = vadd.f32 0.0, %v2123
    %2125 = vdwg.mxu0
    %2126 = vmatprep.subr.mxu0 %v2054
    %2127 = vmatpush1.msra.mxu0 %v2053
    %2128 = vmatprep.subr.mxu0 %v2050
    %2129 = vmatpush1.msra.mxu0 %v2049
    %2130 = vmatprep.subr.mxu0 %v2046
    %2131 = vmatpush1.msra.mxu0 %v2045
    %2132 = vmatprep.subr.mxu0 %v2042
    %2133 = vmatpush1.msra.mxu0 %v2041
    %2134 = vmatprep.subr.mxu0 %v2038
    %2135 = vmatpush1.msra.mxu0 %v2037
    %2136 = vmatprep.subr.mxu0 %v2034
    %2137 = vmatpush1.msra.mxu0 %v2033
    %2138 = vmatprep.subr.mxu0 %v2030
    %2139 = vmatpush1.msra.mxu0 %v2029
    %2140 = vmatprep.subr.mxu0 %v2026
    %2141 = vmatpush1.msra.mxu0 %v2025
    %2142 = vmatprep.subr.mxu0 %v2022
    %2143 = vmatpush1.msra.mxu0 %v2021
    %2144 = vmatprep.subr.mxu0 %v2018
    %2145 = vmatpush1.msra.mxu0 %v2017
    %2146 = vmatprep.subr.mxu0 %v2014
    %2147 = vmatpush1.msra.mxu0 %v2013
    %2148 = vmatprep.subr.mxu0 %v2010
    %2149 = vmatpush1.msra.mxu0 %v2009
    %2150 = vmatprep.subr.mxu0 %v2006
    %2151 = vmatpush1.msra.mxu0 %v2005
    %2152 = vmatprep.subr.mxu0 %v2002
    %2153 = vmatpush1.msra.mxu0 %v2001
    %2154 = vmatprep.subr.mxu0 %v1998
    %2155 = vmatpush1.msra.mxu0 %v1997
    %2156 = vmatprep.subr.mxu0 %v1994
    %2157 = vmatpush1.msra.mxu0 %v1993
    %2158 = vmatprep.subr.mxu0 0.0
    %2159 = vmatpush2.msra.mxu0 0.0
    %2160 = vmatprep.subr.mxu0 0.0
    %2161 = vmatpush2.msra.mxu0 0.0
    %2162 = vmatprep.subr.mxu0 0.0
    %2163 = vmatpush2.msra.mxu0 0.0
    %2164 = vmatprep.subr.mxu0 0.0
    %2165 = vmatpush2.msra.mxu0 0.0
    %2166 = vmatprep.subr.mxu0 0.0
    %2167 = vmatpush2.msra.mxu0 0.0
    %2168 = vmatprep.subr.mxu0 0.0
    %2169 = vmatpush2.msra.mxu0 0.0
    %2170 = vmatprep.subr.mxu0 0.0
    %2171 = vmatpush2.msra.mxu0 0.0
    %2172 = vmatprep.subr.mxu0 0.0
    %2173 = vmatpush2.msra.mxu0 0.0
    %2174 = vmatprep.subr.mxu0 0.0
    %2175 = vmatpush2.msra.mxu0 0.0
    %2176 = vmatprep.subr.mxu0 0.0
    %2177 = vmatpush2.msra.mxu0 0.0
    %2178 = vmatprep.subr.mxu0 0.0
    %2179 = vmatpush2.msra.mxu0 0.0
    %2180 = vmatprep.subr.mxu0 0.0
    %2181 = vmatpush2.msra.mxu0 0.0
    %2182 = vmatprep.subr.mxu0 0.0
    %2183 = vmatpush2.msra.mxu0 0.0
    %2184 = vmatprep.subr.mxu0 0.0
    %2185 = vmatpush2.msra.mxu0 0.0
    %2186 = vmatprep.subr.mxu0 0.0
    %2187 = vmatpush2.msra.mxu0 0.0
    %2188 = vmatprep.subr.mxu0 0.0
    %2189 = vmatpush2.msra.mxu0 0.0
    %2190 = vmatprep.mubr.f32.mxu0 0.0
    %2191 = vmatmul.mubr.f32.gmra.mxu0 %v1748
    %v2192 = vpop.f32.mrf.mxu0
    %v2193 = vadd.f32 0.0, %v2192
    %v2194 = vpop.f32.mrf.mxu0
    %v2195 = vadd.f32 0.0, %v2194
    %2196 = vdwg.mxu0
    %v2201 = vcombine.low %v2122, %v2124
    %v2202 = vcombine.low %v2193, %v2195
    %v2204 = vunpack.c.l.s4 1966171168
    %v2205 = vunpack.c.0.s8 %v2204
    %v2206 = vlaneseq
    %v2207 = vshrl.u32 %v2206, 7
    %v2208 = vsub.s32 %v2205, %v2207
    %v2209 = vrot.slane %v2201, %v2208
    %v2211 = vunpack.c.l.s4 1966171168
    %v2212 = vunpack.c.0.s8 %v2211
    %v2213 = vlaneseq
    %v2214 = vshrl.u32 %v2213, 7
    %v2215 = vsub.s32 %v2212, %v2214
    %v2216 = vrot.slane %v2202, %v2215
    %v2217 = vcombine.low %v2209, %v2216
    %v2219 = vunpack.c.l.s4 1966171168
    %v2220 = vunpack.c.0.s8 %v2219
    %v2221 = vlaneseq
    %v2222 = vshrl.u32 %v2221, 7
    %v2223 = vsub.s32 %v2220, %v2222
    %v2224 = vrot.slane %v2217, %v2223
    %v2226 = vadd.f32 %v1990, %v2224
    %v2227 = vxor.u32 %v1988, 2147483648
    %v2228 = vmul.f32 %v2227, 1.442695
    %v2229 = vpow.pop %v2228
    %v2230 = vadd.f32 %v2229, 1.0
    %v2231 = vrcp.pop %v2230
    %v2232 = vmul.f32 1.0, %v2231
    %v2234 = vrot.slane %v1988, 3
    %v2236 = vtanh.pop %v2234
    %v2238 = vrot.slane %v2232, 1
    %v2240 = vmul.f32 %v2238, %v1724
    %v2241 = vmul.f32 %v2232, %v2236
    %v2242 = vadd.f32 %v2240, %v2241
    %v2243 = vtanh.pop %v2242
    %v2244 = vrot.slane %v2232, 2
    %v2246 = vmul.f32 %v2244, %v2243
    %v2247 = vxor.u32 %v2226, 2147483648
    %v2248 = vmul.f32 %v2247, 1.442695
    %v2249 = vpow.pop %v2248
    %v2250 = vadd.f32 %v2249, 1.0
    %v2251 = vrcp.pop %v2250
    %v2252 = vmul.f32 1.0, %v2251
    %v2254 = vrot.slane %v2226, 3
    %v2256 = vtanh.pop %v2254
    %v2258 = vrot.slane %v2252, 1
    %v2260 = vmul.f32 %v2258, %v1744
    %v2261 = vmul.f32 %v2252, %v2256
    %v2262 = vadd.f32 %v2260, %v2261
    %v2263 = vtanh.pop %v2262
    %v2264 = vrot.slane %v2252, 2
    %v2266 = vmul.f32 %v2264, %v2263
    %2267 = vst [vmem:[#allocation4 + $0x2] sm:$0x1] %v2246
    %2268 = vst [vmem:[#allocation5 + $0x5] sm:$0x1] %v2266
    %s2269 = scalar_lea.vmem [#allocation2], 3
    %v2270 = vld [vmem:[%s2269] ss:$8 sm:$0xf]
    %v2271 = vld [vmem:[#allocation12] sm:$0xff]
    %v2272 = vld [vmem:[#allocation12 + $0x8] sm:$0xff]
    %v2273 = vld [vmem:[#allocation12 + $0x10] sm:$0xff]
    %v2274 = vld [vmem:[#allocation12 + $0x18] sm:$0xff]
    %v2275 = vld [vmem:[#allocation12 + $0x20] sm:$0xff]
    %v2276 = vld [vmem:[#allocation12 + $0x28] sm:$0xff]
    %v2277 = vld [vmem:[#allocation12 + $0x30] sm:$0xff]
    %v2278 = vld [vmem:[#allocation12 + $0x38] sm:$0xff]
    %v2279 = vld [vmem:[#allocation12 + $0x40] sm:$0xff]
    %v2280 = vld [vmem:[#allocation12 + $0x48] sm:$0xff]
    %v2281 = vld [vmem:[#allocation12 + $0x50] sm:$0xff]
    %v2282 = vld [vmem:[#allocation12 + $0x58] sm:$0xff]
    %v2283 = vld [vmem:[#allocation12 + $0x60] sm:$0xff]
    %v2284 = vld [vmem:[#allocation12 + $0x68] sm:$0xff]
    %v2285 = vld [vmem:[#allocation12 + $0x70] sm:$0xff]
    %v2286 = vld [vmem:[#allocation12 + $0x78] sm:$0xff]
    %v2287 = vld [vmem:[#allocation12 + $0x80] sm:$0xff]
    %v2288 = vld [vmem:[#allocation12 + $0x88] sm:$0xff]
    %v2289 = vld [vmem:[#allocation12 + $0x90] sm:$0xff]
    %v2290 = vld [vmem:[#allocation12 + $0x98] sm:$0xff]
    %v2291 = vld [vmem:[#allocation12 + $0xa0] sm:$0xff]
    %v2292 = vld [vmem:[#allocation12 + $0xa8] sm:$0xff]
    %v2293 = vld [vmem:[#allocation12 + $0xb0] sm:$0xff]
    %v2294 = vld [vmem:[#allocation12 + $0xb8] sm:$0xff]
    %v2295 = vld [vmem:[#allocation12 + $0xc0] sm:$0xff]
    %v2296 = vld [vmem:[#allocation12 + $0xc8] sm:$0xff]
    %v2297 = vld [vmem:[#allocation12 + $0xd0] sm:$0xff]
    %v2298 = vld [vmem:[#allocation12 + $0xd8] sm:$0xff]
    %v2299 = vld [vmem:[#allocation12 + $0xe0] sm:$0xff]
    %v2300 = vld [vmem:[#allocation12 + $0xe8] sm:$0xff]
    %v2301 = vld [vmem:[#allocation12 + $0xf0] sm:$0xff]
    %v2302 = vld [vmem:[#allocation12 + $0xf8] sm:$0xff]
    %v2303 = vld [vmem:[#allocation12 + $0x100] sm:$0xff]
    %v2304 = vld [vmem:[#allocation12 + $0x108] sm:$0xff]
    %v2305 = vld [vmem:[#allocation12 + $0x110] sm:$0xff]
    %v2306 = vld [vmem:[#allocation12 + $0x118] sm:$0xff]
    %v2307 = vld [vmem:[#allocation12 + $0x120] sm:$0xff]
    %v2308 = vld [vmem:[#allocation12 + $0x128] sm:$0xff]
    %v2309 = vld [vmem:[#allocation12 + $0x130] sm:$0xff]
    %v2310 = vld [vmem:[#allocation12 + $0x138] sm:$0xff]
    %v2311 = vld [vmem:[#allocation12 + $0x140] sm:$0xff]
    %v2312 = vld [vmem:[#allocation12 + $0x148] sm:$0xff]
    %v2313 = vld [vmem:[#allocation12 + $0x150] sm:$0xff]
    %v2314 = vld [vmem:[#allocation12 + $0x158] sm:$0xff]
    %v2315 = vld [vmem:[#allocation12 + $0x160] sm:$0xff]
    %v2316 = vld [vmem:[#allocation12 + $0x168] sm:$0xff]
    %v2317 = vld [vmem:[#allocation12 + $0x170] sm:$0xff]
    %v2318 = vld [vmem:[#allocation12 + $0x178] sm:$0xff]
    %v2319 = vld [vmem:[#allocation12 + $0x180] sm:$0xff]
    %v2320 = vld [vmem:[#allocation12 + $0x188] sm:$0xff]
    %v2321 = vld [vmem:[#allocation12 + $0x190] sm:$0xff]
    %v2322 = vld [vmem:[#allocation12 + $0x198] sm:$0xff]
    %v2323 = vld [vmem:[#allocation12 + $0x1a0] sm:$0xff]
    %v2324 = vld [vmem:[#allocation12 + $0x1a8] sm:$0xff]
    %v2325 = vld [vmem:[#allocation12 + $0x1b0] sm:$0xff]
    %v2326 = vld [vmem:[#allocation12 + $0x1b8] sm:$0xff]
    %v2327 = vld [vmem:[#allocation12 + $0x1c0] sm:$0xff]
    %v2328 = vld [vmem:[#allocation12 + $0x1c8] sm:$0xff]
    %v2329 = vld [vmem:[#allocation12 + $0x1d0] sm:$0xff]
    %v2330 = vld [vmem:[#allocation12 + $0x1d8] sm:$0xff]
    %v2331 = vld [vmem:[#allocation12 + $0x1e0] sm:$0xff]
    %v2332 = vld [vmem:[#allocation12 + $0x1e8] sm:$0xff]
    %v2333 = vld [vmem:[#allocation12 + $0x1f0] sm:$0xff]
    %v2334 = vld [vmem:[#allocation12 + $0x1f8] sm:$0xff]
    %2335 = vmatprep.subr.mxu0 %v2332
    %2336 = vmatpush1.msra.mxu0 %v2331
    %2337 = vmatprep.subr.mxu0 %v2328
    %2338 = vmatpush1.msra.mxu0 %v2327
    %2339 = vmatprep.subr.mxu0 %v2324
    %2340 = vmatpush1.msra.mxu0 %v2323
    %2341 = vmatprep.subr.mxu0 %v2320
    %2342 = vmatpush1.msra.mxu0 %v2319
    %2343 = vmatprep.subr.mxu0 %v2316
    %2344 = vmatpush1.msra.mxu0 %v2315
    %2345 = vmatprep.subr.mxu0 %v2312
    %2346 = vmatpush1.msra.mxu0 %v2311
    %2347 = vmatprep.subr.mxu0 %v2308
    %2348 = vmatpush1.msra.mxu0 %v2307
    %2349 = vmatprep.subr.mxu0 %v2304
    %2350 = vmatpush1.msra.mxu0 %v2303
    %2351 = vmatprep.subr.mxu0 %v2300
    %2352 = vmatpush1.msra.mxu0 %v2299
    %2353 = vmatprep.subr.mxu0 %v2296
    %2354 = vmatpush1.msra.mxu0 %v2295
    %2355 = vmatprep.subr.mxu0 %v2292
    %2356 = vmatpush1.msra.mxu0 %v2291
    %2357 = vmatprep.subr.mxu0 %v2288
    %2358 = vmatpush1.msra.mxu0 %v2287
    %2359 = vmatprep.subr.mxu0 %v2284
    %2360 = vmatpush1.msra.mxu0 %v2283
    %2361 = vmatprep.subr.mxu0 %v2280
    %2362 = vmatpush1.msra.mxu0 %v2279
    %2363 = vmatprep.subr.mxu0 %v2276
    %2364 = vmatpush1.msra.mxu0 %v2275
    %2365 = vmatprep.subr.mxu0 %v2272
    %2366 = vmatpush1.msra.mxu0 %v2271
    %2367 = vmatprep.subr.mxu0 0.0
    %2368 = vmatpush2.msra.mxu0 0.0
    %2369 = vmatprep.subr.mxu0 0.0
    %2370 = vmatpush2.msra.mxu0 0.0
    %2371 = vmatprep.subr.mxu0 0.0
    %2372 = vmatpush2.msra.mxu0 0.0
    %2373 = vmatprep.subr.mxu0 0.0
    %2374 = vmatpush2.msra.mxu0 0.0
    %2375 = vmatprep.subr.mxu0 0.0
    %2376 = vmatpush2.msra.mxu0 0.0
    %2377 = vmatprep.subr.mxu0 0.0
    %2378 = vmatpush2.msra.mxu0 0.0
    %2379 = vmatprep.subr.mxu0 0.0
    %2380 = vmatpush2.msra.mxu0 0.0
    %2381 = vmatprep.subr.mxu0 0.0
    %2382 = vmatpush2.msra.mxu0 0.0
    %2383 = vmatprep.subr.mxu0 0.0
    %2384 = vmatpush2.msra.mxu0 0.0
    %2385 = vmatprep.subr.mxu0 0.0
    %2386 = vmatpush2.msra.mxu0 0.0
    %2387 = vmatprep.subr.mxu0 0.0
    %2388 = vmatpush2.msra.mxu0 0.0
    %2389 = vmatprep.subr.mxu0 0.0
    %2390 = vmatpush2.msra.mxu0 0.0
    %2391 = vmatprep.subr.mxu0 0.0
    %2392 = vmatpush2.msra.mxu0 0.0
    %2393 = vmatprep.subr.mxu0 0.0
    %2394 = vmatpush2.msra.mxu0 0.0
    %2395 = vmatprep.subr.mxu0 0.0
    %2396 = vmatpush2.msra.mxu0 0.0
    %2397 = vmatprep.subr.mxu0 0.0
    %2398 = vmatpush2.msra.mxu0 0.0
    %2399 = vmatprep.mubr.f32.mxu0 0.0
    %2400 = vmatmul.mubr.f32.gmra.mxu0 %v2246
    %v2401 = vpop.f32.mrf.mxu0
    %v2402 = vadd.f32 0.0, %v2401
    %v2403 = vpop.f32.mrf.mxu0
    %v2404 = vadd.f32 0.0, %v2403
    %2405 = vdwg.mxu0
    %2406 = vmatprep.subr.mxu0 %v2334
    %2407 = vmatpush1.msra.mxu0 %v2333
    %2408 = vmatprep.subr.mxu0 %v2330
    %2409 = vmatpush1.msra.mxu0 %v2329
    %2410 = vmatprep.subr.mxu0 %v2326
    %2411 = vmatpush1.msra.mxu0 %v2325
    %2412 = vmatprep.subr.mxu0 %v2322
    %2413 = vmatpush1.msra.mxu0 %v2321
    %2414 = vmatprep.subr.mxu0 %v2318
    %2415 = vmatpush1.msra.mxu0 %v2317
    %2416 = vmatprep.subr.mxu0 %v2314
    %2417 = vmatpush1.msra.mxu0 %v2313
    %2418 = vmatprep.subr.mxu0 %v2310
    %2419 = vmatpush1.msra.mxu0 %v2309
    %2420 = vmatprep.subr.mxu0 %v2306
    %2421 = vmatpush1.msra.mxu0 %v2305
    %2422 = vmatprep.subr.mxu0 %v2302
    %2423 = vmatpush1.msra.mxu0 %v2301
    %2424 = vmatprep.subr.mxu0 %v2298
    %2425 = vmatpush1.msra.mxu0 %v2297
    %2426 = vmatprep.subr.mxu0 %v2294
    %2427 = vmatpush1.msra.mxu0 %v2293
    %2428 = vmatprep.subr.mxu0 %v2290
    %2429 = vmatpush1.msra.mxu0 %v2289
    %2430 = vmatprep.subr.mxu0 %v2286
    %2431 = vmatpush1.msra.mxu0 %v2285
    %2432 = vmatprep.subr.mxu0 %v2282
    %2433 = vmatpush1.msra.mxu0 %v2281
    %2434 = vmatprep.subr.mxu0 %v2278
    %2435 = vmatpush1.msra.mxu0 %v2277
    %2436 = vmatprep.subr.mxu0 %v2274
    %2437 = vmatpush1.msra.mxu0 %v2273
    %2438 = vmatprep.subr.mxu0 0.0
    %2439 = vmatpush2.msra.mxu0 0.0
    %2440 = vmatprep.subr.mxu0 0.0
    %2441 = vmatpush2.msra.mxu0 0.0
    %2442 = vmatprep.subr.mxu0 0.0
    %2443 = vmatpush2.msra.mxu0 0.0
    %2444 = vmatprep.subr.mxu0 0.0
    %2445 = vmatpush2.msra.mxu0 0.0
    %2446 = vmatprep.subr.mxu0 0.0
    %2447 = vmatpush2.msra.mxu0 0.0
    %2448 = vmatprep.subr.mxu0 0.0
    %2449 = vmatpush2.msra.mxu0 0.0
    %2450 = vmatprep.subr.mxu0 0.0
    %2451 = vmatpush2.msra.mxu0 0.0
    %2452 = vmatprep.subr.mxu0 0.0
    %2453 = vmatpush2.msra.mxu0 0.0
    %2454 = vmatprep.subr.mxu0 0.0
    %2455 = vmatpush2.msra.mxu0 0.0
    %2456 = vmatprep.subr.mxu0 0.0
    %2457 = vmatpush2.msra.mxu0 0.0
    %2458 = vmatprep.subr.mxu0 0.0
    %2459 = vmatpush2.msra.mxu0 0.0
    %2460 = vmatprep.subr.mxu0 0.0
    %2461 = vmatpush2.msra.mxu0 0.0
    %2462 = vmatprep.subr.mxu0 0.0
    %2463 = vmatpush2.msra.mxu0 0.0
    %2464 = vmatprep.subr.mxu0 0.0
    %2465 = vmatpush2.msra.mxu0 0.0
    %2466 = vmatprep.subr.mxu0 0.0
    %2467 = vmatpush2.msra.mxu0 0.0
    %2468 = vmatprep.subr.mxu0 0.0
    %2469 = vmatpush2.msra.mxu0 0.0
    %2470 = vmatprep.mubr.f32.mxu0 0.0
    %2471 = vmatmul.mubr.f32.gmra.mxu0 %v2246
    %v2472 = vpop.f32.mrf.mxu0
    %v2473 = vadd.f32 0.0, %v2472
    %v2474 = vpop.f32.mrf.mxu0
    %v2475 = vadd.f32 0.0, %v2474
    %2476 = vdwg.mxu0
    %v2481 = vcombine.low %v2402, %v2404
    %v2482 = vcombine.low %v2473, %v2475
    %v2484 = vunpack.c.l.s4 1966171168
    %v2485 = vunpack.c.0.s8 %v2484
    %v2486 = vlaneseq
    %v2487 = vshrl.u32 %v2486, 7
    %v2488 = vsub.s32 %v2485, %v2487
    %v2489 = vrot.slane %v2481, %v2488
    %v2491 = vunpack.c.l.s4 1966171168
    %v2492 = vunpack.c.0.s8 %v2491
    %v2493 = vlaneseq
    %v2494 = vshrl.u32 %v2493, 7
    %v2495 = vsub.s32 %v2492, %v2494
    %v2496 = vrot.slane %v2482, %v2495
    %v2497 = vcombine.low %v2489, %v2496
    %v2499 = vunpack.c.l.s4 1966171168
    %v2500 = vunpack.c.0.s8 %v2499
    %v2501 = vlaneseq
    %v2502 = vshrl.u32 %v2501, 7
    %v2503 = vsub.s32 %v2500, %v2502
    %v2504 = vrot.slane %v2497, %v2503
    %v2506 = vadd.f32 %v2270, %v2504
    %s2507 = scalar_lea.vmem [#allocation3], 4
    %v2508 = vld [vmem:[%s2507] ss:$8 sm:$0xf]
    %v2509 = vld [vmem:[#allocation13] sm:$0xff]
    %v2510 = vld [vmem:[#allocation13 + $0x8] sm:$0xff]
    %v2511 = vld [vmem:[#allocation13 + $0x10] sm:$0xff]
    %v2512 = vld [vmem:[#allocation13 + $0x18] sm:$0xff]
    %v2513 = vld [vmem:[#allocation13 + $0x20] sm:$0xff]
    %v2514 = vld [vmem:[#allocation13 + $0x28] sm:$0xff]
    %v2515 = vld [vmem:[#allocation13 + $0x30] sm:$0xff]
    %v2516 = vld [vmem:[#allocation13 + $0x38] sm:$0xff]
    %v2517 = vld [vmem:[#allocation13 + $0x40] sm:$0xff]
    %v2518 = vld [vmem:[#allocation13 + $0x48] sm:$0xff]
    %v2519 = vld [vmem:[#allocation13 + $0x50] sm:$0xff]
    %v2520 = vld [vmem:[#allocation13 + $0x58] sm:$0xff]
    %v2521 = vld [vmem:[#allocation13 + $0x60] sm:$0xff]
    %v2522 = vld [vmem:[#allocation13 + $0x68] sm:$0xff]
    %v2523 = vld [vmem:[#allocation13 + $0x70] sm:$0xff]
    %v2524 = vld [vmem:[#allocation13 + $0x78] sm:$0xff]
    %v2525 = vld [vmem:[#allocation13 + $0x80] sm:$0xff]
    %v2526 = vld [vmem:[#allocation13 + $0x88] sm:$0xff]
    %v2527 = vld [vmem:[#allocation13 + $0x90] sm:$0xff]
    %v2528 = vld [vmem:[#allocation13 + $0x98] sm:$0xff]
    %v2529 = vld [vmem:[#allocation13 + $0xa0] sm:$0xff]
    %v2530 = vld [vmem:[#allocation13 + $0xa8] sm:$0xff]
    %v2531 = vld [vmem:[#allocation13 + $0xb0] sm:$0xff]
    %v2532 = vld [vmem:[#allocation13 + $0xb8] sm:$0xff]
    %v2533 = vld [vmem:[#allocation13 + $0xc0] sm:$0xff]
    %v2534 = vld [vmem:[#allocation13 + $0xc8] sm:$0xff]
    %v2535 = vld [vmem:[#allocation13 + $0xd0] sm:$0xff]
    %v2536 = vld [vmem:[#allocation13 + $0xd8] sm:$0xff]
    %v2537 = vld [vmem:[#allocation13 + $0xe0] sm:$0xff]
    %v2538 = vld [vmem:[#allocation13 + $0xe8] sm:$0xff]
    %v2539 = vld [vmem:[#allocation13 + $0xf0] sm:$0xff]
    %v2540 = vld [vmem:[#allocation13 + $0xf8] sm:$0xff]
    %v2541 = vld [vmem:[#allocation13 + $0x100] sm:$0xff]
    %v2542 = vld [vmem:[#allocation13 + $0x108] sm:$0xff]
    %v2543 = vld [vmem:[#allocation13 + $0x110] sm:$0xff]
    %v2544 = vld [vmem:[#allocation13 + $0x118] sm:$0xff]
    %v2545 = vld [vmem:[#allocation13 + $0x120] sm:$0xff]
    %v2546 = vld [vmem:[#allocation13 + $0x128] sm:$0xff]
    %v2547 = vld [vmem:[#allocation13 + $0x130] sm:$0xff]
    %v2548 = vld [vmem:[#allocation13 + $0x138] sm:$0xff]
    %v2549 = vld [vmem:[#allocation13 + $0x140] sm:$0xff]
    %v2550 = vld [vmem:[#allocation13 + $0x148] sm:$0xff]
    %v2551 = vld [vmem:[#allocation13 + $0x150] sm:$0xff]
    %v2552 = vld [vmem:[#allocation13 + $0x158] sm:$0xff]
    %v2553 = vld [vmem:[#allocation13 + $0x160] sm:$0xff]
    %v2554 = vld [vmem:[#allocation13 + $0x168] sm:$0xff]
    %v2555 = vld [vmem:[#allocation13 + $0x170] sm:$0xff]
    %v2556 = vld [vmem:[#allocation13 + $0x178] sm:$0xff]
    %v2557 = vld [vmem:[#allocation13 + $0x180] sm:$0xff]
    %v2558 = vld [vmem:[#allocation13 + $0x188] sm:$0xff]
    %v2559 = vld [vmem:[#allocation13 + $0x190] sm:$0xff]
    %v2560 = vld [vmem:[#allocation13 + $0x198] sm:$0xff]
    %v2561 = vld [vmem:[#allocation13 + $0x1a0] sm:$0xff]
    %v2562 = vld [vmem:[#allocation13 + $0x1a8] sm:$0xff]
    %v2563 = vld [vmem:[#allocation13 + $0x1b0] sm:$0xff]
    %v2564 = vld [vmem:[#allocation13 + $0x1b8] sm:$0xff]
    %v2565 = vld [vmem:[#allocation13 + $0x1c0] sm:$0xff]
    %v2566 = vld [vmem:[#allocation13 + $0x1c8] sm:$0xff]
    %v2567 = vld [vmem:[#allocation13 + $0x1d0] sm:$0xff]
    %v2568 = vld [vmem:[#allocation13 + $0x1d8] sm:$0xff]
    %v2569 = vld [vmem:[#allocation13 + $0x1e0] sm:$0xff]
    %v2570 = vld [vmem:[#allocation13 + $0x1e8] sm:$0xff]
    %v2571 = vld [vmem:[#allocation13 + $0x1f0] sm:$0xff]
    %v2572 = vld [vmem:[#allocation13 + $0x1f8] sm:$0xff]
    %2573 = vmatprep.subr.mxu0 %v2570
    %2574 = vmatpush1.msra.mxu0 %v2569
    %2575 = vmatprep.subr.mxu0 %v2566
    %2576 = vmatpush1.msra.mxu0 %v2565
    %2577 = vmatprep.subr.mxu0 %v2562
    %2578 = vmatpush1.msra.mxu0 %v2561
    %2579 = vmatprep.subr.mxu0 %v2558
    %2580 = vmatpush1.msra.mxu0 %v2557
    %2581 = vmatprep.subr.mxu0 %v2554
    %2582 = vmatpush1.msra.mxu0 %v2553
    %2583 = vmatprep.subr.mxu0 %v2550
    %2584 = vmatpush1.msra.mxu0 %v2549
    %2585 = vmatprep.subr.mxu0 %v2546
    %2586 = vmatpush1.msra.mxu0 %v2545
    %2587 = vmatprep.subr.mxu0 %v2542
    %2588 = vmatpush1.msra.mxu0 %v2541
    %2589 = vmatprep.subr.mxu0 %v2538
    %2590 = vmatpush1.msra.mxu0 %v2537
    %2591 = vmatprep.subr.mxu0 %v2534
    %2592 = vmatpush1.msra.mxu0 %v2533
    %2593 = vmatprep.subr.mxu0 %v2530
    %2594 = vmatpush1.msra.mxu0 %v2529
    %2595 = vmatprep.subr.mxu0 %v2526
    %2596 = vmatpush1.msra.mxu0 %v2525
    %2597 = vmatprep.subr.mxu0 %v2522
    %2598 = vmatpush1.msra.mxu0 %v2521
    %2599 = vmatprep.subr.mxu0 %v2518
    %2600 = vmatpush1.msra.mxu0 %v2517
    %2601 = vmatprep.subr.mxu0 %v2514
    %2602 = vmatpush1.msra.mxu0 %v2513
    %2603 = vmatprep.subr.mxu0 %v2510
    %2604 = vmatpush1.msra.mxu0 %v2509
    %2605 = vmatprep.subr.mxu0 0.0
    %2606 = vmatpush2.msra.mxu0 0.0
    %2607 = vmatprep.subr.mxu0 0.0
    %2608 = vmatpush2.msra.mxu0 0.0
    %2609 = vmatprep.subr.mxu0 0.0
    %2610 = vmatpush2.msra.mxu0 0.0
    %2611 = vmatprep.subr.mxu0 0.0
    %2612 = vmatpush2.msra.mxu0 0.0
    %2613 = vmatprep.subr.mxu0 0.0
    %2614 = vmatpush2.msra.mxu0 0.0
    %2615 = vmatprep.subr.mxu0 0.0
    %2616 = vmatpush2.msra.mxu0 0.0
    %2617 = vmatprep.subr.mxu0 0.0
    %2618 = vmatpush2.msra.mxu0 0.0
    %2619 = vmatprep.subr.mxu0 0.0
    %2620 = vmatpush2.msra.mxu0 0.0
    %2621 = vmatprep.subr.mxu0 0.0
    %2622 = vmatpush2.msra.mxu0 0.0
    %2623 = vmatprep.subr.mxu0 0.0
    %2624 = vmatpush2.msra.mxu0 0.0
    %2625 = vmatprep.subr.mxu0 0.0
    %2626 = vmatpush2.msra.mxu0 0.0
    %2627 = vmatprep.subr.mxu0 0.0
    %2628 = vmatpush2.msra.mxu0 0.0
    %2629 = vmatprep.subr.mxu0 0.0
    %2630 = vmatpush2.msra.mxu0 0.0
    %2631 = vmatprep.subr.mxu0 0.0
    %2632 = vmatpush2.msra.mxu0 0.0
    %2633 = vmatprep.subr.mxu0 0.0
    %2634 = vmatpush2.msra.mxu0 0.0
    %2635 = vmatprep.subr.mxu0 0.0
    %2636 = vmatpush2.msra.mxu0 0.0
    %2637 = vmatprep.mubr.f32.mxu0 0.0
    %2638 = vmatmul.mubr.f32.gmra.mxu0 %v2266
    %v2639 = vpop.f32.mrf.mxu0
    %v2640 = vadd.f32 0.0, %v2639
    %v2641 = vpop.f32.mrf.mxu0
    %v2642 = vadd.f32 0.0, %v2641
    %2643 = vdwg.mxu0
    %2644 = vmatprep.subr.mxu0 %v2572
    %2645 = vmatpush1.msra.mxu0 %v2571
    %2646 = vmatprep.subr.mxu0 %v2568
    %2647 = vmatpush1.msra.mxu0 %v2567
    %2648 = vmatprep.subr.mxu0 %v2564
    %2649 = vmatpush1.msra.mxu0 %v2563
    %2650 = vmatprep.subr.mxu0 %v2560
    %2651 = vmatpush1.msra.mxu0 %v2559
    %2652 = vmatprep.subr.mxu0 %v2556
    %2653 = vmatpush1.msra.mxu0 %v2555
    %2654 = vmatprep.subr.mxu0 %v2552
    %2655 = vmatpush1.msra.mxu0 %v2551
    %2656 = vmatprep.subr.mxu0 %v2548
    %2657 = vmatpush1.msra.mxu0 %v2547
    %2658 = vmatprep.subr.mxu0 %v2544
    %2659 = vmatpush1.msra.mxu0 %v2543
    %2660 = vmatprep.subr.mxu0 %v2540
    %2661 = vmatpush1.msra.mxu0 %v2539
    %2662 = vmatprep.subr.mxu0 %v2536
    %2663 = vmatpush1.msra.mxu0 %v2535
    %2664 = vmatprep.subr.mxu0 %v2532
    %2665 = vmatpush1.msra.mxu0 %v2531
    %2666 = vmatprep.subr.mxu0 %v2528
    %2667 = vmatpush1.msra.mxu0 %v2527
    %2668 = vmatprep.subr.mxu0 %v2524
    %2669 = vmatpush1.msra.mxu0 %v2523
    %2670 = vmatprep.subr.mxu0 %v2520
    %2671 = vmatpush1.msra.mxu0 %v2519
    %2672 = vmatprep.subr.mxu0 %v2516
    %2673 = vmatpush1.msra.mxu0 %v2515
    %2674 = vmatprep.subr.mxu0 %v2512
    %2675 = vmatpush1.msra.mxu0 %v2511
    %2676 = vmatprep.subr.mxu0 0.0
    %2677 = vmatpush2.msra.mxu0 0.0
    %2678 = vmatprep.subr.mxu0 0.0
    %2679 = vmatpush2.msra.mxu0 0.0
    %2680 = vmatprep.subr.mxu0 0.0
    %2681 = vmatpush2.msra.mxu0 0.0
    %2682 = vmatprep.subr.mxu0 0.0
    %2683 = vmatpush2.msra.mxu0 0.0
    %2684 = vmatprep.subr.mxu0 0.0
    %2685 = vmatpush2.msra.mxu0 0.0
    %2686 = vmatprep.subr.mxu0 0.0
    %2687 = vmatpush2.msra.mxu0 0.0
    %2688 = vmatprep.subr.mxu0 0.0
    %2689 = vmatpush2.msra.mxu0 0.0
    %2690 = vmatprep.subr.mxu0 0.0
    %2691 = vmatpush2.msra.mxu0 0.0
    %2692 = vmatprep.subr.mxu0 0.0
    %2693 = vmatpush2.msra.mxu0 0.0
    %2694 = vmatprep.subr.mxu0 0.0
    %2695 = vmatpush2.msra.mxu0 0.0
    %2696 = vmatprep.subr.mxu0 0.0
    %2697 = vmatpush2.msra.mxu0 0.0
    %2698 = vmatprep.subr.mxu0 0.0
    %2699 = vmatpush2.msra.mxu0 0.0
    %2700 = vmatprep.subr.mxu0 0.0
    %2701 = vmatpush2.msra.mxu0 0.0
    %2702 = vmatprep.subr.mxu0 0.0
    %2703 = vmatpush2.msra.mxu0 0.0
    %2704 = vmatprep.subr.mxu0 0.0
    %2705 = vmatpush2.msra.mxu0 0.0
    %2706 = vmatprep.subr.mxu0 0.0
    %2707 = vmatpush2.msra.mxu0 0.0
    %2708 = vmatprep.mubr.f32.mxu0 0.0
    %2709 = vmatmul.mubr.f32.gmra.mxu0 %v2266
    %v2710 = vpop.f32.mrf.mxu0
    %v2711 = vadd.f32 0.0, %v2710
    %v2712 = vpop.f32.mrf.mxu0
    %v2713 = vadd.f32 0.0, %v2712
    %2714 = vdwg.mxu0
    %v2719 = vcombine.low %v2640, %v2642
    %v2720 = vcombine.low %v2711, %v2713
    %v2722 = vunpack.c.l.s4 1966171168
    %v2723 = vunpack.c.0.s8 %v2722
    %v2724 = vlaneseq
    %v2725 = vshrl.u32 %v2724, 7
    %v2726 = vsub.s32 %v2723, %v2725
    %v2727 = vrot.slane %v2719, %v2726
    %v2729 = vunpack.c.l.s4 1966171168
    %v2730 = vunpack.c.0.s8 %v2729
    %v2731 = vlaneseq
    %v2732 = vshrl.u32 %v2731, 7
    %v2733 = vsub.s32 %v2730, %v2732
    %v2734 = vrot.slane %v2720, %v2733
    %v2735 = vcombine.low %v2727, %v2734
    %v2737 = vunpack.c.l.s4 1966171168
    %v2738 = vunpack.c.0.s8 %v2737
    %v2739 = vlaneseq
    %v2740 = vshrl.u32 %v2739, 7
    %v2741 = vsub.s32 %v2738, %v2740
    %v2742 = vrot.slane %v2735, %v2741
    %v2744 = vadd.f32 %v2508, %v2742
    %v2745 = vxor.u32 %v2506, 2147483648
    %v2746 = vmul.f32 %v2745, 1.442695
    %v2747 = vpow.pop %v2746
    %v2748 = vadd.f32 %v2747, 1.0
    %v2749 = vrcp.pop %v2748
    %v2750 = vmul.f32 1.0, %v2749
    %v2752 = vrot.slane %v2506, 3
    %v2754 = vtanh.pop %v2752
    %v2756 = vrot.slane %v2750, 1
    %v2758 = vmul.f32 %v2756, %v2242
    %v2759 = vmul.f32 %v2750, %v2754
    %v2760 = vadd.f32 %v2758, %v2759
    %v2761 = vtanh.pop %v2760
    %v2762 = vrot.slane %v2750, 2
    %v2764 = vmul.f32 %v2762, %v2761
    %v2765 = vxor.u32 %v2744, 2147483648
    %v2766 = vmul.f32 %v2765, 1.442695
    %v2767 = vpow.pop %v2766
    %v2768 = vadd.f32 %v2767, 1.0
    %v2769 = vrcp.pop %v2768
    %v2770 = vmul.f32 1.0, %v2769
    %v2772 = vrot.slane %v2744, 3
    %v2774 = vtanh.pop %v2772
    %v2776 = vrot.slane %v2770, 1
    %v2778 = vmul.f32 %v2776, %v2262
    %v2779 = vmul.f32 %v2770, %v2774
    %v2780 = vadd.f32 %v2778, %v2779
    %v2781 = vtanh.pop %v2780
    %v2782 = vrot.slane %v2770, 2
    %v2784 = vmul.f32 %v2782, %v2781
    %2785 = vst [vmem:[#allocation4 + $0x3] sm:$0x1] %v2764
    %2786 = vst [vmem:[#allocation5 + $0x4] sm:$0x1] %v2784
    %s2787 = scalar_lea.vmem [#allocation2], 4
    %v2788 = vld [vmem:[%s2787] ss:$8 sm:$0xf]
    %v2789 = vld [vmem:[#allocation12] sm:$0xff]
    %v2790 = vld [vmem:[#allocation12 + $0x8] sm:$0xff]
    %v2791 = vld [vmem:[#allocation12 + $0x10] sm:$0xff]
    %v2792 = vld [vmem:[#allocation12 + $0x18] sm:$0xff]
    %v2793 = vld [vmem:[#allocation12 + $0x20] sm:$0xff]
    %v2794 = vld [vmem:[#allocation12 + $0x28] sm:$0xff]
    %v2795 = vld [vmem:[#allocation12 + $0x30] sm:$0xff]
    %v2796 = vld [vmem:[#allocation12 + $0x38] sm:$0xff]
    %v2797 = vld [vmem:[#allocation12 + $0x40] sm:$0xff]
    %v2798 = vld [vmem:[#allocation12 + $0x48] sm:$0xff]
    %v2799 = vld [vmem:[#allocation12 + $0x50] sm:$0xff]
    %v2800 = vld [vmem:[#allocation12 + $0x58] sm:$0xff]
    %v2801 = vld [vmem:[#allocation12 + $0x60] sm:$0xff]
    %v2802 = vld [vmem:[#allocation12 + $0x68] sm:$0xff]
    %v2803 = vld [vmem:[#allocation12 + $0x70] sm:$0xff]
    %v2804 = vld [vmem:[#allocation12 + $0x78] sm:$0xff]
    %v2805 = vld [vmem:[#allocation12 + $0x80] sm:$0xff]
    %v2806 = vld [vmem:[#allocation12 + $0x88] sm:$0xff]
    %v2807 = vld [vmem:[#allocation12 + $0x90] sm:$0xff]
    %v2808 = vld [vmem:[#allocation12 + $0x98] sm:$0xff]
    %v2809 = vld [vmem:[#allocation12 + $0xa0] sm:$0xff]
    %v2810 = vld [vmem:[#allocation12 + $0xa8] sm:$0xff]
    %v2811 = vld [vmem:[#allocation12 + $0xb0] sm:$0xff]
    %v2812 = vld [vmem:[#allocation12 + $0xb8] sm:$0xff]
    %v2813 = vld [vmem:[#allocation12 + $0xc0] sm:$0xff]
    %v2814 = vld [vmem:[#allocation12 + $0xc8] sm:$0xff]
    %v2815 = vld [vmem:[#allocation12 + $0xd0] sm:$0xff]
    %v2816 = vld [vmem:[#allocation12 + $0xd8] sm:$0xff]
    %v2817 = vld [vmem:[#allocation12 + $0xe0] sm:$0xff]
    %v2818 = vld [vmem:[#allocation12 + $0xe8] sm:$0xff]
    %v2819 = vld [vmem:[#allocation12 + $0xf0] sm:$0xff]
    %v2820 = vld [vmem:[#allocation12 + $0xf8] sm:$0xff]
    %v2821 = vld [vmem:[#allocation12 + $0x100] sm:$0xff]
    %v2822 = vld [vmem:[#allocation12 + $0x108] sm:$0xff]
    %v2823 = vld [vmem:[#allocation12 + $0x110] sm:$0xff]
    %v2824 = vld [vmem:[#allocation12 + $0x118] sm:$0xff]
    %v2825 = vld [vmem:[#allocation12 + $0x120] sm:$0xff]
    %v2826 = vld [vmem:[#allocation12 + $0x128] sm:$0xff]
    %v2827 = vld [vmem:[#allocation12 + $0x130] sm:$0xff]
    %v2828 = vld [vmem:[#allocation12 + $0x138] sm:$0xff]
    %v2829 = vld [vmem:[#allocation12 + $0x140] sm:$0xff]
    %v2830 = vld [vmem:[#allocation12 + $0x148] sm:$0xff]
    %v2831 = vld [vmem:[#allocation12 + $0x150] sm:$0xff]
    %v2832 = vld [vmem:[#allocation12 + $0x158] sm:$0xff]
    %v2833 = vld [vmem:[#allocation12 + $0x160] sm:$0xff]
    %v2834 = vld [vmem:[#allocation12 + $0x168] sm:$0xff]
    %v2835 = vld [vmem:[#allocation12 + $0x170] sm:$0xff]
    %v2836 = vld [vmem:[#allocation12 + $0x178] sm:$0xff]
    %v2837 = vld [vmem:[#allocation12 + $0x180] sm:$0xff]
    %v2838 = vld [vmem:[#allocation12 + $0x188] sm:$0xff]
    %v2839 = vld [vmem:[#allocation12 + $0x190] sm:$0xff]
    %v2840 = vld [vmem:[#allocation12 + $0x198] sm:$0xff]
    %v2841 = vld [vmem:[#allocation12 + $0x1a0] sm:$0xff]
    %v2842 = vld [vmem:[#allocation12 + $0x1a8] sm:$0xff]
    %v2843 = vld [vmem:[#allocation12 + $0x1b0] sm:$0xff]
    %v2844 = vld [vmem:[#allocation12 + $0x1b8] sm:$0xff]
    %v2845 = vld [vmem:[#allocation12 + $0x1c0] sm:$0xff]
    %v2846 = vld [vmem:[#allocation12 + $0x1c8] sm:$0xff]
    %v2847 = vld [vmem:[#allocation12 + $0x1d0] sm:$0xff]
    %v2848 = vld [vmem:[#allocation12 + $0x1d8] sm:$0xff]
    %v2849 = vld [vmem:[#allocation12 + $0x1e0] sm:$0xff]
    %v2850 = vld [vmem:[#allocation12 + $0x1e8] sm:$0xff]
    %v2851 = vld [vmem:[#allocation12 + $0x1f0] sm:$0xff]
    %v2852 = vld [vmem:[#allocation12 + $0x1f8] sm:$0xff]
    %2853 = vmatprep.subr.mxu0 %v2850
    %2854 = vmatpush1.msra.mxu0 %v2849
    %2855 = vmatprep.subr.mxu0 %v2846
    %2856 = vmatpush1.msra.mxu0 %v2845
    %2857 = vmatprep.subr.mxu0 %v2842
    %2858 = vmatpush1.msra.mxu0 %v2841
    %2859 = vmatprep.subr.mxu0 %v2838
    %2860 = vmatpush1.msra.mxu0 %v2837
    %2861 = vmatprep.subr.mxu0 %v2834
    %2862 = vmatpush1.msra.mxu0 %v2833
    %2863 = vmatprep.subr.mxu0 %v2830
    %2864 = vmatpush1.msra.mxu0 %v2829
    %2865 = vmatprep.subr.mxu0 %v2826
    %2866 = vmatpush1.msra.mxu0 %v2825
    %2867 = vmatprep.subr.mxu0 %v2822
    %2868 = vmatpush1.msra.mxu0 %v2821
    %2869 = vmatprep.subr.mxu0 %v2818
    %2870 = vmatpush1.msra.mxu0 %v2817
    %2871 = vmatprep.subr.mxu0 %v2814
    %2872 = vmatpush1.msra.mxu0 %v2813
    %2873 = vmatprep.subr.mxu0 %v2810
    %2874 = vmatpush1.msra.mxu0 %v2809
    %2875 = vmatprep.subr.mxu0 %v2806
    %2876 = vmatpush1.msra.mxu0 %v2805
    %2877 = vmatprep.subr.mxu0 %v2802
    %2878 = vmatpush1.msra.mxu0 %v2801
    %2879 = vmatprep.subr.mxu0 %v2798
    %2880 = vmatpush1.msra.mxu0 %v2797
    %2881 = vmatprep.subr.mxu0 %v2794
    %2882 = vmatpush1.msra.mxu0 %v2793
    %2883 = vmatprep.subr.mxu0 %v2790
    %2884 = vmatpush1.msra.mxu0 %v2789
    %2885 = vmatprep.subr.mxu0 0.0
    %2886 = vmatpush2.msra.mxu0 0.0
    %2887 = vmatprep.subr.mxu0 0.0
    %2888 = vmatpush2.msra.mxu0 0.0
    %2889 = vmatprep.subr.mxu0 0.0
    %2890 = vmatpush2.msra.mxu0 0.0
    %2891 = vmatprep.subr.mxu0 0.0
    %2892 = vmatpush2.msra.mxu0 0.0
    %2893 = vmatprep.subr.mxu0 0.0
    %2894 = vmatpush2.msra.mxu0 0.0
    %2895 = vmatprep.subr.mxu0 0.0
    %2896 = vmatpush2.msra.mxu0 0.0
    %2897 = vmatprep.subr.mxu0 0.0
    %2898 = vmatpush2.msra.mxu0 0.0
    %2899 = vmatprep.subr.mxu0 0.0
    %2900 = vmatpush2.msra.mxu0 0.0
    %2901 = vmatprep.subr.mxu0 0.0
    %2902 = vmatpush2.msra.mxu0 0.0
    %2903 = vmatprep.subr.mxu0 0.0
    %2904 = vmatpush2.msra.mxu0 0.0
    %2905 = vmatprep.subr.mxu0 0.0
    %2906 = vmatpush2.msra.mxu0 0.0
    %2907 = vmatprep.subr.mxu0 0.0
    %2908 = vmatpush2.msra.mxu0 0.0
    %2909 = vmatprep.subr.mxu0 0.0
    %2910 = vmatpush2.msra.mxu0 0.0
    %2911 = vmatprep.subr.mxu0 0.0
    %2912 = vmatpush2.msra.mxu0 0.0
    %2913 = vmatprep.subr.mxu0 0.0
    %2914 = vmatpush2.msra.mxu0 0.0
    %2915 = vmatprep.subr.mxu0 0.0
    %2916 = vmatpush2.msra.mxu0 0.0
    %2917 = vmatprep.mubr.f32.mxu0 0.0
    %2918 = vmatmul.mubr.f32.gmra.mxu0 %v2764
    %v2919 = vpop.f32.mrf.mxu0
    %v2920 = vadd.f32 0.0, %v2919
    %v2921 = vpop.f32.mrf.mxu0
    %v2922 = vadd.f32 0.0, %v2921
    %2923 = vdwg.mxu0
    %2924 = vmatprep.subr.mxu0 %v2852
    %2925 = vmatpush1.msra.mxu0 %v2851
    %2926 = vmatprep.subr.mxu0 %v2848
    %2927 = vmatpush1.msra.mxu0 %v2847
    %2928 = vmatprep.subr.mxu0 %v2844
    %2929 = vmatpush1.msra.mxu0 %v2843
    %2930 = vmatprep.subr.mxu0 %v2840
    %2931 = vmatpush1.msra.mxu0 %v2839
    %2932 = vmatprep.subr.mxu0 %v2836
    %2933 = vmatpush1.msra.mxu0 %v2835
    %2934 = vmatprep.subr.mxu0 %v2832
    %2935 = vmatpush1.msra.mxu0 %v2831
    %2936 = vmatprep.subr.mxu0 %v2828
    %2937 = vmatpush1.msra.mxu0 %v2827
    %2938 = vmatprep.subr.mxu0 %v2824
    %2939 = vmatpush1.msra.mxu0 %v2823
    %2940 = vmatprep.subr.mxu0 %v2820
    %2941 = vmatpush1.msra.mxu0 %v2819
    %2942 = vmatprep.subr.mxu0 %v2816
    %2943 = vmatpush1.msra.mxu0 %v2815
    %2944 = vmatprep.subr.mxu0 %v2812
    %2945 = vmatpush1.msra.mxu0 %v2811
    %2946 = vmatprep.subr.mxu0 %v2808
    %2947 = vmatpush1.msra.mxu0 %v2807
    %2948 = vmatprep.subr.mxu0 %v2804
    %2949 = vmatpush1.msra.mxu0 %v2803
    %2950 = vmatprep.subr.mxu0 %v2800
    %2951 = vmatpush1.msra.mxu0 %v2799
    %2952 = vmatprep.subr.mxu0 %v2796
    %2953 = vmatpush1.msra.mxu0 %v2795
    %2954 = vmatprep.subr.mxu0 %v2792
    %2955 = vmatpush1.msra.mxu0 %v2791
    %2956 = vmatprep.subr.mxu0 0.0
    %2957 = vmatpush2.msra.mxu0 0.0
    %2958 = vmatprep.subr.mxu0 0.0
    %2959 = vmatpush2.msra.mxu0 0.0
    %2960 = vmatprep.subr.mxu0 0.0
    %2961 = vmatpush2.msra.mxu0 0.0
    %2962 = vmatprep.subr.mxu0 0.0
    %2963 = vmatpush2.msra.mxu0 0.0
    %2964 = vmatprep.subr.mxu0 0.0
    %2965 = vmatpush2.msra.mxu0 0.0
    %2966 = vmatprep.subr.mxu0 0.0
    %2967 = vmatpush2.msra.mxu0 0.0
    %2968 = vmatprep.subr.mxu0 0.0
    %2969 = vmatpush2.msra.mxu0 0.0
    %2970 = vmatprep.subr.mxu0 0.0
    %2971 = vmatpush2.msra.mxu0 0.0
    %2972 = vmatprep.subr.mxu0 0.0
    %2973 = vmatpush2.msra.mxu0 0.0
    %2974 = vmatprep.subr.mxu0 0.0
    %2975 = vmatpush2.msra.mxu0 0.0
    %2976 = vmatprep.subr.mxu0 0.0
    %2977 = vmatpush2.msra.mxu0 0.0
    %2978 = vmatprep.subr.mxu0 0.0
    %2979 = vmatpush2.msra.mxu0 0.0
    %2980 = vmatprep.subr.mxu0 0.0
    %2981 = vmatpush2.msra.mxu0 0.0
    %2982 = vmatprep.subr.mxu0 0.0
    %2983 = vmatpush2.msra.mxu0 0.0
    %2984 = vmatprep.subr.mxu0 0.0
    %2985 = vmatpush2.msra.mxu0 0.0
    %2986 = vmatprep.subr.mxu0 0.0
    %2987 = vmatpush2.msra.mxu0 0.0
    %2988 = vmatprep.mubr.f32.mxu0 0.0
    %2989 = vmatmul.mubr.f32.gmra.mxu0 %v2764
    %v2990 = vpop.f32.mrf.mxu0
    %v2991 = vadd.f32 0.0, %v2990
    %v2992 = vpop.f32.mrf.mxu0
    %v2993 = vadd.f32 0.0, %v2992
    %2994 = vdwg.mxu0
    %v2999 = vcombine.low %v2920, %v2922
    %v3000 = vcombine.low %v2991, %v2993
    %v3002 = vunpack.c.l.s4 1966171168
    %v3003 = vunpack.c.0.s8 %v3002
    %v3004 = vlaneseq
    %v3005 = vshrl.u32 %v3004, 7
    %v3006 = vsub.s32 %v3003, %v3005
    %v3007 = vrot.slane %v2999, %v3006
    %v3009 = vunpack.c.l.s4 1966171168
    %v3010 = vunpack.c.0.s8 %v3009
    %v3011 = vlaneseq
    %v3012 = vshrl.u32 %v3011, 7
    %v3013 = vsub.s32 %v3010, %v3012
    %v3014 = vrot.slane %v3000, %v3013
    %v3015 = vcombine.low %v3007, %v3014
    %v3017 = vunpack.c.l.s4 1966171168
    %v3018 = vunpack.c.0.s8 %v3017
    %v3019 = vlaneseq
    %v3020 = vshrl.u32 %v3019, 7
    %v3021 = vsub.s32 %v3018, %v3020
    %v3022 = vrot.slane %v3015, %v3021
    %v3024 = vadd.f32 %v2788, %v3022
    %s3025 = scalar_lea.vmem [#allocation3], 3
    %v3026 = vld [vmem:[%s3025] ss:$8 sm:$0xf]
    %v3027 = vld [vmem:[#allocation13] sm:$0xff]
    %v3028 = vld [vmem:[#allocation13 + $0x8] sm:$0xff]
    %v3029 = vld [vmem:[#allocation13 + $0x10] sm:$0xff]
    %v3030 = vld [vmem:[#allocation13 + $0x18] sm:$0xff]
    %v3031 = vld [vmem:[#allocation13 + $0x20] sm:$0xff]
    %v3032 = vld [vmem:[#allocation13 + $0x28] sm:$0xff]
    %v3033 = vld [vmem:[#allocation13 + $0x30] sm:$0xff]
    %v3034 = vld [vmem:[#allocation13 + $0x38] sm:$0xff]
    %v3035 = vld [vmem:[#allocation13 + $0x40] sm:$0xff]
    %v3036 = vld [vmem:[#allocation13 + $0x48] sm:$0xff]
    %v3037 = vld [vmem:[#allocation13 + $0x50] sm:$0xff]
    %v3038 = vld [vmem:[#allocation13 + $0x58] sm:$0xff]
    %v3039 = vld [vmem:[#allocation13 + $0x60] sm:$0xff]
    %v3040 = vld [vmem:[#allocation13 + $0x68] sm:$0xff]
    %v3041 = vld [vmem:[#allocation13 + $0x70] sm:$0xff]
    %v3042 = vld [vmem:[#allocation13 + $0x78] sm:$0xff]
    %v3043 = vld [vmem:[#allocation13 + $0x80] sm:$0xff]
    %v3044 = vld [vmem:[#allocation13 + $0x88] sm:$0xff]
    %v3045 = vld [vmem:[#allocation13 + $0x90] sm:$0xff]
    %v3046 = vld [vmem:[#allocation13 + $0x98] sm:$0xff]
    %v3047 = vld [vmem:[#allocation13 + $0xa0] sm:$0xff]
    %v3048 = vld [vmem:[#allocation13 + $0xa8] sm:$0xff]
    %v3049 = vld [vmem:[#allocation13 + $0xb0] sm:$0xff]
    %v3050 = vld [vmem:[#allocation13 + $0xb8] sm:$0xff]
    %v3051 = vld [vmem:[#allocation13 + $0xc0] sm:$0xff]
    %v3052 = vld [vmem:[#allocation13 + $0xc8] sm:$0xff]
    %v3053 = vld [vmem:[#allocation13 + $0xd0] sm:$0xff]
    %v3054 = vld [vmem:[#allocation13 + $0xd8] sm:$0xff]
    %v3055 = vld [vmem:[#allocation13 + $0xe0] sm:$0xff]
    %v3056 = vld [vmem:[#allocation13 + $0xe8] sm:$0xff]
    %v3057 = vld [vmem:[#allocation13 + $0xf0] sm:$0xff]
    %v3058 = vld [vmem:[#allocation13 + $0xf8] sm:$0xff]
    %v3059 = vld [vmem:[#allocation13 + $0x100] sm:$0xff]
    %v3060 = vld [vmem:[#allocation13 + $0x108] sm:$0xff]
    %v3061 = vld [vmem:[#allocation13 + $0x110] sm:$0xff]
    %v3062 = vld [vmem:[#allocation13 + $0x118] sm:$0xff]
    %v3063 = vld [vmem:[#allocation13 + $0x120] sm:$0xff]
    %v3064 = vld [vmem:[#allocation13 + $0x128] sm:$0xff]
    %v3065 = vld [vmem:[#allocation13 + $0x130] sm:$0xff]
    %v3066 = vld [vmem:[#allocation13 + $0x138] sm:$0xff]
    %v3067 = vld [vmem:[#allocation13 + $0x140] sm:$0xff]
    %v3068 = vld [vmem:[#allocation13 + $0x148] sm:$0xff]
    %v3069 = vld [vmem:[#allocation13 + $0x150] sm:$0xff]
    %v3070 = vld [vmem:[#allocation13 + $0x158] sm:$0xff]
    %v3071 = vld [vmem:[#allocation13 + $0x160] sm:$0xff]
    %v3072 = vld [vmem:[#allocation13 + $0x168] sm:$0xff]
    %v3073 = vld [vmem:[#allocation13 + $0x170] sm:$0xff]
    %v3074 = vld [vmem:[#allocation13 + $0x178] sm:$0xff]
    %v3075 = vld [vmem:[#allocation13 + $0x180] sm:$0xff]
    %v3076 = vld [vmem:[#allocation13 + $0x188] sm:$0xff]
    %v3077 = vld [vmem:[#allocation13 + $0x190] sm:$0xff]
    %v3078 = vld [vmem:[#allocation13 + $0x198] sm:$0xff]
    %v3079 = vld [vmem:[#allocation13 + $0x1a0] sm:$0xff]
    %v3080 = vld [vmem:[#allocation13 + $0x1a8] sm:$0xff]
    %v3081 = vld [vmem:[#allocation13 + $0x1b0] sm:$0xff]
    %v3082 = vld [vmem:[#allocation13 + $0x1b8] sm:$0xff]
    %v3083 = vld [vmem:[#allocation13 + $0x1c0] sm:$0xff]
    %v3084 = vld [vmem:[#allocation13 + $0x1c8] sm:$0xff]
    %v3085 = vld [vmem:[#allocation13 + $0x1d0] sm:$0xff]
    %v3086 = vld [vmem:[#allocation13 + $0x1d8] sm:$0xff]
    %v3087 = vld [vmem:[#allocation13 + $0x1e0] sm:$0xff]
    %v3088 = vld [vmem:[#allocation13 + $0x1e8] sm:$0xff]
    %v3089 = vld [vmem:[#allocation13 + $0x1f0] sm:$0xff]
    %v3090 = vld [vmem:[#allocation13 + $0x1f8] sm:$0xff]
    %3091 = vmatprep.subr.mxu0 %v3088
    %3092 = vmatpush1.msra.mxu0 %v3087
    %3093 = vmatprep.subr.mxu0 %v3084
    %3094 = vmatpush1.msra.mxu0 %v3083
    %3095 = vmatprep.subr.mxu0 %v3080
    %3096 = vmatpush1.msra.mxu0 %v3079
    %3097 = vmatprep.subr.mxu0 %v3076
    %3098 = vmatpush1.msra.mxu0 %v3075
    %3099 = vmatprep.subr.mxu0 %v3072
    %3100 = vmatpush1.msra.mxu0 %v3071
    %3101 = vmatprep.subr.mxu0 %v3068
    %3102 = vmatpush1.msra.mxu0 %v3067
    %3103 = vmatprep.subr.mxu0 %v3064
    %3104 = vmatpush1.msra.mxu0 %v3063
    %3105 = vmatprep.subr.mxu0 %v3060
    %3106 = vmatpush1.msra.mxu0 %v3059
    %3107 = vmatprep.subr.mxu0 %v3056
    %3108 = vmatpush1.msra.mxu0 %v3055
    %3109 = vmatprep.subr.mxu0 %v3052
    %3110 = vmatpush1.msra.mxu0 %v3051
    %3111 = vmatprep.subr.mxu0 %v3048
    %3112 = vmatpush1.msra.mxu0 %v3047
    %3113 = vmatprep.subr.mxu0 %v3044
    %3114 = vmatpush1.msra.mxu0 %v3043
    %3115 = vmatprep.subr.mxu0 %v3040
    %3116 = vmatpush1.msra.mxu0 %v3039
    %3117 = vmatprep.subr.mxu0 %v3036
    %3118 = vmatpush1.msra.mxu0 %v3035
    %3119 = vmatprep.subr.mxu0 %v3032
    %3120 = vmatpush1.msra.mxu0 %v3031
    %3121 = vmatprep.subr.mxu0 %v3028
    %3122 = vmatpush1.msra.mxu0 %v3027
    %3123 = vmatprep.subr.mxu0 0.0
    %3124 = vmatpush2.msra.mxu0 0.0
    %3125 = vmatprep.subr.mxu0 0.0
    %3126 = vmatpush2.msra.mxu0 0.0
    %3127 = vmatprep.subr.mxu0 0.0
    %3128 = vmatpush2.msra.mxu0 0.0
    %3129 = vmatprep.subr.mxu0 0.0
    %3130 = vmatpush2.msra.mxu0 0.0
    %3131 = vmatprep.subr.mxu0 0.0
    %3132 = vmatpush2.msra.mxu0 0.0
    %3133 = vmatprep.subr.mxu0 0.0
    %3134 = vmatpush2.msra.mxu0 0.0
    %3135 = vmatprep.subr.mxu0 0.0
    %3136 = vmatpush2.msra.mxu0 0.0
    %3137 = vmatprep.subr.mxu0 0.0
    %3138 = vmatpush2.msra.mxu0 0.0
    %3139 = vmatprep.subr.mxu0 0.0
    %3140 = vmatpush2.msra.mxu0 0.0
    %3141 = vmatprep.subr.mxu0 0.0
    %3142 = vmatpush2.msra.mxu0 0.0
    %3143 = vmatprep.subr.mxu0 0.0
    %3144 = vmatpush2.msra.mxu0 0.0
    %3145 = vmatprep.subr.mxu0 0.0
    %3146 = vmatpush2.msra.mxu0 0.0
    %3147 = vmatprep.subr.mxu0 0.0
    %3148 = vmatpush2.msra.mxu0 0.0
    %3149 = vmatprep.subr.mxu0 0.0
    %3150 = vmatpush2.msra.mxu0 0.0
    %3151 = vmatprep.subr.mxu0 0.0
    %3152 = vmatpush2.msra.mxu0 0.0
    %3153 = vmatprep.subr.mxu0 0.0
    %3154 = vmatpush2.msra.mxu0 0.0
    %3155 = vmatprep.mubr.f32.mxu0 0.0
    %3156 = vmatmul.mubr.f32.gmra.mxu0 %v2784
    %v3157 = vpop.f32.mrf.mxu0
    %v3158 = vadd.f32 0.0, %v3157
    %v3159 = vpop.f32.mrf.mxu0
    %v3160 = vadd.f32 0.0, %v3159
    %3161 = vdwg.mxu0
    %3162 = vmatprep.subr.mxu0 %v3090
    %3163 = vmatpush1.msra.mxu0 %v3089
    %3164 = vmatprep.subr.mxu0 %v3086
    %3165 = vmatpush1.msra.mxu0 %v3085
    %3166 = vmatprep.subr.mxu0 %v3082
    %3167 = vmatpush1.msra.mxu0 %v3081
    %3168 = vmatprep.subr.mxu0 %v3078
    %3169 = vmatpush1.msra.mxu0 %v3077
    %3170 = vmatprep.subr.mxu0 %v3074
    %3171 = vmatpush1.msra.mxu0 %v3073
    %3172 = vmatprep.subr.mxu0 %v3070
    %3173 = vmatpush1.msra.mxu0 %v3069
    %3174 = vmatprep.subr.mxu0 %v3066
    %3175 = vmatpush1.msra.mxu0 %v3065
    %3176 = vmatprep.subr.mxu0 %v3062
    %3177 = vmatpush1.msra.mxu0 %v3061
    %3178 = vmatprep.subr.mxu0 %v3058
    %3179 = vmatpush1.msra.mxu0 %v3057
    %3180 = vmatprep.subr.mxu0 %v3054
    %3181 = vmatpush1.msra.mxu0 %v3053
    %3182 = vmatprep.subr.mxu0 %v3050
    %3183 = vmatpush1.msra.mxu0 %v3049
    %3184 = vmatprep.subr.mxu0 %v3046
    %3185 = vmatpush1.msra.mxu0 %v3045
    %3186 = vmatprep.subr.mxu0 %v3042
    %3187 = vmatpush1.msra.mxu0 %v3041
    %3188 = vmatprep.subr.mxu0 %v3038
    %3189 = vmatpush1.msra.mxu0 %v3037
    %3190 = vmatprep.subr.mxu0 %v3034
    %3191 = vmatpush1.msra.mxu0 %v3033
    %3192 = vmatprep.subr.mxu0 %v3030
    %3193 = vmatpush1.msra.mxu0 %v3029
    %3194 = vmatprep.subr.mxu0 0.0
    %3195 = vmatpush2.msra.mxu0 0.0
    %3196 = vmatprep.subr.mxu0 0.0
    %3197 = vmatpush2.msra.mxu0 0.0
    %3198 = vmatprep.subr.mxu0 0.0
    %3199 = vmatpush2.msra.mxu0 0.0
    %3200 = vmatprep.subr.mxu0 0.0
    %3201 = vmatpush2.msra.mxu0 0.0
    %3202 = vmatprep.subr.mxu0 0.0
    %3203 = vmatpush2.msra.mxu0 0.0
    %3204 = vmatprep.subr.mxu0 0.0
    %3205 = vmatpush2.msra.mxu0 0.0
    %3206 = vmatprep.subr.mxu0 0.0
    %3207 = vmatpush2.msra.mxu0 0.0
    %3208 = vmatprep.subr.mxu0 0.0
    %3209 = vmatpush2.msra.mxu0 0.0
    %3210 = vmatprep.subr.mxu0 0.0
    %3211 = vmatpush2.msra.mxu0 0.0
    %3212 = vmatprep.subr.mxu0 0.0
    %3213 = vmatpush2.msra.mxu0 0.0
    %3214 = vmatprep.subr.mxu0 0.0
    %3215 = vmatpush2.msra.mxu0 0.0
    %3216 = vmatprep.subr.mxu0 0.0
    %3217 = vmatpush2.msra.mxu0 0.0
    %3218 = vmatprep.subr.mxu0 0.0
    %3219 = vmatpush2.msra.mxu0 0.0
    %3220 = vmatprep.subr.mxu0 0.0
    %3221 = vmatpush2.msra.mxu0 0.0
    %3222 = vmatprep.subr.mxu0 0.0
    %3223 = vmatpush2.msra.mxu0 0.0
    %3224 = vmatprep.subr.mxu0 0.0
    %3225 = vmatpush2.msra.mxu0 0.0
    %3226 = vmatprep.mubr.f32.mxu0 0.0
    %3227 = vmatmul.mubr.f32.gmra.mxu0 %v2784
    %v3228 = vpop.f32.mrf.mxu0
    %v3229 = vadd.f32 0.0, %v3228
    %v3230 = vpop.f32.mrf.mxu0
    %v3231 = vadd.f32 0.0, %v3230
    %3232 = vdwg.mxu0
    %v3237 = vcombine.low %v3158, %v3160
    %v3238 = vcombine.low %v3229, %v3231
    %v3240 = vunpack.c.l.s4 1966171168
    %v3241 = vunpack.c.0.s8 %v3240
    %v3242 = vlaneseq
    %v3243 = vshrl.u32 %v3242, 7
    %v3244 = vsub.s32 %v3241, %v3243
    %v3245 = vrot.slane %v3237, %v3244
    %v3247 = vunpack.c.l.s4 1966171168
    %v3248 = vunpack.c.0.s8 %v3247
    %v3249 = vlaneseq
    %v3250 = vshrl.u32 %v3249, 7
    %v3251 = vsub.s32 %v3248, %v3250
    %v3252 = vrot.slane %v3238, %v3251
    %v3253 = vcombine.low %v3245, %v3252
    %v3255 = vunpack.c.l.s4 1966171168
    %v3256 = vunpack.c.0.s8 %v3255
    %v3257 = vlaneseq
    %v3258 = vshrl.u32 %v3257, 7
    %v3259 = vsub.s32 %v3256, %v3258
    %v3260 = vrot.slane %v3253, %v3259
    %v3262 = vadd.f32 %v3026, %v3260
    %v3263 = vxor.u32 %v3024, 2147483648
    %v3264 = vmul.f32 %v3263, 1.442695
    %v3265 = vpow.pop %v3264
    %v3266 = vadd.f32 %v3265, 1.0
    %v3267 = vrcp.pop %v3266
    %v3268 = vmul.f32 1.0, %v3267
    %v3270 = vrot.slane %v3024, 3
    %v3272 = vtanh.pop %v3270
    %v3274 = vrot.slane %v3268, 1
    %v3276 = vmul.f32 %v3274, %v2760
    %v3277 = vmul.f32 %v3268, %v3272
    %v3278 = vadd.f32 %v3276, %v3277
    %v3279 = vtanh.pop %v3278
    %v3280 = vrot.slane %v3268, 2
    %v3282 = vmul.f32 %v3280, %v3279
    %v3283 = vxor.u32 %v3262, 2147483648
    %v3284 = vmul.f32 %v3283, 1.442695
    %v3285 = vpow.pop %v3284
    %v3286 = vadd.f32 %v3285, 1.0
    %v3287 = vrcp.pop %v3286
    %v3288 = vmul.f32 1.0, %v3287
    %v3290 = vrot.slane %v3262, 3
    %v3292 = vtanh.pop %v3290
    %v3294 = vrot.slane %v3288, 1
    %v3296 = vmul.f32 %v3294, %v2780
    %v3297 = vmul.f32 %v3288, %v3292
    %v3298 = vadd.f32 %v3296, %v3297
    %v3299 = vtanh.pop %v3298
    %v3300 = vrot.slane %v3288, 2
    %v3302 = vmul.f32 %v3300, %v3299
    %3303 = vst [vmem:[#allocation4 + $0x4] sm:$0x1] %v3282
    %3304 = vst [vmem:[#allocation5 + $0x3] sm:$0x1] %v3302
    %s3305 = scalar_lea.vmem [#allocation2], 5
    %v3306 = vld [vmem:[%s3305] ss:$8 sm:$0xf]
    %v3307 = vld [vmem:[#allocation12] sm:$0xff]
    %v3308 = vld [vmem:[#allocation12 + $0x8] sm:$0xff]
    %v3309 = vld [vmem:[#allocation12 + $0x10] sm:$0xff]
    %v3310 = vld [vmem:[#allocation12 + $0x18] sm:$0xff]
    %v3311 = vld [vmem:[#allocation12 + $0x20] sm:$0xff]
    %v3312 = vld [vmem:[#allocation12 + $0x28] sm:$0xff]
    %v3313 = vld [vmem:[#allocation12 + $0x30] sm:$0xff]
    %v3314 = vld [vmem:[#allocation12 + $0x38] sm:$0xff]
    %v3315 = vld [vmem:[#allocation12 + $0x40] sm:$0xff]
    %v3316 = vld [vmem:[#allocation12 + $0x48] sm:$0xff]
    %v3317 = vld [vmem:[#allocation12 + $0x50] sm:$0xff]
    %v3318 = vld [vmem:[#allocation12 + $0x58] sm:$0xff]
    %v3319 = vld [vmem:[#allocation12 + $0x60] sm:$0xff]
    %v3320 = vld [vmem:[#allocation12 + $0x68] sm:$0xff]
    %v3321 = vld [vmem:[#allocation12 + $0x70] sm:$0xff]
    %v3322 = vld [vmem:[#allocation12 + $0x78] sm:$0xff]
    %v3323 = vld [vmem:[#allocation12 + $0x80] sm:$0xff]
    %v3324 = vld [vmem:[#allocation12 + $0x88] sm:$0xff]
    %v3325 = vld [vmem:[#allocation12 + $0x90] sm:$0xff]
    %v3326 = vld [vmem:[#allocation12 + $0x98] sm:$0xff]
    %v3327 = vld [vmem:[#allocation12 + $0xa0] sm:$0xff]
    %v3328 = vld [vmem:[#allocation12 + $0xa8] sm:$0xff]
    %v3329 = vld [vmem:[#allocation12 + $0xb0] sm:$0xff]
    %v3330 = vld [vmem:[#allocation12 + $0xb8] sm:$0xff]
    %v3331 = vld [vmem:[#allocation12 + $0xc0] sm:$0xff]
    %v3332 = vld [vmem:[#allocation12 + $0xc8] sm:$0xff]
    %v3333 = vld [vmem:[#allocation12 + $0xd0] sm:$0xff]
    %v3334 = vld [vmem:[#allocation12 + $0xd8] sm:$0xff]
    %v3335 = vld [vmem:[#allocation12 + $0xe0] sm:$0xff]
    %v3336 = vld [vmem:[#allocation12 + $0xe8] sm:$0xff]
    %v3337 = vld [vmem:[#allocation12 + $0xf0] sm:$0xff]
    %v3338 = vld [vmem:[#allocation12 + $0xf8] sm:$0xff]
    %v3339 = vld [vmem:[#allocation12 + $0x100] sm:$0xff]
    %v3340 = vld [vmem:[#allocation12 + $0x108] sm:$0xff]
    %v3341 = vld [vmem:[#allocation12 + $0x110] sm:$0xff]
    %v3342 = vld [vmem:[#allocation12 + $0x118] sm:$0xff]
    %v3343 = vld [vmem:[#allocation12 + $0x120] sm:$0xff]
    %v3344 = vld [vmem:[#allocation12 + $0x128] sm:$0xff]
    %v3345 = vld [vmem:[#allocation12 + $0x130] sm:$0xff]
    %v3346 = vld [vmem:[#allocation12 + $0x138] sm:$0xff]
    %v3347 = vld [vmem:[#allocation12 + $0x140] sm:$0xff]
    %v3348 = vld [vmem:[#allocation12 + $0x148] sm:$0xff]
    %v3349 = vld [vmem:[#allocation12 + $0x150] sm:$0xff]
    %v3350 = vld [vmem:[#allocation12 + $0x158] sm:$0xff]
    %v3351 = vld [vmem:[#allocation12 + $0x160] sm:$0xff]
    %v3352 = vld [vmem:[#allocation12 + $0x168] sm:$0xff]
    %v3353 = vld [vmem:[#allocation12 + $0x170] sm:$0xff]
    %v3354 = vld [vmem:[#allocation12 + $0x178] sm:$0xff]
    %v3355 = vld [vmem:[#allocation12 + $0x180] sm:$0xff]
    %v3356 = vld [vmem:[#allocation12 + $0x188] sm:$0xff]
    %v3357 = vld [vmem:[#allocation12 + $0x190] sm:$0xff]
    %v3358 = vld [vmem:[#allocation12 + $0x198] sm:$0xff]
    %v3359 = vld [vmem:[#allocation12 + $0x1a0] sm:$0xff]
    %v3360 = vld [vmem:[#allocation12 + $0x1a8] sm:$0xff]
    %v3361 = vld [vmem:[#allocation12 + $0x1b0] sm:$0xff]
    %v3362 = vld [vmem:[#allocation12 + $0x1b8] sm:$0xff]
    %v3363 = vld [vmem:[#allocation12 + $0x1c0] sm:$0xff]
    %v3364 = vld [vmem:[#allocation12 + $0x1c8] sm:$0xff]
    %v3365 = vld [vmem:[#allocation12 + $0x1d0] sm:$0xff]
    %v3366 = vld [vmem:[#allocation12 + $0x1d8] sm:$0xff]
    %v3367 = vld [vmem:[#allocation12 + $0x1e0] sm:$0xff]
    %v3368 = vld [vmem:[#allocation12 + $0x1e8] sm:$0xff]
    %v3369 = vld [vmem:[#allocation12 + $0x1f0] sm:$0xff]
    %v3370 = vld [vmem:[#allocation12 + $0x1f8] sm:$0xff]
    %3371 = vmatprep.subr.mxu0 %v3368
    %3372 = vmatpush1.msra.mxu0 %v3367
    %3373 = vmatprep.subr.mxu0 %v3364
    %3374 = vmatpush1.msra.mxu0 %v3363
    %3375 = vmatprep.subr.mxu0 %v3360
    %3376 = vmatpush1.msra.mxu0 %v3359
    %3377 = vmatprep.subr.mxu0 %v3356
    %3378 = vmatpush1.msra.mxu0 %v3355
    %3379 = vmatprep.subr.mxu0 %v3352
    %3380 = vmatpush1.msra.mxu0 %v3351
    %3381 = vmatprep.subr.mxu0 %v3348
    %3382 = vmatpush1.msra.mxu0 %v3347
    %3383 = vmatprep.subr.mxu0 %v3344
    %3384 = vmatpush1.msra.mxu0 %v3343
    %3385 = vmatprep.subr.mxu0 %v3340
    %3386 = vmatpush1.msra.mxu0 %v3339
    %3387 = vmatprep.subr.mxu0 %v3336
    %3388 = vmatpush1.msra.mxu0 %v3335
    %3389 = vmatprep.subr.mxu0 %v3332
    %3390 = vmatpush1.msra.mxu0 %v3331
    %3391 = vmatprep.subr.mxu0 %v3328
    %3392 = vmatpush1.msra.mxu0 %v3327
    %3393 = vmatprep.subr.mxu0 %v3324
    %3394 = vmatpush1.msra.mxu0 %v3323
    %3395 = vmatprep.subr.mxu0 %v3320
    %3396 = vmatpush1.msra.mxu0 %v3319
    %3397 = vmatprep.subr.mxu0 %v3316
    %3398 = vmatpush1.msra.mxu0 %v3315
    %3399 = vmatprep.subr.mxu0 %v3312
    %3400 = vmatpush1.msra.mxu0 %v3311
    %3401 = vmatprep.subr.mxu0 %v3308
    %3402 = vmatpush1.msra.mxu0 %v3307
    %3403 = vmatprep.subr.mxu0 0.0
    %3404 = vmatpush2.msra.mxu0 0.0
    %3405 = vmatprep.subr.mxu0 0.0
    %3406 = vmatpush2.msra.mxu0 0.0
    %3407 = vmatprep.subr.mxu0 0.0
    %3408 = vmatpush2.msra.mxu0 0.0
    %3409 = vmatprep.subr.mxu0 0.0
    %3410 = vmatpush2.msra.mxu0 0.0
    %3411 = vmatprep.subr.mxu0 0.0
    %3412 = vmatpush2.msra.mxu0 0.0
    %3413 = vmatprep.subr.mxu0 0.0
    %3414 = vmatpush2.msra.mxu0 0.0
    %3415 = vmatprep.subr.mxu0 0.0
    %3416 = vmatpush2.msra.mxu0 0.0
    %3417 = vmatprep.subr.mxu0 0.0
    %3418 = vmatpush2.msra.mxu0 0.0
    %3419 = vmatprep.subr.mxu0 0.0
    %3420 = vmatpush2.msra.mxu0 0.0
    %3421 = vmatprep.subr.mxu0 0.0
    %3422 = vmatpush2.msra.mxu0 0.0
    %3423 = vmatprep.subr.mxu0 0.0
    %3424 = vmatpush2.msra.mxu0 0.0
    %3425 = vmatprep.subr.mxu0 0.0
    %3426 = vmatpush2.msra.mxu0 0.0
    %3427 = vmatprep.subr.mxu0 0.0
    %3428 = vmatpush2.msra.mxu0 0.0
    %3429 = vmatprep.subr.mxu0 0.0
    %3430 = vmatpush2.msra.mxu0 0.0
    %3431 = vmatprep.subr.mxu0 0.0
    %3432 = vmatpush2.msra.mxu0 0.0
    %3433 = vmatprep.subr.mxu0 0.0
    %3434 = vmatpush2.msra.mxu0 0.0
    %3435 = vmatprep.mubr.f32.mxu0 0.0
    %3436 = vmatmul.mubr.f32.gmra.mxu0 %v3282
    %v3437 = vpop.f32.mrf.mxu0
    %v3438 = vadd.f32 0.0, %v3437
    %v3439 = vpop.f32.mrf.mxu0
    %v3440 = vadd.f32 0.0, %v3439
    %3441 = vdwg.mxu0
    %3442 = vmatprep.subr.mxu0 %v3370
    %3443 = vmatpush1.msra.mxu0 %v3369
    %3444 = vmatprep.subr.mxu0 %v3366
    %3445 = vmatpush1.msra.mxu0 %v3365
    %3446 = vmatprep.subr.mxu0 %v3362
    %3447 = vmatpush1.msra.mxu0 %v3361
    %3448 = vmatprep.subr.mxu0 %v3358
    %3449 = vmatpush1.msra.mxu0 %v3357
    %3450 = vmatprep.subr.mxu0 %v3354
    %3451 = vmatpush1.msra.mxu0 %v3353
    %3452 = vmatprep.subr.mxu0 %v3350
    %3453 = vmatpush1.msra.mxu0 %v3349
    %3454 = vmatprep.subr.mxu0 %v3346
    %3455 = vmatpush1.msra.mxu0 %v3345
    %3456 = vmatprep.subr.mxu0 %v3342
    %3457 = vmatpush1.msra.mxu0 %v3341
    %3458 = vmatprep.subr.mxu0 %v3338
    %3459 = vmatpush1.msra.mxu0 %v3337
    %3460 = vmatprep.subr.mxu0 %v3334
    %3461 = vmatpush1.msra.mxu0 %v3333
    %3462 = vmatprep.subr.mxu0 %v3330
    %3463 = vmatpush1.msra.mxu0 %v3329
    %3464 = vmatprep.subr.mxu0 %v3326
    %3465 = vmatpush1.msra.mxu0 %v3325
    %3466 = vmatprep.subr.mxu0 %v3322
    %3467 = vmatpush1.msra.mxu0 %v3321
    %3468 = vmatprep.subr.mxu0 %v3318
    %3469 = vmatpush1.msra.mxu0 %v3317
    %3470 = vmatprep.subr.mxu0 %v3314
    %3471 = vmatpush1.msra.mxu0 %v3313
    %3472 = vmatprep.subr.mxu0 %v3310
    %3473 = vmatpush1.msra.mxu0 %v3309
    %3474 = vmatprep.subr.mxu0 0.0
    %3475 = vmatpush2.msra.mxu0 0.0
    %3476 = vmatprep.subr.mxu0 0.0
    %3477 = vmatpush2.msra.mxu0 0.0
    %3478 = vmatprep.subr.mxu0 0.0
    %3479 = vmatpush2.msra.mxu0 0.0
    %3480 = vmatprep.subr.mxu0 0.0
    %3481 = vmatpush2.msra.mxu0 0.0
    %3482 = vmatprep.subr.mxu0 0.0
    %3483 = vmatpush2.msra.mxu0 0.0
    %3484 = vmatprep.subr.mxu0 0.0
    %3485 = vmatpush2.msra.mxu0 0.0
    %3486 = vmatprep.subr.mxu0 0.0
    %3487 = vmatpush2.msra.mxu0 0.0
    %3488 = vmatprep.subr.mxu0 0.0
    %3489 = vmatpush2.msra.mxu0 0.0
    %3490 = vmatprep.subr.mxu0 0.0
    %3491 = vmatpush2.msra.mxu0 0.0
    %3492 = vmatprep.subr.mxu0 0.0
    %3493 = vmatpush2.msra.mxu0 0.0
    %3494 = vmatprep.subr.mxu0 0.0
    %3495 = vmatpush2.msra.mxu0 0.0
    %3496 = vmatprep.subr.mxu0 0.0
    %3497 = vmatpush2.msra.mxu0 0.0
    %3498 = vmatprep.subr.mxu0 0.0
    %3499 = vmatpush2.msra.mxu0 0.0
    %3500 = vmatprep.subr.mxu0 0.0
    %3501 = vmatpush2.msra.mxu0 0.0
    %3502 = vmatprep.subr.mxu0 0.0
    %3503 = vmatpush2.msra.mxu0 0.0
    %3504 = vmatprep.subr.mxu0 0.0
    %3505 = vmatpush2.msra.mxu0 0.0
    %3506 = vmatprep.mubr.f32.mxu0 0.0
    %3507 = vmatmul.mubr.f32.gmra.mxu0 %v3282
    %v3508 = vpop.f32.mrf.mxu0
    %v3509 = vadd.f32 0.0, %v3508
    %v3510 = vpop.f32.mrf.mxu0
    %v3511 = vadd.f32 0.0, %v3510
    %3512 = vdwg.mxu0
    %v3517 = vcombine.low %v3438, %v3440
    %v3518 = vcombine.low %v3509, %v3511
    %v3520 = vunpack.c.l.s4 1966171168
    %v3521 = vunpack.c.0.s8 %v3520
    %v3522 = vlaneseq
    %v3523 = vshrl.u32 %v3522, 7
    %v3524 = vsub.s32 %v3521, %v3523
    %v3525 = vrot.slane %v3517, %v3524
    %v3527 = vunpack.c.l.s4 1966171168
    %v3528 = vunpack.c.0.s8 %v3527
    %v3529 = vlaneseq
    %v3530 = vshrl.u32 %v3529, 7
    %v3531 = vsub.s32 %v3528, %v3530
    %v3532 = vrot.slane %v3518, %v3531
    %v3533 = vcombine.low %v3525, %v3532
    %v3535 = vunpack.c.l.s4 1966171168
    %v3536 = vunpack.c.0.s8 %v3535
    %v3537 = vlaneseq
    %v3538 = vshrl.u32 %v3537, 7
    %v3539 = vsub.s32 %v3536, %v3538
    %v3540 = vrot.slane %v3533, %v3539
    %v3542 = vadd.f32 %v3306, %v3540
    %s3543 = scalar_lea.vmem [#allocation3], 2
    %v3544 = vld [vmem:[%s3543] ss:$8 sm:$0xf]
    %v3545 = vld [vmem:[#allocation13] sm:$0xff]
    %v3546 = vld [vmem:[#allocation13 + $0x8] sm:$0xff]
    %v3547 = vld [vmem:[#allocation13 + $0x10] sm:$0xff]
    %v3548 = vld [vmem:[#allocation13 + $0x18] sm:$0xff]
    %v3549 = vld [vmem:[#allocation13 + $0x20] sm:$0xff]
    %v3550 = vld [vmem:[#allocation13 + $0x28] sm:$0xff]
    %v3551 = vld [vmem:[#allocation13 + $0x30] sm:$0xff]
    %v3552 = vld [vmem:[#allocation13 + $0x38] sm:$0xff]
    %v3553 = vld [vmem:[#allocation13 + $0x40] sm:$0xff]
    %v3554 = vld [vmem:[#allocation13 + $0x48] sm:$0xff]
    %v3555 = vld [vmem:[#allocation13 + $0x50] sm:$0xff]
    %v3556 = vld [vmem:[#allocation13 + $0x58] sm:$0xff]
    %v3557 = vld [vmem:[#allocation13 + $0x60] sm:$0xff]
    %v3558 = vld [vmem:[#allocation13 + $0x68] sm:$0xff]
    %v3559 = vld [vmem:[#allocation13 + $0x70] sm:$0xff]
    %v3560 = vld [vmem:[#allocation13 + $0x78] sm:$0xff]
    %v3561 = vld [vmem:[#allocation13 + $0x80] sm:$0xff]
    %v3562 = vld [vmem:[#allocation13 + $0x88] sm:$0xff]
    %v3563 = vld [vmem:[#allocation13 + $0x90] sm:$0xff]
    %v3564 = vld [vmem:[#allocation13 + $0x98] sm:$0xff]
    %v3565 = vld [vmem:[#allocation13 + $0xa0] sm:$0xff]
    %v3566 = vld [vmem:[#allocation13 + $0xa8] sm:$0xff]
    %v3567 = vld [vmem:[#allocation13 + $0xb0] sm:$0xff]
    %v3568 = vld [vmem:[#allocation13 + $0xb8] sm:$0xff]
    %v3569 = vld [vmem:[#allocation13 + $0xc0] sm:$0xff]
    %v3570 = vld [vmem:[#allocation13 + $0xc8] sm:$0xff]
    %v3571 = vld [vmem:[#allocation13 + $0xd0] sm:$0xff]
    %v3572 = vld [vmem:[#allocation13 + $0xd8] sm:$0xff]
    %v3573 = vld [vmem:[#allocation13 + $0xe0] sm:$0xff]
    %v3574 = vld [vmem:[#allocation13 + $0xe8] sm:$0xff]
    %v3575 = vld [vmem:[#allocation13 + $0xf0] sm:$0xff]
    %v3576 = vld [vmem:[#allocation13 + $0xf8] sm:$0xff]
    %v3577 = vld [vmem:[#allocation13 + $0x100] sm:$0xff]
    %v3578 = vld [vmem:[#allocation13 + $0x108] sm:$0xff]
    %v3579 = vld [vmem:[#allocation13 + $0x110] sm:$0xff]
    %v3580 = vld [vmem:[#allocation13 + $0x118] sm:$0xff]
    %v3581 = vld [vmem:[#allocation13 + $0x120] sm:$0xff]
    %v3582 = vld [vmem:[#allocation13 + $0x128] sm:$0xff]
    %v3583 = vld [vmem:[#allocation13 + $0x130] sm:$0xff]
    %v3584 = vld [vmem:[#allocation13 + $0x138] sm:$0xff]
    %v3585 = vld [vmem:[#allocation13 + $0x140] sm:$0xff]
    %v3586 = vld [vmem:[#allocation13 + $0x148] sm:$0xff]
    %v3587 = vld [vmem:[#allocation13 + $0x150] sm:$0xff]
    %v3588 = vld [vmem:[#allocation13 + $0x158] sm:$0xff]
    %v3589 = vld [vmem:[#allocation13 + $0x160] sm:$0xff]
    %v3590 = vld [vmem:[#allocation13 + $0x168] sm:$0xff]
    %v3591 = vld [vmem:[#allocation13 + $0x170] sm:$0xff]
    %v3592 = vld [vmem:[#allocation13 + $0x178] sm:$0xff]
    %v3593 = vld [vmem:[#allocation13 + $0x180] sm:$0xff]
    %v3594 = vld [vmem:[#allocation13 + $0x188] sm:$0xff]
    %v3595 = vld [vmem:[#allocation13 + $0x190] sm:$0xff]
    %v3596 = vld [vmem:[#allocation13 + $0x198] sm:$0xff]
    %v3597 = vld [vmem:[#allocation13 + $0x1a0] sm:$0xff]
    %v3598 = vld [vmem:[#allocation13 + $0x1a8] sm:$0xff]
    %v3599 = vld [vmem:[#allocation13 + $0x1b0] sm:$0xff]
    %v3600 = vld [vmem:[#allocation13 + $0x1b8] sm:$0xff]
    %v3601 = vld [vmem:[#allocation13 + $0x1c0] sm:$0xff]
    %v3602 = vld [vmem:[#allocation13 + $0x1c8] sm:$0xff]
    %v3603 = vld [vmem:[#allocation13 + $0x1d0] sm:$0xff]
    %v3604 = vld [vmem:[#allocation13 + $0x1d8] sm:$0xff]
    %v3605 = vld [vmem:[#allocation13 + $0x1e0] sm:$0xff]
    %v3606 = vld [vmem:[#allocation13 + $0x1e8] sm:$0xff]
    %v3607 = vld [vmem:[#allocation13 + $0x1f0] sm:$0xff]
    %v3608 = vld [vmem:[#allocation13 + $0x1f8] sm:$0xff]
    %3609 = vmatprep.subr.mxu0 %v3606
    %3610 = vmatpush1.msra.mxu0 %v3605
    %3611 = vmatprep.subr.mxu0 %v3602
    %3612 = vmatpush1.msra.mxu0 %v3601
    %3613 = vmatprep.subr.mxu0 %v3598
    %3614 = vmatpush1.msra.mxu0 %v3597
    %3615 = vmatprep.subr.mxu0 %v3594
    %3616 = vmatpush1.msra.mxu0 %v3593
    %3617 = vmatprep.subr.mxu0 %v3590
    %3618 = vmatpush1.msra.mxu0 %v3589
    %3619 = vmatprep.subr.mxu0 %v3586
    %3620 = vmatpush1.msra.mxu0 %v3585
    %3621 = vmatprep.subr.mxu0 %v3582
    %3622 = vmatpush1.msra.mxu0 %v3581
    %3623 = vmatprep.subr.mxu0 %v3578
    %3624 = vmatpush1.msra.mxu0 %v3577
    %3625 = vmatprep.subr.mxu0 %v3574
    %3626 = vmatpush1.msra.mxu0 %v3573
    %3627 = vmatprep.subr.mxu0 %v3570
    %3628 = vmatpush1.msra.mxu0 %v3569
    %3629 = vmatprep.subr.mxu0 %v3566
    %3630 = vmatpush1.msra.mxu0 %v3565
    %3631 = vmatprep.subr.mxu0 %v3562
    %3632 = vmatpush1.msra.mxu0 %v3561
    %3633 = vmatprep.subr.mxu0 %v3558
    %3634 = vmatpush1.msra.mxu0 %v3557
    %3635 = vmatprep.subr.mxu0 %v3554
    %3636 = vmatpush1.msra.mxu0 %v3553
    %3637 = vmatprep.subr.mxu0 %v3550
    %3638 = vmatpush1.msra.mxu0 %v3549
    %3639 = vmatprep.subr.mxu0 %v3546
    %3640 = vmatpush1.msra.mxu0 %v3545
    %3641 = vmatprep.subr.mxu0 0.0
    %3642 = vmatpush2.msra.mxu0 0.0
    %3643 = vmatprep.subr.mxu0 0.0
    %3644 = vmatpush2.msra.mxu0 0.0
    %3645 = vmatprep.subr.mxu0 0.0
    %3646 = vmatpush2.msra.mxu0 0.0
    %3647 = vmatprep.subr.mxu0 0.0
    %3648 = vmatpush2.msra.mxu0 0.0
    %3649 = vmatprep.subr.mxu0 0.0
    %3650 = vmatpush2.msra.mxu0 0.0
    %3651 = vmatprep.subr.mxu0 0.0
    %3652 = vmatpush2.msra.mxu0 0.0
    %3653 = vmatprep.subr.mxu0 0.0
    %3654 = vmatpush2.msra.mxu0 0.0
    %3655 = vmatprep.subr.mxu0 0.0
    %3656 = vmatpush2.msra.mxu0 0.0
    %3657 = vmatprep.subr.mxu0 0.0
    %3658 = vmatpush2.msra.mxu0 0.0
    %3659 = vmatprep.subr.mxu0 0.0
    %3660 = vmatpush2.msra.mxu0 0.0
    %3661 = vmatprep.subr.mxu0 0.0
    %3662 = vmatpush2.msra.mxu0 0.0
    %3663 = vmatprep.subr.mxu0 0.0
    %3664 = vmatpush2.msra.mxu0 0.0
    %3665 = vmatprep.subr.mxu0 0.0
    %3666 = vmatpush2.msra.mxu0 0.0
    %3667 = vmatprep.subr.mxu0 0.0
    %3668 = vmatpush2.msra.mxu0 0.0
    %3669 = vmatprep.subr.mxu0 0.0
    %3670 = vmatpush2.msra.mxu0 0.0
    %3671 = vmatprep.subr.mxu0 0.0
    %3672 = vmatpush2.msra.mxu0 0.0
    %3673 = vmatprep.mubr.f32.mxu0 0.0
    %3674 = vmatmul.mubr.f32.gmra.mxu0 %v3302
    %v3675 = vpop.f32.mrf.mxu0
    %v3676 = vadd.f32 0.0, %v3675
    %v3677 = vpop.f32.mrf.mxu0
    %v3678 = vadd.f32 0.0, %v3677
    %3679 = vdwg.mxu0
    %3680 = vmatprep.subr.mxu0 %v3608
    %3681 = vmatpush1.msra.mxu0 %v3607
    %3682 = vmatprep.subr.mxu0 %v3604
    %3683 = vmatpush1.msra.mxu0 %v3603
    %3684 = vmatprep.subr.mxu0 %v3600
    %3685 = vmatpush1.msra.mxu0 %v3599
    %3686 = vmatprep.subr.mxu0 %v3596
    %3687 = vmatpush1.msra.mxu0 %v3595
    %3688 = vmatprep.subr.mxu0 %v3592
    %3689 = vmatpush1.msra.mxu0 %v3591
    %3690 = vmatprep.subr.mxu0 %v3588
    %3691 = vmatpush1.msra.mxu0 %v3587
    %3692 = vmatprep.subr.mxu0 %v3584
    %3693 = vmatpush1.msra.mxu0 %v3583
    %3694 = vmatprep.subr.mxu0 %v3580
    %3695 = vmatpush1.msra.mxu0 %v3579
    %3696 = vmatprep.subr.mxu0 %v3576
    %3697 = vmatpush1.msra.mxu0 %v3575
    %3698 = vmatprep.subr.mxu0 %v3572
    %3699 = vmatpush1.msra.mxu0 %v3571
    %3700 = vmatprep.subr.mxu0 %v3568
    %3701 = vmatpush1.msra.mxu0 %v3567
    %3702 = vmatprep.subr.mxu0 %v3564
    %3703 = vmatpush1.msra.mxu0 %v3563
    %3704 = vmatprep.subr.mxu0 %v3560
    %3705 = vmatpush1.msra.mxu0 %v3559
    %3706 = vmatprep.subr.mxu0 %v3556
    %3707 = vmatpush1.msra.mxu0 %v3555
    %3708 = vmatprep.subr.mxu0 %v3552
    %3709 = vmatpush1.msra.mxu0 %v3551
    %3710 = vmatprep.subr.mxu0 %v3548
    %3711 = vmatpush1.msra.mxu0 %v3547
    %3712 = vmatprep.subr.mxu0 0.0
    %3713 = vmatpush2.msra.mxu0 0.0
    %3714 = vmatprep.subr.mxu0 0.0
    %3715 = vmatpush2.msra.mxu0 0.0
    %3716 = vmatprep.subr.mxu0 0.0
    %3717 = vmatpush2.msra.mxu0 0.0
    %3718 = vmatprep.subr.mxu0 0.0
    %3719 = vmatpush2.msra.mxu0 0.0
    %3720 = vmatprep.subr.mxu0 0.0
    %3721 = vmatpush2.msra.mxu0 0.0
    %3722 = vmatprep.subr.mxu0 0.0
    %3723 = vmatpush2.msra.mxu0 0.0
    %3724 = vmatprep.subr.mxu0 0.0
    %3725 = vmatpush2.msra.mxu0 0.0
    %3726 = vmatprep.subr.mxu0 0.0
    %3727 = vmatpush2.msra.mxu0 0.0
    %3728 = vmatprep.subr.mxu0 0.0
    %3729 = vmatpush2.msra.mxu0 0.0
    %3730 = vmatprep.subr.mxu0 0.0
    %3731 = vmatpush2.msra.mxu0 0.0
    %3732 = vmatprep.subr.mxu0 0.0
    %3733 = vmatpush2.msra.mxu0 0.0
    %3734 = vmatprep.subr.mxu0 0.0
    %3735 = vmatpush2.msra.mxu0 0.0
    %3736 = vmatprep.subr.mxu0 0.0
    %3737 = vmatpush2.msra.mxu0 0.0
    %3738 = vmatprep.subr.mxu0 0.0
    %3739 = vmatpush2.msra.mxu0 0.0
    %3740 = vmatprep.subr.mxu0 0.0
    %3741 = vmatpush2.msra.mxu0 0.0
    %3742 = vmatprep.subr.mxu0 0.0
    %3743 = vmatpush2.msra.mxu0 0.0
    %3744 = vmatprep.mubr.f32.mxu0 0.0
    %3745 = vmatmul.mubr.f32.gmra.mxu0 %v3302
    %v3746 = vpop.f32.mrf.mxu0
    %v3747 = vadd.f32 0.0, %v3746
    %v3748 = vpop.f32.mrf.mxu0
    %v3749 = vadd.f32 0.0, %v3748
    %3750 = vdwg.mxu0
    %v3755 = vcombine.low %v3676, %v3678
    %v3756 = vcombine.low %v3747, %v3749
    %v3758 = vunpack.c.l.s4 1966171168
    %v3759 = vunpack.c.0.s8 %v3758
    %v3760 = vlaneseq
    %v3761 = vshrl.u32 %v3760, 7
    %v3762 = vsub.s32 %v3759, %v3761
    %v3763 = vrot.slane %v3755, %v3762
    %v3765 = vunpack.c.l.s4 1966171168
    %v3766 = vunpack.c.0.s8 %v3765
    %v3767 = vlaneseq
    %v3768 = vshrl.u32 %v3767, 7
    %v3769 = vsub.s32 %v3766, %v3768
    %v3770 = vrot.slane %v3756, %v3769
    %v3771 = vcombine.low %v3763, %v3770
    %v3773 = vunpack.c.l.s4 1966171168
    %v3774 = vunpack.c.0.s8 %v3773
    %v3775 = vlaneseq
    %v3776 = vshrl.u32 %v3775, 7
    %v3777 = vsub.s32 %v3774, %v3776
    %v3778 = vrot.slane %v3771, %v3777
    %v3780 = vadd.f32 %v3544, %v3778
    %v3781 = vxor.u32 %v3542, 2147483648
    %v3782 = vmul.f32 %v3781, 1.442695
    %v3783 = vpow.pop %v3782
    %v3784 = vadd.f32 %v3783, 1.0
    %v3785 = vrcp.pop %v3784
    %v3786 = vmul.f32 1.0, %v3785
    %v3788 = vrot.slane %v3542, 3
    %v3790 = vtanh.pop %v3788
    %v3792 = vrot.slane %v3786, 1
    %v3794 = vmul.f32 %v3792, %v3278
    %v3795 = vmul.f32 %v3786, %v3790
    %v3796 = vadd.f32 %v3794, %v3795
    %v3797 = vtanh.pop %v3796
    %v3798 = vrot.slane %v3786, 2
    %v3800 = vmul.f32 %v3798, %v3797
    %v3801 = vxor.u32 %v3780, 2147483648
    %v3802 = vmul.f32 %v3801, 1.442695
    %v3803 = vpow.pop %v3802
    %v3804 = vadd.f32 %v3803, 1.0
    %v3805 = vrcp.pop %v3804
    %v3806 = vmul.f32 1.0, %v3805
    %v3808 = vrot.slane %v3780, 3
    %v3810 = vtanh.pop %v3808
    %v3812 = vrot.slane %v3806, 1
    %v3814 = vmul.f32 %v3812, %v3298
    %v3815 = vmul.f32 %v3806, %v3810
    %v3816 = vadd.f32 %v3814, %v3815
    %v3817 = vtanh.pop %v3816
    %v3818 = vrot.slane %v3806, 2
    %v3820 = vmul.f32 %v3818, %v3817
    %3821 = vst [vmem:[#allocation4 + $0x5] sm:$0x1] %v3800
    %3822 = vst [vmem:[#allocation5 + $0x2] sm:$0x1] %v3820
    %s3823 = scalar_lea.vmem [#allocation2], 6
    %v3824 = vld [vmem:[%s3823] ss:$8 sm:$0xf]
    %v3825 = vld [vmem:[#allocation12] sm:$0xff]
    %v3826 = vld [vmem:[#allocation12 + $0x8] sm:$0xff]
    %v3827 = vld [vmem:[#allocation12 + $0x10] sm:$0xff]
    %v3828 = vld [vmem:[#allocation12 + $0x18] sm:$0xff]
    %v3829 = vld [vmem:[#allocation12 + $0x20] sm:$0xff]
    %v3830 = vld [vmem:[#allocation12 + $0x28] sm:$0xff]
    %v3831 = vld [vmem:[#allocation12 + $0x30] sm:$0xff]
    %v3832 = vld [vmem:[#allocation12 + $0x38] sm:$0xff]
    %v3833 = vld [vmem:[#allocation12 + $0x40] sm:$0xff]
    %v3834 = vld [vmem:[#allocation12 + $0x48] sm:$0xff]
    %v3835 = vld [vmem:[#allocation12 + $0x50] sm:$0xff]
    %v3836 = vld [vmem:[#allocation12 + $0x58] sm:$0xff]
    %v3837 = vld [vmem:[#allocation12 + $0x60] sm:$0xff]
    %v3838 = vld [vmem:[#allocation12 + $0x68] sm:$0xff]
    %v3839 = vld [vmem:[#allocation12 + $0x70] sm:$0xff]
    %v3840 = vld [vmem:[#allocation12 + $0x78] sm:$0xff]
    %v3841 = vld [vmem:[#allocation12 + $0x80] sm:$0xff]
    %v3842 = vld [vmem:[#allocation12 + $0x88] sm:$0xff]
    %v3843 = vld [vmem:[#allocation12 + $0x90] sm:$0xff]
    %v3844 = vld [vmem:[#allocation12 + $0x98] sm:$0xff]
    %v3845 = vld [vmem:[#allocation12 + $0xa0] sm:$0xff]
    %v3846 = vld [vmem:[#allocation12 + $0xa8] sm:$0xff]
    %v3847 = vld [vmem:[#allocation12 + $0xb0] sm:$0xff]
    %v3848 = vld [vmem:[#allocation12 + $0xb8] sm:$0xff]
    %v3849 = vld [vmem:[#allocation12 + $0xc0] sm:$0xff]
    %v3850 = vld [vmem:[#allocation12 + $0xc8] sm:$0xff]
    %v3851 = vld [vmem:[#allocation12 + $0xd0] sm:$0xff]
    %v3852 = vld [vmem:[#allocation12 + $0xd8] sm:$0xff]
    %v3853 = vld [vmem:[#allocation12 + $0xe0] sm:$0xff]
    %v3854 = vld [vmem:[#allocation12 + $0xe8] sm:$0xff]
    %v3855 = vld [vmem:[#allocation12 + $0xf0] sm:$0xff]
    %v3856 = vld [vmem:[#allocation12 + $0xf8] sm:$0xff]
    %v3857 = vld [vmem:[#allocation12 + $0x100] sm:$0xff]
    %v3858 = vld [vmem:[#allocation12 + $0x108] sm:$0xff]
    %v3859 = vld [vmem:[#allocation12 + $0x110] sm:$0xff]
    %v3860 = vld [vmem:[#allocation12 + $0x118] sm:$0xff]
    %v3861 = vld [vmem:[#allocation12 + $0x120] sm:$0xff]
    %v3862 = vld [vmem:[#allocation12 + $0x128] sm:$0xff]
    %v3863 = vld [vmem:[#allocation12 + $0x130] sm:$0xff]
    %v3864 = vld [vmem:[#allocation12 + $0x138] sm:$0xff]
    %v3865 = vld [vmem:[#allocation12 + $0x140] sm:$0xff]
    %v3866 = vld [vmem:[#allocation12 + $0x148] sm:$0xff]
    %v3867 = vld [vmem:[#allocation12 + $0x150] sm:$0xff]
    %v3868 = vld [vmem:[#allocation12 + $0x158] sm:$0xff]
    %v3869 = vld [vmem:[#allocation12 + $0x160] sm:$0xff]
    %v3870 = vld [vmem:[#allocation12 + $0x168] sm:$0xff]
    %v3871 = vld [vmem:[#allocation12 + $0x170] sm:$0xff]
    %v3872 = vld [vmem:[#allocation12 + $0x178] sm:$0xff]
    %v3873 = vld [vmem:[#allocation12 + $0x180] sm:$0xff]
    %v3874 = vld [vmem:[#allocation12 + $0x188] sm:$0xff]
    %v3875 = vld [vmem:[#allocation12 + $0x190] sm:$0xff]
    %v3876 = vld [vmem:[#allocation12 + $0x198] sm:$0xff]
    %v3877 = vld [vmem:[#allocation12 + $0x1a0] sm:$0xff]
    %v3878 = vld [vmem:[#allocation12 + $0x1a8] sm:$0xff]
    %v3879 = vld [vmem:[#allocation12 + $0x1b0] sm:$0xff]
    %v3880 = vld [vmem:[#allocation12 + $0x1b8] sm:$0xff]
    %v3881 = vld [vmem:[#allocation12 + $0x1c0] sm:$0xff]
    %v3882 = vld [vmem:[#allocation12 + $0x1c8] sm:$0xff]
    %v3883 = vld [vmem:[#allocation12 + $0x1d0] sm:$0xff]
    %v3884 = vld [vmem:[#allocation12 + $0x1d8] sm:$0xff]
    %v3885 = vld [vmem:[#allocation12 + $0x1e0] sm:$0xff]
    %v3886 = vld [vmem:[#allocation12 + $0x1e8] sm:$0xff]
    %v3887 = vld [vmem:[#allocation12 + $0x1f0] sm:$0xff]
    %v3888 = vld [vmem:[#allocation12 + $0x1f8] sm:$0xff]
    %3889 = vmatprep.subr.mxu0 %v3886
    %3890 = vmatpush1.msra.mxu0 %v3885
    %3891 = vmatprep.subr.mxu0 %v3882
    %3892 = vmatpush1.msra.mxu0 %v3881
    %3893 = vmatprep.subr.mxu0 %v3878
    %3894 = vmatpush1.msra.mxu0 %v3877
    %3895 = vmatprep.subr.mxu0 %v3874
    %3896 = vmatpush1.msra.mxu0 %v3873
    %3897 = vmatprep.subr.mxu0 %v3870
    %3898 = vmatpush1.msra.mxu0 %v3869
    %3899 = vmatprep.subr.mxu0 %v3866
    %3900 = vmatpush1.msra.mxu0 %v3865
    %3901 = vmatprep.subr.mxu0 %v3862
    %3902 = vmatpush1.msra.mxu0 %v3861
    %3903 = vmatprep.subr.mxu0 %v3858
    %3904 = vmatpush1.msra.mxu0 %v3857
    %3905 = vmatprep.subr.mxu0 %v3854
    %3906 = vmatpush1.msra.mxu0 %v3853
    %3907 = vmatprep.subr.mxu0 %v3850
    %3908 = vmatpush1.msra.mxu0 %v3849
    %3909 = vmatprep.subr.mxu0 %v3846
    %3910 = vmatpush1.msra.mxu0 %v3845
    %3911 = vmatprep.subr.mxu0 %v3842
    %3912 = vmatpush1.msra.mxu0 %v3841
    %3913 = vmatprep.subr.mxu0 %v3838
    %3914 = vmatpush1.msra.mxu0 %v3837
    %3915 = vmatprep.subr.mxu0 %v3834
    %3916 = vmatpush1.msra.mxu0 %v3833
    %3917 = vmatprep.subr.mxu0 %v3830
    %3918 = vmatpush1.msra.mxu0 %v3829
    %3919 = vmatprep.subr.mxu0 %v3826
    %3920 = vmatpush1.msra.mxu0 %v3825
    %3921 = vmatprep.subr.mxu0 0.0
    %3922 = vmatpush2.msra.mxu0 0.0
    %3923 = vmatprep.subr.mxu0 0.0
    %3924 = vmatpush2.msra.mxu0 0.0
    %3925 = vmatprep.subr.mxu0 0.0
    %3926 = vmatpush2.msra.mxu0 0.0
    %3927 = vmatprep.subr.mxu0 0.0
    %3928 = vmatpush2.msra.mxu0 0.0
    %3929 = vmatprep.subr.mxu0 0.0
    %3930 = vmatpush2.msra.mxu0 0.0
    %3931 = vmatprep.subr.mxu0 0.0
    %3932 = vmatpush2.msra.mxu0 0.0
    %3933 = vmatprep.subr.mxu0 0.0
    %3934 = vmatpush2.msra.mxu0 0.0
    %3935 = vmatprep.subr.mxu0 0.0
    %3936 = vmatpush2.msra.mxu0 0.0
    %3937 = vmatprep.subr.mxu0 0.0
    %3938 = vmatpush2.msra.mxu0 0.0
    %3939 = vmatprep.subr.mxu0 0.0
    %3940 = vmatpush2.msra.mxu0 0.0
    %3941 = vmatprep.subr.mxu0 0.0
    %3942 = vmatpush2.msra.mxu0 0.0
    %3943 = vmatprep.subr.mxu0 0.0
    %3944 = vmatpush2.msra.mxu0 0.0
    %3945 = vmatprep.subr.mxu0 0.0
    %3946 = vmatpush2.msra.mxu0 0.0
    %3947 = vmatprep.subr.mxu0 0.0
    %3948 = vmatpush2.msra.mxu0 0.0
    %3949 = vmatprep.subr.mxu0 0.0
    %3950 = vmatpush2.msra.mxu0 0.0
    %3951 = vmatprep.subr.mxu0 0.0
    %3952 = vmatpush2.msra.mxu0 0.0
    %3953 = vmatprep.mubr.f32.mxu0 0.0
    %3954 = vmatmul.mubr.f32.gmra.mxu0 %v3800
    %v3955 = vpop.f32.mrf.mxu0
    %v3956 = vadd.f32 0.0, %v3955
    %v3957 = vpop.f32.mrf.mxu0
    %v3958 = vadd.f32 0.0, %v3957
    %3959 = vdwg.mxu0
    %3960 = vmatprep.subr.mxu0 %v3888
    %3961 = vmatpush1.msra.mxu0 %v3887
    %3962 = vmatprep.subr.mxu0 %v3884
    %3963 = vmatpush1.msra.mxu0 %v3883
    %3964 = vmatprep.subr.mxu0 %v3880
    %3965 = vmatpush1.msra.mxu0 %v3879
    %3966 = vmatprep.subr.mxu0 %v3876
    %3967 = vmatpush1.msra.mxu0 %v3875
    %3968 = vmatprep.subr.mxu0 %v3872
    %3969 = vmatpush1.msra.mxu0 %v3871
    %3970 = vmatprep.subr.mxu0 %v3868
    %3971 = vmatpush1.msra.mxu0 %v3867
    %3972 = vmatprep.subr.mxu0 %v3864
    %3973 = vmatpush1.msra.mxu0 %v3863
    %3974 = vmatprep.subr.mxu0 %v3860
    %3975 = vmatpush1.msra.mxu0 %v3859
    %3976 = vmatprep.subr.mxu0 %v3856
    %3977 = vmatpush1.msra.mxu0 %v3855
    %3978 = vmatprep.subr.mxu0 %v3852
    %3979 = vmatpush1.msra.mxu0 %v3851
    %3980 = vmatprep.subr.mxu0 %v3848
    %3981 = vmatpush1.msra.mxu0 %v3847
    %3982 = vmatprep.subr.mxu0 %v3844
    %3983 = vmatpush1.msra.mxu0 %v3843
    %3984 = vmatprep.subr.mxu0 %v3840
    %3985 = vmatpush1.msra.mxu0 %v3839
    %3986 = vmatprep.subr.mxu0 %v3836
    %3987 = vmatpush1.msra.mxu0 %v3835
    %3988 = vmatprep.subr.mxu0 %v3832
    %3989 = vmatpush1.msra.mxu0 %v3831
    %3990 = vmatprep.subr.mxu0 %v3828
    %3991 = vmatpush1.msra.mxu0 %v3827
    %3992 = vmatprep.subr.mxu0 0.0
    %3993 = vmatpush2.msra.mxu0 0.0
    %3994 = vmatprep.subr.mxu0 0.0
    %3995 = vmatpush2.msra.mxu0 0.0
    %3996 = vmatprep.subr.mxu0 0.0
    %3997 = vmatpush2.msra.mxu0 0.0
    %3998 = vmatprep.subr.mxu0 0.0
    %3999 = vmatpush2.msra.mxu0 0.0
    %4000 = vmatprep.subr.mxu0 0.0
    %4001 = vmatpush2.msra.mxu0 0.0
    %4002 = vmatprep.subr.mxu0 0.0
    %4003 = vmatpush2.msra.mxu0 0.0
    %4004 = vmatprep.subr.mxu0 0.0
    %4005 = vmatpush2.msra.mxu0 0.0
    %4006 = vmatprep.subr.mxu0 0.0
    %4007 = vmatpush2.msra.mxu0 0.0
    %4008 = vmatprep.subr.mxu0 0.0
    %4009 = vmatpush2.msra.mxu0 0.0
    %4010 = vmatprep.subr.mxu0 0.0
    %4011 = vmatpush2.msra.mxu0 0.0
    %4012 = vmatprep.subr.mxu0 0.0
    %4013 = vmatpush2.msra.mxu0 0.0
    %4014 = vmatprep.subr.mxu0 0.0
    %4015 = vmatpush2.msra.mxu0 0.0
    %4016 = vmatprep.subr.mxu0 0.0
    %4017 = vmatpush2.msra.mxu0 0.0
    %4018 = vmatprep.subr.mxu0 0.0
    %4019 = vmatpush2.msra.mxu0 0.0
    %4020 = vmatprep.subr.mxu0 0.0
    %4021 = vmatpush2.msra.mxu0 0.0
    %4022 = vmatprep.subr.mxu0 0.0
    %4023 = vmatpush2.msra.mxu0 0.0
    %4024 = vmatprep.mubr.f32.mxu0 0.0
    %4025 = vmatmul.mubr.f32.gmra.mxu0 %v3800
    %v4026 = vpop.f32.mrf.mxu0
    %v4027 = vadd.f32 0.0, %v4026
    %v4028 = vpop.f32.mrf.mxu0
    %v4029 = vadd.f32 0.0, %v4028
    %4030 = vdwg.mxu0
    %v4035 = vcombine.low %v3956, %v3958
    %v4036 = vcombine.low %v4027, %v4029
    %v4038 = vunpack.c.l.s4 1966171168
    %v4039 = vunpack.c.0.s8 %v4038
    %v4040 = vlaneseq
    %v4041 = vshrl.u32 %v4040, 7
    %v4042 = vsub.s32 %v4039, %v4041
    %v4043 = vrot.slane %v4035, %v4042
    %v4045 = vunpack.c.l.s4 1966171168
    %v4046 = vunpack.c.0.s8 %v4045
    %v4047 = vlaneseq
    %v4048 = vshrl.u32 %v4047, 7
    %v4049 = vsub.s32 %v4046, %v4048
    %v4050 = vrot.slane %v4036, %v4049
    %v4051 = vcombine.low %v4043, %v4050
    %v4053 = vunpack.c.l.s4 1966171168
    %v4054 = vunpack.c.0.s8 %v4053
    %v4055 = vlaneseq
    %v4056 = vshrl.u32 %v4055, 7
    %v4057 = vsub.s32 %v4054, %v4056
    %v4058 = vrot.slane %v4051, %v4057
    %v4060 = vadd.f32 %v3824, %v4058
    %s4061 = scalar_lea.vmem [#allocation3], 1
    %v4062 = vld [vmem:[%s4061] ss:$8 sm:$0xf]
    %v4063 = vld [vmem:[#allocation13] sm:$0xff]
    %v4064 = vld [vmem:[#allocation13 + $0x8] sm:$0xff]
    %v4065 = vld [vmem:[#allocation13 + $0x10] sm:$0xff]
    %v4066 = vld [vmem:[#allocation13 + $0x18] sm:$0xff]
    %v4067 = vld [vmem:[#allocation13 + $0x20] sm:$0xff]
    %v4068 = vld [vmem:[#allocation13 + $0x28] sm:$0xff]
    %v4069 = vld [vmem:[#allocation13 + $0x30] sm:$0xff]
    %v4070 = vld [vmem:[#allocation13 + $0x38] sm:$0xff]
    %v4071 = vld [vmem:[#allocation13 + $0x40] sm:$0xff]
    %v4072 = vld [vmem:[#allocation13 + $0x48] sm:$0xff]
    %v4073 = vld [vmem:[#allocation13 + $0x50] sm:$0xff]
    %v4074 = vld [vmem:[#allocation13 + $0x58] sm:$0xff]
    %v4075 = vld [vmem:[#allocation13 + $0x60] sm:$0xff]
    %v4076 = vld [vmem:[#allocation13 + $0x68] sm:$0xff]
    %v4077 = vld [vmem:[#allocation13 + $0x70] sm:$0xff]
    %v4078 = vld [vmem:[#allocation13 + $0x78] sm:$0xff]
    %v4079 = vld [vmem:[#allocation13 + $0x80] sm:$0xff]
    %v4080 = vld [vmem:[#allocation13 + $0x88] sm:$0xff]
    %v4081 = vld [vmem:[#allocation13 + $0x90] sm:$0xff]
    %v4082 = vld [vmem:[#allocation13 + $0x98] sm:$0xff]
    %v4083 = vld [vmem:[#allocation13 + $0xa0] sm:$0xff]
    %v4084 = vld [vmem:[#allocation13 + $0xa8] sm:$0xff]
    %v4085 = vld [vmem:[#allocation13 + $0xb0] sm:$0xff]
    %v4086 = vld [vmem:[#allocation13 + $0xb8] sm:$0xff]
    %v4087 = vld [vmem:[#allocation13 + $0xc0] sm:$0xff]
    %v4088 = vld [vmem:[#allocation13 + $0xc8] sm:$0xff]
    %v4089 = vld [vmem:[#allocation13 + $0xd0] sm:$0xff]
    %v4090 = vld [vmem:[#allocation13 + $0xd8] sm:$0xff]
    %v4091 = vld [vmem:[#allocation13 + $0xe0] sm:$0xff]
    %v4092 = vld [vmem:[#allocation13 + $0xe8] sm:$0xff]
    %v4093 = vld [vmem:[#allocation13 + $0xf0] sm:$0xff]
    %v4094 = vld [vmem:[#allocation13 + $0xf8] sm:$0xff]
    %v4095 = vld [vmem:[#allocation13 + $0x100] sm:$0xff]
    %v4096 = vld [vmem:[#allocation13 + $0x108] sm:$0xff]
    %v4097 = vld [vmem:[#allocation13 + $0x110] sm:$0xff]
    %v4098 = vld [vmem:[#allocation13 + $0x118] sm:$0xff]
    %v4099 = vld [vmem:[#allocation13 + $0x120] sm:$0xff]
    %v4100 = vld [vmem:[#allocation13 + $0x128] sm:$0xff]
    %v4101 = vld [vmem:[#allocation13 + $0x130] sm:$0xff]
    %v4102 = vld [vmem:[#allocation13 + $0x138] sm:$0xff]
    %v4103 = vld [vmem:[#allocation13 + $0x140] sm:$0xff]
    %v4104 = vld [vmem:[#allocation13 + $0x148] sm:$0xff]
    %v4105 = vld [vmem:[#allocation13 + $0x150] sm:$0xff]
    %v4106 = vld [vmem:[#allocation13 + $0x158] sm:$0xff]
    %v4107 = vld [vmem:[#allocation13 + $0x160] sm:$0xff]
    %v4108 = vld [vmem:[#allocation13 + $0x168] sm:$0xff]
    %v4109 = vld [vmem:[#allocation13 + $0x170] sm:$0xff]
    %v4110 = vld [vmem:[#allocation13 + $0x178] sm:$0xff]
    %v4111 = vld [vmem:[#allocation13 + $0x180] sm:$0xff]
    %v4112 = vld [vmem:[#allocation13 + $0x188] sm:$0xff]
    %v4113 = vld [vmem:[#allocation13 + $0x190] sm:$0xff]
    %v4114 = vld [vmem:[#allocation13 + $0x198] sm:$0xff]
    %v4115 = vld [vmem:[#allocation13 + $0x1a0] sm:$0xff]
    %v4116 = vld [vmem:[#allocation13 + $0x1a8] sm:$0xff]
    %v4117 = vld [vmem:[#allocation13 + $0x1b0] sm:$0xff]
    %v4118 = vld [vmem:[#allocation13 + $0x1b8] sm:$0xff]
    %v4119 = vld [vmem:[#allocation13 + $0x1c0] sm:$0xff]
    %v4120 = vld [vmem:[#allocation13 + $0x1c8] sm:$0xff]
    %v4121 = vld [vmem:[#allocation13 + $0x1d0] sm:$0xff]
    %v4122 = vld [vmem:[#allocation13 + $0x1d8] sm:$0xff]
    %v4123 = vld [vmem:[#allocation13 + $0x1e0] sm:$0xff]
    %v4124 = vld [vmem:[#allocation13 + $0x1e8] sm:$0xff]
    %v4125 = vld [vmem:[#allocation13 + $0x1f0] sm:$0xff]
    %v4126 = vld [vmem:[#allocation13 + $0x1f8] sm:$0xff]
    %4127 = vmatprep.subr.mxu0 %v4124
    %4128 = vmatpush1.msra.mxu0 %v4123
    %4129 = vmatprep.subr.mxu0 %v4120
    %4130 = vmatpush1.msra.mxu0 %v4119
    %4131 = vmatprep.subr.mxu0 %v4116
    %4132 = vmatpush1.msra.mxu0 %v4115
    %4133 = vmatprep.subr.mxu0 %v4112
    %4134 = vmatpush1.msra.mxu0 %v4111
    %4135 = vmatprep.subr.mxu0 %v4108
    %4136 = vmatpush1.msra.mxu0 %v4107
    %4137 = vmatprep.subr.mxu0 %v4104
    %4138 = vmatpush1.msra.mxu0 %v4103
    %4139 = vmatprep.subr.mxu0 %v4100
    %4140 = vmatpush1.msra.mxu0 %v4099
    %4141 = vmatprep.subr.mxu0 %v4096
    %4142 = vmatpush1.msra.mxu0 %v4095
    %4143 = vmatprep.subr.mxu0 %v4092
    %4144 = vmatpush1.msra.mxu0 %v4091
    %4145 = vmatprep.subr.mxu0 %v4088
    %4146 = vmatpush1.msra.mxu0 %v4087
    %4147 = vmatprep.subr.mxu0 %v4084
    %4148 = vmatpush1.msra.mxu0 %v4083
    %4149 = vmatprep.subr.mxu0 %v4080
    %4150 = vmatpush1.msra.mxu0 %v4079
    %4151 = vmatprep.subr.mxu0 %v4076
    %4152 = vmatpush1.msra.mxu0 %v4075
    %4153 = vmatprep.subr.mxu0 %v4072
    %4154 = vmatpush1.msra.mxu0 %v4071
    %4155 = vmatprep.subr.mxu0 %v4068
    %4156 = vmatpush1.msra.mxu0 %v4067
    %4157 = vmatprep.subr.mxu0 %v4064
    %4158 = vmatpush1.msra.mxu0 %v4063
    %4159 = vmatprep.subr.mxu0 0.0
    %4160 = vmatpush2.msra.mxu0 0.0
    %4161 = vmatprep.subr.mxu0 0.0
    %4162 = vmatpush2.msra.mxu0 0.0
    %4163 = vmatprep.subr.mxu0 0.0
    %4164 = vmatpush2.msra.mxu0 0.0
    %4165 = vmatprep.subr.mxu0 0.0
    %4166 = vmatpush2.msra.mxu0 0.0
    %4167 = vmatprep.subr.mxu0 0.0
    %4168 = vmatpush2.msra.mxu0 0.0
    %4169 = vmatprep.subr.mxu0 0.0
    %4170 = vmatpush2.msra.mxu0 0.0
    %4171 = vmatprep.subr.mxu0 0.0
    %4172 = vmatpush2.msra.mxu0 0.0
    %4173 = vmatprep.subr.mxu0 0.0
    %4174 = vmatpush2.msra.mxu0 0.0
    %4175 = vmatprep.subr.mxu0 0.0
    %4176 = vmatpush2.msra.mxu0 0.0
    %4177 = vmatprep.subr.mxu0 0.0
    %4178 = vmatpush2.msra.mxu0 0.0
    %4179 = vmatprep.subr.mxu0 0.0
    %4180 = vmatpush2.msra.mxu0 0.0
    %4181 = vmatprep.subr.mxu0 0.0
    %4182 = vmatpush2.msra.mxu0 0.0
    %4183 = vmatprep.subr.mxu0 0.0
    %4184 = vmatpush2.msra.mxu0 0.0
    %4185 = vmatprep.subr.mxu0 0.0
    %4186 = vmatpush2.msra.mxu0 0.0
    %4187 = vmatprep.subr.mxu0 0.0
    %4188 = vmatpush2.msra.mxu0 0.0
    %4189 = vmatprep.subr.mxu0 0.0
    %4190 = vmatpush2.msra.mxu0 0.0
    %4191 = vmatprep.mubr.f32.mxu0 0.0
    %4192 = vmatmul.mubr.f32.gmra.mxu0 %v3820
    %v4193 = vpop.f32.mrf.mxu0
    %v4194 = vadd.f32 0.0, %v4193
    %v4195 = vpop.f32.mrf.mxu0
    %v4196 = vadd.f32 0.0, %v4195
    %4197 = vdwg.mxu0
    %4198 = vmatprep.subr.mxu0 %v4126
    %4199 = vmatpush1.msra.mxu0 %v4125
    %4200 = vmatprep.subr.mxu0 %v4122
    %4201 = vmatpush1.msra.mxu0 %v4121
    %4202 = vmatprep.subr.mxu0 %v4118
    %4203 = vmatpush1.msra.mxu0 %v4117
    %4204 = vmatprep.subr.mxu0 %v4114
    %4205 = vmatpush1.msra.mxu0 %v4113
    %4206 = vmatprep.subr.mxu0 %v4110
    %4207 = vmatpush1.msra.mxu0 %v4109
    %4208 = vmatprep.subr.mxu0 %v4106
    %4209 = vmatpush1.msra.mxu0 %v4105
    %4210 = vmatprep.subr.mxu0 %v4102
    %4211 = vmatpush1.msra.mxu0 %v4101
    %4212 = vmatprep.subr.mxu0 %v4098
    %4213 = vmatpush1.msra.mxu0 %v4097
    %4214 = vmatprep.subr.mxu0 %v4094
    %4215 = vmatpush1.msra.mxu0 %v4093
    %4216 = vmatprep.subr.mxu0 %v4090
    %4217 = vmatpush1.msra.mxu0 %v4089
    %4218 = vmatprep.subr.mxu0 %v4086
    %4219 = vmatpush1.msra.mxu0 %v4085
    %4220 = vmatprep.subr.mxu0 %v4082
    %4221 = vmatpush1.msra.mxu0 %v4081
    %4222 = vmatprep.subr.mxu0 %v4078
    %4223 = vmatpush1.msra.mxu0 %v4077
    %4224 = vmatprep.subr.mxu0 %v4074
    %4225 = vmatpush1.msra.mxu0 %v4073
    %4226 = vmatprep.subr.mxu0 %v4070
    %4227 = vmatpush1.msra.mxu0 %v4069
    %4228 = vmatprep.subr.mxu0 %v4066
    %4229 = vmatpush1.msra.mxu0 %v4065
    %4230 = vmatprep.subr.mxu0 0.0
    %4231 = vmatpush2.msra.mxu0 0.0
    %4232 = vmatprep.subr.mxu0 0.0
    %4233 = vmatpush2.msra.mxu0 0.0
    %4234 = vmatprep.subr.mxu0 0.0
    %4235 = vmatpush2.msra.mxu0 0.0
    %4236 = vmatprep.subr.mxu0 0.0
    %4237 = vmatpush2.msra.mxu0 0.0
    %4238 = vmatprep.subr.mxu0 0.0
    %4239 = vmatpush2.msra.mxu0 0.0
    %4240 = vmatprep.subr.mxu0 0.0
    %4241 = vmatpush2.msra.mxu0 0.0
    %4242 = vmatprep.subr.mxu0 0.0
    %4243 = vmatpush2.msra.mxu0 0.0
    %4244 = vmatprep.subr.mxu0 0.0
    %4245 = vmatpush2.msra.mxu0 0.0
    %4246 = vmatprep.subr.mxu0 0.0
    %4247 = vmatpush2.msra.mxu0 0.0
    %4248 = vmatprep.subr.mxu0 0.0
    %4249 = vmatpush2.msra.mxu0 0.0
    %4250 = vmatprep.subr.mxu0 0.0
    %4251 = vmatpush2.msra.mxu0 0.0
    %4252 = vmatprep.subr.mxu0 0.0
    %4253 = vmatpush2.msra.mxu0 0.0
    %4254 = vmatprep.subr.mxu0 0.0
    %4255 = vmatpush2.msra.mxu0 0.0
    %4256 = vmatprep.subr.mxu0 0.0
    %4257 = vmatpush2.msra.mxu0 0.0
    %4258 = vmatprep.subr.mxu0 0.0
    %4259 = vmatpush2.msra.mxu0 0.0
    %4260 = vmatprep.subr.mxu0 0.0
    %4261 = vmatpush2.msra.mxu0 0.0
    %4262 = vmatprep.mubr.f32.mxu0 0.0
    %4263 = vmatmul.mubr.f32.gmra.mxu0 %v3820
    %v4264 = vpop.f32.mrf.mxu0
    %v4265 = vadd.f32 0.0, %v4264
    %v4266 = vpop.f32.mrf.mxu0
    %v4267 = vadd.f32 0.0, %v4266
    %4268 = vdwg.mxu0
    %v4273 = vcombine.low %v4194, %v4196
    %v4274 = vcombine.low %v4265, %v4267
    %v4276 = vunpack.c.l.s4 1966171168
    %v4277 = vunpack.c.0.s8 %v4276
    %v4278 = vlaneseq
    %v4279 = vshrl.u32 %v4278, 7
    %v4280 = vsub.s32 %v4277, %v4279
    %v4281 = vrot.slane %v4273, %v4280
    %v4283 = vunpack.c.l.s4 1966171168
    %v4284 = vunpack.c.0.s8 %v4283
    %v4285 = vlaneseq
    %v4286 = vshrl.u32 %v4285, 7
    %v4287 = vsub.s32 %v4284, %v4286
    %v4288 = vrot.slane %v4274, %v4287
    %v4289 = vcombine.low %v4281, %v4288
    %v4291 = vunpack.c.l.s4 1966171168
    %v4292 = vunpack.c.0.s8 %v4291
    %v4293 = vlaneseq
    %v4294 = vshrl.u32 %v4293, 7
    %v4295 = vsub.s32 %v4292, %v4294
    %v4296 = vrot.slane %v4289, %v4295
    %v4298 = vadd.f32 %v4062, %v4296
    %v4299 = vxor.u32 %v4060, 2147483648
    %v4300 = vmul.f32 %v4299, 1.442695
    %v4301 = vpow.pop %v4300
    %v4302 = vadd.f32 %v4301, 1.0
    %v4303 = vrcp.pop %v4302
    %v4304 = vmul.f32 1.0, %v4303
    %v4306 = vrot.slane %v4060, 3
    %v4308 = vtanh.pop %v4306
    %v4310 = vrot.slane %v4304, 1
    %v4312 = vmul.f32 %v4310, %v3796
    %v4313 = vmul.f32 %v4304, %v4308
    %v4314 = vadd.f32 %v4312, %v4313
    %v4315 = vtanh.pop %v4314
    %v4316 = vrot.slane %v4304, 2
    %v4318 = vmul.f32 %v4316, %v4315
    %v4319 = vxor.u32 %v4298, 2147483648
    %v4320 = vmul.f32 %v4319, 1.442695
    %v4321 = vpow.pop %v4320
    %v4322 = vadd.f32 %v4321, 1.0
    %v4323 = vrcp.pop %v4322
    %v4324 = vmul.f32 1.0, %v4323
    %v4326 = vrot.slane %v4298, 3
    %v4328 = vtanh.pop %v4326
    %v4330 = vrot.slane %v4324, 1
    %v4332 = vmul.f32 %v4330, %v3816
    %v4333 = vmul.f32 %v4324, %v4328
    %v4334 = vadd.f32 %v4332, %v4333
    %v4335 = vtanh.pop %v4334
    %v4336 = vrot.slane %v4324, 2
    %v4338 = vmul.f32 %v4336, %v4335
    %4339 = vst [vmem:[#allocation4 + $0x6] sm:$0x1] %v4318
    %4340 = vst [vmem:[#allocation5 + $0x1] sm:$0x1] %v4338
    %s4341 = scalar_lea.vmem [#allocation2], 7
    %v4342 = vld [vmem:[%s4341] ss:$8 sm:$0xf]
    %v4343 = vld [vmem:[#allocation12] sm:$0xff]
    %v4344 = vld [vmem:[#allocation12 + $0x8] sm:$0xff]
    %v4345 = vld [vmem:[#allocation12 + $0x10] sm:$0xff]
    %v4346 = vld [vmem:[#allocation12 + $0x18] sm:$0xff]
    %v4347 = vld [vmem:[#allocation12 + $0x20] sm:$0xff]
    %v4348 = vld [vmem:[#allocation12 + $0x28] sm:$0xff]
    %v4349 = vld [vmem:[#allocation12 + $0x30] sm:$0xff]
    %v4350 = vld [vmem:[#allocation12 + $0x38] sm:$0xff]
    %v4351 = vld [vmem:[#allocation12 + $0x40] sm:$0xff]
    %v4352 = vld [vmem:[#allocation12 + $0x48] sm:$0xff]
    %v4353 = vld [vmem:[#allocation12 + $0x50] sm:$0xff]
    %v4354 = vld [vmem:[#allocation12 + $0x58] sm:$0xff]
    %v4355 = vld [vmem:[#allocation12 + $0x60] sm:$0xff]
    %v4356 = vld [vmem:[#allocation12 + $0x68] sm:$0xff]
    %v4357 = vld [vmem:[#allocation12 + $0x70] sm:$0xff]
    %v4358 = vld [vmem:[#allocation12 + $0x78] sm:$0xff]
    %v4359 = vld [vmem:[#allocation12 + $0x80] sm:$0xff]
    %v4360 = vld [vmem:[#allocation12 + $0x88] sm:$0xff]
    %v4361 = vld [vmem:[#allocation12 + $0x90] sm:$0xff]
    %v4362 = vld [vmem:[#allocation12 + $0x98] sm:$0xff]
    %v4363 = vld [vmem:[#allocation12 + $0xa0] sm:$0xff]
    %v4364 = vld [vmem:[#allocation12 + $0xa8] sm:$0xff]
    %v4365 = vld [vmem:[#allocation12 + $0xb0] sm:$0xff]
    %v4366 = vld [vmem:[#allocation12 + $0xb8] sm:$0xff]
    %v4367 = vld [vmem:[#allocation12 + $0xc0] sm:$0xff]
    %v4368 = vld [vmem:[#allocation12 + $0xc8] sm:$0xff]
    %v4369 = vld [vmem:[#allocation12 + $0xd0] sm:$0xff]
    %v4370 = vld [vmem:[#allocation12 + $0xd8] sm:$0xff]
    %v4371 = vld [vmem:[#allocation12 + $0xe0] sm:$0xff]
    %v4372 = vld [vmem:[#allocation12 + $0xe8] sm:$0xff]
    %v4373 = vld [vmem:[#allocation12 + $0xf0] sm:$0xff]
    %v4374 = vld [vmem:[#allocation12 + $0xf8] sm:$0xff]
    %v4375 = vld [vmem:[#allocation12 + $0x100] sm:$0xff]
    %v4376 = vld [vmem:[#allocation12 + $0x108] sm:$0xff]
    %v4377 = vld [vmem:[#allocation12 + $0x110] sm:$0xff]
    %v4378 = vld [vmem:[#allocation12 + $0x118] sm:$0xff]
    %v4379 = vld [vmem:[#allocation12 + $0x120] sm:$0xff]
    %v4380 = vld [vmem:[#allocation12 + $0x128] sm:$0xff]
    %v4381 = vld [vmem:[#allocation12 + $0x130] sm:$0xff]
    %v4382 = vld [vmem:[#allocation12 + $0x138] sm:$0xff]
    %v4383 = vld [vmem:[#allocation12 + $0x140] sm:$0xff]
    %v4384 = vld [vmem:[#allocation12 + $0x148] sm:$0xff]
    %v4385 = vld [vmem:[#allocation12 + $0x150] sm:$0xff]
    %v4386 = vld [vmem:[#allocation12 + $0x158] sm:$0xff]
    %v4387 = vld [vmem:[#allocation12 + $0x160] sm:$0xff]
    %v4388 = vld [vmem:[#allocation12 + $0x168] sm:$0xff]
    %v4389 = vld [vmem:[#allocation12 + $0x170] sm:$0xff]
    %v4390 = vld [vmem:[#allocation12 + $0x178] sm:$0xff]
    %v4391 = vld [vmem:[#allocation12 + $0x180] sm:$0xff]
    %v4392 = vld [vmem:[#allocation12 + $0x188] sm:$0xff]
    %v4393 = vld [vmem:[#allocation12 + $0x190] sm:$0xff]
    %v4394 = vld [vmem:[#allocation12 + $0x198] sm:$0xff]
    %v4395 = vld [vmem:[#allocation12 + $0x1a0] sm:$0xff]
    %v4396 = vld [vmem:[#allocation12 + $0x1a8] sm:$0xff]
    %v4397 = vld [vmem:[#allocation12 + $0x1b0] sm:$0xff]
    %v4398 = vld [vmem:[#allocation12 + $0x1b8] sm:$0xff]
    %v4399 = vld [vmem:[#allocation12 + $0x1c0] sm:$0xff]
    %v4400 = vld [vmem:[#allocation12 + $0x1c8] sm:$0xff]
    %v4401 = vld [vmem:[#allocation12 + $0x1d0] sm:$0xff]
    %v4402 = vld [vmem:[#allocation12 + $0x1d8] sm:$0xff]
    %v4403 = vld [vmem:[#allocation12 + $0x1e0] sm:$0xff]
    %v4404 = vld [vmem:[#allocation12 + $0x1e8] sm:$0xff]
    %v4405 = vld [vmem:[#allocation12 + $0x1f0] sm:$0xff]
    %v4406 = vld [vmem:[#allocation12 + $0x1f8] sm:$0xff]
    %4407 = vmatprep.subr.mxu0 %v4404
    %4408 = vmatpush1.msra.mxu0 %v4403
    %4409 = vmatprep.subr.mxu0 %v4400
    %4410 = vmatpush1.msra.mxu0 %v4399
    %4411 = vmatprep.subr.mxu0 %v4396
    %4412 = vmatpush1.msra.mxu0 %v4395
    %4413 = vmatprep.subr.mxu0 %v4392
    %4414 = vmatpush1.msra.mxu0 %v4391
    %4415 = vmatprep.subr.mxu0 %v4388
    %4416 = vmatpush1.msra.mxu0 %v4387
    %4417 = vmatprep.subr.mxu0 %v4384
    %4418 = vmatpush1.msra.mxu0 %v4383
    %4419 = vmatprep.subr.mxu0 %v4380
    %4420 = vmatpush1.msra.mxu0 %v4379
    %4421 = vmatprep.subr.mxu0 %v4376
    %4422 = vmatpush1.msra.mxu0 %v4375
    %4423 = vmatprep.subr.mxu0 %v4372
    %4424 = vmatpush1.msra.mxu0 %v4371
    %4425 = vmatprep.subr.mxu0 %v4368
    %4426 = vmatpush1.msra.mxu0 %v4367
    %4427 = vmatprep.subr.mxu0 %v4364
    %4428 = vmatpush1.msra.mxu0 %v4363
    %4429 = vmatprep.subr.mxu0 %v4360
    %4430 = vmatpush1.msra.mxu0 %v4359
    %4431 = vmatprep.subr.mxu0 %v4356
    %4432 = vmatpush1.msra.mxu0 %v4355
    %4433 = vmatprep.subr.mxu0 %v4352
    %4434 = vmatpush1.msra.mxu0 %v4351
    %4435 = vmatprep.subr.mxu0 %v4348
    %4436 = vmatpush1.msra.mxu0 %v4347
    %4437 = vmatprep.subr.mxu0 %v4344
    %4438 = vmatpush1.msra.mxu0 %v4343
    %4439 = vmatprep.subr.mxu0 0.0
    %4440 = vmatpush2.msra.mxu0 0.0
    %4441 = vmatprep.subr.mxu0 0.0
    %4442 = vmatpush2.msra.mxu0 0.0
    %4443 = vmatprep.subr.mxu0 0.0
    %4444 = vmatpush2.msra.mxu0 0.0
    %4445 = vmatprep.subr.mxu0 0.0
    %4446 = vmatpush2.msra.mxu0 0.0
    %4447 = vmatprep.subr.mxu0 0.0
    %4448 = vmatpush2.msra.mxu0 0.0
    %4449 = vmatprep.subr.mxu0 0.0
    %4450 = vmatpush2.msra.mxu0 0.0
    %4451 = vmatprep.subr.mxu0 0.0
    %4452 = vmatpush2.msra.mxu0 0.0
    %4453 = vmatprep.subr.mxu0 0.0
    %4454 = vmatpush2.msra.mxu0 0.0
    %4455 = vmatprep.subr.mxu0 0.0
    %4456 = vmatpush2.msra.mxu0 0.0
    %4457 = vmatprep.subr.mxu0 0.0
    %4458 = vmatpush2.msra.mxu0 0.0
    %4459 = vmatprep.subr.mxu0 0.0
    %4460 = vmatpush2.msra.mxu0 0.0
    %4461 = vmatprep.subr.mxu0 0.0
    %4462 = vmatpush2.msra.mxu0 0.0
    %4463 = vmatprep.subr.mxu0 0.0
    %4464 = vmatpush2.msra.mxu0 0.0
    %4465 = vmatprep.subr.mxu0 0.0
    %4466 = vmatpush2.msra.mxu0 0.0
    %4467 = vmatprep.subr.mxu0 0.0
    %4468 = vmatpush2.msra.mxu0 0.0
    %4469 = vmatprep.subr.mxu0 0.0
    %4470 = vmatpush2.msra.mxu0 0.0
    %4471 = vmatprep.mubr.f32.mxu0 0.0
    %4472 = vmatmul.mubr.f32.gmra.mxu0 %v4318
    %v4473 = vpop.f32.mrf.mxu0
    %v4474 = vadd.f32 0.0, %v4473
    %v4475 = vpop.f32.mrf.mxu0
    %v4476 = vadd.f32 0.0, %v4475
    %4477 = vdwg.mxu0
    %4478 = vmatprep.subr.mxu0 %v4406
    %4479 = vmatpush1.msra.mxu0 %v4405
    %4480 = vmatprep.subr.mxu0 %v4402
    %4481 = vmatpush1.msra.mxu0 %v4401
    %4482 = vmatprep.subr.mxu0 %v4398
    %4483 = vmatpush1.msra.mxu0 %v4397
    %4484 = vmatprep.subr.mxu0 %v4394
    %4485 = vmatpush1.msra.mxu0 %v4393
    %4486 = vmatprep.subr.mxu0 %v4390
    %4487 = vmatpush1.msra.mxu0 %v4389
    %4488 = vmatprep.subr.mxu0 %v4386
    %4489 = vmatpush1.msra.mxu0 %v4385
    %4490 = vmatprep.subr.mxu0 %v4382
    %4491 = vmatpush1.msra.mxu0 %v4381
    %4492 = vmatprep.subr.mxu0 %v4378
    %4493 = vmatpush1.msra.mxu0 %v4377
    %4494 = vmatprep.subr.mxu0 %v4374
    %4495 = vmatpush1.msra.mxu0 %v4373
    %4496 = vmatprep.subr.mxu0 %v4370
    %4497 = vmatpush1.msra.mxu0 %v4369
    %4498 = vmatprep.subr.mxu0 %v4366
    %4499 = vmatpush1.msra.mxu0 %v4365
    %4500 = vmatprep.subr.mxu0 %v4362
    %4501 = vmatpush1.msra.mxu0 %v4361
    %4502 = vmatprep.subr.mxu0 %v4358
    %4503 = vmatpush1.msra.mxu0 %v4357
    %4504 = vmatprep.subr.mxu0 %v4354
    %4505 = vmatpush1.msra.mxu0 %v4353
    %4506 = vmatprep.subr.mxu0 %v4350
    %4507 = vmatpush1.msra.mxu0 %v4349
    %4508 = vmatprep.subr.mxu0 %v4346
    %4509 = vmatpush1.msra.mxu0 %v4345
    %4510 = vmatprep.subr.mxu0 0.0
    %4511 = vmatpush2.msra.mxu0 0.0
    %4512 = vmatprep.subr.mxu0 0.0
    %4513 = vmatpush2.msra.mxu0 0.0
    %4514 = vmatprep.subr.mxu0 0.0
    %4515 = vmatpush2.msra.mxu0 0.0
    %4516 = vmatprep.subr.mxu0 0.0
    %4517 = vmatpush2.msra.mxu0 0.0
    %4518 = vmatprep.subr.mxu0 0.0
    %4519 = vmatpush2.msra.mxu0 0.0
    %4520 = vmatprep.subr.mxu0 0.0
    %4521 = vmatpush2.msra.mxu0 0.0
    %4522 = vmatprep.subr.mxu0 0.0
    %4523 = vmatpush2.msra.mxu0 0.0
    %4524 = vmatprep.subr.mxu0 0.0
    %4525 = vmatpush2.msra.mxu0 0.0
    %4526 = vmatprep.subr.mxu0 0.0
    %4527 = vmatpush2.msra.mxu0 0.0
    %4528 = vmatprep.subr.mxu0 0.0
    %4529 = vmatpush2.msra.mxu0 0.0
    %4530 = vmatprep.subr.mxu0 0.0
    %4531 = vmatpush2.msra.mxu0 0.0
    %4532 = vmatprep.subr.mxu0 0.0
    %4533 = vmatpush2.msra.mxu0 0.0
    %4534 = vmatprep.subr.mxu0 0.0
    %4535 = vmatpush2.msra.mxu0 0.0
    %4536 = vmatprep.subr.mxu0 0.0
    %4537 = vmatpush2.msra.mxu0 0.0
    %4538 = vmatprep.subr.mxu0 0.0
    %4539 = vmatpush2.msra.mxu0 0.0
    %4540 = vmatprep.subr.mxu0 0.0
    %4541 = vmatpush2.msra.mxu0 0.0
    %4542 = vmatprep.mubr.f32.mxu0 0.0
    %4543 = vmatmul.mubr.f32.gmra.mxu0 %v4318
    %v4544 = vpop.f32.mrf.mxu0
    %v4545 = vadd.f32 0.0, %v4544
    %v4546 = vpop.f32.mrf.mxu0
    %v4547 = vadd.f32 0.0, %v4546
    %4548 = vdwg.mxu0
    %v4553 = vcombine.low %v4474, %v4476
    %v4554 = vcombine.low %v4545, %v4547
    %v4556 = vunpack.c.l.s4 1966171168
    %v4557 = vunpack.c.0.s8 %v4556
    %v4558 = vlaneseq
    %v4559 = vshrl.u32 %v4558, 7
    %v4560 = vsub.s32 %v4557, %v4559
    %v4561 = vrot.slane %v4553, %v4560
    %v4563 = vunpack.c.l.s4 1966171168
    %v4564 = vunpack.c.0.s8 %v4563
    %v4565 = vlaneseq
    %v4566 = vshrl.u32 %v4565, 7
    %v4567 = vsub.s32 %v4564, %v4566
    %v4568 = vrot.slane %v4554, %v4567
    %v4569 = vcombine.low %v4561, %v4568
    %v4571 = vunpack.c.l.s4 1966171168
    %v4572 = vunpack.c.0.s8 %v4571
    %v4573 = vlaneseq
    %v4574 = vshrl.u32 %v4573, 7
    %v4575 = vsub.s32 %v4572, %v4574
    %v4576 = vrot.slane %v4569, %v4575
    %v4578 = vadd.f32 %v4342, %v4576
    %v4579 = vld [vmem:[#allocation3] ss:$8 sm:$0xf]
    %v4580 = vld [vmem:[#allocation13] sm:$0xff]
    %v4581 = vld [vmem:[#allocation13 + $0x8] sm:$0xff]
    %v4582 = vld [vmem:[#allocation13 + $0x10] sm:$0xff]
    %v4583 = vld [vmem:[#allocation13 + $0x18] sm:$0xff]
    %v4584 = vld [vmem:[#allocation13 + $0x20] sm:$0xff]
    %v4585 = vld [vmem:[#allocation13 + $0x28] sm:$0xff]
    %v4586 = vld [vmem:[#allocation13 + $0x30] sm:$0xff]
    %v4587 = vld [vmem:[#allocation13 + $0x38] sm:$0xff]
    %v4588 = vld [vmem:[#allocation13 + $0x40] sm:$0xff]
    %v4589 = vld [vmem:[#allocation13 + $0x48] sm:$0xff]
    %v4590 = vld [vmem:[#allocation13 + $0x50] sm:$0xff]
    %v4591 = vld [vmem:[#allocation13 + $0x58] sm:$0xff]
    %v4592 = vld [vmem:[#allocation13 + $0x60] sm:$0xff]
    %v4593 = vld [vmem:[#allocation13 + $0x68] sm:$0xff]
    %v4594 = vld [vmem:[#allocation13 + $0x70] sm:$0xff]
    %v4595 = vld [vmem:[#allocation13 + $0x78] sm:$0xff]
    %v4596 = vld [vmem:[#allocation13 + $0x80] sm:$0xff]
    %v4597 = vld [vmem:[#allocation13 + $0x88] sm:$0xff]
    %v4598 = vld [vmem:[#allocation13 + $0x90] sm:$0xff]
    %v4599 = vld [vmem:[#allocation13 + $0x98] sm:$0xff]
    %v4600 = vld [vmem:[#allocation13 + $0xa0] sm:$0xff]
    %v4601 = vld [vmem:[#allocation13 + $0xa8] sm:$0xff]
    %v4602 = vld [vmem:[#allocation13 + $0xb0] sm:$0xff]
    %v4603 = vld [vmem:[#allocation13 + $0xb8] sm:$0xff]
    %v4604 = vld [vmem:[#allocation13 + $0xc0] sm:$0xff]
    %v4605 = vld [vmem:[#allocation13 + $0xc8] sm:$0xff]
    %v4606 = vld [vmem:[#allocation13 + $0xd0] sm:$0xff]
    %v4607 = vld [vmem:[#allocation13 + $0xd8] sm:$0xff]
    %v4608 = vld [vmem:[#allocation13 + $0xe0] sm:$0xff]
    %v4609 = vld [vmem:[#allocation13 + $0xe8] sm:$0xff]
    %v4610 = vld [vmem:[#allocation13 + $0xf0] sm:$0xff]
    %v4611 = vld [vmem:[#allocation13 + $0xf8] sm:$0xff]
    %v4612 = vld [vmem:[#allocation13 + $0x100] sm:$0xff]
    %v4613 = vld [vmem:[#allocation13 + $0x108] sm:$0xff]
    %v4614 = vld [vmem:[#allocation13 + $0x110] sm:$0xff]
    %v4615 = vld [vmem:[#allocation13 + $0x118] sm:$0xff]
    %v4616 = vld [vmem:[#allocation13 + $0x120] sm:$0xff]
    %v4617 = vld [vmem:[#allocation13 + $0x128] sm:$0xff]
    %v4618 = vld [vmem:[#allocation13 + $0x130] sm:$0xff]
    %v4619 = vld [vmem:[#allocation13 + $0x138] sm:$0xff]
    %v4620 = vld [vmem:[#allocation13 + $0x140] sm:$0xff]
    %v4621 = vld [vmem:[#allocation13 + $0x148] sm:$0xff]
    %v4622 = vld [vmem:[#allocation13 + $0x150] sm:$0xff]
    %v4623 = vld [vmem:[#allocation13 + $0x158] sm:$0xff]
    %v4624 = vld [vmem:[#allocation13 + $0x160] sm:$0xff]
    %v4625 = vld [vmem:[#allocation13 + $0x168] sm:$0xff]
    %v4626 = vld [vmem:[#allocation13 + $0x170] sm:$0xff]
    %v4627 = vld [vmem:[#allocation13 + $0x178] sm:$0xff]
    %v4628 = vld [vmem:[#allocation13 + $0x180] sm:$0xff]
    %v4629 = vld [vmem:[#allocation13 + $0x188] sm:$0xff]
    %v4630 = vld [vmem:[#allocation13 + $0x190] sm:$0xff]
    %v4631 = vld [vmem:[#allocation13 + $0x198] sm:$0xff]
    %v4632 = vld [vmem:[#allocation13 + $0x1a0] sm:$0xff]
    %v4633 = vld [vmem:[#allocation13 + $0x1a8] sm:$0xff]
    %v4634 = vld [vmem:[#allocation13 + $0x1b0] sm:$0xff]
    %v4635 = vld [vmem:[#allocation13 + $0x1b8] sm:$0xff]
    %v4636 = vld [vmem:[#allocation13 + $0x1c0] sm:$0xff]
    %v4637 = vld [vmem:[#allocation13 + $0x1c8] sm:$0xff]
    %v4638 = vld [vmem:[#allocation13 + $0x1d0] sm:$0xff]
    %v4639 = vld [vmem:[#allocation13 + $0x1d8] sm:$0xff]
    %v4640 = vld [vmem:[#allocation13 + $0x1e0] sm:$0xff]
    %v4641 = vld [vmem:[#allocation13 + $0x1e8] sm:$0xff]
    %v4642 = vld [vmem:[#allocation13 + $0x1f0] sm:$0xff]
    %v4643 = vld [vmem:[#allocation13 + $0x1f8] sm:$0xff]
    %4644 = vmatprep.subr.mxu0 %v4641
    %4645 = vmatpush1.msra.mxu0 %v4640
    %4646 = vmatprep.subr.mxu0 %v4637
    %4647 = vmatpush1.msra.mxu0 %v4636
    %4648 = vmatprep.subr.mxu0 %v4633
    %4649 = vmatpush1.msra.mxu0 %v4632
    %4650 = vmatprep.subr.mxu0 %v4629
    %4651 = vmatpush1.msra.mxu0 %v4628
    %4652 = vmatprep.subr.mxu0 %v4625
    %4653 = vmatpush1.msra.mxu0 %v4624
    %4654 = vmatprep.subr.mxu0 %v4621
    %4655 = vmatpush1.msra.mxu0 %v4620
    %4656 = vmatprep.subr.mxu0 %v4617
    %4657 = vmatpush1.msra.mxu0 %v4616
    %4658 = vmatprep.subr.mxu0 %v4613
    %4659 = vmatpush1.msra.mxu0 %v4612
    %4660 = vmatprep.subr.mxu0 %v4609
    %4661 = vmatpush1.msra.mxu0 %v4608
    %4662 = vmatprep.subr.mxu0 %v4605
    %4663 = vmatpush1.msra.mxu0 %v4604
    %4664 = vmatprep.subr.mxu0 %v4601
    %4665 = vmatpush1.msra.mxu0 %v4600
    %4666 = vmatprep.subr.mxu0 %v4597
    %4667 = vmatpush1.msra.mxu0 %v4596
    %4668 = vmatprep.subr.mxu0 %v4593
    %4669 = vmatpush1.msra.mxu0 %v4592
    %4670 = vmatprep.subr.mxu0 %v4589
    %4671 = vmatpush1.msra.mxu0 %v4588
    %4672 = vmatprep.subr.mxu0 %v4585
    %4673 = vmatpush1.msra.mxu0 %v4584
    %4674 = vmatprep.subr.mxu0 %v4581
    %4675 = vmatpush1.msra.mxu0 %v4580
    %4676 = vmatprep.subr.mxu0 0.0
    %4677 = vmatpush2.msra.mxu0 0.0
    %4678 = vmatprep.subr.mxu0 0.0
    %4679 = vmatpush2.msra.mxu0 0.0
    %4680 = vmatprep.subr.mxu0 0.0
    %4681 = vmatpush2.msra.mxu0 0.0
    %4682 = vmatprep.subr.mxu0 0.0
    %4683 = vmatpush2.msra.mxu0 0.0
    %4684 = vmatprep.subr.mxu0 0.0
    %4685 = vmatpush2.msra.mxu0 0.0
    %4686 = vmatprep.subr.mxu0 0.0
    %4687 = vmatpush2.msra.mxu0 0.0
    %4688 = vmatprep.subr.mxu0 0.0
    %4689 = vmatpush2.msra.mxu0 0.0
    %4690 = vmatprep.subr.mxu0 0.0
    %4691 = vmatpush2.msra.mxu0 0.0
    %4692 = vmatprep.subr.mxu0 0.0
    %4693 = vmatpush2.msra.mxu0 0.0
    %4694 = vmatprep.subr.mxu0 0.0
    %4695 = vmatpush2.msra.mxu0 0.0
    %4696 = vmatprep.subr.mxu0 0.0
    %4697 = vmatpush2.msra.mxu0 0.0
    %4698 = vmatprep.subr.mxu0 0.0
    %4699 = vmatpush2.msra.mxu0 0.0
    %4700 = vmatprep.subr.mxu0 0.0
    %4701 = vmatpush2.msra.mxu0 0.0
    %4702 = vmatprep.subr.mxu0 0.0
    %4703 = vmatpush2.msra.mxu0 0.0
    %4704 = vmatprep.subr.mxu0 0.0
    %4705 = vmatpush2.msra.mxu0 0.0
    %4706 = vmatprep.subr.mxu0 0.0
    %4707 = vmatpush2.msra.mxu0 0.0
    %4708 = vmatprep.mubr.f32.mxu0 0.0
    %4709 = vmatmul.mubr.f32.gmra.mxu0 %v4338
    %v4710 = vpop.f32.mrf.mxu0
    %v4711 = vadd.f32 0.0, %v4710
    %v4712 = vpop.f32.mrf.mxu0
    %v4713 = vadd.f32 0.0, %v4712
    %4714 = vdwg.mxu0
    %4715 = vmatprep.subr.mxu0 %v4643
    %4716 = vmatpush1.msra.mxu0 %v4642
    %4717 = vmatprep.subr.mxu0 %v4639
    %4718 = vmatpush1.msra.mxu0 %v4638
    %4719 = vmatprep.subr.mxu0 %v4635
    %4720 = vmatpush1.msra.mxu0 %v4634
    %4721 = vmatprep.subr.mxu0 %v4631
    %4722 = vmatpush1.msra.mxu0 %v4630
    %4723 = vmatprep.subr.mxu0 %v4627
    %4724 = vmatpush1.msra.mxu0 %v4626
    %4725 = vmatprep.subr.mxu0 %v4623
    %4726 = vmatpush1.msra.mxu0 %v4622
    %4727 = vmatprep.subr.mxu0 %v4619
    %4728 = vmatpush1.msra.mxu0 %v4618
    %4729 = vmatprep.subr.mxu0 %v4615
    %4730 = vmatpush1.msra.mxu0 %v4614
    %4731 = vmatprep.subr.mxu0 %v4611
    %4732 = vmatpush1.msra.mxu0 %v4610
    %4733 = vmatprep.subr.mxu0 %v4607
    %4734 = vmatpush1.msra.mxu0 %v4606
    %4735 = vmatprep.subr.mxu0 %v4603
    %4736 = vmatpush1.msra.mxu0 %v4602
    %4737 = vmatprep.subr.mxu0 %v4599
    %4738 = vmatpush1.msra.mxu0 %v4598
    %4739 = vmatprep.subr.mxu0 %v4595
    %4740 = vmatpush1.msra.mxu0 %v4594
    %4741 = vmatprep.subr.mxu0 %v4591
    %4742 = vmatpush1.msra.mxu0 %v4590
    %4743 = vmatprep.subr.mxu0 %v4587
    %4744 = vmatpush1.msra.mxu0 %v4586
    %4745 = vmatprep.subr.mxu0 %v4583
    %4746 = vmatpush1.msra.mxu0 %v4582
    %4747 = vmatprep.subr.mxu0 0.0
    %4748 = vmatpush2.msra.mxu0 0.0
    %4749 = vmatprep.subr.mxu0 0.0
    %4750 = vmatpush2.msra.mxu0 0.0
    %4751 = vmatprep.subr.mxu0 0.0
    %4752 = vmatpush2.msra.mxu0 0.0
    %4753 = vmatprep.subr.mxu0 0.0
    %4754 = vmatpush2.msra.mxu0 0.0
    %4755 = vmatprep.subr.mxu0 0.0
    %4756 = vmatpush2.msra.mxu0 0.0
    %4757 = vmatprep.subr.mxu0 0.0
    %4758 = vmatpush2.msra.mxu0 0.0
    %4759 = vmatprep.subr.mxu0 0.0
    %4760 = vmatpush2.msra.mxu0 0.0
    %4761 = vmatprep.subr.mxu0 0.0
    %4762 = vmatpush2.msra.mxu0 0.0
    %4763 = vmatprep.subr.mxu0 0.0
    %4764 = vmatpush2.msra.mxu0 0.0
    %4765 = vmatprep.subr.mxu0 0.0
    %4766 = vmatpush2.msra.mxu0 0.0
    %4767 = vmatprep.subr.mxu0 0.0
    %4768 = vmatpush2.msra.mxu0 0.0
    %4769 = vmatprep.subr.mxu0 0.0
    %4770 = vmatpush2.msra.mxu0 0.0
    %4771 = vmatprep.subr.mxu0 0.0
    %4772 = vmatpush2.msra.mxu0 0.0
    %4773 = vmatprep.subr.mxu0 0.0
    %4774 = vmatpush2.msra.mxu0 0.0
    %4775 = vmatprep.subr.mxu0 0.0
    %4776 = vmatpush2.msra.mxu0 0.0
    %4777 = vmatprep.subr.mxu0 0.0
    %4778 = vmatpush2.msra.mxu0 0.0
    %4779 = vmatprep.mubr.f32.mxu0 0.0
    %4780 = vmatmul.mubr.f32.gmra.mxu0 %v4338
    %v4781 = vpop.f32.mrf.mxu0
    %v4782 = vadd.f32 0.0, %v4781
    %v4783 = vpop.f32.mrf.mxu0
    %v4784 = vadd.f32 0.0, %v4783
    %4785 = vdwg.mxu0
    %v4790 = vcombine.low %v4711, %v4713
    %v4791 = vcombine.low %v4782, %v4784
    %v4793 = vunpack.c.l.s4 1966171168
    %v4794 = vunpack.c.0.s8 %v4793
    %v4795 = vlaneseq
    %v4796 = vshrl.u32 %v4795, 7
    %v4797 = vsub.s32 %v4794, %v4796
    %v4798 = vrot.slane %v4790, %v4797
    %v4800 = vunpack.c.l.s4 1966171168
    %v4801 = vunpack.c.0.s8 %v4800
    %v4802 = vlaneseq
    %v4803 = vshrl.u32 %v4802, 7
    %v4804 = vsub.s32 %v4801, %v4803
    %v4805 = vrot.slane %v4791, %v4804
    %v4806 = vcombine.low %v4798, %v4805
    %v4808 = vunpack.c.l.s4 1966171168
    %v4809 = vunpack.c.0.s8 %v4808
    %v4810 = vlaneseq
    %v4811 = vshrl.u32 %v4810, 7
    %v4812 = vsub.s32 %v4809, %v4811
    %v4813 = vrot.slane %v4806, %v4812
    %v4815 = vadd.f32 %v4579, %v4813
    %v4816 = vxor.u32 %v4578, 2147483648
    %v4817 = vmul.f32 %v4816, 1.442695
    %v4818 = vpow.pop %v4817
    %v4819 = vadd.f32 %v4818, 1.0
    %v4820 = vrcp.pop %v4819
    %v4821 = vmul.f32 1.0, %v4820
    %v4823 = vrot.slane %v4578, 3
    %v4825 = vtanh.pop %v4823
    %v4827 = vrot.slane %v4821, 1
    %v4829 = vmul.f32 %v4827, %v4314
    %v4830 = vmul.f32 %v4821, %v4825
    %v4831 = vadd.f32 %v4829, %v4830
    %v4832 = vtanh.pop %v4831
    %v4833 = vrot.slane %v4821, 2
    %v4835 = vmul.f32 %v4833, %v4832
    %v4836 = vxor.u32 %v4815, 2147483648
    %v4837 = vmul.f32 %v4836, 1.442695
    %v4838 = vpow.pop %v4837
    %v4839 = vadd.f32 %v4838, 1.0
    %v4840 = vrcp.pop %v4839
    %v4841 = vmul.f32 1.0, %v4840
    %v4843 = vrot.slane %v4815, 3
    %v4845 = vtanh.pop %v4843
    %v4847 = vrot.slane %v4841, 1
    %v4849 = vmul.f32 %v4847, %v4334
    %v4850 = vmul.f32 %v4841, %v4845
    %v4851 = vadd.f32 %v4849, %v4850
    %v4852 = vtanh.pop %v4851
    %v4853 = vrot.slane %v4841, 2
    %v4855 = vmul.f32 %v4853, %v4852
    %4856 = vst [vmem:[#allocation4 + $0x7] sm:$0x1] %v4835
    %4857 = vst [vmem:[#allocation5] sm:$0x1] %v4855
    %v4858 = vld [vmem:[#allocation4] sm:$0xff]
    %v4859 = vld [vmem:[#allocation15] sm:$0xff]
    %v4860 = vld [vmem:[#allocation15 + $0x8] sm:$0xff]
    %v4861 = vld [vmem:[#allocation15 + $0x10] sm:$0xff]
    %v4862 = vld [vmem:[#allocation15 + $0x18] sm:$0xff]
    %v4863 = vld [vmem:[#allocation15 + $0x20] sm:$0xff]
    %v4864 = vld [vmem:[#allocation15 + $0x28] sm:$0xff]
    %v4865 = vld [vmem:[#allocation15 + $0x30] sm:$0xff]
    %v4866 = vld [vmem:[#allocation15 + $0x38] sm:$0xff]
    %v4867 = vld [vmem:[#allocation15 + $0x40] sm:$0xff]
    %v4868 = vld [vmem:[#allocation15 + $0x48] sm:$0xff]
    %v4869 = vld [vmem:[#allocation15 + $0x50] sm:$0xff]
    %v4870 = vld [vmem:[#allocation15 + $0x58] sm:$0xff]
    %v4871 = vld [vmem:[#allocation15 + $0x60] sm:$0xff]
    %v4872 = vld [vmem:[#allocation15 + $0x68] sm:$0xff]
    %v4873 = vld [vmem:[#allocation15 + $0x70] sm:$0xff]
    %v4874 = vld [vmem:[#allocation15 + $0x78] sm:$0xff]
    %v4875 = vld [vmem:[#allocation5] sm:$0xff]
    %v4876 = vld [vmem:[#allocation16] sm:$0xff]
    %v4877 = vld [vmem:[#allocation16 + $0x8] sm:$0xff]
    %v4878 = vld [vmem:[#allocation16 + $0x10] sm:$0xff]
    %v4879 = vld [vmem:[#allocation16 + $0x18] sm:$0xff]
    %v4880 = vld [vmem:[#allocation16 + $0x20] sm:$0xff]
    %v4881 = vld [vmem:[#allocation16 + $0x28] sm:$0xff]
    %v4882 = vld [vmem:[#allocation16 + $0x30] sm:$0xff]
    %v4883 = vld [vmem:[#allocation16 + $0x38] sm:$0xff]
    %v4884 = vld [vmem:[#allocation16 + $0x40] sm:$0xff]
    %v4885 = vld [vmem:[#allocation16 + $0x48] sm:$0xff]
    %v4886 = vld [vmem:[#allocation16 + $0x50] sm:$0xff]
    %v4887 = vld [vmem:[#allocation16 + $0x58] sm:$0xff]
    %v4888 = vld [vmem:[#allocation16 + $0x60] sm:$0xff]
    %v4889 = vld [vmem:[#allocation16 + $0x68] sm:$0xff]
    %v4890 = vld [vmem:[#allocation16 + $0x70] sm:$0xff]
    %v4891 = vld [vmem:[#allocation16 + $0x78] sm:$0xff]
    %4892 = vmatprep.subr.mxu0 0.0
    %4893 = vmatpush1.msra.mxu0 %v4891
    %4894 = vmatprep.subr.mxu0 0.0
    %4895 = vmatpush1.msra.mxu0 %v4890
    %4896 = vmatprep.subr.mxu0 0.0
    %4897 = vmatpush1.msra.mxu0 %v4889
    %4898 = vmatprep.subr.mxu0 0.0
    %4899 = vmatpush1.msra.mxu0 %v4888
    %4900 = vmatprep.subr.mxu0 0.0
    %4901 = vmatpush1.msra.mxu0 %v4887
    %4902 = vmatprep.subr.mxu0 0.0
    %4903 = vmatpush1.msra.mxu0 %v4886
    %4904 = vmatprep.subr.mxu0 0.0
    %4905 = vmatpush1.msra.mxu0 %v4885
    %4906 = vmatprep.subr.mxu0 0.0
    %4907 = vmatpush1.msra.mxu0 %v4884
    %4908 = vmatprep.subr.mxu0 0.0
    %4909 = vmatpush1.msra.mxu0 %v4883
    %4910 = vmatprep.subr.mxu0 0.0
    %4911 = vmatpush1.msra.mxu0 %v4882
    %4912 = vmatprep.subr.mxu0 0.0
    %4913 = vmatpush1.msra.mxu0 %v4881
    %4914 = vmatprep.subr.mxu0 0.0
    %4915 = vmatpush1.msra.mxu0 %v4880
    %4916 = vmatprep.subr.mxu0 0.0
    %4917 = vmatpush1.msra.mxu0 %v4879
    %4918 = vmatprep.subr.mxu0 0.0
    %4919 = vmatpush1.msra.mxu0 %v4878
    %4920 = vmatprep.subr.mxu0 0.0
    %4921 = vmatpush1.msra.mxu0 %v4877
    %4922 = vmatprep.subr.mxu0 0.0
    %4923 = vmatpush1.msra.mxu0 %v4876
    %4924 = vmatprep.subr.mxu0 0.0
    %4925 = vmatpush2.msra.mxu0 0.0
    %4926 = vmatprep.subr.mxu0 0.0
    %4927 = vmatpush2.msra.mxu0 0.0
    %4928 = vmatprep.subr.mxu0 0.0
    %4929 = vmatpush2.msra.mxu0 0.0
    %4930 = vmatprep.subr.mxu0 0.0
    %4931 = vmatpush2.msra.mxu0 0.0
    %4932 = vmatprep.subr.mxu0 0.0
    %4933 = vmatpush2.msra.mxu0 0.0
    %4934 = vmatprep.subr.mxu0 0.0
    %4935 = vmatpush2.msra.mxu0 0.0
    %4936 = vmatprep.subr.mxu0 0.0
    %4937 = vmatpush2.msra.mxu0 0.0
    %4938 = vmatprep.subr.mxu0 0.0
    %4939 = vmatpush2.msra.mxu0 0.0
    %4940 = vmatprep.subr.mxu0 0.0
    %4941 = vmatpush2.msra.mxu0 0.0
    %4942 = vmatprep.subr.mxu0 0.0
    %4943 = vmatpush2.msra.mxu0 0.0
    %4944 = vmatprep.subr.mxu0 0.0
    %4945 = vmatpush2.msra.mxu0 0.0
    %4946 = vmatprep.subr.mxu0 0.0
    %4947 = vmatpush2.msra.mxu0 0.0
    %4948 = vmatprep.subr.mxu0 0.0
    %4949 = vmatpush2.msra.mxu0 0.0
    %4950 = vmatprep.subr.mxu0 0.0
    %4951 = vmatpush2.msra.mxu0 0.0
    %4952 = vmatprep.subr.mxu0 0.0
    %4953 = vmatpush2.msra.mxu0 0.0
    %4954 = vmatprep.subr.mxu0 0.0
    %4955 = vmatpush2.msra.mxu0 0.0
    %4956 = vmatprep.mubr.f32.mxu0 0.0
    %4957 = vmatmul.mubr.f32.gmra.mxu0 %v4875
    %v4958 = vpop.f32.mrf.mxu0
    %v4959 = vadd.f32 0.0, %v4958
    %v4960 = vpop.f32.mrf.mxu0
    %4961 = vdwg.mxu0
    %4962 = vmatprep.subr.mxu0 0.0
    %4963 = vmatpush1.msra.mxu0 %v4874
    %4964 = vmatprep.subr.mxu0 0.0
    %4965 = vmatpush1.msra.mxu0 %v4873
    %4966 = vmatprep.subr.mxu0 0.0
    %4967 = vmatpush1.msra.mxu0 %v4872
    %4968 = vmatprep.subr.mxu0 0.0
    %4969 = vmatpush1.msra.mxu0 %v4871
    %4970 = vmatprep.subr.mxu0 0.0
    %4971 = vmatpush1.msra.mxu0 %v4870
    %4972 = vmatprep.subr.mxu0 0.0
    %4973 = vmatpush1.msra.mxu0 %v4869
    %4974 = vmatprep.subr.mxu0 0.0
    %4975 = vmatpush1.msra.mxu0 %v4868
    %4976 = vmatprep.subr.mxu0 0.0
    %4977 = vmatpush1.msra.mxu0 %v4867
    %4978 = vmatprep.subr.mxu0 0.0
    %4979 = vmatpush1.msra.mxu0 %v4866
    %4980 = vmatprep.subr.mxu0 0.0
    %4981 = vmatpush1.msra.mxu0 %v4865
    %4982 = vmatprep.subr.mxu0 0.0
    %4983 = vmatpush1.msra.mxu0 %v4864
    %4984 = vmatprep.subr.mxu0 0.0
    %4985 = vmatpush1.msra.mxu0 %v4863
    %4986 = vmatprep.subr.mxu0 0.0
    %4987 = vmatpush1.msra.mxu0 %v4862
    %4988 = vmatprep.subr.mxu0 0.0
    %4989 = vmatpush1.msra.mxu0 %v4861
    %4990 = vmatprep.subr.mxu0 0.0
    %4991 = vmatpush1.msra.mxu0 %v4860
    %4992 = vmatprep.subr.mxu0 0.0
    %4993 = vmatpush1.msra.mxu0 %v4859
    %4994 = vmatprep.subr.mxu0 0.0
    %4995 = vmatpush2.msra.mxu0 0.0
    %4996 = vmatprep.subr.mxu0 0.0
    %4997 = vmatpush2.msra.mxu0 0.0
    %4998 = vmatprep.subr.mxu0 0.0
    %4999 = vmatpush2.msra.mxu0 0.0
    %5000 = vmatprep.subr.mxu0 0.0
    %5001 = vmatpush2.msra.mxu0 0.0
    %5002 = vmatprep.subr.mxu0 0.0
    %5003 = vmatpush2.msra.mxu0 0.0
    %5004 = vmatprep.subr.mxu0 0.0
    %5005 = vmatpush2.msra.mxu0 0.0
    %5006 = vmatprep.subr.mxu0 0.0
    %5007 = vmatpush2.msra.mxu0 0.0
    %5008 = vmatprep.subr.mxu0 0.0
    %5009 = vmatpush2.msra.mxu0 0.0
    %5010 = vmatprep.subr.mxu0 0.0
    %5011 = vmatpush2.msra.mxu0 0.0
    %5012 = vmatprep.subr.mxu0 0.0
    %5013 = vmatpush2.msra.mxu0 0.0
    %5014 = vmatprep.subr.mxu0 0.0
    %5015 = vmatpush2.msra.mxu0 0.0
    %5016 = vmatprep.subr.mxu0 0.0
    %5017 = vmatpush2.msra.mxu0 0.0
    %5018 = vmatprep.subr.mxu0 0.0
    %5019 = vmatpush2.msra.mxu0 0.0
    %5020 = vmatprep.subr.mxu0 0.0
    %5021 = vmatpush2.msra.mxu0 0.0
    %5022 = vmatprep.subr.mxu0 0.0
    %5023 = vmatpush2.msra.mxu0 0.0
    %5024 = vmatprep.subr.mxu0 0.0
    %5025 = vmatpush2.msra.mxu0 0.0
    %5026 = vmatprep.mubr.f32.mxu0 0.0
    %5027 = vmatmul.mubr.f32.gmra.mxu0 %v4858
    %v5028 = vpop.f32.mrf.mxu0
    %v5029 = vadd.f32 %v4959, %v5028
    %v5030 = vpop.f32.mrf.mxu0
    %5031 = vdwg.mxu0
    %v5032 = vld [vmem:[#allocation18] sm:$0x1]
    %v5034 = vlaneseq
    %v5035 = vshrl.u32 %v5034, 7
    %v5036 = vsub.s32 0, %v5035
    %v5037 = vrot.slane %v5032, %v5036
    %v5039 = vadd.f32 %v5029, %v5037
    %5040 = vst [vmem:[#allocation21] sm:$0xff] %v5039
    %v5041 = vld [vmem:[#allocation19] sm:$0xff]
    %v5042 = vld [vmem:[#allocation19 + $0x8] sm:$0xff]
    %v5043 = vld [vmem:[#allocation19 + $0x10] sm:$0xff]
    %v5044 = vld [vmem:[#allocation19 + $0x18] sm:$0xff]
    %v5045 = vld [vmem:[#allocation19 + $0x20] sm:$0xff]
    %v5046 = vld [vmem:[#allocation19 + $0x28] sm:$0xff]
    %v5047 = vld [vmem:[#allocation19 + $0x30] sm:$0xff]
    %v5048 = vld [vmem:[#allocation19 + $0x38] sm:$0xff]
    %v5049 = vld [vmem:[#allocation19 + $0x40] sm:$0xff]
    %v5050 = vld [vmem:[#allocation19 + $0x48] sm:$0xff]
    %v5051 = vld [vmem:[#allocation19 + $0x50] sm:$0xff]
    %v5052 = vld [vmem:[#allocation19 + $0x58] sm:$0xff]
    %v5053 = vld [vmem:[#allocation19 + $0x60] sm:$0xff]
    %v5054 = vld [vmem:[#allocation19 + $0x68] sm:$0xff]
    %v5055 = vld [vmem:[#allocation19 + $0x70] sm:$0xff]
    %v5056 = vld [vmem:[#allocation19 + $0x78] sm:$0xff]
    %v5057 = vlaneseq
    %v5058 = vshrl.u32 %v5057, 7
    %v5059 = vadd.s32 %v5058, 8
    %v5060 = vadd.s32 %v5058, 16
    %v5061 = vadd.s32 %v5058, 24
    %v5062 = vadd.s32 %v5058, 32
    %v5063 = vadd.s32 %v5058, 40
    %v5064 = vadd.s32 %v5058, 48
    %v5065 = vadd.s32 %v5058, 56
    %v5066 = vadd.s32 %v5058, 64
    %v5067 = vadd.s32 %v5058, 72
    %v5068 = vadd.s32 %v5058, 80
    %v5069 = vadd.s32 %v5058, 88
    %v5070 = vadd.s32 %v5058, 96
    %v5071 = vadd.s32 %v5058, 104
    %v5072 = vadd.s32 %v5058, 112
    %v5073 = vadd.s32 %v5058, 120
    %vm5074 = vcmp.eq.s32.totalorder %v5058, %v157
    %vm5075 = vcmp.eq.s32.totalorder %v5059, %v157
    %vm5076 = vcmp.eq.s32.totalorder %v5060, %v157
    %vm5077 = vcmp.eq.s32.totalorder %v5061, %v157
    %vm5078 = vcmp.eq.s32.totalorder %v5062, %v157
    %vm5079 = vcmp.eq.s32.totalorder %v5063, %v157
    %vm5080 = vcmp.eq.s32.totalorder %v5064, %v157
    %vm5081 = vcmp.eq.s32.totalorder %v5065, %v157
    %vm5082 = vcmp.eq.s32.totalorder %v5066, %v157
    %vm5083 = vcmp.eq.s32.totalorder %v5067, %v157
    %vm5084 = vcmp.eq.s32.totalorder %v5068, %v157
    %vm5085 = vcmp.eq.s32.totalorder %v5069, %v157
    %vm5086 = vcmp.eq.s32.totalorder %v5070, %v157
    %vm5087 = vcmp.eq.s32.totalorder %v5071, %v157
    %vm5088 = vcmp.eq.s32.totalorder %v5072, %v157
    %vm5089 = vcmp.eq.s32.totalorder %v5073, %v157
    %v5090 = vcvt.s32.f32 %v5058
    %v5091 = vcvt.s32.f32 %v5059
    %v5092 = vcvt.s32.f32 %v5060
    %v5093 = vcvt.s32.f32 %v5061
    %v5094 = vcvt.s32.f32 %v5062
    %v5095 = vcvt.s32.f32 %v5063
    %v5096 = vcvt.s32.f32 %v5064
    %v5097 = vcvt.s32.f32 %v5065
    %v5098 = vcvt.s32.f32 %v5066
    %v5099 = vcvt.s32.f32 %v5067
    %v5100 = vcvt.s32.f32 %v5068
    %v5101 = vcvt.s32.f32 %v5069
    %v5102 = vcvt.s32.f32 %v5070
    %v5103 = vcvt.s32.f32 %v5071
    %v5104 = vcvt.s32.f32 %v5072
    %v5105 = vcvt.s32.f32 %v5073
    %v5106 = vcvt.s32.f32 %v157
    %v5107 = vld [vmem:[%s12] sm:$0x1]
    %v5109 = vlaneseq
    %v5110 = vshrl.u32 %v5109, 7
    %v5111 = vsub.s32 0, %v5110
    %v5112 = vrot.slane %v5107, %v5111
    %v5114 = vsel %vm5074, %v5112, 0.0
    %v5115 = vsel %vm5075, %v5112, 0.0
    %v5116 = vsel %vm5076, %v5112, 0.0
    %v5117 = vsel %vm5077, %v5112, 0.0
    %v5118 = vsel %vm5078, %v5112, 0.0
    %v5119 = vsel %vm5079, %v5112, 0.0
    %v5120 = vsel %vm5080, %v5112, 0.0
    %v5121 = vsel %vm5081, %v5112, 0.0
    %v5122 = vsel %vm5082, %v5112, 0.0
    %v5123 = vsel %vm5083, %v5112, 0.0
    %v5124 = vsel %vm5084, %v5112, 0.0
    %v5125 = vsel %vm5085, %v5112, 0.0
    %v5126 = vsel %vm5086, %v5112, 0.0
    %v5127 = vsel %vm5087, %v5112, 0.0
    %v5128 = vsel %vm5088, %v5112, 0.0
    %v5129 = vsel %vm5089, %v5112, 0.0
    %5130 = vadd.xlane.f32.xlu0 %v5114
    %v5131 = vpop.xlane.xlu0 %5130
    %5132 = vadd.xlane.f32.xlu0 %v5115
    %v5133 = vpop.xlane.xlu0 %5132
    %5134 = vadd.xlane.f32.xlu0 %v5116
    %v5135 = vpop.xlane.xlu0 %5134
    %5136 = vadd.xlane.f32.xlu0 %v5117
    %v5137 = vpop.xlane.xlu0 %5136
    %5138 = vadd.xlane.f32.xlu0 %v5118
    %v5139 = vpop.xlane.xlu0 %5138
    %5140 = vadd.xlane.f32.xlu0 %v5119
    %v5141 = vpop.xlane.xlu0 %5140
    %5142 = vadd.xlane.f32.xlu0 %v5120
    %v5143 = vpop.xlane.xlu0 %5142
    %5144 = vadd.xlane.f32.xlu0 %v5121
    %v5145 = vpop.xlane.xlu0 %5144
    %5146 = vadd.xlane.f32.xlu0 %v5122
    %v5147 = vpop.xlane.xlu0 %5146
    %5148 = vadd.xlane.f32.xlu0 %v5123
    %v5149 = vpop.xlane.xlu0 %5148
    %5150 = vadd.xlane.f32.xlu0 %v5124
    %v5151 = vpop.xlane.xlu0 %5150
    %5152 = vadd.xlane.f32.xlu0 %v5125
    %v5153 = vpop.xlane.xlu0 %5152
    %5154 = vadd.xlane.f32.xlu0 %v5126
    %v5155 = vpop.xlane.xlu0 %5154
    %5156 = vadd.xlane.f32.xlu0 %v5127
    %v5157 = vpop.xlane.xlu0 %5156
    %5158 = vadd.xlane.f32.xlu0 %v5128
    %v5159 = vpop.xlane.xlu0 %5158
    %5160 = vadd.xlane.f32.xlu0 %v5129
    %v5161 = vpop.xlane.xlu0 %5160
    %v5162 = vadd.f32 %v5041, %v5131
    %v5163 = vadd.f32 %v5042, %v5133
    %v5164 = vadd.f32 %v5043, %v5135
    %v5165 = vadd.f32 %v5044, %v5137
    %v5166 = vadd.f32 %v5045, %v5139
    %v5167 = vadd.f32 %v5046, %v5141
    %v5168 = vadd.f32 %v5047, %v5143
    %v5169 = vadd.f32 %v5048, %v5145
    %v5170 = vadd.f32 %v5049, %v5147
    %v5171 = vadd.f32 %v5050, %v5149
    %v5172 = vadd.f32 %v5051, %v5151
    %v5173 = vadd.f32 %v5052, %v5153
    %v5174 = vadd.f32 %v5053, %v5155
    %v5175 = vadd.f32 %v5054, %v5157
    %v5176 = vadd.f32 %v5055, %v5159
    %v5177 = vadd.f32 %v5056, %v5161
    %v5178 = vmax.f32 %v5162, %v5166
    %v5179 = vmax.f32 %v5163, %v5167
    %v5180 = vmax.f32 %v5164, %v5168
    %v5181 = vmax.f32 %v5165, %v5169
    %v5182 = vmax.f32 %v5178, %v5170
    %v5183 = vmax.f32 %v5179, %v5171
    %v5184 = vmax.f32 %v5180, %v5172
    %v5185 = vmax.f32 %v5181, %v5173
    %v5186 = vmax.f32 %v5182, %v5174
    %v5187 = vmax.f32 %v5183, %v5175
    %v5188 = vmax.f32 %v5184, %v5176
    %v5189 = vmax.f32 %v5185, %v5177
    %v5190 = vmax.f32 %v5186, %v5187
    %v5191 = vmax.f32 %v5188, %v5189
    %v5192 = vmax.f32 %v5190, %v5191
    %v5193 = vrot.slane %v5192, 4
    %v5194 = vmax.f32 %v5192, %v5193
    %v5195 = vrot.slane %v5194, 2
    %v5196 = vmax.f32 %v5194, %v5195
    %v5197 = vrot.slane %v5196, 1
    %v5198 = vmax.f32 %v5196, %v5197
    %vm5199 = vcmp.ge.f32.partialorder %v5162, %v5198
    %vm5200 = vcmp.ge.f32.partialorder %v5163, %v5198
    %vm5201 = vcmp.ge.f32.partialorder %v5164, %v5198
    %vm5202 = vcmp.ge.f32.partialorder %v5165, %v5198
    %vm5203 = vcmp.ge.f32.partialorder %v5166, %v5198
    %vm5204 = vcmp.ge.f32.partialorder %v5167, %v5198
    %vm5205 = vcmp.ge.f32.partialorder %v5168, %v5198
    %vm5206 = vcmp.ge.f32.partialorder %v5169, %v5198
    %vm5207 = vcmp.ge.f32.partialorder %v5170, %v5198
    %vm5208 = vcmp.ge.f32.partialorder %v5171, %v5198
    %vm5209 = vcmp.ge.f32.partialorder %v5172, %v5198
    %vm5210 = vcmp.ge.f32.partialorder %v5173, %v5198
    %vm5211 = vcmp.ge.f32.partialorder %v5174, %v5198
    %vm5212 = vcmp.ge.f32.partialorder %v5175, %v5198
    %vm5213 = vcmp.ge.f32.partialorder %v5176, %v5198
    %vm5214 = vcmp.ge.f32.partialorder %v5177, %v5198
    %v5215 = vsel %vm5199, %v5090, 128.0
    %v5216 = vsel %vm5200, %v5091, 128.0
    %v5217 = vsel %vm5201, %v5092, 128.0
    %v5218 = vsel %vm5202, %v5093, 128.0
    %v5219 = vsel %vm5203, %v5094, 128.0
    %v5220 = vsel %vm5204, %v5095, 128.0
    %v5221 = vsel %vm5205, %v5096, 128.0
    %v5222 = vsel %vm5206, %v5097, 128.0
    %v5223 = vsel %vm5207, %v5098, 128.0
    %v5224 = vsel %vm5208, %v5099, 128.0
    %v5225 = vsel %vm5209, %v5100, 128.0
    %v5226 = vsel %vm5210, %v5101, 128.0
    %v5227 = vsel %vm5211, %v5102, 128.0
    %v5228 = vsel %vm5212, %v5103, 128.0
    %v5229 = vsel %vm5213, %v5104, 128.0
    %v5230 = vsel %vm5214, %v5105, 128.0
    %v5231 = vmin.f32 %v5215, %v5219
    %v5232 = vmin.f32 %v5216, %v5220
    %v5233 = vmin.f32 %v5217, %v5221
    %v5234 = vmin.f32 %v5218, %v5222
    %v5235 = vmin.f32 %v5231, %v5223
    %v5236 = vmin.f32 %v5232, %v5224
    %v5237 = vmin.f32 %v5233, %v5225
    %v5238 = vmin.f32 %v5234, %v5226
    %v5239 = vmin.f32 %v5235, %v5227
    %v5240 = vmin.f32 %v5236, %v5228
    %v5241 = vmin.f32 %v5237, %v5229
    %v5242 = vmin.f32 %v5238, %v5230
    %v5243 = vmin.f32 %v5239, %v5240
    %v5244 = vmin.f32 %v5241, %v5242
    %v5245 = vmin.f32 %v5243, %v5244
    %v5246 = vrot.slane %v5245, 4
    %v5247 = vmin.f32 %v5245, %v5246
    %v5248 = vrot.slane %v5247, 2
    %v5249 = vmin.f32 %v5247, %v5248
    %v5250 = vrot.slane %v5249, 1
    %v5251 = vmin.f32 %v5249, %v5250
    %5252 = vst [vmem:[#allocation6] sm:$0x1] %v5251
    %v5253 = vld [vmem:[#allocation21] sm:$0x1]
    %v5254 = vadd.f32 %v5198, %v5253
    %v5255 = vlaneseq
    %v5256 = vshrl.u32 %v5255, 7
    %v5257 = vsub.s32 0, %v5256
    %v5258 = vrot.slane %v5254, %v5257
    %v5259 = vsel %vm5074, %v5258, 0.0
    %v5260 = vsel %vm5075, %v5258, 0.0
    %v5261 = vsel %vm5076, %v5258, 0.0
    %v5262 = vsel %vm5077, %v5258, 0.0
    %v5263 = vsel %vm5078, %v5258, 0.0
    %v5264 = vsel %vm5079, %v5258, 0.0
    %v5265 = vsel %vm5080, %v5258, 0.0
    %v5266 = vsel %vm5081, %v5258, 0.0
    %v5267 = vsel %vm5082, %v5258, 0.0
    %v5268 = vsel %vm5083, %v5258, 0.0
    %v5269 = vsel %vm5084, %v5258, 0.0
    %v5270 = vsel %vm5085, %v5258, 0.0
    %v5271 = vsel %vm5086, %v5258, 0.0
    %v5272 = vsel %vm5087, %v5258, 0.0
    %v5273 = vsel %vm5088, %v5258, 0.0
    %v5274 = vsel %vm5089, %v5258, 0.0
    %5275 = vadd.xlane.f32.xlu0 %v5259
    %v5276 = vpop.xlane.xlu0 %5275
    %5277 = vadd.xlane.f32.xlu0 %v5260
    %v5278 = vpop.xlane.xlu0 %5277
    %5279 = vadd.xlane.f32.xlu0 %v5261
    %v5280 = vpop.xlane.xlu0 %5279
    %5281 = vadd.xlane.f32.xlu0 %v5262
    %v5282 = vpop.xlane.xlu0 %5281
    %5283 = vadd.xlane.f32.xlu0 %v5263
    %v5284 = vpop.xlane.xlu0 %5283
    %5285 = vadd.xlane.f32.xlu0 %v5264
    %v5286 = vpop.xlane.xlu0 %5285
    %5287 = vadd.xlane.f32.xlu0 %v5265
    %v5288 = vpop.xlane.xlu0 %5287
    %5289 = vadd.xlane.f32.xlu0 %v5266
    %v5290 = vpop.xlane.xlu0 %5289
    %5291 = vadd.xlane.f32.xlu0 %v5267
    %v5292 = vpop.xlane.xlu0 %5291
    %5293 = vadd.xlane.f32.xlu0 %v5268
    %v5294 = vpop.xlane.xlu0 %5293
    %5295 = vadd.xlane.f32.xlu0 %v5269
    %v5296 = vpop.xlane.xlu0 %5295
    %5297 = vadd.xlane.f32.xlu0 %v5270
    %v5298 = vpop.xlane.xlu0 %5297
    %5299 = vadd.xlane.f32.xlu0 %v5271
    %v5300 = vpop.xlane.xlu0 %5299
    %5301 = vadd.xlane.f32.xlu0 %v5272
    %v5302 = vpop.xlane.xlu0 %5301
    %5303 = vadd.xlane.f32.xlu0 %v5273
    %v5304 = vpop.xlane.xlu0 %5303
    %5305 = vadd.xlane.f32.xlu0 %v5274
    %v5306 = vpop.xlane.xlu0 %5305
    %v5307 = vadd.f32 %v5041, %v5276
    %v5308 = vadd.f32 %v5042, %v5278
    %v5309 = vadd.f32 %v5043, %v5280
    %v5310 = vadd.f32 %v5044, %v5282
    %v5311 = vadd.f32 %v5045, %v5284
    %v5312 = vadd.f32 %v5046, %v5286
    %v5313 = vadd.f32 %v5047, %v5288
    %v5314 = vadd.f32 %v5048, %v5290
    %v5315 = vadd.f32 %v5049, %v5292
    %v5316 = vadd.f32 %v5050, %v5294
    %v5317 = vadd.f32 %v5051, %v5296
    %v5318 = vadd.f32 %v5052, %v5298
    %v5319 = vadd.f32 %v5053, %v5300
    %v5320 = vadd.f32 %v5054, %v5302
    %v5321 = vadd.f32 %v5055, %v5304
    %v5322 = vadd.f32 %v5056, %v5306
    %v5323 = vmax.f32 %v5307, %v5311
    %v5324 = vmax.f32 %v5308, %v5312
    %v5325 = vmax.f32 %v5309, %v5313
    %v5326 = vmax.f32 %v5310, %v5314
    %v5327 = vmax.f32 %v5323, %v5315
    %v5328 = vmax.f32 %v5324, %v5316
    %v5329 = vmax.f32 %v5325, %v5317
    %v5330 = vmax.f32 %v5326, %v5318
    %v5331 = vmax.f32 %v5327, %v5319
    %v5332 = vmax.f32 %v5328, %v5320
    %v5333 = vmax.f32 %v5329, %v5321
    %v5334 = vmax.f32 %v5330, %v5322
    %v5335 = vmax.f32 %v5331, %v5332
    %v5336 = vmax.f32 %v5333, %v5334
    %v5337 = vmax.f32 %v5335, %v5336
    %v5338 = vrot.slane %v5337, 4
    %v5339 = vmax.f32 %v5337, %v5338
    %v5340 = vrot.slane %v5339, 2
    %v5341 = vmax.f32 %v5339, %v5340
    %v5342 = vrot.slane %v5341, 1
    %v5343 = vmax.f32 %v5341, %v5342
    %vm5344 = vcmp.ge.f32.partialorder %v5307, %v5343
    %vm5345 = vcmp.ge.f32.partialorder %v5308, %v5343
    %vm5346 = vcmp.ge.f32.partialorder %v5309, %v5343
    %vm5347 = vcmp.ge.f32.partialorder %v5310, %v5343
    %vm5348 = vcmp.ge.f32.partialorder %v5311, %v5343
    %vm5349 = vcmp.ge.f32.partialorder %v5312, %v5343
    %vm5350 = vcmp.ge.f32.partialorder %v5313, %v5343
    %vm5351 = vcmp.ge.f32.partialorder %v5314, %v5343
    %vm5352 = vcmp.ge.f32.partialorder %v5315, %v5343
    %vm5353 = vcmp.ge.f32.partialorder %v5316, %v5343
    %vm5354 = vcmp.ge.f32.partialorder %v5317, %v5343
    %vm5355 = vcmp.ge.f32.partialorder %v5318, %v5343
    %vm5356 = vcmp.ge.f32.partialorder %v5319, %v5343
    %vm5357 = vcmp.ge.f32.partialorder %v5320, %v5343
    %vm5358 = vcmp.ge.f32.partialorder %v5321, %v5343
    %vm5359 = vcmp.ge.f32.partialorder %v5322, %v5343
    %v5360 = vsel %vm5344, %v5090, 128.0
    %v5361 = vsel %vm5345, %v5091, 128.0
    %v5362 = vsel %vm5346, %v5092, 128.0
    %v5363 = vsel %vm5347, %v5093, 128.0
    %v5364 = vsel %vm5348, %v5094, 128.0
    %v5365 = vsel %vm5349, %v5095, 128.0
    %v5366 = vsel %vm5350, %v5096, 128.0
    %v5367 = vsel %vm5351, %v5097, 128.0
    %v5368 = vsel %vm5352, %v5098, 128.0
    %v5369 = vsel %vm5353, %v5099, 128.0
    %v5370 = vsel %vm5354, %v5100, 128.0
    %v5371 = vsel %vm5355, %v5101, 128.0
    %v5372 = vsel %vm5356, %v5102, 128.0
    %v5373 = vsel %vm5357, %v5103, 128.0
    %v5374 = vsel %vm5358, %v5104, 128.0
    %v5375 = vsel %vm5359, %v5105, 128.0
    %v5376 = vmin.f32 %v5360, %v5364
    %v5377 = vmin.f32 %v5361, %v5365
    %v5378 = vmin.f32 %v5362, %v5366
    %v5379 = vmin.f32 %v5363, %v5367
    %v5380 = vmin.f32 %v5376, %v5368
    %v5381 = vmin.f32 %v5377, %v5369
    %v5382 = vmin.f32 %v5378, %v5370
    %v5383 = vmin.f32 %v5379, %v5371
    %v5384 = vmin.f32 %v5380, %v5372
    %v5385 = vmin.f32 %v5381, %v5373
    %v5386 = vmin.f32 %v5382, %v5374
    %v5387 = vmin.f32 %v5383, %v5375
    %v5388 = vmin.f32 %v5384, %v5385
    %v5389 = vmin.f32 %v5386, %v5387
    %v5390 = vmin.f32 %v5388, %v5389
    %v5391 = vrot.slane %v5390, 4
    %v5392 = vmin.f32 %v5390, %v5391
    %v5393 = vrot.slane %v5392, 2
    %v5394 = vmin.f32 %v5392, %v5393
    %v5395 = vrot.slane %v5394, 1
    %v5396 = vmin.f32 %v5394, %v5395
    %5397 = vst [vmem:[#allocation6 + $0x1] sm:$0x1] %v5396
    %v5398 = vld [vmem:[#allocation21 + $0x1] sm:$0x1]
    %v5399 = vadd.f32 %v5343, %v5398
    %v5400 = vlaneseq
    %v5401 = vshrl.u32 %v5400, 7
    %v5402 = vsub.s32 0, %v5401
    %v5403 = vrot.slane %v5399, %v5402
    %v5404 = vsel %vm5074, %v5403, 0.0
    %v5405 = vsel %vm5075, %v5403, 0.0
    %v5406 = vsel %vm5076, %v5403, 0.0
    %v5407 = vsel %vm5077, %v5403, 0.0
    %v5408 = vsel %vm5078, %v5403, 0.0
    %v5409 = vsel %vm5079, %v5403, 0.0
    %v5410 = vsel %vm5080, %v5403, 0.0
    %v5411 = vsel %vm5081, %v5403, 0.0
    %v5412 = vsel %vm5082, %v5403, 0.0
    %v5413 = vsel %vm5083, %v5403, 0.0
    %v5414 = vsel %vm5084, %v5403, 0.0
    %v5415 = vsel %vm5085, %v5403, 0.0
    %v5416 = vsel %vm5086, %v5403, 0.0
    %v5417 = vsel %vm5087, %v5403, 0.0
    %v5418 = vsel %vm5088, %v5403, 0.0
    %v5419 = vsel %vm5089, %v5403, 0.0
    %5420 = vadd.xlane.f32.xlu0 %v5404
    %v5421 = vpop.xlane.xlu0 %5420
    %5422 = vadd.xlane.f32.xlu0 %v5405
    %v5423 = vpop.xlane.xlu0 %5422
    %5424 = vadd.xlane.f32.xlu0 %v5406
    %v5425 = vpop.xlane.xlu0 %5424
    %5426 = vadd.xlane.f32.xlu0 %v5407
    %v5427 = vpop.xlane.xlu0 %5426
    %5428 = vadd.xlane.f32.xlu0 %v5408
    %v5429 = vpop.xlane.xlu0 %5428
    %5430 = vadd.xlane.f32.xlu0 %v5409
    %v5431 = vpop.xlane.xlu0 %5430
    %5432 = vadd.xlane.f32.xlu0 %v5410
    %v5433 = vpop.xlane.xlu0 %5432
    %5434 = vadd.xlane.f32.xlu0 %v5411
    %v5435 = vpop.xlane.xlu0 %5434
    %5436 = vadd.xlane.f32.xlu0 %v5412
    %v5437 = vpop.xlane.xlu0 %5436
    %5438 = vadd.xlane.f32.xlu0 %v5413
    %v5439 = vpop.xlane.xlu0 %5438
    %5440 = vadd.xlane.f32.xlu0 %v5414
    %v5441 = vpop.xlane.xlu0 %5440
    %5442 = vadd.xlane.f32.xlu0 %v5415
    %v5443 = vpop.xlane.xlu0 %5442
    %5444 = vadd.xlane.f32.xlu0 %v5416
    %v5445 = vpop.xlane.xlu0 %5444
    %5446 = vadd.xlane.f32.xlu0 %v5417
    %v5447 = vpop.xlane.xlu0 %5446
    %5448 = vadd.xlane.f32.xlu0 %v5418
    %v5449 = vpop.xlane.xlu0 %5448
    %5450 = vadd.xlane.f32.xlu0 %v5419
    %v5451 = vpop.xlane.xlu0 %5450
    %v5452 = vadd.f32 %v5041, %v5421
    %v5453 = vadd.f32 %v5042, %v5423
    %v5454 = vadd.f32 %v5043, %v5425
    %v5455 = vadd.f32 %v5044, %v5427
    %v5456 = vadd.f32 %v5045, %v5429
    %v5457 = vadd.f32 %v5046, %v5431
    %v5458 = vadd.f32 %v5047, %v5433
    %v5459 = vadd.f32 %v5048, %v5435
    %v5460 = vadd.f32 %v5049, %v5437
    %v5461 = vadd.f32 %v5050, %v5439
    %v5462 = vadd.f32 %v5051, %v5441
    %v5463 = vadd.f32 %v5052, %v5443
    %v5464 = vadd.f32 %v5053, %v5445
    %v5465 = vadd.f32 %v5054, %v5447
    %v5466 = vadd.f32 %v5055, %v5449
    %v5467 = vadd.f32 %v5056, %v5451
    %v5468 = vmax.f32 %v5452, %v5456
    %v5469 = vmax.f32 %v5453, %v5457
    %v5470 = vmax.f32 %v5454, %v5458
    %v5471 = vmax.f32 %v5455, %v5459
    %v5472 = vmax.f32 %v5468, %v5460
    %v5473 = vmax.f32 %v5469, %v5461
    %v5474 = vmax.f32 %v5470, %v5462
    %v5475 = vmax.f32 %v5471, %v5463
    %v5476 = vmax.f32 %v5472, %v5464
    %v5477 = vmax.f32 %v5473, %v5465
    %v5478 = vmax.f32 %v5474, %v5466
    %v5479 = vmax.f32 %v5475, %v5467
    %v5480 = vmax.f32 %v5476, %v5477
    %v5481 = vmax.f32 %v5478, %v5479
    %v5482 = vmax.f32 %v5480, %v5481
    %v5483 = vrot.slane %v5482, 4
    %v5484 = vmax.f32 %v5482, %v5483
    %v5485 = vrot.slane %v5484, 2
    %v5486 = vmax.f32 %v5484, %v5485
    %v5487 = vrot.slane %v5486, 1
    %v5488 = vmax.f32 %v5486, %v5487
    %vm5489 = vcmp.ge.f32.partialorder %v5452, %v5488
    %vm5490 = vcmp.ge.f32.partialorder %v5453, %v5488
    %vm5491 = vcmp.ge.f32.partialorder %v5454, %v5488
    %vm5492 = vcmp.ge.f32.partialorder %v5455, %v5488
    %vm5493 = vcmp.ge.f32.partialorder %v5456, %v5488
    %vm5494 = vcmp.ge.f32.partialorder %v5457, %v5488
    %vm5495 = vcmp.ge.f32.partialorder %v5458, %v5488
    %vm5496 = vcmp.ge.f32.partialorder %v5459, %v5488
    %vm5497 = vcmp.ge.f32.partialorder %v5460, %v5488
    %vm5498 = vcmp.ge.f32.partialorder %v5461, %v5488
    %vm5499 = vcmp.ge.f32.partialorder %v5462, %v5488
    %vm5500 = vcmp.ge.f32.partialorder %v5463, %v5488
    %vm5501 = vcmp.ge.f32.partialorder %v5464, %v5488
    %vm5502 = vcmp.ge.f32.partialorder %v5465, %v5488
    %vm5503 = vcmp.ge.f32.partialorder %v5466, %v5488
    %vm5504 = vcmp.ge.f32.partialorder %v5467, %v5488
    %v5505 = vsel %vm5489, %v5090, 128.0
    %v5506 = vsel %vm5490, %v5091, 128.0
    %v5507 = vsel %vm5491, %v5092, 128.0
    %v5508 = vsel %vm5492, %v5093, 128.0
    %v5509 = vsel %vm5493, %v5094, 128.0
    %v5510 = vsel %vm5494, %v5095, 128.0
    %v5511 = vsel %vm5495, %v5096, 128.0
    %v5512 = vsel %vm5496, %v5097, 128.0
    %v5513 = vsel %vm5497, %v5098, 128.0
    %v5514 = vsel %vm5498, %v5099, 128.0
    %v5515 = vsel %vm5499, %v5100, 128.0
    %v5516 = vsel %vm5500, %v5101, 128.0
    %v5517 = vsel %vm5501, %v5102, 128.0
    %v5518 = vsel %vm5502, %v5103, 128.0
    %v5519 = vsel %vm5503, %v5104, 128.0
    %v5520 = vsel %vm5504, %v5105, 128.0
    %v5521 = vmin.f32 %v5505, %v5509
    %v5522 = vmin.f32 %v5506, %v5510
    %v5523 = vmin.f32 %v5507, %v5511
    %v5524 = vmin.f32 %v5508, %v5512
    %v5525 = vmin.f32 %v5521, %v5513
    %v5526 = vmin.f32 %v5522, %v5514
    %v5527 = vmin.f32 %v5523, %v5515
    %v5528 = vmin.f32 %v5524, %v5516
    %v5529 = vmin.f32 %v5525, %v5517
    %v5530 = vmin.f32 %v5526, %v5518
    %v5531 = vmin.f32 %v5527, %v5519
    %v5532 = vmin.f32 %v5528, %v5520
    %v5533 = vmin.f32 %v5529, %v5530
    %v5534 = vmin.f32 %v5531, %v5532
    %v5535 = vmin.f32 %v5533, %v5534
    %v5536 = vrot.slane %v5535, 4
    %v5537 = vmin.f32 %v5535, %v5536
    %v5538 = vrot.slane %v5537, 2
    %v5539 = vmin.f32 %v5537, %v5538
    %v5540 = vrot.slane %v5539, 1
    %v5541 = vmin.f32 %v5539, %v5540
    %5542 = vst [vmem:[#allocation6 + $0x2] sm:$0x1] %v5541
    %v5543 = vld [vmem:[#allocation21 + $0x2] sm:$0x1]
    %v5544 = vadd.f32 %v5488, %v5543
    %v5545 = vlaneseq
    %v5546 = vshrl.u32 %v5545, 7
    %v5547 = vsub.s32 0, %v5546
    %v5548 = vrot.slane %v5544, %v5547
    %v5549 = vsel %vm5074, %v5548, 0.0
    %v5550 = vsel %vm5075, %v5548, 0.0
    %v5551 = vsel %vm5076, %v5548, 0.0
    %v5552 = vsel %vm5077, %v5548, 0.0
    %v5553 = vsel %vm5078, %v5548, 0.0
    %v5554 = vsel %vm5079, %v5548, 0.0
    %v5555 = vsel %vm5080, %v5548, 0.0
    %v5556 = vsel %vm5081, %v5548, 0.0
    %v5557 = vsel %vm5082, %v5548, 0.0
    %v5558 = vsel %vm5083, %v5548, 0.0
    %v5559 = vsel %vm5084, %v5548, 0.0
    %v5560 = vsel %vm5085, %v5548, 0.0
    %v5561 = vsel %vm5086, %v5548, 0.0
    %v5562 = vsel %vm5087, %v5548, 0.0
    %v5563 = vsel %vm5088, %v5548, 0.0
    %v5564 = vsel %vm5089, %v5548, 0.0
    %5565 = vadd.xlane.f32.xlu0 %v5549
    %v5566 = vpop.xlane.xlu0 %5565
    %5567 = vadd.xlane.f32.xlu0 %v5550
    %v5568 = vpop.xlane.xlu0 %5567
    %5569 = vadd.xlane.f32.xlu0 %v5551
    %v5570 = vpop.xlane.xlu0 %5569
    %5571 = vadd.xlane.f32.xlu0 %v5552
    %v5572 = vpop.xlane.xlu0 %5571
    %5573 = vadd.xlane.f32.xlu0 %v5553
    %v5574 = vpop.xlane.xlu0 %5573
    %5575 = vadd.xlane.f32.xlu0 %v5554
    %v5576 = vpop.xlane.xlu0 %5575
    %5577 = vadd.xlane.f32.xlu0 %v5555
    %v5578 = vpop.xlane.xlu0 %5577
    %5579 = vadd.xlane.f32.xlu0 %v5556
    %v5580 = vpop.xlane.xlu0 %5579
    %5581 = vadd.xlane.f32.xlu0 %v5557
    %v5582 = vpop.xlane.xlu0 %5581
    %5583 = vadd.xlane.f32.xlu0 %v5558
    %v5584 = vpop.xlane.xlu0 %5583
    %5585 = vadd.xlane.f32.xlu0 %v5559
    %v5586 = vpop.xlane.xlu0 %5585
    %5587 = vadd.xlane.f32.xlu0 %v5560
    %v5588 = vpop.xlane.xlu0 %5587
    %5589 = vadd.xlane.f32.xlu0 %v5561
    %v5590 = vpop.xlane.xlu0 %5589
    %5591 = vadd.xlane.f32.xlu0 %v5562
    %v5592 = vpop.xlane.xlu0 %5591
    %5593 = vadd.xlane.f32.xlu0 %v5563
    %v5594 = vpop.xlane.xlu0 %5593
    %5595 = vadd.xlane.f32.xlu0 %v5564
    %v5596 = vpop.xlane.xlu0 %5595
    %v5597 = vadd.f32 %v5041, %v5566
    %v5598 = vadd.f32 %v5042, %v5568
    %v5599 = vadd.f32 %v5043, %v5570
    %v5600 = vadd.f32 %v5044, %v5572
    %v5601 = vadd.f32 %v5045, %v5574
    %v5602 = vadd.f32 %v5046, %v5576
    %v5603 = vadd.f32 %v5047, %v5578
    %v5604 = vadd.f32 %v5048, %v5580
    %v5605 = vadd.f32 %v5049, %v5582
    %v5606 = vadd.f32 %v5050, %v5584
    %v5607 = vadd.f32 %v5051, %v5586
    %v5608 = vadd.f32 %v5052, %v5588
    %v5609 = vadd.f32 %v5053, %v5590
    %v5610 = vadd.f32 %v5054, %v5592
    %v5611 = vadd.f32 %v5055, %v5594
    %v5612 = vadd.f32 %v5056, %v5596
    %v5613 = vmax.f32 %v5597, %v5601
    %v5614 = vmax.f32 %v5598, %v5602
    %v5615 = vmax.f32 %v5599, %v5603
    %v5616 = vmax.f32 %v5600, %v5604
    %v5617 = vmax.f32 %v5613, %v5605
    %v5618 = vmax.f32 %v5614, %v5606
    %v5619 = vmax.f32 %v5615, %v5607
    %v5620 = vmax.f32 %v5616, %v5608
    %v5621 = vmax.f32 %v5617, %v5609
    %v5622 = vmax.f32 %v5618, %v5610
    %v5623 = vmax.f32 %v5619, %v5611
    %v5624 = vmax.f32 %v5620, %v5612
    %v5625 = vmax.f32 %v5621, %v5622
    %v5626 = vmax.f32 %v5623, %v5624
    %v5627 = vmax.f32 %v5625, %v5626
    %v5628 = vrot.slane %v5627, 4
    %v5629 = vmax.f32 %v5627, %v5628
    %v5630 = vrot.slane %v5629, 2
    %v5631 = vmax.f32 %v5629, %v5630
    %v5632 = vrot.slane %v5631, 1
    %v5633 = vmax.f32 %v5631, %v5632
    %vm5634 = vcmp.ge.f32.partialorder %v5597, %v5633
    %vm5635 = vcmp.ge.f32.partialorder %v5598, %v5633
    %vm5636 = vcmp.ge.f32.partialorder %v5599, %v5633
    %vm5637 = vcmp.ge.f32.partialorder %v5600, %v5633
    %vm5638 = vcmp.ge.f32.partialorder %v5601, %v5633
    %vm5639 = vcmp.ge.f32.partialorder %v5602, %v5633
    %vm5640 = vcmp.ge.f32.partialorder %v5603, %v5633
    %vm5641 = vcmp.ge.f32.partialorder %v5604, %v5633
    %vm5642 = vcmp.ge.f32.partialorder %v5605, %v5633
    %vm5643 = vcmp.ge.f32.partialorder %v5606, %v5633
    %vm5644 = vcmp.ge.f32.partialorder %v5607, %v5633
    %vm5645 = vcmp.ge.f32.partialorder %v5608, %v5633
    %vm5646 = vcmp.ge.f32.partialorder %v5609, %v5633
    %vm5647 = vcmp.ge.f32.partialorder %v5610, %v5633
    %vm5648 = vcmp.ge.f32.partialorder %v5611, %v5633
    %vm5649 = vcmp.ge.f32.partialorder %v5612, %v5633
    %v5650 = vsel %vm5634, %v5090, 128.0
    %v5651 = vsel %vm5635, %v5091, 128.0
    %v5652 = vsel %vm5636, %v5092, 128.0
    %v5653 = vsel %vm5637, %v5093, 128.0
    %v5654 = vsel %vm5638, %v5094, 128.0
    %v5655 = vsel %vm5639, %v5095, 128.0
    %v5656 = vsel %vm5640, %v5096, 128.0
    %v5657 = vsel %vm5641, %v5097, 128.0
    %v5658 = vsel %vm5642, %v5098, 128.0
    %v5659 = vsel %vm5643, %v5099, 128.0
    %v5660 = vsel %vm5644, %v5100, 128.0
    %v5661 = vsel %vm5645, %v5101, 128.0
    %v5662 = vsel %vm5646, %v5102, 128.0
    %v5663 = vsel %vm5647, %v5103, 128.0
    %v5664 = vsel %vm5648, %v5104, 128.0
    %v5665 = vsel %vm5649, %v5105, 128.0
    %v5666 = vmin.f32 %v5650, %v5654
    %v5667 = vmin.f32 %v5651, %v5655
    %v5668 = vmin.f32 %v5652, %v5656
    %v5669 = vmin.f32 %v5653, %v5657
    %v5670 = vmin.f32 %v5666, %v5658
    %v5671 = vmin.f32 %v5667, %v5659
    %v5672 = vmin.f32 %v5668, %v5660
    %v5673 = vmin.f32 %v5669, %v5661
    %v5674 = vmin.f32 %v5670, %v5662
    %v5675 = vmin.f32 %v5671, %v5663
    %v5676 = vmin.f32 %v5672, %v5664
    %v5677 = vmin.f32 %v5673, %v5665
    %v5678 = vmin.f32 %v5674, %v5675
    %v5679 = vmin.f32 %v5676, %v5677
    %v5680 = vmin.f32 %v5678, %v5679
    %v5681 = vrot.slane %v5680, 4
    %v5682 = vmin.f32 %v5680, %v5681
    %v5683 = vrot.slane %v5682, 2
    %v5684 = vmin.f32 %v5682, %v5683
    %v5685 = vrot.slane %v5684, 1
    %v5686 = vmin.f32 %v5684, %v5685
    %5687 = vst [vmem:[#allocation6 + $0x3] sm:$0x1] %v5686
    %v5688 = vld [vmem:[#allocation21 + $0x3] sm:$0x1]
    %v5689 = vadd.f32 %v5633, %v5688
    %v5690 = vlaneseq
    %v5691 = vshrl.u32 %v5690, 7
    %v5692 = vsub.s32 0, %v5691
    %v5693 = vrot.slane %v5689, %v5692
    %v5694 = vsel %vm5074, %v5693, 0.0
    %v5695 = vsel %vm5075, %v5693, 0.0
    %v5696 = vsel %vm5076, %v5693, 0.0
    %v5697 = vsel %vm5077, %v5693, 0.0
    %v5698 = vsel %vm5078, %v5693, 0.0
    %v5699 = vsel %vm5079, %v5693, 0.0
    %v5700 = vsel %vm5080, %v5693, 0.0
    %v5701 = vsel %vm5081, %v5693, 0.0
    %v5702 = vsel %vm5082, %v5693, 0.0
    %v5703 = vsel %vm5083, %v5693, 0.0
    %v5704 = vsel %vm5084, %v5693, 0.0
    %v5705 = vsel %vm5085, %v5693, 0.0
    %v5706 = vsel %vm5086, %v5693, 0.0
    %v5707 = vsel %vm5087, %v5693, 0.0
    %v5708 = vsel %vm5088, %v5693, 0.0
    %v5709 = vsel %vm5089, %v5693, 0.0
    %5710 = vadd.xlane.f32.xlu0 %v5694
    %v5711 = vpop.xlane.xlu0 %5710
    %5712 = vadd.xlane.f32.xlu0 %v5695
    %v5713 = vpop.xlane.xlu0 %5712
    %5714 = vadd.xlane.f32.xlu0 %v5696
    %v5715 = vpop.xlane.xlu0 %5714
    %5716 = vadd.xlane.f32.xlu0 %v5697
    %v5717 = vpop.xlane.xlu0 %5716
    %5718 = vadd.xlane.f32.xlu0 %v5698
    %v5719 = vpop.xlane.xlu0 %5718
    %5720 = vadd.xlane.f32.xlu0 %v5699
    %v5721 = vpop.xlane.xlu0 %5720
    %5722 = vadd.xlane.f32.xlu0 %v5700
    %v5723 = vpop.xlane.xlu0 %5722
    %5724 = vadd.xlane.f32.xlu0 %v5701
    %v5725 = vpop.xlane.xlu0 %5724
    %5726 = vadd.xlane.f32.xlu0 %v5702
    %v5727 = vpop.xlane.xlu0 %5726
    %5728 = vadd.xlane.f32.xlu0 %v5703
    %v5729 = vpop.xlane.xlu0 %5728
    %5730 = vadd.xlane.f32.xlu0 %v5704
    %v5731 = vpop.xlane.xlu0 %5730
    %5732 = vadd.xlane.f32.xlu0 %v5705
    %v5733 = vpop.xlane.xlu0 %5732
    %5734 = vadd.xlane.f32.xlu0 %v5706
    %v5735 = vpop.xlane.xlu0 %5734
    %5736 = vadd.xlane.f32.xlu0 %v5707
    %v5737 = vpop.xlane.xlu0 %5736
    %5738 = vadd.xlane.f32.xlu0 %v5708
    %v5739 = vpop.xlane.xlu0 %5738
    %5740 = vadd.xlane.f32.xlu0 %v5709
    %v5741 = vpop.xlane.xlu0 %5740
    %v5742 = vadd.f32 %v5041, %v5711
    %v5743 = vadd.f32 %v5042, %v5713
    %v5744 = vadd.f32 %v5043, %v5715
    %v5745 = vadd.f32 %v5044, %v5717
    %v5746 = vadd.f32 %v5045, %v5719
    %v5747 = vadd.f32 %v5046, %v5721
    %v5748 = vadd.f32 %v5047, %v5723
    %v5749 = vadd.f32 %v5048, %v5725
    %v5750 = vadd.f32 %v5049, %v5727
    %v5751 = vadd.f32 %v5050, %v5729
    %v5752 = vadd.f32 %v5051, %v5731
    %v5753 = vadd.f32 %v5052, %v5733
    %v5754 = vadd.f32 %v5053, %v5735
    %v5755 = vadd.f32 %v5054, %v5737
    %v5756 = vadd.f32 %v5055, %v5739
    %v5757 = vadd.f32 %v5056, %v5741
    %v5758 = vmax.f32 %v5742, %v5746
    %v5759 = vmax.f32 %v5743, %v5747
    %v5760 = vmax.f32 %v5744, %v5748
    %v5761 = vmax.f32 %v5745, %v5749
    %v5762 = vmax.f32 %v5758, %v5750
    %v5763 = vmax.f32 %v5759, %v5751
    %v5764 = vmax.f32 %v5760, %v5752
    %v5765 = vmax.f32 %v5761, %v5753
    %v5766 = vmax.f32 %v5762, %v5754
    %v5767 = vmax.f32 %v5763, %v5755
    %v5768 = vmax.f32 %v5764, %v5756
    %v5769 = vmax.f32 %v5765, %v5757
    %v5770 = vmax.f32 %v5766, %v5767
    %v5771 = vmax.f32 %v5768, %v5769
    %v5772 = vmax.f32 %v5770, %v5771
    %v5773 = vrot.slane %v5772, 4
    %v5774 = vmax.f32 %v5772, %v5773
    %v5775 = vrot.slane %v5774, 2
    %v5776 = vmax.f32 %v5774, %v5775
    %v5777 = vrot.slane %v5776, 1
    %v5778 = vmax.f32 %v5776, %v5777
    %vm5779 = vcmp.ge.f32.partialorder %v5742, %v5778
    %vm5780 = vcmp.ge.f32.partialorder %v5743, %v5778
    %vm5781 = vcmp.ge.f32.partialorder %v5744, %v5778
    %vm5782 = vcmp.ge.f32.partialorder %v5745, %v5778
    %vm5783 = vcmp.ge.f32.partialorder %v5746, %v5778
    %vm5784 = vcmp.ge.f32.partialorder %v5747, %v5778
    %vm5785 = vcmp.ge.f32.partialorder %v5748, %v5778
    %vm5786 = vcmp.ge.f32.partialorder %v5749, %v5778
    %vm5787 = vcmp.ge.f32.partialorder %v5750, %v5778
    %vm5788 = vcmp.ge.f32.partialorder %v5751, %v5778
    %vm5789 = vcmp.ge.f32.partialorder %v5752, %v5778
    %vm5790 = vcmp.ge.f32.partialorder %v5753, %v5778
    %vm5791 = vcmp.ge.f32.partialorder %v5754, %v5778
    %vm5792 = vcmp.ge.f32.partialorder %v5755, %v5778
    %vm5793 = vcmp.ge.f32.partialorder %v5756, %v5778
    %vm5794 = vcmp.ge.f32.partialorder %v5757, %v5778
    %v5795 = vsel %vm5779, %v5090, 128.0
    %v5796 = vsel %vm5780, %v5091, 128.0
    %v5797 = vsel %vm5781, %v5092, 128.0
    %v5798 = vsel %vm5782, %v5093, 128.0
    %v5799 = vsel %vm5783, %v5094, 128.0
    %v5800 = vsel %vm5784, %v5095, 128.0
    %v5801 = vsel %vm5785, %v5096, 128.0
    %v5802 = vsel %vm5786, %v5097, 128.0
    %v5803 = vsel %vm5787, %v5098, 128.0
    %v5804 = vsel %vm5788, %v5099, 128.0
    %v5805 = vsel %vm5789, %v5100, 128.0
    %v5806 = vsel %vm5790, %v5101, 128.0
    %v5807 = vsel %vm5791, %v5102, 128.0
    %v5808 = vsel %vm5792, %v5103, 128.0
    %v5809 = vsel %vm5793, %v5104, 128.0
    %v5810 = vsel %vm5794, %v5105, 128.0
    %v5811 = vmin.f32 %v5795, %v5799
    %v5812 = vmin.f32 %v5796, %v5800
    %v5813 = vmin.f32 %v5797, %v5801
    %v5814 = vmin.f32 %v5798, %v5802
    %v5815 = vmin.f32 %v5811, %v5803
    %v5816 = vmin.f32 %v5812, %v5804
    %v5817 = vmin.f32 %v5813, %v5805
    %v5818 = vmin.f32 %v5814, %v5806
    %v5819 = vmin.f32 %v5815, %v5807
    %v5820 = vmin.f32 %v5816, %v5808
    %v5821 = vmin.f32 %v5817, %v5809
    %v5822 = vmin.f32 %v5818, %v5810
    %v5823 = vmin.f32 %v5819, %v5820
    %v5824 = vmin.f32 %v5821, %v5822
    %v5825 = vmin.f32 %v5823, %v5824
    %v5826 = vrot.slane %v5825, 4
    %v5827 = vmin.f32 %v5825, %v5826
    %v5828 = vrot.slane %v5827, 2
    %v5829 = vmin.f32 %v5827, %v5828
    %v5830 = vrot.slane %v5829, 1
    %v5831 = vmin.f32 %v5829, %v5830
    %5832 = vst [vmem:[#allocation6 + $0x4] sm:$0x1] %v5831
    %v5833 = vld [vmem:[#allocation21 + $0x4] sm:$0x1]
    %v5834 = vadd.f32 %v5778, %v5833
    %v5835 = vlaneseq
    %v5836 = vshrl.u32 %v5835, 7
    %v5837 = vsub.s32 0, %v5836
    %v5838 = vrot.slane %v5834, %v5837
    %v5839 = vsel %vm5074, %v5838, 0.0
    %v5840 = vsel %vm5075, %v5838, 0.0
    %v5841 = vsel %vm5076, %v5838, 0.0
    %v5842 = vsel %vm5077, %v5838, 0.0
    %v5843 = vsel %vm5078, %v5838, 0.0
    %v5844 = vsel %vm5079, %v5838, 0.0
    %v5845 = vsel %vm5080, %v5838, 0.0
    %v5846 = vsel %vm5081, %v5838, 0.0
    %v5847 = vsel %vm5082, %v5838, 0.0
    %v5848 = vsel %vm5083, %v5838, 0.0
    %v5849 = vsel %vm5084, %v5838, 0.0
    %v5850 = vsel %vm5085, %v5838, 0.0
    %v5851 = vsel %vm5086, %v5838, 0.0
    %v5852 = vsel %vm5087, %v5838, 0.0
    %v5853 = vsel %vm5088, %v5838, 0.0
    %v5854 = vsel %vm5089, %v5838, 0.0
    %5855 = vadd.xlane.f32.xlu0 %v5839
    %v5856 = vpop.xlane.xlu0 %5855
    %5857 = vadd.xlane.f32.xlu0 %v5840
    %v5858 = vpop.xlane.xlu0 %5857
    %5859 = vadd.xlane.f32.xlu0 %v5841
    %v5860 = vpop.xlane.xlu0 %5859
    %5861 = vadd.xlane.f32.xlu0 %v5842
    %v5862 = vpop.xlane.xlu0 %5861
    %5863 = vadd.xlane.f32.xlu0 %v5843
    %v5864 = vpop.xlane.xlu0 %5863
    %5865 = vadd.xlane.f32.xlu0 %v5844
    %v5866 = vpop.xlane.xlu0 %5865
    %5867 = vadd.xlane.f32.xlu0 %v5845
    %v5868 = vpop.xlane.xlu0 %5867
    %5869 = vadd.xlane.f32.xlu0 %v5846
    %v5870 = vpop.xlane.xlu0 %5869
    %5871 = vadd.xlane.f32.xlu0 %v5847
    %v5872 = vpop.xlane.xlu0 %5871
    %5873 = vadd.xlane.f32.xlu0 %v5848
    %v5874 = vpop.xlane.xlu0 %5873
    %5875 = vadd.xlane.f32.xlu0 %v5849
    %v5876 = vpop.xlane.xlu0 %5875
    %5877 = vadd.xlane.f32.xlu0 %v5850
    %v5878 = vpop.xlane.xlu0 %5877
    %5879 = vadd.xlane.f32.xlu0 %v5851
    %v5880 = vpop.xlane.xlu0 %5879
    %5881 = vadd.xlane.f32.xlu0 %v5852
    %v5882 = vpop.xlane.xlu0 %5881
    %5883 = vadd.xlane.f32.xlu0 %v5853
    %v5884 = vpop.xlane.xlu0 %5883
    %5885 = vadd.xlane.f32.xlu0 %v5854
    %v5886 = vpop.xlane.xlu0 %5885
    %v5887 = vadd.f32 %v5041, %v5856
    %v5888 = vadd.f32 %v5042, %v5858
    %v5889 = vadd.f32 %v5043, %v5860
    %v5890 = vadd.f32 %v5044, %v5862
    %v5891 = vadd.f32 %v5045, %v5864
    %v5892 = vadd.f32 %v5046, %v5866
    %v5893 = vadd.f32 %v5047, %v5868
    %v5894 = vadd.f32 %v5048, %v5870
    %v5895 = vadd.f32 %v5049, %v5872
    %v5896 = vadd.f32 %v5050, %v5874
    %v5897 = vadd.f32 %v5051, %v5876
    %v5898 = vadd.f32 %v5052, %v5878
    %v5899 = vadd.f32 %v5053, %v5880
    %v5900 = vadd.f32 %v5054, %v5882
    %v5901 = vadd.f32 %v5055, %v5884
    %v5902 = vadd.f32 %v5056, %v5886
    %v5903 = vmax.f32 %v5887, %v5891
    %v5904 = vmax.f32 %v5888, %v5892
    %v5905 = vmax.f32 %v5889, %v5893
    %v5906 = vmax.f32 %v5890, %v5894
    %v5907 = vmax.f32 %v5903, %v5895
    %v5908 = vmax.f32 %v5904, %v5896
    %v5909 = vmax.f32 %v5905, %v5897
    %v5910 = vmax.f32 %v5906, %v5898
    %v5911 = vmax.f32 %v5907, %v5899
    %v5912 = vmax.f32 %v5908, %v5900
    %v5913 = vmax.f32 %v5909, %v5901
    %v5914 = vmax.f32 %v5910, %v5902
    %v5915 = vmax.f32 %v5911, %v5912
    %v5916 = vmax.f32 %v5913, %v5914
    %v5917 = vmax.f32 %v5915, %v5916
    %v5918 = vrot.slane %v5917, 4
    %v5919 = vmax.f32 %v5917, %v5918
    %v5920 = vrot.slane %v5919, 2
    %v5921 = vmax.f32 %v5919, %v5920
    %v5922 = vrot.slane %v5921, 1
    %v5923 = vmax.f32 %v5921, %v5922
    %vm5924 = vcmp.ge.f32.partialorder %v5887, %v5923
    %vm5925 = vcmp.ge.f32.partialorder %v5888, %v5923
    %vm5926 = vcmp.ge.f32.partialorder %v5889, %v5923
    %vm5927 = vcmp.ge.f32.partialorder %v5890, %v5923
    %vm5928 = vcmp.ge.f32.partialorder %v5891, %v5923
    %vm5929 = vcmp.ge.f32.partialorder %v5892, %v5923
    %vm5930 = vcmp.ge.f32.partialorder %v5893, %v5923
    %vm5931 = vcmp.ge.f32.partialorder %v5894, %v5923
    %vm5932 = vcmp.ge.f32.partialorder %v5895, %v5923
    %vm5933 = vcmp.ge.f32.partialorder %v5896, %v5923
    %vm5934 = vcmp.ge.f32.partialorder %v5897, %v5923
    %vm5935 = vcmp.ge.f32.partialorder %v5898, %v5923
    %vm5936 = vcmp.ge.f32.partialorder %v5899, %v5923
    %vm5937 = vcmp.ge.f32.partialorder %v5900, %v5923
    %vm5938 = vcmp.ge.f32.partialorder %v5901, %v5923
    %vm5939 = vcmp.ge.f32.partialorder %v5902, %v5923
    %v5940 = vsel %vm5924, %v5090, 128.0
    %v5941 = vsel %vm5925, %v5091, 128.0
    %v5942 = vsel %vm5926, %v5092, 128.0
    %v5943 = vsel %vm5927, %v5093, 128.0
    %v5944 = vsel %vm5928, %v5094, 128.0
    %v5945 = vsel %vm5929, %v5095, 128.0
    %v5946 = vsel %vm5930, %v5096, 128.0
    %v5947 = vsel %vm5931, %v5097, 128.0
    %v5948 = vsel %vm5932, %v5098, 128.0
    %v5949 = vsel %vm5933, %v5099, 128.0
    %v5950 = vsel %vm5934, %v5100, 128.0
    %v5951 = vsel %vm5935, %v5101, 128.0
    %v5952 = vsel %vm5936, %v5102, 128.0
    %v5953 = vsel %vm5937, %v5103, 128.0
    %v5954 = vsel %vm5938, %v5104, 128.0
    %v5955 = vsel %vm5939, %v5105, 128.0
    %v5956 = vmin.f32 %v5940, %v5944
    %v5957 = vmin.f32 %v5941, %v5945
    %v5958 = vmin.f32 %v5942, %v5946
    %v5959 = vmin.f32 %v5943, %v5947
    %v5960 = vmin.f32 %v5956, %v5948
    %v5961 = vmin.f32 %v5957, %v5949
    %v5962 = vmin.f32 %v5958, %v5950
    %v5963 = vmin.f32 %v5959, %v5951
    %v5964 = vmin.f32 %v5960, %v5952
    %v5965 = vmin.f32 %v5961, %v5953
    %v5966 = vmin.f32 %v5962, %v5954
    %v5967 = vmin.f32 %v5963, %v5955
    %v5968 = vmin.f32 %v5964, %v5965
    %v5969 = vmin.f32 %v5966, %v5967
    %v5970 = vmin.f32 %v5968, %v5969
    %v5971 = vrot.slane %v5970, 4
    %v5972 = vmin.f32 %v5970, %v5971
    %v5973 = vrot.slane %v5972, 2
    %v5974 = vmin.f32 %v5972, %v5973
    %v5975 = vrot.slane %v5974, 1
    %v5976 = vmin.f32 %v5974, %v5975
    %5977 = vst [vmem:[#allocation6 + $0x5] sm:$0x1] %v5976
    %v5978 = vld [vmem:[#allocation21 + $0x5] sm:$0x1]
    %v5979 = vadd.f32 %v5923, %v5978
    %v5980 = vlaneseq
    %v5981 = vshrl.u32 %v5980, 7
    %v5982 = vsub.s32 0, %v5981
    %v5983 = vrot.slane %v5979, %v5982
    %v5984 = vsel %vm5074, %v5983, 0.0
    %v5985 = vsel %vm5075, %v5983, 0.0
    %v5986 = vsel %vm5076, %v5983, 0.0
    %v5987 = vsel %vm5077, %v5983, 0.0
    %v5988 = vsel %vm5078, %v5983, 0.0
    %v5989 = vsel %vm5079, %v5983, 0.0
    %v5990 = vsel %vm5080, %v5983, 0.0
    %v5991 = vsel %vm5081, %v5983, 0.0
    %v5992 = vsel %vm5082, %v5983, 0.0
    %v5993 = vsel %vm5083, %v5983, 0.0
    %v5994 = vsel %vm5084, %v5983, 0.0
    %v5995 = vsel %vm5085, %v5983, 0.0
    %v5996 = vsel %vm5086, %v5983, 0.0
    %v5997 = vsel %vm5087, %v5983, 0.0
    %v5998 = vsel %vm5088, %v5983, 0.0
    %v5999 = vsel %vm5089, %v5983, 0.0
    %6000 = vadd.xlane.f32.xlu0 %v5984
    %v6001 = vpop.xlane.xlu0 %6000
    %6002 = vadd.xlane.f32.xlu0 %v5985
    %v6003 = vpop.xlane.xlu0 %6002
    %6004 = vadd.xlane.f32.xlu0 %v5986
    %v6005 = vpop.xlane.xlu0 %6004
    %6006 = vadd.xlane.f32.xlu0 %v5987
    %v6007 = vpop.xlane.xlu0 %6006
    %6008 = vadd.xlane.f32.xlu0 %v5988
    %v6009 = vpop.xlane.xlu0 %6008
    %6010 = vadd.xlane.f32.xlu0 %v5989
    %v6011 = vpop.xlane.xlu0 %6010
    %6012 = vadd.xlane.f32.xlu0 %v5990
    %v6013 = vpop.xlane.xlu0 %6012
    %6014 = vadd.xlane.f32.xlu0 %v5991
    %v6015 = vpop.xlane.xlu0 %6014
    %6016 = vadd.xlane.f32.xlu0 %v5992
    %v6017 = vpop.xlane.xlu0 %6016
    %6018 = vadd.xlane.f32.xlu0 %v5993
    %v6019 = vpop.xlane.xlu0 %6018
    %6020 = vadd.xlane.f32.xlu0 %v5994
    %v6021 = vpop.xlane.xlu0 %6020
    %6022 = vadd.xlane.f32.xlu0 %v5995
    %v6023 = vpop.xlane.xlu0 %6022
    %6024 = vadd.xlane.f32.xlu0 %v5996
    %v6025 = vpop.xlane.xlu0 %6024
    %6026 = vadd.xlane.f32.xlu0 %v5997
    %v6027 = vpop.xlane.xlu0 %6026
    %6028 = vadd.xlane.f32.xlu0 %v5998
    %v6029 = vpop.xlane.xlu0 %6028
    %6030 = vadd.xlane.f32.xlu0 %v5999
    %v6031 = vpop.xlane.xlu0 %6030
    %v6032 = vadd.f32 %v5041, %v6001
    %v6033 = vadd.f32 %v5042, %v6003
    %v6034 = vadd.f32 %v5043, %v6005
    %v6035 = vadd.f32 %v5044, %v6007
    %v6036 = vadd.f32 %v5045, %v6009
    %v6037 = vadd.f32 %v5046, %v6011
    %v6038 = vadd.f32 %v5047, %v6013
    %v6039 = vadd.f32 %v5048, %v6015
    %v6040 = vadd.f32 %v5049, %v6017
    %v6041 = vadd.f32 %v5050, %v6019
    %v6042 = vadd.f32 %v5051, %v6021
    %v6043 = vadd.f32 %v5052, %v6023
    %v6044 = vadd.f32 %v5053, %v6025
    %v6045 = vadd.f32 %v5054, %v6027
    %v6046 = vadd.f32 %v5055, %v6029
    %v6047 = vadd.f32 %v5056, %v6031
    %v6048 = vmax.f32 %v6032, %v6036
    %v6049 = vmax.f32 %v6033, %v6037
    %v6050 = vmax.f32 %v6034, %v6038
    %v6051 = vmax.f32 %v6035, %v6039
    %v6052 = vmax.f32 %v6048, %v6040
    %v6053 = vmax.f32 %v6049, %v6041
    %v6054 = vmax.f32 %v6050, %v6042
    %v6055 = vmax.f32 %v6051, %v6043
    %v6056 = vmax.f32 %v6052, %v6044
    %v6057 = vmax.f32 %v6053, %v6045
    %v6058 = vmax.f32 %v6054, %v6046
    %v6059 = vmax.f32 %v6055, %v6047
    %v6060 = vmax.f32 %v6056, %v6057
    %v6061 = vmax.f32 %v6058, %v6059
    %v6062 = vmax.f32 %v6060, %v6061
    %v6063 = vrot.slane %v6062, 4
    %v6064 = vmax.f32 %v6062, %v6063
    %v6065 = vrot.slane %v6064, 2
    %v6066 = vmax.f32 %v6064, %v6065
    %v6067 = vrot.slane %v6066, 1
    %v6068 = vmax.f32 %v6066, %v6067
    %vm6069 = vcmp.ge.f32.partialorder %v6032, %v6068
    %vm6070 = vcmp.ge.f32.partialorder %v6033, %v6068
    %vm6071 = vcmp.ge.f32.partialorder %v6034, %v6068
    %vm6072 = vcmp.ge.f32.partialorder %v6035, %v6068
    %vm6073 = vcmp.ge.f32.partialorder %v6036, %v6068
    %vm6074 = vcmp.ge.f32.partialorder %v6037, %v6068
    %vm6075 = vcmp.ge.f32.partialorder %v6038, %v6068
    %vm6076 = vcmp.ge.f32.partialorder %v6039, %v6068
    %vm6077 = vcmp.ge.f32.partialorder %v6040, %v6068
    %vm6078 = vcmp.ge.f32.partialorder %v6041, %v6068
    %vm6079 = vcmp.ge.f32.partialorder %v6042, %v6068
    %vm6080 = vcmp.ge.f32.partialorder %v6043, %v6068
    %vm6081 = vcmp.ge.f32.partialorder %v6044, %v6068
    %vm6082 = vcmp.ge.f32.partialorder %v6045, %v6068
    %vm6083 = vcmp.ge.f32.partialorder %v6046, %v6068
    %vm6084 = vcmp.ge.f32.partialorder %v6047, %v6068
    %v6085 = vsel %vm6069, %v5090, 128.0
    %v6086 = vsel %vm6070, %v5091, 128.0
    %v6087 = vsel %vm6071, %v5092, 128.0
    %v6088 = vsel %vm6072, %v5093, 128.0
    %v6089 = vsel %vm6073, %v5094, 128.0
    %v6090 = vsel %vm6074, %v5095, 128.0
    %v6091 = vsel %vm6075, %v5096, 128.0
    %v6092 = vsel %vm6076, %v5097, 128.0
    %v6093 = vsel %vm6077, %v5098, 128.0
    %v6094 = vsel %vm6078, %v5099, 128.0
    %v6095 = vsel %vm6079, %v5100, 128.0
    %v6096 = vsel %vm6080, %v5101, 128.0
    %v6097 = vsel %vm6081, %v5102, 128.0
    %v6098 = vsel %vm6082, %v5103, 128.0
    %v6099 = vsel %vm6083, %v5104, 128.0
    %v6100 = vsel %vm6084, %v5105, 128.0
    %v6101 = vmin.f32 %v6085, %v6089
    %v6102 = vmin.f32 %v6086, %v6090
    %v6103 = vmin.f32 %v6087, %v6091
    %v6104 = vmin.f32 %v6088, %v6092
    %v6105 = vmin.f32 %v6101, %v6093
    %v6106 = vmin.f32 %v6102, %v6094
    %v6107 = vmin.f32 %v6103, %v6095
    %v6108 = vmin.f32 %v6104, %v6096
    %v6109 = vmin.f32 %v6105, %v6097
    %v6110 = vmin.f32 %v6106, %v6098
    %v6111 = vmin.f32 %v6107, %v6099
    %v6112 = vmin.f32 %v6108, %v6100
    %v6113 = vmin.f32 %v6109, %v6110
    %v6114 = vmin.f32 %v6111, %v6112
    %v6115 = vmin.f32 %v6113, %v6114
    %v6116 = vrot.slane %v6115, 4
    %v6117 = vmin.f32 %v6115, %v6116
    %v6118 = vrot.slane %v6117, 2
    %v6119 = vmin.f32 %v6117, %v6118
    %v6120 = vrot.slane %v6119, 1
    %v6121 = vmin.f32 %v6119, %v6120
    %6122 = vst [vmem:[#allocation6 + $0x6] sm:$0x1] %v6121
    %v6123 = vld [vmem:[#allocation21 + $0x6] sm:$0x1]
    %v6124 = vadd.f32 %v6068, %v6123
    %v6125 = vlaneseq
    %v6126 = vshrl.u32 %v6125, 7
    %v6127 = vsub.s32 0, %v6126
    %v6128 = vrot.slane %v6124, %v6127
    %v6129 = vsel %vm5074, %v6128, 0.0
    %v6130 = vsel %vm5075, %v6128, 0.0
    %v6131 = vsel %vm5076, %v6128, 0.0
    %v6132 = vsel %vm5077, %v6128, 0.0
    %v6133 = vsel %vm5078, %v6128, 0.0
    %v6134 = vsel %vm5079, %v6128, 0.0
    %v6135 = vsel %vm5080, %v6128, 0.0
    %v6136 = vsel %vm5081, %v6128, 0.0
    %v6137 = vsel %vm5082, %v6128, 0.0
    %v6138 = vsel %vm5083, %v6128, 0.0
    %v6139 = vsel %vm5084, %v6128, 0.0
    %v6140 = vsel %vm5085, %v6128, 0.0
    %v6141 = vsel %vm5086, %v6128, 0.0
    %v6142 = vsel %vm5087, %v6128, 0.0
    %v6143 = vsel %vm5088, %v6128, 0.0
    %v6144 = vsel %vm5089, %v6128, 0.0
    %6145 = vadd.xlane.f32.xlu0 %v6129
    %v6146 = vpop.xlane.xlu0 %6145
    %6147 = vadd.xlane.f32.xlu0 %v6130
    %v6148 = vpop.xlane.xlu0 %6147
    %6149 = vadd.xlane.f32.xlu0 %v6131
    %v6150 = vpop.xlane.xlu0 %6149
    %6151 = vadd.xlane.f32.xlu0 %v6132
    %v6152 = vpop.xlane.xlu0 %6151
    %6153 = vadd.xlane.f32.xlu0 %v6133
    %v6154 = vpop.xlane.xlu0 %6153
    %6155 = vadd.xlane.f32.xlu0 %v6134
    %v6156 = vpop.xlane.xlu0 %6155
    %6157 = vadd.xlane.f32.xlu0 %v6135
    %v6158 = vpop.xlane.xlu0 %6157
    %6159 = vadd.xlane.f32.xlu0 %v6136
    %v6160 = vpop.xlane.xlu0 %6159
    %6161 = vadd.xlane.f32.xlu0 %v6137
    %v6162 = vpop.xlane.xlu0 %6161
    %6163 = vadd.xlane.f32.xlu0 %v6138
    %v6164 = vpop.xlane.xlu0 %6163
    %6165 = vadd.xlane.f32.xlu0 %v6139
    %v6166 = vpop.xlane.xlu0 %6165
    %6167 = vadd.xlane.f32.xlu0 %v6140
    %v6168 = vpop.xlane.xlu0 %6167
    %6169 = vadd.xlane.f32.xlu0 %v6141
    %v6170 = vpop.xlane.xlu0 %6169
    %6171 = vadd.xlane.f32.xlu0 %v6142
    %v6172 = vpop.xlane.xlu0 %6171
    %6173 = vadd.xlane.f32.xlu0 %v6143
    %v6174 = vpop.xlane.xlu0 %6173
    %6175 = vadd.xlane.f32.xlu0 %v6144
    %v6176 = vpop.xlane.xlu0 %6175
    %v6177 = vadd.f32 %v5041, %v6146
    %v6178 = vadd.f32 %v5042, %v6148
    %v6179 = vadd.f32 %v5043, %v6150
    %v6180 = vadd.f32 %v5044, %v6152
    %v6181 = vadd.f32 %v5045, %v6154
    %v6182 = vadd.f32 %v5046, %v6156
    %v6183 = vadd.f32 %v5047, %v6158
    %v6184 = vadd.f32 %v5048, %v6160
    %v6185 = vadd.f32 %v5049, %v6162
    %v6186 = vadd.f32 %v5050, %v6164
    %v6187 = vadd.f32 %v5051, %v6166
    %v6188 = vadd.f32 %v5052, %v6168
    %v6189 = vadd.f32 %v5053, %v6170
    %v6190 = vadd.f32 %v5054, %v6172
    %v6191 = vadd.f32 %v5055, %v6174
    %v6192 = vadd.f32 %v5056, %v6176
    %v6193 = vmax.f32 %v6177, %v6181
    %v6194 = vmax.f32 %v6178, %v6182
    %v6195 = vmax.f32 %v6179, %v6183
    %v6196 = vmax.f32 %v6180, %v6184
    %v6197 = vmax.f32 %v6193, %v6185
    %v6198 = vmax.f32 %v6194, %v6186
    %v6199 = vmax.f32 %v6195, %v6187
    %v6200 = vmax.f32 %v6196, %v6188
    %v6201 = vmax.f32 %v6197, %v6189
    %v6202 = vmax.f32 %v6198, %v6190
    %v6203 = vmax.f32 %v6199, %v6191
    %v6204 = vmax.f32 %v6200, %v6192
    %v6205 = vmax.f32 %v6201, %v6202
    %v6206 = vmax.f32 %v6203, %v6204
    %v6207 = vmax.f32 %v6205, %v6206
    %v6208 = vrot.slane %v6207, 4
    %v6209 = vmax.f32 %v6207, %v6208
    %v6210 = vrot.slane %v6209, 2
    %v6211 = vmax.f32 %v6209, %v6210
    %v6212 = vrot.slane %v6211, 1
    %v6213 = vmax.f32 %v6211, %v6212
    %vm6214 = vcmp.ge.f32.partialorder %v6177, %v6213
    %vm6215 = vcmp.ge.f32.partialorder %v6178, %v6213
    %vm6216 = vcmp.ge.f32.partialorder %v6179, %v6213
    %vm6217 = vcmp.ge.f32.partialorder %v6180, %v6213
    %vm6218 = vcmp.ge.f32.partialorder %v6181, %v6213
    %vm6219 = vcmp.ge.f32.partialorder %v6182, %v6213
    %vm6220 = vcmp.ge.f32.partialorder %v6183, %v6213
    %vm6221 = vcmp.ge.f32.partialorder %v6184, %v6213
    %vm6222 = vcmp.ge.f32.partialorder %v6185, %v6213
    %vm6223 = vcmp.ge.f32.partialorder %v6186, %v6213
    %vm6224 = vcmp.ge.f32.partialorder %v6187, %v6213
    %vm6225 = vcmp.ge.f32.partialorder %v6188, %v6213
    %vm6226 = vcmp.ge.f32.partialorder %v6189, %v6213
    %vm6227 = vcmp.ge.f32.partialorder %v6190, %v6213
    %vm6228 = vcmp.ge.f32.partialorder %v6191, %v6213
    %vm6229 = vcmp.ge.f32.partialorder %v6192, %v6213
    %v6230 = vsel %vm6214, %v5090, 128.0
    %v6231 = vsel %vm6215, %v5091, 128.0
    %v6232 = vsel %vm6216, %v5092, 128.0
    %v6233 = vsel %vm6217, %v5093, 128.0
    %v6234 = vsel %vm6218, %v5094, 128.0
    %v6235 = vsel %vm6219, %v5095, 128.0
    %v6236 = vsel %vm6220, %v5096, 128.0
    %v6237 = vsel %vm6221, %v5097, 128.0
    %v6238 = vsel %vm6222, %v5098, 128.0
    %v6239 = vsel %vm6223, %v5099, 128.0
    %v6240 = vsel %vm6224, %v5100, 128.0
    %v6241 = vsel %vm6225, %v5101, 128.0
    %v6242 = vsel %vm6226, %v5102, 128.0
    %v6243 = vsel %vm6227, %v5103, 128.0
    %v6244 = vsel %vm6228, %v5104, 128.0
    %v6245 = vsel %vm6229, %v5105, 128.0
    %v6246 = vmin.f32 %v6230, %v6234
    %v6247 = vmin.f32 %v6231, %v6235
    %v6248 = vmin.f32 %v6232, %v6236
    %v6249 = vmin.f32 %v6233, %v6237
    %v6250 = vmin.f32 %v6246, %v6238
    %v6251 = vmin.f32 %v6247, %v6239
    %v6252 = vmin.f32 %v6248, %v6240
    %v6253 = vmin.f32 %v6249, %v6241
    %v6254 = vmin.f32 %v6250, %v6242
    %v6255 = vmin.f32 %v6251, %v6243
    %v6256 = vmin.f32 %v6252, %v6244
    %v6257 = vmin.f32 %v6253, %v6245
    %v6258 = vmin.f32 %v6254, %v6255
    %v6259 = vmin.f32 %v6256, %v6257
    %v6260 = vmin.f32 %v6258, %v6259
    %v6261 = vrot.slane %v6260, 4
    %v6262 = vmin.f32 %v6260, %v6261
    %v6263 = vrot.slane %v6262, 2
    %v6264 = vmin.f32 %v6262, %v6263
    %v6265 = vrot.slane %v6264, 1
    %v6266 = vmin.f32 %v6264, %v6265
    %6267 = vst [vmem:[#allocation6 + $0x7] sm:$0x1] %v6266
    %v6268 = vld [vmem:[#allocation21 + $0x7] sm:$0x1]
    %v6269 = vadd.f32 %v6213, %v6268
    %v6270 = vld [vmem:[%s11] sm:$0x1]
    %v6271 = vadd.f32 %v6269, %v6270
    %vm6272 = vcmask 1040384
    %v6273 = vsel %vm6272, %v6271, -inf
    %6274 = vmax.xlane.f32.xlu0 %v6273
    %v6275 = vpop.xlane.xlu0 %6274
    %vm6276 = vcmp.ge.f32.partialorder %v6271, %v6275
    %v6277 = vsel %vm6276, %v5106, 128.0
    %v6278 = vsel %vm6272, %v6277, inf
    %6279 = vmin.xlane.f32.xlu0 %v6278
    %v6280 = vpop.xlane.xlu0 %6279
    %v6281 = vcvt.f32.s32.to.zero.pseudo %v6280
    %6282 = vst [vmem:[%s14 + $0x7] sm:$0x1] %v6281
    %v6283 = vld [vmem:[#allocation6 + $0x7] sm:$0x1]
    %vm6284 = vcmp.eq.f32.partialorder %v5106, %v6280
    %v6285 = vsel %vm6284, %v6283, 0.0
    %v6286 = vsel %vm6272, %v6285, 0.0
    %6287 = vadd.xlane.f32.xlu0 %v6286
    %v6288 = vpop.xlane.xlu0 %6287
    %v6289 = vcvt.f32.s32.to.zero.pseudo %v6288
    %6290 = vst [vmem:[%s14 + $0x6] sm:$0x1] %v6289
    %v6291 = vld [vmem:[#allocation6 + $0x6] sm:$0x1]
    %vm6292 = vcmp.eq.f32.partialorder %v5106, %v6288
    %v6293 = vsel %vm6292, %v6291, 0.0
    %v6294 = vsel %vm6272, %v6293, 0.0
    %6295 = vadd.xlane.f32.xlu0 %v6294
    %v6296 = vpop.xlane.xlu0 %6295
    %v6297 = vcvt.f32.s32.to.zero.pseudo %v6296
    %6298 = vst [vmem:[%s14 + $0x5] sm:$0x1] %v6297
    %v6299 = vld [vmem:[#allocation6 + $0x5] sm:$0x1]
    %vm6300 = vcmp.eq.f32.partialorder %v5106, %v6296
    %v6301 = vsel %vm6300, %v6299, 0.0
    %v6302 = vsel %vm6272, %v6301, 0.0
    %6303 = vadd.xlane.f32.xlu0 %v6302
    %v6304 = vpop.xlane.xlu0 %6303
    %v6305 = vcvt.f32.s32.to.zero.pseudo %v6304
    %6306 = vst [vmem:[%s14 + $0x4] sm:$0x1] %v6305
    %v6307 = vld [vmem:[#allocation6 + $0x4] sm:$0x1]
    %vm6308 = vcmp.eq.f32.partialorder %v5106, %v6304
    %v6309 = vsel %vm6308, %v6307, 0.0
    %v6310 = vsel %vm6272, %v6309, 0.0
    %6311 = vadd.xlane.f32.xlu0 %v6310
    %v6312 = vpop.xlane.xlu0 %6311
    %v6313 = vcvt.f32.s32.to.zero.pseudo %v6312
    %6314 = vst [vmem:[%s14 + $0x3] sm:$0x1] %v6313
    %v6315 = vld [vmem:[#allocation6 + $0x3] sm:$0x1]
    %vm6316 = vcmp.eq.f32.partialorder %v5106, %v6312
    %v6317 = vsel %vm6316, %v6315, 0.0
    %v6318 = vsel %vm6272, %v6317, 0.0
    %6319 = vadd.xlane.f32.xlu0 %v6318
    %v6320 = vpop.xlane.xlu0 %6319
    %v6321 = vcvt.f32.s32.to.zero.pseudo %v6320
    %6322 = vst [vmem:[%s14 + $0x2] sm:$0x1] %v6321
    %v6323 = vld [vmem:[#allocation6 + $0x2] sm:$0x1]
    %vm6324 = vcmp.eq.f32.partialorder %v5106, %v6320
    %v6325 = vsel %vm6324, %v6323, 0.0
    %v6326 = vsel %vm6272, %v6325, 0.0
    %6327 = vadd.xlane.f32.xlu0 %v6326
    %v6328 = vpop.xlane.xlu0 %6327
    %v6329 = vcvt.f32.s32.to.zero.pseudo %v6328
    %6330 = vst [vmem:[%s14 + $0x1] sm:$0x1] %v6329
    %v6331 = vld [vmem:[#allocation6 + $0x1] sm:$0x1]
    %vm6332 = vcmp.eq.f32.partialorder %v5106, %v6328
    %v6333 = vsel %vm6332, %v6331, 0.0
    %v6334 = vsel %vm6272, %v6333, 0.0
    %6335 = vadd.xlane.f32.xlu0 %v6334
    %v6336 = vpop.xlane.xlu0 %6335
    %v6337 = vcvt.f32.s32.to.zero.pseudo %v6336
    %6338 = vst [vmem:[%s14] sm:$0x1] %v6337
    %v6339 = vld [vmem:[#allocation6] sm:$0x1]
    %vm6340 = vcmp.eq.f32.partialorder %v5106, %v6336
    %v6341 = vsel %vm6340, %v6339, 0.0
    %v6342 = vsel %vm6272, %v6341, 0.0
    %6343 = vadd.xlane.f32.xlu0 %v6342
    %v6344 = vpop.xlane.xlu0 %6343
    %6345 = vst [vmem:[%s15] sm:$0xff] 0.0
    %6346 = vst [vmem:[%s15] sm:$0x1] %v6344
    %6347 = vst [vmem:[%s15 + $0x1] sm:$0x1] %v6275
    // Predicated region
    $region86: #{_forward_device.1} parent=1 // pred_check
      _
    $region87: #{_forward_device.1} parent=1 // pred_check_branch
      %6349 = sbr.rel (0) target = $region89
    $region88: #{_forward_device.1} parent=1 // pred_region
      %s6351 = ssub.s32 128, 128
      %6352 = vsyncadd [#allocation9], %s6351
      %s6354 = sshll.u32 [#allocation21], 4
      %s6355 = int_to_ptr.vmem [resolvable:$true] %s6354
      %6357 = dma.vmem_to_hbm [thread:$0]  %s6355, 128, %s13, [#allocation9]
    $region89: #{_forward_device.1} parent=1 // pred_fallthru
      _
    // Predicated region
    $region90: #{_forward_device.1} parent=1 // pred_check
      _
    $region91: #{_forward_device.1} parent=1 // pred_check_branch
      %6359 = sbr.rel (0) target = $region93
    $region92: #{_forward_device.1} parent=1 // pred_region
      _
    $region93: #{_forward_device.1} parent=1 // pred_fallthru
      _
    // Predicated region
    $region94: #{_forward_device.1} parent=1 // pred_check
      _
    $region95: #{_forward_device.1} parent=1 // pred_check_branch
      %6361 = sbr.rel (0) target = $region97
    $region96: #{_forward_device.1} parent=1 // pred_region
      _
    $region97: #{_forward_device.1} parent=1 // pred_fallthru
      _
    // Predicated region
    $region98: #{_forward_device.1} parent=1 // pred_check
      _
    $region99: #{_forward_device.1} parent=1 // pred_check_branch
      %6363 = sbr.rel (0) target = $region101
    $region100: #{_forward_device.1} parent=1 // pred_region
      %6364 = dma.done [#allocation9], 128
    $region101: #{_forward_device.1} parent=1 // pred_fallthru
      _
    // Predicated region
    $region102: #{_forward_device.1} parent=1 // pred_check
      _
    $region103: #{_forward_device.1} parent=1 // pred_check_branch
      %6366 = sbr.rel (0) target = $region105
    $region104: #{_forward_device.1} parent=1 // pred_region
      _
    $region105: #{_forward_device.1} parent=1 // pred_fallthru
      _
    // Predicated region
    $region106: #{_forward_device.1} parent=1 // pred_check
      _
    $region107: #{_forward_device.1} parent=1 // pred_check_branch
      %6368 = sbr.rel (0) target = $region109
    $region108: #{_forward_device.1} parent=1 // pred_region
      _
    $region109: #{_forward_device.1} parent=1 // pred_fallthru
      _
    %6369 = vsyncpa [#allocation8], 1
    %6370 = vsyncpa [#allocation11], 1
    %6371 = vsyncpa [#allocation14], 1
    %6372 = vsyncpa [#allocation17], 1
    %6373 = vsyncpa [#allocation20], 1
    %6374 = vsyncpa [#allocation9], 1

</llo_original>
